<compile_context>
chip_gen: v7x
topology: tpu7x:2x2x1
jax: 0.10.0
libtpu: 0.0.40
codegen_flags: <defaults>
</compile_context>

<pallas_src>
import functools

import jax
import jax.numpy as jnp
import numpy as np
from jax.experimental import pallas as pl
from jax.experimental.pallas import tpu as pltpu


def _round_up(x, m):
    return ((x + m - 1) // m) * m


# ----------------------------------------------------------------------------- kernel
def _bilstm_kernel(x_ref, m_ref, wihf_ref, wihb_ref, whh_ref, b_ref, o_ref,
                   *, hidden_padded, seq_len, unroll):
    """Fused bidirectional single-layer LSTM over padded sequences, batch on lanes.

    x_ref : (S, TB, Dp)    time-major inputs (already embedded + concatenated)
    m_ref : (S, 1, TB)     1.0 = valid, 0.0 = padding
    wihf  : (8Hp, Dp)      input weights, forward-direction rows only (bwd rows zero)
    wihb  : (8Hp, Dp)      input weights, backward-direction rows only (fwd rows zero)
    whh   : (8Hp, 2Hp)     block-diagonal fused recurrent weights (cols: [h_fwd | h_bwd])
    b     : (8Hp, 1)       fused bias (b_ih + b_hh per direction), f32
    o_ref : (S, 2Hp, TB)   output rows [fwd Hp | bwd Hp], zeros at padded positions

    Gate-major row order (Hp rows each): [i_f i_b f_f f_b g_f g_b o_f o_b].
    """
    Hp = hidden_padded
    S = seq_len
    TB = x_ref.shape[1]
    f32 = jnp.float32

    # Weights stay resident across the whole serial loop.
    wih_f = wihf_ref[...]
    wih_b = wihb_ref[...]
    whh = whh_ref[...]
    mx_dtype = whh.dtype            # f32 (default) or bf16 for the single-pass MXU path

    # Hoisted loop invariants (broadcasts are not CSE'd by JAX -> do them once).
    bias = jnp.broadcast_to(b_ref[...].astype(f32), (8 * Hp, TB))
    row_2h = jax.lax.broadcasted_iota(jnp.int32, (2 * Hp, TB), 0)
    is_fwd_row = row_2h < Hp        # (2Hp, TB) bool: True on forward-direction rows

    def step(s, carry):
        h, c = carry                # (2Hp, TB) f32 each, rows = [fwd | bwd]
        tf = s                      # forward-direction time index
        tb_ = S - 1 - s             # backward-direction time index

        x_f = x_ref[pl.ds(tf, 1)][0].astype(mx_dtype)    # (TB, Dp)
        x_b = x_ref[pl.ds(tb_, 1)][0].astype(mx_dtype)

        # Input + recurrent projections, all four gates, both directions, batch on lanes.
        gates = (
            jnp.dot(wih_f, x_f.T, preferred_element_type=f32)
            + jnp.dot(wih_b, x_b.T, preferred_element_type=f32)
            + jnp.dot(whh, h.astype(mx_dtype), preferred_element_type=f32)
            + bias
        )                                                # (8Hp, TB)

        # Gate extraction = sublane-aligned whole-vreg row slices (lane-dense).
        i = jax.nn.sigmoid(gates[0:2 * Hp])
        f = jax.nn.sigmoid(gates[2 * Hp:4 * Hp])
        g = jnp.tanh(gates[4 * Hp:6 * Hp])
        o = jax.nn.sigmoid(gates[6 * Hp:8 * Hp])
        c_new = f * c + i * g
        h_new = o * jnp.tanh(c_new)

        m_f = m_ref[pl.ds(tf, 1)][0]                     # (1, TB) f32
        m_b = m_ref[pl.ds(tb_, 1)][0]
        valid = jnp.where(is_fwd_row, m_f, m_b) > 0.5    # (2Hp, TB) bool

        # Masked state update == packed-sequence semantics (padding is a suffix).
        h_upd = jnp.where(valid, h_new, h)
        c_upd = jnp.where(valid, c_new, c)

        # pad_packed_sequence zero-fills padded positions; stores are full-lane width.
        out_f = jnp.where(valid[0:Hp], h_upd[0:Hp], 0.0)
        out_b = jnp.where(valid[Hp:2 * Hp], h_upd[Hp:2 * Hp], 0.0)
        o_ref[pl.ds(tf, 1), 0:Hp, :] = out_f[None].astype(o_ref.dtype)
        o_ref[pl.ds(tb_, 1), Hp:2 * Hp, :] = out_b[None].astype(o_ref.dtype)
        return h_upd, c_upd

    h0 = jnp.zeros((2 * Hp, TB), f32)
    c0 = jnp.zeros((2 * Hp, TB), f32)
    jax.lax.fori_loop(0, S, step, (h0, c0), unroll=unroll)


# ----------------------------------------------------------------------------- wrapper
def _bilstm_pallas(xs_t, mask_t, packed, *, tb=128):
    """xs_t: (S, B, Din) f32 time-major, mask_t: (S, B) bool.  Returns (B, S, 2H) like
    PyTorch bidirectional LSTM output after pad_packed_sequence (T == S here)."""
    S, B, Din = xs_t.shape
    H, Hp, Dp = packed["hidden"], packed["hidden_padded"], packed["din_padded"]

    # Lane-dense batch tile.  tb=128 fills a v5e vreg/MXU pass; prefer tb=256 on
    # v6e/v7x for large batches and keep Bp // tb >= 2 on v7x so both TCs get work.
    Bp = _round_up(max(B, tb), tb)
    if Bp != B:
        xs_t = jnp.pad(xs_t, ((0, 0), (0, Bp - B), (0, 0)))     # padded rows fully masked
        mask_t = jnp.pad(mask_t, ((0, 0), (0, Bp - B)))
    if Dp != Din:
        xs_t = jnp.pad(xs_t, ((0, 0), (0, 0), (0, Dp - Din)))   # zero feature columns
    m_t = mask_t.astype(jnp.float32)[:, None, :]                # (S, 1, Bp)

    # Full unroll for short sequences; partial unroll bounds vreg pressure for long S.
    unroll = True if S <= 16 else 8

    kernel = functools.partial(_bilstm_kernel, hidden_padded=Hp, seq_len=S, unroll=unroll)
    out_t = pl.pallas_call(
        kernel,
        out_shape=jax.ShapeDtypeStruct((S, 2 * Hp, Bp), jnp.float32),
        grid=(Bp // tb,),
        in_specs=[
            pl.BlockSpec((S, tb, Dp), lambda b: (0, b, 0)),
            pl.BlockSpec((S, 1, tb), lambda b: (0, 0, b)),
            pl.BlockSpec((8 * Hp, Dp), lambda b: (0, 0)),       # weights stay resident
            pl.BlockSpec((8 * Hp, Dp), lambda b: (0, 0)),
            pl.BlockSpec((8 * Hp, 2 * Hp), lambda b: (0, 0)),
            pl.BlockSpec((8 * Hp, 1), lambda b: (0, 0)),
        ],
        out_specs=pl.BlockSpec((S, 2 * Hp, tb), lambda b: (0, 0, b)),
        compiler_params=pltpu.CompilerParams(dimension_semantics=("parallel",)),
    )(xs_t, m_t, packed["wih_f"], packed["wih_b"], packed["whh"], packed["bias"])

    # Drop the hidden-padding rows and go back to batch-first.  This is the single
    # surviving wrapper transpose (inputs are produced time-major by the gather).
    out = jnp.concatenate([out_t[:, 0:H, :], out_t[:, Hp:Hp + H, :]], axis=1)  # (S, 2H, Bp)
    return jnp.transpose(out, (2, 0, 1))[:B]                                   # (B, S, 2H)


def _pack_bilstm_weights(raw, mxu_dtype=jnp.float32):
    """Fuse PyTorch-layout LSTM weights (gate order [i,f,g,o], fwd + reverse) into the
    kernel's gate-major, direction-interleaved, hardware-padded layout.
    Use mxu_dtype=jnp.bfloat16 in production for the native single-pass MXU path."""
    H = int(raw["hidden"])
    Hp = _round_up(H, 8)            # pad hidden so all row slices are sublane tiles
    Din = int(raw["w_ih_f"].shape[1])
    Dp = _round_up(Din, 8)

    wih_f = np.zeros((8 * Hp, Dp), np.float32)
    wih_b = np.zeros((8 * Hp, Dp), np.float32)
    whh = np.zeros((8 * Hp, 2 * Hp), np.float32)
    bias = np.zeros((8 * Hp, 1), np.float32)

    w_ih_f, w_ih_b = np.asarray(raw["w_ih_f"]), np.asarray(raw["w_ih_b"])
    w_hh_f, w_hh_b = np.asarray(raw["w_hh_f"]), np.asarray(raw["w_hh_b"])
    b_f = np.asarray(raw["b_ih_f"]) + np.asarray(raw["b_hh_f"])
    b_b = np.asarray(raw["b_ih_b"]) + np.asarray(raw["b_hh_b"])

    for k in range(4):              # gate order i, f, g, o
        rf = k * 2 * Hp             # forward rows for gate k
        rb = rf + Hp                # backward rows for gate k
        wih_f[rf:rf + H, :Din] = w_ih_f[k * H:(k + 1) * H]
        wih_b[rb:rb + H, :Din] = w_ih_b[k * H:(k + 1) * H]
        whh[rf:rf + H, 0:H] = w_hh_f[k * H:(k + 1) * H]
        whh[rb:rb + H, Hp:Hp + H] = w_hh_b[k * H:(k + 1) * H]
        bias[rf:rf + H, 0] = b_f[k * H:(k + 1) * H]
        bias[rb:rb + H, 0] = b_b[k * H:(k + 1) * H]

    return {
        "hidden": H, "hidden_padded": Hp, "din": Din, "din_padded": Dp,
        "wih_f": jnp.asarray(wih_f, mxu_dtype),
        "wih_b": jnp.asarray(wih_b, mxu_dtype),
        "whh": jnp.asarray(whh, mxu_dtype),
        "bias": jnp.asarray(bias, jnp.float32),
    }


# ----------------------------------------------------------------------- module forward
def sequential_context_compressor_forward(x_tokens, params):
    """Mirrors SequentialContextCompressor.forward (eval mode).
    Returns (sequential_contexts, sequential_context_masks)."""
    sequential_contexts = []
    sequential_context_masks = []
    for table, tp in params["tables"].items():
        # --- SequentialContextEmbedders.forward: -1 padding -> mask, gather, concat.
        # Tokens are transposed first (cheap int32 op) so the gather directly produces
        # the time-major layout the kernel consumes: no big activation transpose here.
        embeddings = []
        mask = None
        for sub_col, emb in tp["embedders"].items():
            toks = jnp.squeeze(x_tokens[sub_col], axis=-1)      # (B, S) int32, -1 padded
            mask = toks != -1                                   # (B, S) bool
            safe_t = jnp.where(toks == -1, 0, toks).T           # (S, B)
            embeddings.append(jnp.take(emb, safe_t, axis=0))    # (S, B, D_i)
        xs_t = jnp.concatenate(embeddings, axis=-1)             # (S, B, Din)

        # nn.Dropout is identity at inference.
        # TODO(synk): training-mode dropout (Bernoulli mask) not implemented.
        # TODO(synk): multi-layer LSTM stacking (heuristic default is 1 bi-layer).
        out = _bilstm_pallas(xs_t, mask.T, tp["lstm"])
        # pad_packed_sequence gives T = max(lengths); test data has a full-length row,
        # so T == S and padded positions are zero-filled, as here.
        sequential_contexts.append(out)
        sequential_context_masks.append(mask)
    return sequential_contexts, sequential_context_masks


# ----------------------------------------------------------------------------- reference
def _ref_bilstm(xs, mask, raw):
    """Pure-JAX bidirectional packed-LSTM reference (standard per-direction scan)."""
    B, S, _ = xs.shape
    H = raw["hidden"]
    m = mask.astype(jnp.float32)

    def run(x_sbd, m_sb1, w_ih, w_hh, b):
        def step(carry, inp):
            h, c = carry
            xt, mt = inp
            gates = xt @ w_ih.T + h @ w_hh.T + b
            i, f, g, o = jnp.split(gates, 4, axis=-1)
            i, f, o = jax.nn.sigmoid(i), jax.nn.sigmoid(f), jax.nn.sigmoid(o)
            g = jnp.tanh(g)
            c_new = f * c + i * g
            h_new = o * jnp.tanh(c_new)
            h2 = mt * h_new + (1.0 - mt) * h
            c2 = mt * c_new + (1.0 - mt) * c
            return (h2, c2), h_new * mt
        init = (jnp.zeros((B, H), jnp.float32), jnp.zeros((B, H), jnp.float32))
        _, outs = jax.lax.scan(step, init, (x_sbd, m_sb1))
        return outs                                         # (S, B, H)

    x_t = jnp.transpose(xs, (1, 0, 2))
    m_t = jnp.transpose(m, (1, 0))[:, :, None]
    out_f = run(x_t, m_t, raw["w_ih_f"], raw["w_hh_f"], raw["b_ih_f"] + raw["b_hh_f"])
    out_b = run(x_t[::-1], m_t[::-1], raw["w_ih_b"], raw["w_hh_b"],
                raw["b_ih_b"] + raw["b_hh_b"])[::-1]
    return jnp.transpose(jnp.concatenate([out_f, out_b], axis=-1), (1, 0, 2))


def _reference_forward(x_tokens, params):
    ctxs, masks = [], []
    for table, tp in params["tables"].items():
        embeddings, mask = [], None
        for sub_col, emb in tp["embedders"].items():
            toks = x_tokens[sub_col]
            mask = jnp.squeeze(toks != -1, axis=-1)
            safe = jnp.where(toks == -1, 0, toks)
            embeddings.append(jnp.take(emb, jnp.squeeze(safe, -1), axis=0))
        xs = jnp.concatenate(embeddings, axis=-1)
        ctxs.append(_ref_bilstm(xs, mask, tp["lstm_raw"]))
        masks.append(mask)
    return ctxs, masks


# ----------------------------------------------------------------------------- demo
if __name__ == "__main__":
    key = jax.random.PRNGKey(0)
    B = 16
    table_cfgs = {
        "orders": dict(cards={"orders::amount_bin": 11, "orders::category": 7},
                       emb_dims=[6, 10], seq_len=10, hidden=16),
        "visits": dict(cards={"visits::site": 13},
                       emb_dims=[12], seq_len=6, hidden=12),
    }

    params = {"tables": {}}
    x_tokens = {}
    for table, cfg in table_cfgs.items():
        S, H = cfg["seq_len"], cfg["hidden"]
        din = sum(cfg["emb_dims"])

        key, k_len = jax.random.split(key)
        lengths = jax.random.randint(k_len, (B,), 1, S + 1).at[0].set(S)   # ensure T == S

        # -1-padded nested tokens (same padding pattern for every sub-col of a table)
        for sub_col, card in cfg["cards"].items():
            key, k_t = jax.random.split(key)
            t = jax.random.randint(k_t, (B, S, 1), 0, card, dtype=jnp.int32)
            pos = jnp.arange(S)[None, :, None]
            x_tokens[sub_col] = jnp.where(pos < lengths[:, None, None], t, -1)

        embedders = {}
        for (sub_col, card), d in zip(cfg["cards"].items(), cfg["emb_dims"]):
            key, k_e = jax.random.split(key)
            embedders[sub_col] = jax.random.normal(k_e, (card, d), jnp.float32) * 0.5

        raw = {"hidden": H}
        for name, shape in [("w_ih_f", (4 * H, din)), ("w_hh_f", (4 * H, H)),
                            ("b_ih_f", (4 * H,)), ("b_hh_f", (4 * H,)),
                            ("w_ih_b", (4 * H, din)), ("w_hh_b", (4 * H, H)),
                            ("b_ih_b", (4 * H,)), ("b_hh_b", (4 * H,))]:
            key, k_w = jax.random.split(key)
            raw[name] = jax.random.normal(k_w, shape, jnp.float32) * (1.0 / np.sqrt(H))

        params["tables"][table] = {
            "embedders": embedders,
            "lstm": _pack_bilstm_weights(raw),     # f32; use mxu_dtype=bf16 in production
            "lstm_raw": raw,
        }

    ctxs, masks = sequential_context_compressor_forward(x_tokens, params)
    ctxs = [jax.block_until_ready(c) for c in ctxs]

    ref_ctxs, ref_masks = _reference_forward(x_tokens, params)
    for c, rc in zip(ctxs, ref_ctxs):
        np.testing.assert_allclose(np.asarray(c), np.asarray(rc), rtol=1e-4, atol=1e-4)
    for m, rm in zip(masks, ref_masks):
        assert bool(jnp.all(m == rm))
    assert ctxs[0].shape == (B, 10, 2 * 16) and ctxs[1].shape == (B, 6, 2 * 12)

    print("KERNEL_OK")
</pallas_src>

<mosaic_0001>
module attributes {stable_mosaic.version = 11 : i64} {
  func.func @_bilstm_kernel(%arg0: i32, %arg1: memref<10x128x16xf32, #tpu.memory_space<vmem>>, %arg2: memref<10x1x128xf32, #tpu.memory_space<vmem>>, %arg3: memref<128x16xf32, #tpu.memory_space<vmem>>, %arg4: memref<128x16xf32, #tpu.memory_space<vmem>>, %arg5: memref<128x32xf32, #tpu.memory_space<vmem>>, %arg6: memref<128x1xf32, #tpu.memory_space<vmem>>, %arg7: memref<10x32x128xf32, #tpu.memory_space<vmem>>) attributes {dimension_semantics = [#tpu.dimension_semantics<parallel>], iteration_bounds = array<i64: 1>, scalar_prefetch = 0 : i64, scratch_operands = 0 : i64, tpu.core_type = #tpu.core_type<tc>, window_params = [{transform_indices = @transform_0, window_bounds = array<i64: 10, 128, 16>}, {transform_indices = @transform_1, window_bounds = array<i64: 10, 1, 128>}, {pipeline_mode = #tpu.pipeline_mode<synchronous>, transform_indices = @transform_2, window_bounds = array<i64: 128, 16>}, {pipeline_mode = #tpu.pipeline_mode<synchronous>, transform_indices = @transform_3, window_bounds = array<i64: 128, 16>}, {pipeline_mode = #tpu.pipeline_mode<synchronous>, transform_indices = @transform_4, window_bounds = array<i64: 128, 32>}, {pipeline_mode = #tpu.pipeline_mode<synchronous>, transform_indices = @transform_5, window_bounds = array<i64: 128, 1>}, {transform_indices = @transform_6, window_bounds = array<i64: 10, 32, 128>}]} {
    %c0 = arith.constant 0 : index
    %c0_0 = arith.constant 0 : index
    %0 = vector.load %arg3[%c0, %c0_0] : memref<128x16xf32, #tpu.memory_space<vmem>>, vector<128x16xf32>
    %c0_1 = arith.constant 0 : index
    %c0_2 = arith.constant 0 : index
    %1 = vector.load %arg4[%c0_1, %c0_2] : memref<128x16xf32, #tpu.memory_space<vmem>>, vector<128x16xf32>
    %c0_3 = arith.constant 0 : index
    %c0_4 = arith.constant 0 : index
    %2 = vector.load %arg5[%c0_3, %c0_4] : memref<128x32xf32, #tpu.memory_space<vmem>>, vector<128x32xf32>
    %c0_5 = arith.constant 0 : index
    %c0_6 = arith.constant 0 : index
    %3 = vector.load %arg6[%c0_5, %c0_6] : memref<128x1xf32, #tpu.memory_space<vmem>>, vector<128x1xf32>
    %4 = vector.shape_cast %3 : vector<128x1xf32> to vector<128x1xf32>
    %5 = vector.broadcast %4 : vector<128x1xf32> to vector<128x128xf32>
    %6 = tpu.iota {dimensions = array<i32: 0>} : vector<32x128xi32>
    %c16_i32 = arith.constant 16 : i32
    %7 = vector.broadcast %c16_i32 : i32 to vector<32x128xi32>
    %8 = arith.cmpi slt, %6, %7 : vector<32x128xi32>
    %cst = arith.constant 0.000000e+00 : f32
    %9 = vector.broadcast %cst : f32 to vector<32x128xf32>
    %cst_7 = arith.constant 0.000000e+00 : f32
    %10 = vector.broadcast %cst_7 : f32 to vector<32x128xf32>
    %c0_i32 = arith.constant 0 : i32
    %c9_i32 = arith.constant 9 : i32
    %11 = arith.subi %c9_i32, %c0_i32 : i32
    %12 = arith.index_cast %c0_i32 : i32 to index
    %c0_8 = arith.constant 0 : index
    %c0_9 = arith.constant 0 : index
    %13 = vector.load %arg1[%12, %c0_8, %c0_9] : memref<10x128x16xf32, #tpu.memory_space<vmem>>, vector<1x128x16xf32>
    %14 = vector.shape_cast %13 : vector<1x128x16xf32> to vector<128x16xf32>
    %15 = arith.index_cast %11 : i32 to index
    %c0_10 = arith.constant 0 : index
    %c0_11 = arith.constant 0 : index
    %16 = vector.load %arg1[%15, %c0_10, %c0_11] : memref<10x128x16xf32, #tpu.memory_space<vmem>>, vector<1x128x16xf32>
    %17 = vector.shape_cast %16 : vector<1x128x16xf32> to vector<128x16xf32>
    %18 = tpu.transpose %14, [1, 0] : vector<128x16xf32> -> vector<16x128xf32>
    %cst_12 = arith.constant dense<0.000000e+00> : vector<128x128xf32>
    %19 = tpu.matmul %0, %18, %cst_12 {dimension_numbers = #tpu.dot_dimension_numbers<[1], [0], [0], [1], [0, 0, 1, 1], [], []>} : vector<128x16xf32>, vector<16x128xf32>, vector<128x128xf32> -> vector<128x128xf32>
    %20 = tpu.transpose %17, [1, 0] : vector<128x16xf32> -> vector<16x128xf32>
    %cst_13 = arith.constant dense<0.000000e+00> : vector<128x128xf32>
    %21 = tpu.matmul %1, %20, %cst_13 {dimension_numbers = #tpu.dot_dimension_numbers<[1], [0], [0], [1], [0, 0, 1, 1], [], []>} : vector<128x16xf32>, vector<16x128xf32>, vector<128x128xf32> -> vector<128x128xf32>
    %22 = arith.addf %19, %21 : vector<128x128xf32>
    %cst_14 = arith.constant dense<0.000000e+00> : vector<128x128xf32>
    %23 = tpu.matmul %2, %9, %cst_14 {dimension_numbers = #tpu.dot_dimension_numbers<[1], [0], [0], [1], [0, 0, 1, 1], [], []>} : vector<128x32xf32>, vector<32x128xf32>, vector<128x128xf32> -> vector<128x128xf32>
    %24 = arith.addf %22, %23 : vector<128x128xf32>
    %25 = arith.addf %24, %5 : vector<128x128xf32>
    %26 = vector.extract_strided_slice %25 {offsets = [0, 0], sizes = [32, 128], strides = [1, 1]} : vector<128x128xf32> to vector<32x128xf32>
    %27 = arith.negf %26 : vector<32x128xf32>
    %28 = math.exp %27 : vector<32x128xf32>
    %cst_15 = arith.constant 1.000000e+00 : f32
    %29 = vector.broadcast %cst_15 : f32 to vector<32x128xf32>
    %30 = arith.addf %29, %28 : vector<32x128xf32>
    %31 = arith.divf %29, %30 : vector<32x128xf32>
    %32 = vector.extract_strided_slice %25 {offsets = [32, 0], sizes = [32, 128], strides = [1, 1]} : vector<128x128xf32> to vector<32x128xf32>
    %33 = arith.negf %32 : vector<32x128xf32>
    %34 = math.exp %33 : vector<32x128xf32>
    %cst_16 = arith.constant 1.000000e+00 : f32
    %35 = vector.broadcast %cst_16 : f32 to vector<32x128xf32>
    %36 = arith.addf %35, %34 : vector<32x128xf32>
    %37 = arith.divf %35, %36 : vector<32x128xf32>
    %38 = vector.extract_strided_slice %25 {offsets = [64, 0], sizes = [32, 128], strides = [1, 1]} : vector<128x128xf32> to vector<32x128xf32>
    %39 = math.tanh %38 : vector<32x128xf32>
    %40 = vector.extract_strided_slice %25 {offsets = [96, 0], sizes = [32, 128], strides = [1, 1]} : vector<128x128xf32> to vector<32x128xf32>
    %41 = arith.negf %40 : vector<32x128xf32>
    %42 = math.exp %41 : vector<32x128xf32>
    %cst_17 = arith.constant 1.000000e+00 : f32
    %43 = vector.broadcast %cst_17 : f32 to vector<32x128xf32>
    %44 = arith.addf %43, %42 : vector<32x128xf32>
    %45 = arith.divf %43, %44 : vector<32x128xf32>
    %46 = arith.mulf %37, %10 : vector<32x128xf32>
    %47 = arith.mulf %31, %39 : vector<32x128xf32>
    %48 = arith.addf %46, %47 : vector<32x128xf32>
    %49 = math.tanh %48 : vector<32x128xf32>
    %50 = arith.mulf %45, %49 : vector<32x128xf32>
    %51 = arith.index_cast %c0_i32 : i32 to index
    %c0_18 = arith.constant 0 : index
    %c0_19 = arith.constant 0 : index
    %52 = vector.load %arg2[%51, %c0_18, %c0_19] : memref<10x1x128xf32, #tpu.memory_space<vmem>>, vector<1x1x128xf32>
    %53 = vector.shape_cast %52 : vector<1x1x128xf32> to vector<1x128xf32>
    %54 = arith.index_cast %11 : i32 to index
    %c0_20 = arith.constant 0 : index
    %c0_21 = arith.constant 0 : index
    %55 = vector.load %arg2[%54, %c0_20, %c0_21] : memref<10x1x128xf32, #tpu.memory_space<vmem>>, vector<1x1x128xf32>
    %56 = vector.shape_cast %55 : vector<1x1x128xf32> to vector<1x128xf32>
    %57 = vector.shape_cast %53 : vector<1x128xf32> to vector<1x128xf32>
    %58 = vector.broadcast %57 : vector<1x128xf32> to vector<32x128xf32>
    %59 = vector.shape_cast %56 : vector<1x128xf32> to vector<1x128xf32>
    %60 = vector.broadcast %59 : vector<1x128xf32> to vector<32x128xf32>
    %61 = arith.select %8, %58, %60 : vector<32x128xi1>, vector<32x128xf32>
    %cst_22 = arith.constant 5.000000e-01 : f32
    %62 = vector.broadcast %cst_22 : f32 to vector<32x128xf32>
    %63 = arith.cmpf ogt, %61, %62 : vector<32x128xf32>
    %64 = arith.select %63, %50, %9 : vector<32x128xi1>, vector<32x128xf32>
    %65 = arith.select %63, %48, %10 : vector<32x128xi1>, vector<32x128xf32>
    %66 = vector.extract_strided_slice %63 {offsets = [0, 0], sizes = [16, 128], strides = [1, 1]} : vector<32x128xi1> to vector<16x128xi1>
    %67 = vector.extract_strided_slice %64 {offsets = [0, 0], sizes = [16, 128], strides = [1, 1]} : vector<32x128xf32> to vector<16x128xf32>
    %cst_23 = arith.constant 0.000000e+00 : f32
    %68 = vector.broadcast %cst_23 : f32 to vector<16x128xf32>
    %69 = arith.select %66, %67, %68 : vector<16x128xi1>, vector<16x128xf32>
    %70 = vector.extract_strided_slice %63 {offsets = [16, 0], sizes = [16, 128], strides = [1, 1]} : vector<32x128xi1> to vector<16x128xi1>
    %71 = vector.extract_strided_slice %64 {offsets = [16, 0], sizes = [16, 128], strides = [1, 1]} : vector<32x128xf32> to vector<16x128xf32>
    %cst_24 = arith.constant 0.000000e+00 : f32
    %72 = vector.broadcast %cst_24 : f32 to vector<16x128xf32>
    %73 = arith.select %70, %71, %72 : vector<16x128xi1>, vector<16x128xf32>
    %74 = vector.shape_cast %69 : vector<16x128xf32> to vector<1x16x128xf32>
    %75 = arith.index_cast %c0_i32 : i32 to index
    %c0_25 = arith.constant 0 : index
    %c0_26 = arith.constant 0 : index
    %76 = vector.load %arg7[%75, %c0_25, %c0_26] : memref<10x32x128xf32, #tpu.memory_space<vmem>>, vector<1x16x128xf32>
    tpu.vector_store %arg7[%75, %c0_25, %c0_26], %74 {strides = array<i32>} : memref<10x32x128xf32, #tpu.memory_space<vmem>>, vector<1x16x128xf32>,
    %77 = vector.shape_cast %73 : vector<16x128xf32> to vector<1x16x128xf32>
    %78 = arith.index_cast %11 : i32 to index
    %c16 = arith.constant 16 : index
    %c0_27 = arith.constant 0 : index
    %79 = vector.load %arg7[%78, %c16, %c0_27] : memref<10x32x128xf32, #tpu.memory_space<vmem>>, vector<1x16x128xf32>
    tpu.vector_store %arg7[%78, %c16, %c0_27], %77 {strides = array<i32>} : memref<10x32x128xf32, #tpu.memory_space<vmem>>, vector<1x16x128xf32>,
    %c1_i32 = arith.constant 1 : i32
    %c9_i32_28 = arith.constant 9 : i32
    %80 = arith.subi %c9_i32_28, %c1_i32 : i32
    %81 = arith.index_cast %c1_i32 : i32 to index
    %c0_29 = arith.constant 0 : index
    %c0_30 = arith.constant 0 : index
    %82 = vector.load %arg1[%81, %c0_29, %c0_30] : memref<10x128x16xf32, #tpu.memory_space<vmem>>, vector<1x128x16xf32>
    %83 = vector.shape_cast %82 : vector<1x128x16xf32> to vector<128x16xf32>
    %84 = arith.index_cast %80 : i32 to index
    %c0_31 = arith.constant 0 : index
    %c0_32 = arith.constant 0 : index
    %85 = vector.load %arg1[%84, %c0_31, %c0_32] : memref<10x128x16xf32, #tpu.memory_space<vmem>>, vector<1x128x16xf32>
    %86 = vector.shape_cast %85 : vector<1x128x16xf32> to vector<128x16xf32>
    %87 = tpu.transpose %83, [1, 0] : vector<128x16xf32> -> vector<16x128xf32>
    %cst_33 = arith.constant dense<0.000000e+00> : vector<128x128xf32>
    %88 = tpu.matmul %0, %87, %cst_33 {dimension_numbers = #tpu.dot_dimension_numbers<[1], [0], [0], [1], [0, 0, 1, 1], [], []>} : vector<128x16xf32>, vector<16x128xf32>, vector<128x128xf32> -> vector<128x128xf32>
    %89 = tpu.transpose %86, [1, 0] : vector<128x16xf32> -> vector<16x128xf32>
    %cst_34 = arith.constant dense<0.000000e+00> : vector<128x128xf32>
    %90 = tpu.matmul %1, %89, %cst_34 {dimension_numbers = #tpu.dot_dimension_numbers<[1], [0], [0], [1], [0, 0, 1, 1], [], []>} : vector<128x16xf32>, vector<16x128xf32>, vector<128x128xf32> -> vector<128x128xf32>
    %91 = arith.addf %88, %90 : vector<128x128xf32>
    %cst_35 = arith.constant dense<0.000000e+00> : vector<128x128xf32>
    %92 = tpu.matmul %2, %64, %cst_35 {dimension_numbers = #tpu.dot_dimension_numbers<[1], [0], [0], [1], [0, 0, 1, 1], [], []>} : vector<128x32xf32>, vector<32x128xf32>, vector<128x128xf32> -> vector<128x128xf32>
    %93 = arith.addf %91, %92 : vector<128x128xf32>
    %94 = arith.addf %93, %5 : vector<128x128xf32>
    %95 = vector.extract_strided_slice %94 {offsets = [0, 0], sizes = [32, 128], strides = [1, 1]} : vector<128x128xf32> to vector<32x128xf32>
    %96 = arith.negf %95 : vector<32x128xf32>
    %97 = math.exp %96 : vector<32x128xf32>
    %cst_36 = arith.constant 1.000000e+00 : f32
    %98 = vector.broadcast %cst_36 : f32 to vector<32x128xf32>
    %99 = arith.addf %98, %97 : vector<32x128xf32>
    %100 = arith.divf %98, %99 : vector<32x128xf32>
    %101 = vector.extract_strided_slice %94 {offsets = [32, 0], sizes = [32, 128], strides = [1, 1]} : vector<128x128xf32> to vector<32x128xf32>
    %102 = arith.negf %101 : vector<32x128xf32>
    %103 = math.exp %102 : vector<32x128xf32>
    %cst_37 = arith.constant 1.000000e+00 : f32
    %104 = vector.broadcast %cst_37 : f32 to vector<32x128xf32>
    %105 = arith.addf %104, %103 : vector<32x128xf32>
    %106 = arith.divf %104, %105 : vector<32x128xf32>
    %107 = vector.extract_strided_slice %94 {offsets = [64, 0], sizes = [32, 128], strides = [1, 1]} : vector<128x128xf32> to vector<32x128xf32>
    %108 = math.tanh %107 : vector<32x128xf32>
    %109 = vector.extract_strided_slice %94 {offsets = [96, 0], sizes = [32, 128], strides = [1, 1]} : vector<128x128xf32> to vector<32x128xf32>
    %110 = arith.negf %109 : vector<32x128xf32>
    %111 = math.exp %110 : vector<32x128xf32>
    %cst_38 = arith.constant 1.000000e+00 : f32
    %112 = vector.broadcast %cst_38 : f32 to vector<32x128xf32>
    %113 = arith.addf %112, %111 : vector<32x128xf32>
    %114 = arith.divf %112, %113 : vector<32x128xf32>
    %115 = arith.mulf %106, %65 : vector<32x128xf32>
    %116 = arith.mulf %100, %108 : vector<32x128xf32>
    %117 = arith.addf %115, %116 : vector<32x128xf32>
    %118 = math.tanh %117 : vector<32x128xf32>
    %119 = arith.mulf %114, %118 : vector<32x128xf32>
    %120 = arith.index_cast %c1_i32 : i32 to index
    %c0_39 = arith.constant 0 : index
    %c0_40 = arith.constant 0 : index
    %121 = vector.load %arg2[%120, %c0_39, %c0_40] : memref<10x1x128xf32, #tpu.memory_space<vmem>>, vector<1x1x128xf32>
    %122 = vector.shape_cast %121 : vector<1x1x128xf32> to vector<1x128xf32>
    %123 = arith.index_cast %80 : i32 to index
    %c0_41 = arith.constant 0 : index
    %c0_42 = arith.constant 0 : index
    %124 = vector.load %arg2[%123, %c0_41, %c0_42] : memref<10x1x128xf32, #tpu.memory_space<vmem>>, vector<1x1x128xf32>
    %125 = vector.shape_cast %124 : vector<1x1x128xf32> to vector<1x128xf32>
    %126 = vector.shape_cast %122 : vector<1x128xf32> to vector<1x128xf32>
    %127 = vector.broadcast %126 : vector<1x128xf32> to vector<32x128xf32>
    %128 = vector.shape_cast %125 : vector<1x128xf32> to vector<1x128xf32>
    %129 = vector.broadcast %128 : vector<1x128xf32> to vector<32x128xf32>
    %130 = arith.select %8, %127, %129 : vector<32x128xi1>, vector<32x128xf32>
    %cst_43 = arith.constant 5.000000e-01 : f32
    %131 = vector.broadcast %cst_43 : f32 to vector<32x128xf32>
    %132 = arith.cmpf ogt, %130, %131 : vector<32x128xf32>
    %133 = arith.select %132, %119, %64 : vector<32x128xi1>, vector<32x128xf32>
    %134 = arith.select %132, %117, %65 : vector<32x128xi1>, vector<32x128xf32>
    %135 = vector.extract_strided_slice %132 {offsets = [0, 0], sizes = [16, 128], strides = [1, 1]} : vector<32x128xi1> to vector<16x128xi1>
    %136 = vector.extract_strided_slice %133 {offsets = [0, 0], sizes = [16, 128], strides = [1, 1]} : vector<32x128xf32> to vector<16x128xf32>
    %cst_44 = arith.constant 0.000000e+00 : f32
    %137 = vector.broadcast %cst_44 : f32 to vector<16x128xf32>
    %138 = arith.select %135, %136, %137 : vector<16x128xi1>, vector<16x128xf32>
    %139 = vector.extract_strided_slice %132 {offsets = [16, 0], sizes = [16, 128], strides = [1, 1]} : vector<32x128xi1> to vector<16x128xi1>
    %140 = vector.extract_strided_slice %133 {offsets = [16, 0], sizes = [16, 128], strides = [1, 1]} : vector<32x128xf32> to vector<16x128xf32>
    %cst_45 = arith.constant 0.000000e+00 : f32
    %141 = vector.broadcast %cst_45 : f32 to vector<16x128xf32>
    %142 = arith.select %139, %140, %141 : vector<16x128xi1>, vector<16x128xf32>
    %143 = vector.shape_cast %138 : vector<16x128xf32> to vector<1x16x128xf32>
    %144 = arith.index_cast %c1_i32 : i32 to index
    %c0_46 = arith.constant 0 : index
    %c0_47 = arith.constant 0 : index
    %145 = vector.load %arg7[%144, %c0_46, %c0_47] : memref<10x32x128xf32, #tpu.memory_space<vmem>>, vector<1x16x128xf32>
    tpu.vector_store %arg7[%144, %c0_46, %c0_47], %143 {strides = array<i32>} : memref<10x32x128xf32, #tpu.memory_space<vmem>>, vector<1x16x128xf32>,
    %146 = vector.shape_cast %142 : vector<16x128xf32> to vector<1x16x128xf32>
    %147 = arith.index_cast %80 : i32 to index
    %c16_48 = arith.constant 16 : index
    %c0_49 = arith.constant 0 : index
    %148 = vector.load %arg7[%147, %c16_48, %c0_49] : memref<10x32x128xf32, #tpu.memory_space<vmem>>, vector<1x16x128xf32>
    tpu.vector_store %arg7[%147, %c16_48, %c0_49], %146 {strides = array<i32>} : memref<10x32x128xf32, #tpu.memory_space<vmem>>, vector<1x16x128xf32>,
    %c2_i32 = arith.constant 2 : i32
    %c9_i32_50 = arith.constant 9 : i32
    %149 = arith.subi %c9_i32_50, %c2_i32 : i32
    %150 = arith.index_cast %c2_i32 : i32 to index
    %c0_51 = arith.constant 0 : index
    %c0_52 = arith.constant 0 : index
    %151 = vector.load %arg1[%150, %c0_51, %c0_52] : memref<10x128x16xf32, #tpu.memory_space<vmem>>, vector<1x128x16xf32>
    %152 = vector.shape_cast %151 : vector<1x128x16xf32> to vector<128x16xf32>
    %153 = arith.index_cast %149 : i32 to index
    %c0_53 = arith.constant 0 : index
    %c0_54 = arith.constant 0 : index
    %154 = vector.load %arg1[%153, %c0_53, %c0_54] : memref<10x128x16xf32, #tpu.memory_space<vmem>>, vector<1x128x16xf32>
    %155 = vector.shape_cast %154 : vector<1x128x16xf32> to vector<128x16xf32>
    %156 = tpu.transpose %152, [1, 0] : vector<128x16xf32> -> vector<16x128xf32>
    %cst_55 = arith.constant dense<0.000000e+00> : vector<128x128xf32>
    %157 = tpu.matmul %0, %156, %cst_55 {dimension_numbers = #tpu.dot_dimension_numbers<[1], [0], [0], [1], [0, 0, 1, 1], [], []>} : vector<128x16xf32>, vector<16x128xf32>, vector<128x128xf32> -> vector<128x128xf32>
    %158 = tpu.transpose %155, [1, 0] : vector<128x16xf32> -> vector<16x128xf32>
    %cst_56 = arith.constant dense<0.000000e+00> : vector<128x128xf32>
    %159 = tpu.matmul %1, %158, %cst_56 {dimension_numbers = #tpu.dot_dimension_numbers<[1], [0], [0], [1], [0, 0, 1, 1], [], []>} : vector<128x16xf32>, vector<16x128xf32>, vector<128x128xf32> -> vector<128x128xf32>
    %160 = arith.addf %157, %159 : vector<128x128xf32>
    %cst_57 = arith.constant dense<0.000000e+00> : vector<128x128xf32>
    %161 = tpu.matmul %2, %133, %cst_57 {dimension_numbers = #tpu.dot_dimension_numbers<[1], [0], [0], [1], [0, 0, 1, 1], [], []>} : vector<128x32xf32>, vector<32x128xf32>, vector<128x128xf32> -> vector<128x128xf32>
    %162 = arith.addf %160, %161 : vector<128x128xf32>
    %163 = arith.addf %162, %5 : vector<128x128xf32>
    %164 = vector.extract_strided_slice %163 {offsets = [0, 0], sizes = [32, 128], strides = [1, 1]} : vector<128x128xf32> to vector<32x128xf32>
    %165 = arith.negf %164 : vector<32x128xf32>
    %166 = math.exp %165 : vector<32x128xf32>
    %cst_58 = arith.constant 1.000000e+00 : f32
    %167 = vector.broadcast %cst_58 : f32 to vector<32x128xf32>
    %168 = arith.addf %167, %166 : vector<32x128xf32>
    %169 = arith.divf %167, %168 : vector<32x128xf32>
    %170 = vector.extract_strided_slice %163 {offsets = [32, 0], sizes = [32, 128], strides = [1, 1]} : vector<128x128xf32> to vector<32x128xf32>
    %171 = arith.negf %170 : vector<32x128xf32>
    %172 = math.exp %171 : vector<32x128xf32>
    %cst_59 = arith.constant 1.000000e+00 : f32
    %173 = vector.broadcast %cst_59 : f32 to vector<32x128xf32>
    %174 = arith.addf %173, %172 : vector<32x128xf32>
    %175 = arith.divf %173, %174 : vector<32x128xf32>
    %176 = vector.extract_strided_slice %163 {offsets = [64, 0], sizes = [32, 128], strides = [1, 1]} : vector<128x128xf32> to vector<32x128xf32>
    %177 = math.tanh %176 : vector<32x128xf32>
    %178 = vector.extract_strided_slice %163 {offsets = [96, 0], sizes = [32, 128], strides = [1, 1]} : vector<128x128xf32> to vector<32x128xf32>
    %179 = arith.negf %178 : vector<32x128xf32>
    %180 = math.exp %179 : vector<32x128xf32>
    %cst_60 = arith.constant 1.000000e+00 : f32
    %181 = vector.broadcast %cst_60 : f32 to vector<32x128xf32>
    %182 = arith.addf %181, %180 : vector<32x128xf32>
    %183 = arith.divf %181, %182 : vector<32x128xf32>
    %184 = arith.mulf %175, %134 : vector<32x128xf32>
    %185 = arith.mulf %169, %177 : vector<32x128xf32>
    %186 = arith.addf %184, %185 : vector<32x128xf32>
    %187 = math.tanh %186 : vector<32x128xf32>
    %188 = arith.mulf %183, %187 : vector<32x128xf32>
    %189 = arith.index_cast %c2_i32 : i32 to index
    %c0_61 = arith.constant 0 : index
    %c0_62 = arith.constant 0 : index
    %190 = vector.load %arg2[%189, %c0_61, %c0_62] : memref<10x1x128xf32, #tpu.memory_space<vmem>>, vector<1x1x128xf32>
    %191 = vector.shape_cast %190 : vector<1x1x128xf32> to vector<1x128xf32>
    %192 = arith.index_cast %149 : i32 to index
    %c0_63 = arith.constant 0 : index
    %c0_64 = arith.constant 0 : index
    %193 = vector.load %arg2[%192, %c0_63, %c0_64] : memref<10x1x128xf32, #tpu.memory_space<vmem>>, vector<1x1x128xf32>
    %194 = vector.shape_cast %193 : vector<1x1x128xf32> to vector<1x128xf32>
    %195 = vector.shape_cast %191 : vector<1x128xf32> to vector<1x128xf32>
    %196 = vector.broadcast %195 : vector<1x128xf32> to vector<32x128xf32>
    %197 = vector.shape_cast %194 : vector<1x128xf32> to vector<1x128xf32>
    %198 = vector.broadcast %197 : vector<1x128xf32> to vector<32x128xf32>
    %199 = arith.select %8, %196, %198 : vector<32x128xi1>, vector<32x128xf32>
    %cst_65 = arith.constant 5.000000e-01 : f32
    %200 = vector.broadcast %cst_65 : f32 to vector<32x128xf32>
    %201 = arith.cmpf ogt, %199, %200 : vector<32x128xf32>
    %202 = arith.select %201, %188, %133 : vector<32x128xi1>, vector<32x128xf32>
    %203 = arith.select %201, %186, %134 : vector<32x128xi1>, vector<32x128xf32>
    %204 = vector.extract_strided_slice %201 {offsets = [0, 0], sizes = [16, 128], strides = [1, 1]} : vector<32x128xi1> to vector<16x128xi1>
    %205 = vector.extract_strided_slice %202 {offsets = [0, 0], sizes = [16, 128], strides = [1, 1]} : vector<32x128xf32> to vector<16x128xf32>
    %cst_66 = arith.constant 0.000000e+00 : f32
    %206 = vector.broadcast %cst_66 : f32 to vector<16x128xf32>
    %207 = arith.select %204, %205, %206 : vector<16x128xi1>, vector<16x128xf32>
    %208 = vector.extract_strided_slice %201 {offsets = [16, 0], sizes = [16, 128], strides = [1, 1]} : vector<32x128xi1> to vector<16x128xi1>
    %209 = vector.extract_strided_slice %202 {offsets = [16, 0], sizes = [16, 128], strides = [1, 1]} : vector<32x128xf32> to vector<16x128xf32>
    %cst_67 = arith.constant 0.000000e+00 : f32
    %210 = vector.broadcast %cst_67 : f32 to vector<16x128xf32>
    %211 = arith.select %208, %209, %210 : vector<16x128xi1>, vector<16x128xf32>
    %212 = vector.shape_cast %207 : vector<16x128xf32> to vector<1x16x128xf32>
    %213 = arith.index_cast %c2_i32 : i32 to index
    %c0_68 = arith.constant 0 : index
    %c0_69 = arith.constant 0 : index
    %214 = vector.load %arg7[%213, %c0_68, %c0_69] : memref<10x32x128xf32, #tpu.memory_space<vmem>>, vector<1x16x128xf32>
    tpu.vector_store %arg7[%213, %c0_68, %c0_69], %212 {strides = array<i32>} : memref<10x32x128xf32, #tpu.memory_space<vmem>>, vector<1x16x128xf32>,
    %215 = vector.shape_cast %211 : vector<16x128xf32> to vector<1x16x128xf32>
    %216 = arith.index_cast %149 : i32 to index
    %c16_70 = arith.constant 16 : index
    %c0_71 = arith.constant 0 : index
    %217 = vector.load %arg7[%216, %c16_70, %c0_71] : memref<10x32x128xf32, #tpu.memory_space<vmem>>, vector<1x16x128xf32>
    tpu.vector_store %arg7[%216, %c16_70, %c0_71], %215 {strides = array<i32>} : memref<10x32x128xf32, #tpu.memory_space<vmem>>, vector<1x16x128xf32>,
    %c3_i32 = arith.constant 3 : i32
    %c9_i32_72 = arith.constant 9 : i32
    %218 = arith.subi %c9_i32_72, %c3_i32 : i32
    %219 = arith.index_cast %c3_i32 : i32 to index
    %c0_73 = arith.constant 0 : index
    %c0_74 = arith.constant 0 : index
    %220 = vector.load %arg1[%219, %c0_73, %c0_74] : memref<10x128x16xf32, #tpu.memory_space<vmem>>, vector<1x128x16xf32>
    %221 = vector.shape_cast %220 : vector<1x128x16xf32> to vector<128x16xf32>
    %222 = arith.index_cast %218 : i32 to index
    %c0_75 = arith.constant 0 : index
    %c0_76 = arith.constant 0 : index
    %223 = vector.load %arg1[%222, %c0_75, %c0_76] : memref<10x128x16xf32, #tpu.memory_space<vmem>>, vector<1x128x16xf32>
    %224 = vector.shape_cast %223 : vector<1x128x16xf32> to vector<128x16xf32>
    %225 = tpu.transpose %221, [1, 0] : vector<128x16xf32> -> vector<16x128xf32>
    %cst_77 = arith.constant dense<0.000000e+00> : vector<128x128xf32>
    %226 = tpu.matmul %0, %225, %cst_77 {dimension_numbers = #tpu.dot_dimension_numbers<[1], [0], [0], [1], [0, 0, 1, 1], [], []>} : vector<128x16xf32>, vector<16x128xf32>, vector<128x128xf32> -> vector<128x128xf32>
    %227 = tpu.transpose %224, [1, 0] : vector<128x16xf32> -> vector<16x128xf32>
    %cst_78 = arith.constant dense<0.000000e+00> : vector<128x128xf32>
    %228 = tpu.matmul %1, %227, %cst_78 {dimension_numbers = #tpu.dot_dimension_numbers<[1], [0], [0], [1], [0, 0, 1, 1], [], []>} : vector<128x16xf32>, vector<16x128xf32>, vector<128x128xf32> -> vector<128x128xf32>
    %229 = arith.addf %226, %228 : vector<128x128xf32>
    %cst_79 = arith.constant dense<0.000000e+00> : vector<128x128xf32>
    %230 = tpu.matmul %2, %202, %cst_79 {dimension_numbers = #tpu.dot_dimension_numbers<[1], [0], [0], [1], [0, 0, 1, 1], [], []>} : vector<128x32xf32>, vector<32x128xf32>, vector<128x128xf32> -> vector<128x128xf32>
    %231 = arith.addf %229, %230 : vector<128x128xf32>
    %232 = arith.addf %231, %5 : vector<128x128xf32>
    %233 = vector.extract_strided_slice %232 {offsets = [0, 0], sizes = [32, 128], strides = [1, 1]} : vector<128x128xf32> to vector<32x128xf32>
    %234 = arith.negf %233 : vector<32x128xf32>
    %235 = math.exp %234 : vector<32x128xf32>
    %cst_80 = arith.constant 1.000000e+00 : f32
    %236 = vector.broadcast %cst_80 : f32 to vector<32x128xf32>
    %237 = arith.addf %236, %235 : vector<32x128xf32>
    %238 = arith.divf %236, %237 : vector<32x128xf32>
    %239 = vector.extract_strided_slice %232 {offsets = [32, 0], sizes = [32, 128], strides = [1, 1]} : vector<128x128xf32> to vector<32x128xf32>
    %240 = arith.negf %239 : vector<32x128xf32>
    %241 = math.exp %240 : vector<32x128xf32>
    %cst_81 = arith.constant 1.000000e+00 : f32
    %242 = vector.broadcast %cst_81 : f32 to vector<32x128xf32>
    %243 = arith.addf %242, %241 : vector<32x128xf32>
    %244 = arith.divf %242, %243 : vector<32x128xf32>
    %245 = vector.extract_strided_slice %232 {offsets = [64, 0], sizes = [32, 128], strides = [1, 1]} : vector<128x128xf32> to vector<32x128xf32>
    %246 = math.tanh %245 : vector<32x128xf32>
    %247 = vector.extract_strided_slice %232 {offsets = [96, 0], sizes = [32, 128], strides = [1, 1]} : vector<128x128xf32> to vector<32x128xf32>
    %248 = arith.negf %247 : vector<32x128xf32>
    %249 = math.exp %248 : vector<32x128xf32>
    %cst_82 = arith.constant 1.000000e+00 : f32
    %250 = vector.broadcast %cst_82 : f32 to vector<32x128xf32>
    %251 = arith.addf %250, %249 : vector<32x128xf32>
    %252 = arith.divf %250, %251 : vector<32x128xf32>
    %253 = arith.mulf %244, %203 : vector<32x128xf32>
    %254 = arith.mulf %238, %246 : vector<32x128xf32>
    %255 = arith.addf %253, %254 : vector<32x128xf32>
    %256 = math.tanh %255 : vector<32x128xf32>
    %257 = arith.mulf %252, %256 : vector<32x128xf32>
    %258 = arith.index_cast %c3_i32 : i32 to index
    %c0_83 = arith.constant 0 : index
    %c0_84 = arith.constant 0 : index
    %259 = vector.load %arg2[%258, %c0_83, %c0_84] : memref<10x1x128xf32, #tpu.memory_space<vmem>>, vector<1x1x128xf32>
    %260 = vector.shape_cast %259 : vector<1x1x128xf32> to vector<1x128xf32>
    %261 = arith.index_cast %218 : i32 to index
    %c0_85 = arith.constant 0 : index
    %c0_86 = arith.constant 0 : index
    %262 = vector.load %arg2[%261, %c0_85, %c0_86] : memref<10x1x128xf32, #tpu.memory_space<vmem>>, vector<1x1x128xf32>
    %263 = vector.shape_cast %262 : vector<1x1x128xf32> to vector<1x128xf32>
    %264 = vector.shape_cast %260 : vector<1x128xf32> to vector<1x128xf32>
    %265 = vector.broadcast %264 : vector<1x128xf32> to vector<32x128xf32>
    %266 = vector.shape_cast %263 : vector<1x128xf32> to vector<1x128xf32>
    %267 = vector.broadcast %266 : vector<1x128xf32> to vector<32x128xf32>
    %268 = arith.select %8, %265, %267 : vector<32x128xi1>, vector<32x128xf32>
    %cst_87 = arith.constant 5.000000e-01 : f32
    %269 = vector.broadcast %cst_87 : f32 to vector<32x128xf32>
    %270 = arith.cmpf ogt, %268, %269 : vector<32x128xf32>
    %271 = arith.select %270, %257, %202 : vector<32x128xi1>, vector<32x128xf32>
    %272 = arith.select %270, %255, %203 : vector<32x128xi1>, vector<32x128xf32>
    %273 = vector.extract_strided_slice %270 {offsets = [0, 0], sizes = [16, 128], strides = [1, 1]} : vector<32x128xi1> to vector<16x128xi1>
    %274 = vector.extract_strided_slice %271 {offsets = [0, 0], sizes = [16, 128], strides = [1, 1]} : vector<32x128xf32> to vector<16x128xf32>
    %cst_88 = arith.constant 0.000000e+00 : f32
    %275 = vector.broadcast %cst_88 : f32 to vector<16x128xf32>
    %276 = arith.select %273, %274, %275 : vector<16x128xi1>, vector<16x128xf32>
    %277 = vector.extract_strided_slice %270 {offsets = [16, 0], sizes = [16, 128], strides = [1, 1]} : vector<32x128xi1> to vector<16x128xi1>
    %278 = vector.extract_strided_slice %271 {offsets = [16, 0], sizes = [16, 128], strides = [1, 1]} : vector<32x128xf32> to vector<16x128xf32>
    %cst_89 = arith.constant 0.000000e+00 : f32
    %279 = vector.broadcast %cst_89 : f32 to vector<16x128xf32>
    %280 = arith.select %277, %278, %279 : vector<16x128xi1>, vector<16x128xf32>
    %281 = vector.shape_cast %276 : vector<16x128xf32> to vector<1x16x128xf32>
    %282 = arith.index_cast %c3_i32 : i32 to index
    %c0_90 = arith.constant 0 : index
    %c0_91 = arith.constant 0 : index
    %283 = vector.load %arg7[%282, %c0_90, %c0_91] : memref<10x32x128xf32, #tpu.memory_space<vmem>>, vector<1x16x128xf32>
    tpu.vector_store %arg7[%282, %c0_90, %c0_91], %281 {strides = array<i32>} : memref<10x32x128xf32, #tpu.memory_space<vmem>>, vector<1x16x128xf32>,
    %284 = vector.shape_cast %280 : vector<16x128xf32> to vector<1x16x128xf32>
    %285 = arith.index_cast %218 : i32 to index
    %c16_92 = arith.constant 16 : index
    %c0_93 = arith.constant 0 : index
    %286 = vector.load %arg7[%285, %c16_92, %c0_93] : memref<10x32x128xf32, #tpu.memory_space<vmem>>, vector<1x16x128xf32>
    tpu.vector_store %arg7[%285, %c16_92, %c0_93], %284 {strides = array<i32>} : memref<10x32x128xf32, #tpu.memory_space<vmem>>, vector<1x16x128xf32>,
    %c4_i32 = arith.constant 4 : i32
    %c9_i32_94 = arith.constant 9 : i32
    %287 = arith.subi %c9_i32_94, %c4_i32 : i32
    %288 = arith.index_cast %c4_i32 : i32 to index
    %c0_95 = arith.constant 0 : index
    %c0_96 = arith.constant 0 : index
    %289 = vector.load %arg1[%288, %c0_95, %c0_96] : memref<10x128x16xf32, #tpu.memory_space<vmem>>, vector<1x128x16xf32>
    %290 = vector.shape_cast %289 : vector<1x128x16xf32> to vector<128x16xf32>
    %291 = arith.index_cast %287 : i32 to index
    %c0_97 = arith.constant 0 : index
    %c0_98 = arith.constant 0 : index
    %292 = vector.load %arg1[%291, %c0_97, %c0_98] : memref<10x128x16xf32, #tpu.memory_space<vmem>>, vector<1x128x16xf32>
    %293 = vector.shape_cast %292 : vector<1x128x16xf32> to vector<128x16xf32>
    %294 = tpu.transpose %290, [1, 0] : vector<128x16xf32> -> vector<16x128xf32>
    %cst_99 = arith.constant dense<0.000000e+00> : vector<128x128xf32>
    %295 = tpu.matmul %0, %294, %cst_99 {dimension_numbers = #tpu.dot_dimension_numbers<[1], [0], [0], [1], [0, 0, 1, 1], [], []>} : vector<128x16xf32>, vector<16x128xf32>, vector<128x128xf32> -> vector<128x128xf32>
    %296 = tpu.transpose %293, [1, 0] : vector<128x16xf32> -> vector<16x128xf32>
    %cst_100 = arith.constant dense<0.000000e+00> : vector<128x128xf32>
    %297 = tpu.matmul %1, %296, %cst_100 {dimension_numbers = #tpu.dot_dimension_numbers<[1], [0], [0], [1], [0, 0, 1, 1], [], []>} : vector<128x16xf32>, vector<16x128xf32>, vector<128x128xf32> -> vector<128x128xf32>
    %298 = arith.addf %295, %297 : vector<128x128xf32>
    %cst_101 = arith.constant dense<0.000000e+00> : vector<128x128xf32>
    %299 = tpu.matmul %2, %271, %cst_101 {dimension_numbers = #tpu.dot_dimension_numbers<[1], [0], [0], [1], [0, 0, 1, 1], [], []>} : vector<128x32xf32>, vector<32x128xf32>, vector<128x128xf32> -> vector<128x128xf32>
    %300 = arith.addf %298, %299 : vector<128x128xf32>
    %301 = arith.addf %300, %5 : vector<128x128xf32>
    %302 = vector.extract_strided_slice %301 {offsets = [0, 0], sizes = [32, 128], strides = [1, 1]} : vector<128x128xf32> to vector<32x128xf32>
    %303 = arith.negf %302 : vector<32x128xf32>
    %304 = math.exp %303 : vector<32x128xf32>
    %cst_102 = arith.constant 1.000000e+00 : f32
    %305 = vector.broadcast %cst_102 : f32 to vector<32x128xf32>
    %306 = arith.addf %305, %304 : vector<32x128xf32>
    %307 = arith.divf %305, %306 : vector<32x128xf32>
    %308 = vector.extract_strided_slice %301 {offsets = [32, 0], sizes = [32, 128], strides = [1, 1]} : vector<128x128xf32> to vector<32x128xf32>
    %309 = arith.negf %308 : vector<32x128xf32>
    %310 = math.exp %309 : vector<32x128xf32>
    %cst_103 = arith.constant 1.000000e+00 : f32
    %311 = vector.broadcast %cst_103 : f32 to vector<32x128xf32>
    %312 = arith.addf %311, %310 : vector<32x128xf32>
    %313 = arith.divf %311, %312 : vector<32x128xf32>
    %314 = vector.extract_strided_slice %301 {offsets = [64, 0], sizes = [32, 128], strides = [1, 1]} : vector<128x128xf32> to vector<32x128xf32>
    %315 = math.tanh %314 : vector<32x128xf32>
    %316 = vector.extract_strided_slice %301 {offsets = [96, 0], sizes = [32, 128], strides = [1, 1]} : vector<128x128xf32> to vector<32x128xf32>
    %317 = arith.negf %316 : vector<32x128xf32>
    %318 = math.exp %317 : vector<32x128xf32>
    %cst_104 = arith.constant 1.000000e+00 : f32
    %319 = vector.broadcast %cst_104 : f32 to vector<32x128xf32>
    %320 = arith.addf %319, %318 : vector<32x128xf32>
    %321 = arith.divf %319, %320 : vector<32x128xf32>
    %322 = arith.mulf %313, %272 : vector<32x128xf32>
    %323 = arith.mulf %307, %315 : vector<32x128xf32>
    %324 = arith.addf %322, %323 : vector<32x128xf32>
    %325 = math.tanh %324 : vector<32x128xf32>
    %326 = arith.mulf %321, %325 : vector<32x128xf32>
    %327 = arith.index_cast %c4_i32 : i32 to index
    %c0_105 = arith.constant 0 : index
    %c0_106 = arith.constant 0 : index
    %328 = vector.load %arg2[%327, %c0_105, %c0_106] : memref<10x1x128xf32, #tpu.memory_space<vmem>>, vector<1x1x128xf32>
    %329 = vector.shape_cast %328 : vector<1x1x128xf32> to vector<1x128xf32>
    %330 = arith.index_cast %287 : i32 to index
    %c0_107 = arith.constant 0 : index
    %c0_108 = arith.constant 0 : index
    %331 = vector.load %arg2[%330, %c0_107, %c0_108] : memref<10x1x128xf32, #tpu.memory_space<vmem>>, vector<1x1x128xf32>
    %332 = vector.shape_cast %331 : vector<1x1x128xf32> to vector<1x128xf32>
    %333 = vector.shape_cast %329 : vector<1x128xf32> to vector<1x128xf32>
    %334 = vector.broadcast %333 : vector<1x128xf32> to vector<32x128xf32>
    %335 = vector.shape_cast %332 : vector<1x128xf32> to vector<1x128xf32>
    %336 = vector.broadcast %335 : vector<1x128xf32> to vector<32x128xf32>
    %337 = arith.select %8, %334, %336 : vector<32x128xi1>, vector<32x128xf32>
    %cst_109 = arith.constant 5.000000e-01 : f32
    %338 = vector.broadcast %cst_109 : f32 to vector<32x128xf32>
    %339 = arith.cmpf ogt, %337, %338 : vector<32x128xf32>
    %340 = arith.select %339, %326, %271 : vector<32x128xi1>, vector<32x128xf32>
    %341 = arith.select %339, %324, %272 : vector<32x128xi1>, vector<32x128xf32>
    %342 = vector.extract_strided_slice %339 {offsets = [0, 0], sizes = [16, 128], strides = [1, 1]} : vector<32x128xi1> to vector<16x128xi1>
    %343 = vector.extract_strided_slice %340 {offsets = [0, 0], sizes = [16, 128], strides = [1, 1]} : vector<32x128xf32> to vector<16x128xf32>
    %cst_110 = arith.constant 0.000000e+00 : f32
    %344 = vector.broadcast %cst_110 : f32 to vector<16x128xf32>
    %345 = arith.select %342, %343, %344 : vector<16x128xi1>, vector<16x128xf32>
    %346 = vector.extract_strided_slice %339 {offsets = [16, 0], sizes = [16, 128], strides = [1, 1]} : vector<32x128xi1> to vector<16x128xi1>
    %347 = vector.extract_strided_slice %340 {offsets = [16, 0], sizes = [16, 128], strides = [1, 1]} : vector<32x128xf32> to vector<16x128xf32>
    %cst_111 = arith.constant 0.000000e+00 : f32
    %348 = vector.broadcast %cst_111 : f32 to vector<16x128xf32>
    %349 = arith.select %346, %347, %348 : vector<16x128xi1>, vector<16x128xf32>
    %350 = vector.shape_cast %345 : vector<16x128xf32> to vector<1x16x128xf32>
    %351 = arith.index_cast %c4_i32 : i32 to index
    %c0_112 = arith.constant 0 : index
    %c0_113 = arith.constant 0 : index
    %352 = vector.load %arg7[%351, %c0_112, %c0_113] : memref<10x32x128xf32, #tpu.memory_space<vmem>>, vector<1x16x128xf32>
    tpu.vector_store %arg7[%351, %c0_112, %c0_113], %350 {strides = array<i32>} : memref<10x32x128xf32, #tpu.memory_space<vmem>>, vector<1x16x128xf32>,
    %353 = vector.shape_cast %349 : vector<16x128xf32> to vector<1x16x128xf32>
    %354 = arith.index_cast %287 : i32 to index
    %c16_114 = arith.constant 16 : index
    %c0_115 = arith.constant 0 : index
    %355 = vector.load %arg7[%354, %c16_114, %c0_115] : memref<10x32x128xf32, #tpu.memory_space<vmem>>, vector<1x16x128xf32>
    tpu.vector_store %arg7[%354, %c16_114, %c0_115], %353 {strides = array<i32>} : memref<10x32x128xf32, #tpu.memory_space<vmem>>, vector<1x16x128xf32>,
    %c5_i32 = arith.constant 5 : i32
    %c9_i32_116 = arith.constant 9 : i32
    %356 = arith.subi %c9_i32_116, %c5_i32 : i32
    %357 = arith.index_cast %c5_i32 : i32 to index
    %c0_117 = arith.constant 0 : index
    %c0_118 = arith.constant 0 : index
    %358 = vector.load %arg1[%357, %c0_117, %c0_118] : memref<10x128x16xf32, #tpu.memory_space<vmem>>, vector<1x128x16xf32>
    %359 = vector.shape_cast %358 : vector<1x128x16xf32> to vector<128x16xf32>
    %360 = arith.index_cast %356 : i32 to index
    %c0_119 = arith.constant 0 : index
    %c0_120 = arith.constant 0 : index
    %361 = vector.load %arg1[%360, %c0_119, %c0_120] : memref<10x128x16xf32, #tpu.memory_space<vmem>>, vector<1x128x16xf32>
    %362 = vector.shape_cast %361 : vector<1x128x16xf32> to vector<128x16xf32>
    %363 = tpu.transpose %359, [1, 0] : vector<128x16xf32> -> vector<16x128xf32>
    %cst_121 = arith.constant dense<0.000000e+00> : vector<128x128xf32>
    %364 = tpu.matmul %0, %363, %cst_121 {dimension_numbers = #tpu.dot_dimension_numbers<[1], [0], [0], [1], [0, 0, 1, 1], [], []>} : vector<128x16xf32>, vector<16x128xf32>, vector<128x128xf32> -> vector<128x128xf32>
    %365 = tpu.transpose %362, [1, 0] : vector<128x16xf32> -> vector<16x128xf32>
    %cst_122 = arith.constant dense<0.000000e+00> : vector<128x128xf32>
    %366 = tpu.matmul %1, %365, %cst_122 {dimension_numbers = #tpu.dot_dimension_numbers<[1], [0], [0], [1], [0, 0, 1, 1], [], []>} : vector<128x16xf32>, vector<16x128xf32>, vector<128x128xf32> -> vector<128x128xf32>
    %367 = arith.addf %364, %366 : vector<128x128xf32>
    %cst_123 = arith.constant dense<0.000000e+00> : vector<128x128xf32>
    %368 = tpu.matmul %2, %340, %cst_123 {dimension_numbers = #tpu.dot_dimension_numbers<[1], [0], [0], [1], [0, 0, 1, 1], [], []>} : vector<128x32xf32>, vector<32x128xf32>, vector<128x128xf32> -> vector<128x128xf32>
    %369 = arith.addf %367, %368 : vector<128x128xf32>
    %370 = arith.addf %369, %5 : vector<128x128xf32>
    %371 = vector.extract_strided_slice %370 {offsets = [0, 0], sizes = [32, 128], strides = [1, 1]} : vector<128x128xf32> to vector<32x128xf32>
    %372 = arith.negf %371 : vector<32x128xf32>
    %373 = math.exp %372 : vector<32x128xf32>
    %cst_124 = arith.constant 1.000000e+00 : f32
    %374 = vector.broadcast %cst_124 : f32 to vector<32x128xf32>
    %375 = arith.addf %374, %373 : vector<32x128xf32>
    %376 = arith.divf %374, %375 : vector<32x128xf32>
    %377 = vector.extract_strided_slice %370 {offsets = [32, 0], sizes = [32, 128], strides = [1, 1]} : vector<128x128xf32> to vector<32x128xf32>
    %378 = arith.negf %377 : vector<32x128xf32>
    %379 = math.exp %378 : vector<32x128xf32>
    %cst_125 = arith.constant 1.000000e+00 : f32
    %380 = vector.broadcast %cst_125 : f32 to vector<32x128xf32>
    %381 = arith.addf %380, %379 : vector<32x128xf32>
    %382 = arith.divf %380, %381 : vector<32x128xf32>
    %383 = vector.extract_strided_slice %370 {offsets = [64, 0], sizes = [32, 128], strides = [1, 1]} : vector<128x128xf32> to vector<32x128xf32>
    %384 = math.tanh %383 : vector<32x128xf32>
    %385 = vector.extract_strided_slice %370 {offsets = [96, 0], sizes = [32, 128], strides = [1, 1]} : vector<128x128xf32> to vector<32x128xf32>
    %386 = arith.negf %385 : vector<32x128xf32>
    %387 = math.exp %386 : vector<32x128xf32>
    %cst_126 = arith.constant 1.000000e+00 : f32
    %388 = vector.broadcast %cst_126 : f32 to vector<32x128xf32>
    %389 = arith.addf %388, %387 : vector<32x128xf32>
    %390 = arith.divf %388, %389 : vector<32x128xf32>
    %391 = arith.mulf %382, %341 : vector<32x128xf32>
    %392 = arith.mulf %376, %384 : vector<32x128xf32>
    %393 = arith.addf %391, %392 : vector<32x128xf32>
    %394 = math.tanh %393 : vector<32x128xf32>
    %395 = arith.mulf %390, %394 : vector<32x128xf32>
    %396 = arith.index_cast %c5_i32 : i32 to index
    %c0_127 = arith.constant 0 : index
    %c0_128 = arith.constant 0 : index
    %397 = vector.load %arg2[%396, %c0_127, %c0_128] : memref<10x1x128xf32, #tpu.memory_space<vmem>>, vector<1x1x128xf32>
    %398 = vector.shape_cast %397 : vector<1x1x128xf32> to vector<1x128xf32>
    %399 = arith.index_cast %356 : i32 to index
    %c0_129 = arith.constant 0 : index
    %c0_130 = arith.constant 0 : index
    %400 = vector.load %arg2[%399, %c0_129, %c0_130] : memref<10x1x128xf32, #tpu.memory_space<vmem>>, vector<1x1x128xf32>
    %401 = vector.shape_cast %400 : vector<1x1x128xf32> to vector<1x128xf32>
    %402 = vector.shape_cast %398 : vector<1x128xf32> to vector<1x128xf32>
    %403 = vector.broadcast %402 : vector<1x128xf32> to vector<32x128xf32>
    %404 = vector.shape_cast %401 : vector<1x128xf32> to vector<1x128xf32>
    %405 = vector.broadcast %404 : vector<1x128xf32> to vector<32x128xf32>
    %406 = arith.select %8, %403, %405 : vector<32x128xi1>, vector<32x128xf32>
    %cst_131 = arith.constant 5.000000e-01 : f32
    %407 = vector.broadcast %cst_131 : f32 to vector<32x128xf32>
    %408 = arith.cmpf ogt, %406, %407 : vector<32x128xf32>
    %409 = arith.select %408, %395, %340 : vector<32x128xi1>, vector<32x128xf32>
    %410 = arith.select %408, %393, %341 : vector<32x128xi1>, vector<32x128xf32>
    %411 = vector.extract_strided_slice %408 {offsets = [0, 0], sizes = [16, 128], strides = [1, 1]} : vector<32x128xi1> to vector<16x128xi1>
    %412 = vector.extract_strided_slice %409 {offsets = [0, 0], sizes = [16, 128], strides = [1, 1]} : vector<32x128xf32> to vector<16x128xf32>
    %cst_132 = arith.constant 0.000000e+00 : f32
    %413 = vector.broadcast %cst_132 : f32 to vector<16x128xf32>
    %414 = arith.select %411, %412, %413 : vector<16x128xi1>, vector<16x128xf32>
    %415 = vector.extract_strided_slice %408 {offsets = [16, 0], sizes = [16, 128], strides = [1, 1]} : vector<32x128xi1> to vector<16x128xi1>
    %416 = vector.extract_strided_slice %409 {offsets = [16, 0], sizes = [16, 128], strides = [1, 1]} : vector<32x128xf32> to vector<16x128xf32>
    %cst_133 = arith.constant 0.000000e+00 : f32
    %417 = vector.broadcast %cst_133 : f32 to vector<16x128xf32>
    %418 = arith.select %415, %416, %417 : vector<16x128xi1>, vector<16x128xf32>
    %419 = vector.shape_cast %414 : vector<16x128xf32> to vector<1x16x128xf32>
    %420 = arith.index_cast %c5_i32 : i32 to index
    %c0_134 = arith.constant 0 : index
    %c0_135 = arith.constant 0 : index
    %421 = vector.load %arg7[%420, %c0_134, %c0_135] : memref<10x32x128xf32, #tpu.memory_space<vmem>>, vector<1x16x128xf32>
    tpu.vector_store %arg7[%420, %c0_134, %c0_135], %419 {strides = array<i32>} : memref<10x32x128xf32, #tpu.memory_space<vmem>>, vector<1x16x128xf32>,
    %422 = vector.shape_cast %418 : vector<16x128xf32> to vector<1x16x128xf32>
    %423 = arith.index_cast %356 : i32 to index
    %c16_136 = arith.constant 16 : index
    %c0_137 = arith.constant 0 : index
    %424 = vector.load %arg7[%423, %c16_136, %c0_137] : memref<10x32x128xf32, #tpu.memory_space<vmem>>, vector<1x16x128xf32>
    tpu.vector_store %arg7[%423, %c16_136, %c0_137], %422 {strides = array<i32>} : memref<10x32x128xf32, #tpu.memory_space<vmem>>, vector<1x16x128xf32>,
    %c6_i32 = arith.constant 6 : i32
    %c9_i32_138 = arith.constant 9 : i32
    %425 = arith.subi %c9_i32_138, %c6_i32 : i32
    %426 = arith.index_cast %c6_i32 : i32 to index
    %c0_139 = arith.constant 0 : index
    %c0_140 = arith.constant 0 : index
    %427 = vector.load %arg1[%426, %c0_139, %c0_140] : memref<10x128x16xf32, #tpu.memory_space<vmem>>, vector<1x128x16xf32>
    %428 = vector.shape_cast %427 : vector<1x128x16xf32> to vector<128x16xf32>
    %429 = arith.index_cast %425 : i32 to index
    %c0_141 = arith.constant 0 : index
    %c0_142 = arith.constant 0 : index
    %430 = vector.load %arg1[%429, %c0_141, %c0_142] : memref<10x128x16xf32, #tpu.memory_space<vmem>>, vector<1x128x16xf32>
    %431 = vector.shape_cast %430 : vector<1x128x16xf32> to vector<128x16xf32>
    %432 = tpu.transpose %428, [1, 0] : vector<128x16xf32> -> vector<16x128xf32>
    %cst_143 = arith.constant dense<0.000000e+00> : vector<128x128xf32>
    %433 = tpu.matmul %0, %432, %cst_143 {dimension_numbers = #tpu.dot_dimension_numbers<[1], [0], [0], [1], [0, 0, 1, 1], [], []>} : vector<128x16xf32>, vector<16x128xf32>, vector<128x128xf32> -> vector<128x128xf32>
    %434 = tpu.transpose %431, [1, 0] : vector<128x16xf32> -> vector<16x128xf32>
    %cst_144 = arith.constant dense<0.000000e+00> : vector<128x128xf32>
    %435 = tpu.matmul %1, %434, %cst_144 {dimension_numbers = #tpu.dot_dimension_numbers<[1], [0], [0], [1], [0, 0, 1, 1], [], []>} : vector<128x16xf32>, vector<16x128xf32>, vector<128x128xf32> -> vector<128x128xf32>
    %436 = arith.addf %433, %435 : vector<128x128xf32>
    %cst_145 = arith.constant dense<0.000000e+00> : vector<128x128xf32>
    %437 = tpu.matmul %2, %409, %cst_145 {dimension_numbers = #tpu.dot_dimension_numbers<[1], [0], [0], [1], [0, 0, 1, 1], [], []>} : vector<128x32xf32>, vector<32x128xf32>, vector<128x128xf32> -> vector<128x128xf32>
    %438 = arith.addf %436, %437 : vector<128x128xf32>
    %439 = arith.addf %438, %5 : vector<128x128xf32>
    %440 = vector.extract_strided_slice %439 {offsets = [0, 0], sizes = [32, 128], strides = [1, 1]} : vector<128x128xf32> to vector<32x128xf32>
    %441 = arith.negf %440 : vector<32x128xf32>
    %442 = math.exp %441 : vector<32x128xf32>
    %cst_146 = arith.constant 1.000000e+00 : f32
    %443 = vector.broadcast %cst_146 : f32 to vector<32x128xf32>
    %444 = arith.addf %443, %442 : vector<32x128xf32>
    %445 = arith.divf %443, %444 : vector<32x128xf32>
    %446 = vector.extract_strided_slice %439 {offsets = [32, 0], sizes = [32, 128], strides = [1, 1]} : vector<128x128xf32> to vector<32x128xf32>
    %447 = arith.negf %446 : vector<32x128xf32>
    %448 = math.exp %447 : vector<32x128xf32>
    %cst_147 = arith.constant 1.000000e+00 : f32
    %449 = vector.broadcast %cst_147 : f32 to vector<32x128xf32>
    %450 = arith.addf %449, %448 : vector<32x128xf32>
    %451 = arith.divf %449, %450 : vector<32x128xf32>
    %452 = vector.extract_strided_slice %439 {offsets = [64, 0], sizes = [32, 128], strides = [1, 1]} : vector<128x128xf32> to vector<32x128xf32>
    %453 = math.tanh %452 : vector<32x128xf32>
    %454 = vector.extract_strided_slice %439 {offsets = [96, 0], sizes = [32, 128], strides = [1, 1]} : vector<128x128xf32> to vector<32x128xf32>
    %455 = arith.negf %454 : vector<32x128xf32>
    %456 = math.exp %455 : vector<32x128xf32>
    %cst_148 = arith.constant 1.000000e+00 : f32
    %457 = vector.broadcast %cst_148 : f32 to vector<32x128xf32>
    %458 = arith.addf %457, %456 : vector<32x128xf32>
    %459 = arith.divf %457, %458 : vector<32x128xf32>
    %460 = arith.mulf %451, %410 : vector<32x128xf32>
    %461 = arith.mulf %445, %453 : vector<32x128xf32>
    %462 = arith.addf %460, %461 : vector<32x128xf32>
    %463 = math.tanh %462 : vector<32x128xf32>
    %464 = arith.mulf %459, %463 : vector<32x128xf32>
    %465 = arith.index_cast %c6_i32 : i32 to index
    %c0_149 = arith.constant 0 : index
    %c0_150 = arith.constant 0 : index
    %466 = vector.load %arg2[%465, %c0_149, %c0_150] : memref<10x1x128xf32, #tpu.memory_space<vmem>>, vector<1x1x128xf32>
    %467 = vector.shape_cast %466 : vector<1x1x128xf32> to vector<1x128xf32>
    %468 = arith.index_cast %425 : i32 to index
    %c0_151 = arith.constant 0 : index
    %c0_152 = arith.constant 0 : index
    %469 = vector.load %arg2[%468, %c0_151, %c0_152] : memref<10x1x128xf32, #tpu.memory_space<vmem>>, vector<1x1x128xf32>
    %470 = vector.shape_cast %469 : vector<1x1x128xf32> to vector<1x128xf32>
    %471 = vector.shape_cast %467 : vector<1x128xf32> to vector<1x128xf32>
    %472 = vector.broadcast %471 : vector<1x128xf32> to vector<32x128xf32>
    %473 = vector.shape_cast %470 : vector<1x128xf32> to vector<1x128xf32>
    %474 = vector.broadcast %473 : vector<1x128xf32> to vector<32x128xf32>
    %475 = arith.select %8, %472, %474 : vector<32x128xi1>, vector<32x128xf32>
    %cst_153 = arith.constant 5.000000e-01 : f32
    %476 = vector.broadcast %cst_153 : f32 to vector<32x128xf32>
    %477 = arith.cmpf ogt, %475, %476 : vector<32x128xf32>
    %478 = arith.select %477, %464, %409 : vector<32x128xi1>, vector<32x128xf32>
    %479 = arith.select %477, %462, %410 : vector<32x128xi1>, vector<32x128xf32>
    %480 = vector.extract_strided_slice %477 {offsets = [0, 0], sizes = [16, 128], strides = [1, 1]} : vector<32x128xi1> to vector<16x128xi1>
    %481 = vector.extract_strided_slice %478 {offsets = [0, 0], sizes = [16, 128], strides = [1, 1]} : vector<32x128xf32> to vector<16x128xf32>
    %cst_154 = arith.constant 0.000000e+00 : f32
    %482 = vector.broadcast %cst_154 : f32 to vector<16x128xf32>
    %483 = arith.select %480, %481, %482 : vector<16x128xi1>, vector<16x128xf32>
    %484 = vector.extract_strided_slice %477 {offsets = [16, 0], sizes = [16, 128], strides = [1, 1]} : vector<32x128xi1> to vector<16x128xi1>
    %485 = vector.extract_strided_slice %478 {offsets = [16, 0], sizes = [16, 128], strides = [1, 1]} : vector<32x128xf32> to vector<16x128xf32>
    %cst_155 = arith.constant 0.000000e+00 : f32
    %486 = vector.broadcast %cst_155 : f32 to vector<16x128xf32>
    %487 = arith.select %484, %485, %486 : vector<16x128xi1>, vector<16x128xf32>
    %488 = vector.shape_cast %483 : vector<16x128xf32> to vector<1x16x128xf32>
    %489 = arith.index_cast %c6_i32 : i32 to index
    %c0_156 = arith.constant 0 : index
    %c0_157 = arith.constant 0 : index
    %490 = vector.load %arg7[%489, %c0_156, %c0_157] : memref<10x32x128xf32, #tpu.memory_space<vmem>>, vector<1x16x128xf32>
    tpu.vector_store %arg7[%489, %c0_156, %c0_157], %488 {strides = array<i32>} : memref<10x32x128xf32, #tpu.memory_space<vmem>>, vector<1x16x128xf32>,
    %491 = vector.shape_cast %487 : vector<16x128xf32> to vector<1x16x128xf32>
    %492 = arith.index_cast %425 : i32 to index
    %c16_158 = arith.constant 16 : index
    %c0_159 = arith.constant 0 : index
    %493 = vector.load %arg7[%492, %c16_158, %c0_159] : memref<10x32x128xf32, #tpu.memory_space<vmem>>, vector<1x16x128xf32>
    tpu.vector_store %arg7[%492, %c16_158, %c0_159], %491 {strides = array<i32>} : memref<10x32x128xf32, #tpu.memory_space<vmem>>, vector<1x16x128xf32>,
    %c7_i32 = arith.constant 7 : i32
    %c9_i32_160 = arith.constant 9 : i32
    %494 = arith.subi %c9_i32_160, %c7_i32 : i32
    %495 = arith.index_cast %c7_i32 : i32 to index
    %c0_161 = arith.constant 0 : index
    %c0_162 = arith.constant 0 : index
    %496 = vector.load %arg1[%495, %c0_161, %c0_162] : memref<10x128x16xf32, #tpu.memory_space<vmem>>, vector<1x128x16xf32>
    %497 = vector.shape_cast %496 : vector<1x128x16xf32> to vector<128x16xf32>
    %498 = arith.index_cast %494 : i32 to index
    %c0_163 = arith.constant 0 : index
    %c0_164 = arith.constant 0 : index
    %499 = vector.load %arg1[%498, %c0_163, %c0_164] : memref<10x128x16xf32, #tpu.memory_space<vmem>>, vector<1x128x16xf32>
    %500 = vector.shape_cast %499 : vector<1x128x16xf32> to vector<128x16xf32>
    %501 = tpu.transpose %497, [1, 0] : vector<128x16xf32> -> vector<16x128xf32>
    %cst_165 = arith.constant dense<0.000000e+00> : vector<128x128xf32>
    %502 = tpu.matmul %0, %501, %cst_165 {dimension_numbers = #tpu.dot_dimension_numbers<[1], [0], [0], [1], [0, 0, 1, 1], [], []>} : vector<128x16xf32>, vector<16x128xf32>, vector<128x128xf32> -> vector<128x128xf32>
    %503 = tpu.transpose %500, [1, 0] : vector<128x16xf32> -> vector<16x128xf32>
    %cst_166 = arith.constant dense<0.000000e+00> : vector<128x128xf32>
    %504 = tpu.matmul %1, %503, %cst_166 {dimension_numbers = #tpu.dot_dimension_numbers<[1], [0], [0], [1], [0, 0, 1, 1], [], []>} : vector<128x16xf32>, vector<16x128xf32>, vector<128x128xf32> -> vector<128x128xf32>
    %505 = arith.addf %502, %504 : vector<128x128xf32>
    %cst_167 = arith.constant dense<0.000000e+00> : vector<128x128xf32>
    %506 = tpu.matmul %2, %478, %cst_167 {dimension_numbers = #tpu.dot_dimension_numbers<[1], [0], [0], [1], [0, 0, 1, 1], [], []>} : vector<128x32xf32>, vector<32x128xf32>, vector<128x128xf32> -> vector<128x128xf32>
    %507 = arith.addf %505, %506 : vector<128x128xf32>
    %508 = arith.addf %507, %5 : vector<128x128xf32>
    %509 = vector.extract_strided_slice %508 {offsets = [0, 0], sizes = [32, 128], strides = [1, 1]} : vector<128x128xf32> to vector<32x128xf32>
    %510 = arith.negf %509 : vector<32x128xf32>
    %511 = math.exp %510 : vector<32x128xf32>
    %cst_168 = arith.constant 1.000000e+00 : f32
    %512 = vector.broadcast %cst_168 : f32 to vector<32x128xf32>
    %513 = arith.addf %512, %511 : vector<32x128xf32>
    %514 = arith.divf %512, %513 : vector<32x128xf32>
    %515 = vector.extract_strided_slice %508 {offsets = [32, 0], sizes = [32, 128], strides = [1, 1]} : vector<128x128xf32> to vector<32x128xf32>
    %516 = arith.negf %515 : vector<32x128xf32>
    %517 = math.exp %516 : vector<32x128xf32>
    %cst_169 = arith.constant 1.000000e+00 : f32
    %518 = vector.broadcast %cst_169 : f32 to vector<32x128xf32>
    %519 = arith.addf %518, %517 : vector<32x128xf32>
    %520 = arith.divf %518, %519 : vector<32x128xf32>
    %521 = vector.extract_strided_slice %508 {offsets = [64, 0], sizes = [32, 128], strides = [1, 1]} : vector<128x128xf32> to vector<32x128xf32>
    %522 = math.tanh %521 : vector<32x128xf32>
    %523 = vector.extract_strided_slice %508 {offsets = [96, 0], sizes = [32, 128], strides = [1, 1]} : vector<128x128xf32> to vector<32x128xf32>
    %524 = arith.negf %523 : vector<32x128xf32>
    %525 = math.exp %524 : vector<32x128xf32>
    %cst_170 = arith.constant 1.000000e+00 : f32
    %526 = vector.broadcast %cst_170 : f32 to vector<32x128xf32>
    %527 = arith.addf %526, %525 : vector<32x128xf32>
    %528 = arith.divf %526, %527 : vector<32x128xf32>
    %529 = arith.mulf %520, %479 : vector<32x128xf32>
    %530 = arith.mulf %514, %522 : vector<32x128xf32>
    %531 = arith.addf %529, %530 : vector<32x128xf32>
    %532 = math.tanh %531 : vector<32x128xf32>
    %533 = arith.mulf %528, %532 : vector<32x128xf32>
    %534 = arith.index_cast %c7_i32 : i32 to index
    %c0_171 = arith.constant 0 : index
    %c0_172 = arith.constant 0 : index
    %535 = vector.load %arg2[%534, %c0_171, %c0_172] : memref<10x1x128xf32, #tpu.memory_space<vmem>>, vector<1x1x128xf32>
    %536 = vector.shape_cast %535 : vector<1x1x128xf32> to vector<1x128xf32>
    %537 = arith.index_cast %494 : i32 to index
    %c0_173 = arith.constant 0 : index
    %c0_174 = arith.constant 0 : index
    %538 = vector.load %arg2[%537, %c0_173, %c0_174] : memref<10x1x128xf32, #tpu.memory_space<vmem>>, vector<1x1x128xf32>
    %539 = vector.shape_cast %538 : vector<1x1x128xf32> to vector<1x128xf32>
    %540 = vector.shape_cast %536 : vector<1x128xf32> to vector<1x128xf32>
    %541 = vector.broadcast %540 : vector<1x128xf32> to vector<32x128xf32>
    %542 = vector.shape_cast %539 : vector<1x128xf32> to vector<1x128xf32>
    %543 = vector.broadcast %542 : vector<1x128xf32> to vector<32x128xf32>
    %544 = arith.select %8, %541, %543 : vector<32x128xi1>, vector<32x128xf32>
    %cst_175 = arith.constant 5.000000e-01 : f32
    %545 = vector.broadcast %cst_175 : f32 to vector<32x128xf32>
    %546 = arith.cmpf ogt, %544, %545 : vector<32x128xf32>
    %547 = arith.select %546, %533, %478 : vector<32x128xi1>, vector<32x128xf32>
    %548 = arith.select %546, %531, %479 : vector<32x128xi1>, vector<32x128xf32>
    %549 = vector.extract_strided_slice %546 {offsets = [0, 0], sizes = [16, 128], strides = [1, 1]} : vector<32x128xi1> to vector<16x128xi1>
    %550 = vector.extract_strided_slice %547 {offsets = [0, 0], sizes = [16, 128], strides = [1, 1]} : vector<32x128xf32> to vector<16x128xf32>
    %cst_176 = arith.constant 0.000000e+00 : f32
    %551 = vector.broadcast %cst_176 : f32 to vector<16x128xf32>
    %552 = arith.select %549, %550, %551 : vector<16x128xi1>, vector<16x128xf32>
    %553 = vector.extract_strided_slice %546 {offsets = [16, 0], sizes = [16, 128], strides = [1, 1]} : vector<32x128xi1> to vector<16x128xi1>
    %554 = vector.extract_strided_slice %547 {offsets = [16, 0], sizes = [16, 128], strides = [1, 1]} : vector<32x128xf32> to vector<16x128xf32>
    %cst_177 = arith.constant 0.000000e+00 : f32
    %555 = vector.broadcast %cst_177 : f32 to vector<16x128xf32>
    %556 = arith.select %553, %554, %555 : vector<16x128xi1>, vector<16x128xf32>
    %557 = vector.shape_cast %552 : vector<16x128xf32> to vector<1x16x128xf32>
    %558 = arith.index_cast %c7_i32 : i32 to index
    %c0_178 = arith.constant 0 : index
    %c0_179 = arith.constant 0 : index
    %559 = vector.load %arg7[%558, %c0_178, %c0_179] : memref<10x32x128xf32, #tpu.memory_space<vmem>>, vector<1x16x128xf32>
    tpu.vector_store %arg7[%558, %c0_178, %c0_179], %557 {strides = array<i32>} : memref<10x32x128xf32, #tpu.memory_space<vmem>>, vector<1x16x128xf32>,
    %560 = vector.shape_cast %556 : vector<16x128xf32> to vector<1x16x128xf32>
    %561 = arith.index_cast %494 : i32 to index
    %c16_180 = arith.constant 16 : index
    %c0_181 = arith.constant 0 : index
    %562 = vector.load %arg7[%561, %c16_180, %c0_181] : memref<10x32x128xf32, #tpu.memory_space<vmem>>, vector<1x16x128xf32>
    tpu.vector_store %arg7[%561, %c16_180, %c0_181], %560 {strides = array<i32>} : memref<10x32x128xf32, #tpu.memory_space<vmem>>, vector<1x16x128xf32>,
    %c8_i32 = arith.constant 8 : i32
    %c9_i32_182 = arith.constant 9 : i32
    %563 = arith.subi %c9_i32_182, %c8_i32 : i32
    %564 = arith.index_cast %c8_i32 : i32 to index
    %c0_183 = arith.constant 0 : index
    %c0_184 = arith.constant 0 : index
    %565 = vector.load %arg1[%564, %c0_183, %c0_184] : memref<10x128x16xf32, #tpu.memory_space<vmem>>, vector<1x128x16xf32>
    %566 = vector.shape_cast %565 : vector<1x128x16xf32> to vector<128x16xf32>
    %567 = arith.index_cast %563 : i32 to index
    %c0_185 = arith.constant 0 : index
    %c0_186 = arith.constant 0 : index
    %568 = vector.load %arg1[%567, %c0_185, %c0_186] : memref<10x128x16xf32, #tpu.memory_space<vmem>>, vector<1x128x16xf32>
    %569 = vector.shape_cast %568 : vector<1x128x16xf32> to vector<128x16xf32>
    %570 = tpu.transpose %566, [1, 0] : vector<128x16xf32> -> vector<16x128xf32>
    %cst_187 = arith.constant dense<0.000000e+00> : vector<128x128xf32>
    %571 = tpu.matmul %0, %570, %cst_187 {dimension_numbers = #tpu.dot_dimension_numbers<[1], [0], [0], [1], [0, 0, 1, 1], [], []>} : vector<128x16xf32>, vector<16x128xf32>, vector<128x128xf32> -> vector<128x128xf32>
    %572 = tpu.transpose %569, [1, 0] : vector<128x16xf32> -> vector<16x128xf32>
    %cst_188 = arith.constant dense<0.000000e+00> : vector<128x128xf32>
    %573 = tpu.matmul %1, %572, %cst_188 {dimension_numbers = #tpu.dot_dimension_numbers<[1], [0], [0], [1], [0, 0, 1, 1], [], []>} : vector<128x16xf32>, vector<16x128xf32>, vector<128x128xf32> -> vector<128x128xf32>
    %574 = arith.addf %571, %573 : vector<128x128xf32>
    %cst_189 = arith.constant dense<0.000000e+00> : vector<128x128xf32>
    %575 = tpu.matmul %2, %547, %cst_189 {dimension_numbers = #tpu.dot_dimension_numbers<[1], [0], [0], [1], [0, 0, 1, 1], [], []>} : vector<128x32xf32>, vector<32x128xf32>, vector<128x128xf32> -> vector<128x128xf32>
    %576 = arith.addf %574, %575 : vector<128x128xf32>
    %577 = arith.addf %576, %5 : vector<128x128xf32>
    %578 = vector.extract_strided_slice %577 {offsets = [0, 0], sizes = [32, 128], strides = [1, 1]} : vector<128x128xf32> to vector<32x128xf32>
    %579 = arith.negf %578 : vector<32x128xf32>
    %580 = math.exp %579 : vector<32x128xf32>
    %cst_190 = arith.constant 1.000000e+00 : f32
    %581 = vector.broadcast %cst_190 : f32 to vector<32x128xf32>
    %582 = arith.addf %581, %580 : vector<32x128xf32>
    %583 = arith.divf %581, %582 : vector<32x128xf32>
    %584 = vector.extract_strided_slice %577 {offsets = [32, 0], sizes = [32, 128], strides = [1, 1]} : vector<128x128xf32> to vector<32x128xf32>
    %585 = arith.negf %584 : vector<32x128xf32>
    %586 = math.exp %585 : vector<32x128xf32>
    %cst_191 = arith.constant 1.000000e+00 : f32
    %587 = vector.broadcast %cst_191 : f32 to vector<32x128xf32>
    %588 = arith.addf %587, %586 : vector<32x128xf32>
    %589 = arith.divf %587, %588 : vector<32x128xf32>
    %590 = vector.extract_strided_slice %577 {offsets = [64, 0], sizes = [32, 128], strides = [1, 1]} : vector<128x128xf32> to vector<32x128xf32>
    %591 = math.tanh %590 : vector<32x128xf32>
    %592 = vector.extract_strided_slice %577 {offsets = [96, 0], sizes = [32, 128], strides = [1, 1]} : vector<128x128xf32> to vector<32x128xf32>
    %593 = arith.negf %592 : vector<32x128xf32>
    %594 = math.exp %593 : vector<32x128xf32>
    %cst_192 = arith.constant 1.000000e+00 : f32
    %595 = vector.broadcast %cst_192 : f32 to vector<32x128xf32>
    %596 = arith.addf %595, %594 : vector<32x128xf32>
    %597 = arith.divf %595, %596 : vector<32x128xf32>
    %598 = arith.mulf %589, %548 : vector<32x128xf32>
    %599 = arith.mulf %583, %591 : vector<32x128xf32>
    %600 = arith.addf %598, %599 : vector<32x128xf32>
    %601 = math.tanh %600 : vector<32x128xf32>
    %602 = arith.mulf %597, %601 : vector<32x128xf32>
    %603 = arith.index_cast %c8_i32 : i32 to index
    %c0_193 = arith.constant 0 : index
    %c0_194 = arith.constant 0 : index
    %604 = vector.load %arg2[%603, %c0_193, %c0_194] : memref<10x1x128xf32, #tpu.memory_space<vmem>>, vector<1x1x128xf32>
    %605 = vector.shape_cast %604 : vector<1x1x128xf32> to vector<1x128xf32>
    %606 = arith.index_cast %563 : i32 to index
    %c0_195 = arith.constant 0 : index
    %c0_196 = arith.constant 0 : index
    %607 = vector.load %arg2[%606, %c0_195, %c0_196] : memref<10x1x128xf32, #tpu.memory_space<vmem>>, vector<1x1x128xf32>
    %608 = vector.shape_cast %607 : vector<1x1x128xf32> to vector<1x128xf32>
    %609 = vector.shape_cast %605 : vector<1x128xf32> to vector<1x128xf32>
    %610 = vector.broadcast %609 : vector<1x128xf32> to vector<32x128xf32>
    %611 = vector.shape_cast %608 : vector<1x128xf32> to vector<1x128xf32>
    %612 = vector.broadcast %611 : vector<1x128xf32> to vector<32x128xf32>
    %613 = arith.select %8, %610, %612 : vector<32x128xi1>, vector<32x128xf32>
    %cst_197 = arith.constant 5.000000e-01 : f32
    %614 = vector.broadcast %cst_197 : f32 to vector<32x128xf32>
    %615 = arith.cmpf ogt, %613, %614 : vector<32x128xf32>
    %616 = arith.select %615, %602, %547 : vector<32x128xi1>, vector<32x128xf32>
    %617 = arith.select %615, %600, %548 : vector<32x128xi1>, vector<32x128xf32>
    %618 = vector.extract_strided_slice %615 {offsets = [0, 0], sizes = [16, 128], strides = [1, 1]} : vector<32x128xi1> to vector<16x128xi1>
    %619 = vector.extract_strided_slice %616 {offsets = [0, 0], sizes = [16, 128], strides = [1, 1]} : vector<32x128xf32> to vector<16x128xf32>
    %cst_198 = arith.constant 0.000000e+00 : f32
    %620 = vector.broadcast %cst_198 : f32 to vector<16x128xf32>
    %621 = arith.select %618, %619, %620 : vector<16x128xi1>, vector<16x128xf32>
    %622 = vector.extract_strided_slice %615 {offsets = [16, 0], sizes = [16, 128], strides = [1, 1]} : vector<32x128xi1> to vector<16x128xi1>
    %623 = vector.extract_strided_slice %616 {offsets = [16, 0], sizes = [16, 128], strides = [1, 1]} : vector<32x128xf32> to vector<16x128xf32>
    %cst_199 = arith.constant 0.000000e+00 : f32
    %624 = vector.broadcast %cst_199 : f32 to vector<16x128xf32>
    %625 = arith.select %622, %623, %624 : vector<16x128xi1>, vector<16x128xf32>
    %626 = vector.shape_cast %621 : vector<16x128xf32> to vector<1x16x128xf32>
    %627 = arith.index_cast %c8_i32 : i32 to index
    %c0_200 = arith.constant 0 : index
    %c0_201 = arith.constant 0 : index
    %628 = vector.load %arg7[%627, %c0_200, %c0_201] : memref<10x32x128xf32, #tpu.memory_space<vmem>>, vector<1x16x128xf32>
    tpu.vector_store %arg7[%627, %c0_200, %c0_201], %626 {strides = array<i32>} : memref<10x32x128xf32, #tpu.memory_space<vmem>>, vector<1x16x128xf32>,
    %629 = vector.shape_cast %625 : vector<16x128xf32> to vector<1x16x128xf32>
    %630 = arith.index_cast %563 : i32 to index
    %c16_202 = arith.constant 16 : index
    %c0_203 = arith.constant 0 : index
    %631 = vector.load %arg7[%630, %c16_202, %c0_203] : memref<10x32x128xf32, #tpu.memory_space<vmem>>, vector<1x16x128xf32>
    tpu.vector_store %arg7[%630, %c16_202, %c0_203], %629 {strides = array<i32>} : memref<10x32x128xf32, #tpu.memory_space<vmem>>, vector<1x16x128xf32>,
    %c9_i32_204 = arith.constant 9 : i32
    %c9_i32_205 = arith.constant 9 : i32
    %632 = arith.subi %c9_i32_205, %c9_i32_204 : i32
    %633 = arith.index_cast %c9_i32_204 : i32 to index
    %c0_206 = arith.constant 0 : index
    %c0_207 = arith.constant 0 : index
    %634 = vector.load %arg1[%633, %c0_206, %c0_207] : memref<10x128x16xf32, #tpu.memory_space<vmem>>, vector<1x128x16xf32>
    %635 = vector.shape_cast %634 : vector<1x128x16xf32> to vector<128x16xf32>
    %636 = arith.index_cast %632 : i32 to index
    %c0_208 = arith.constant 0 : index
    %c0_209 = arith.constant 0 : index
    %637 = vector.load %arg1[%636, %c0_208, %c0_209] : memref<10x128x16xf32, #tpu.memory_space<vmem>>, vector<1x128x16xf32>
    %638 = vector.shape_cast %637 : vector<1x128x16xf32> to vector<128x16xf32>
    %639 = tpu.transpose %635, [1, 0] : vector<128x16xf32> -> vector<16x128xf32>
    %cst_210 = arith.constant dense<0.000000e+00> : vector<128x128xf32>
    %640 = tpu.matmul %0, %639, %cst_210 {dimension_numbers = #tpu.dot_dimension_numbers<[1], [0], [0], [1], [0, 0, 1, 1], [], []>} : vector<128x16xf32>, vector<16x128xf32>, vector<128x128xf32> -> vector<128x128xf32>
    %641 = tpu.transpose %638, [1, 0] : vector<128x16xf32> -> vector<16x128xf32>
    %cst_211 = arith.constant dense<0.000000e+00> : vector<128x128xf32>
    %642 = tpu.matmul %1, %641, %cst_211 {dimension_numbers = #tpu.dot_dimension_numbers<[1], [0], [0], [1], [0, 0, 1, 1], [], []>} : vector<128x16xf32>, vector<16x128xf32>, vector<128x128xf32> -> vector<128x128xf32>
    %643 = arith.addf %640, %642 : vector<128x128xf32>
    %cst_212 = arith.constant dense<0.000000e+00> : vector<128x128xf32>
    %644 = tpu.matmul %2, %616, %cst_212 {dimension_numbers = #tpu.dot_dimension_numbers<[1], [0], [0], [1], [0, 0, 1, 1], [], []>} : vector<128x32xf32>, vector<32x128xf32>, vector<128x128xf32> -> vector<128x128xf32>
    %645 = arith.addf %643, %644 : vector<128x128xf32>
    %646 = arith.addf %645, %5 : vector<128x128xf32>
    %647 = vector.extract_strided_slice %646 {offsets = [0, 0], sizes = [32, 128], strides = [1, 1]} : vector<128x128xf32> to vector<32x128xf32>
    %648 = arith.negf %647 : vector<32x128xf32>
    %649 = math.exp %648 : vector<32x128xf32>
    %cst_213 = arith.constant 1.000000e+00 : f32
    %650 = vector.broadcast %cst_213 : f32 to vector<32x128xf32>
    %651 = arith.addf %650, %649 : vector<32x128xf32>
    %652 = arith.divf %650, %651 : vector<32x128xf32>
    %653 = vector.extract_strided_slice %646 {offsets = [32, 0], sizes = [32, 128], strides = [1, 1]} : vector<128x128xf32> to vector<32x128xf32>
    %654 = arith.negf %653 : vector<32x128xf32>
    %655 = math.exp %654 : vector<32x128xf32>
    %cst_214 = arith.constant 1.000000e+00 : f32
    %656 = vector.broadcast %cst_214 : f32 to vector<32x128xf32>
    %657 = arith.addf %656, %655 : vector<32x128xf32>
    %658 = arith.divf %656, %657 : vector<32x128xf32>
    %659 = vector.extract_strided_slice %646 {offsets = [64, 0], sizes = [32, 128], strides = [1, 1]} : vector<128x128xf32> to vector<32x128xf32>
    %660 = math.tanh %659 : vector<32x128xf32>
    %661 = vector.extract_strided_slice %646 {offsets = [96, 0], sizes = [32, 128], strides = [1, 1]} : vector<128x128xf32> to vector<32x128xf32>
    %662 = arith.negf %661 : vector<32x128xf32>
    %663 = math.exp %662 : vector<32x128xf32>
    %cst_215 = arith.constant 1.000000e+00 : f32
    %664 = vector.broadcast %cst_215 : f32 to vector<32x128xf32>
    %665 = arith.addf %664, %663 : vector<32x128xf32>
    %666 = arith.divf %664, %665 : vector<32x128xf32>
    %667 = arith.mulf %658, %617 : vector<32x128xf32>
    %668 = arith.mulf %652, %660 : vector<32x128xf32>
    %669 = arith.addf %667, %668 : vector<32x128xf32>
    %670 = math.tanh %669 : vector<32x128xf32>
    %671 = arith.mulf %666, %670 : vector<32x128xf32>
    %672 = arith.index_cast %c9_i32_204 : i32 to index
    %c0_216 = arith.constant 0 : index
    %c0_217 = arith.constant 0 : index
    %673 = vector.load %arg2[%672, %c0_216, %c0_217] : memref<10x1x128xf32, #tpu.memory_space<vmem>>, vector<1x1x128xf32>
    %674 = vector.shape_cast %673 : vector<1x1x128xf32> to vector<1x128xf32>
    %675 = arith.index_cast %632 : i32 to index
    %c0_218 = arith.constant 0 : index
    %c0_219 = arith.constant 0 : index
    %676 = vector.load %arg2[%675, %c0_218, %c0_219] : memref<10x1x128xf32, #tpu.memory_space<vmem>>, vector<1x1x128xf32>
    %677 = vector.shape_cast %676 : vector<1x1x128xf32> to vector<1x128xf32>
    %678 = vector.shape_cast %674 : vector<1x128xf32> to vector<1x128xf32>
    %679 = vector.broadcast %678 : vector<1x128xf32> to vector<32x128xf32>
    %680 = vector.shape_cast %677 : vector<1x128xf32> to vector<1x128xf32>
    %681 = vector.broadcast %680 : vector<1x128xf32> to vector<32x128xf32>
    %682 = arith.select %8, %679, %681 : vector<32x128xi1>, vector<32x128xf32>
    %cst_220 = arith.constant 5.000000e-01 : f32
    %683 = vector.broadcast %cst_220 : f32 to vector<32x128xf32>
    %684 = arith.cmpf ogt, %682, %683 : vector<32x128xf32>
    %685 = arith.select %684, %671, %616 : vector<32x128xi1>, vector<32x128xf32>
    %686 = arith.select %684, %669, %617 : vector<32x128xi1>, vector<32x128xf32>
    %687 = vector.extract_strided_slice %684 {offsets = [0, 0], sizes = [16, 128], strides = [1, 1]} : vector<32x128xi1> to vector<16x128xi1>
    %688 = vector.extract_strided_slice %685 {offsets = [0, 0], sizes = [16, 128], strides = [1, 1]} : vector<32x128xf32> to vector<16x128xf32>
    %cst_221 = arith.constant 0.000000e+00 : f32
    %689 = vector.broadcast %cst_221 : f32 to vector<16x128xf32>
    %690 = arith.select %687, %688, %689 : vector<16x128xi1>, vector<16x128xf32>
    %691 = vector.extract_strided_slice %684 {offsets = [16, 0], sizes = [16, 128], strides = [1, 1]} : vector<32x128xi1> to vector<16x128xi1>
    %692 = vector.extract_strided_slice %685 {offsets = [16, 0], sizes = [16, 128], strides = [1, 1]} : vector<32x128xf32> to vector<16x128xf32>
    %cst_222 = arith.constant 0.000000e+00 : f32
    %693 = vector.broadcast %cst_222 : f32 to vector<16x128xf32>
    %694 = arith.select %691, %692, %693 : vector<16x128xi1>, vector<16x128xf32>
    %695 = vector.shape_cast %690 : vector<16x128xf32> to vector<1x16x128xf32>
    %696 = arith.index_cast %c9_i32_204 : i32 to index
    %c0_223 = arith.constant 0 : index
    %c0_224 = arith.constant 0 : index
    %697 = vector.load %arg7[%696, %c0_223, %c0_224] : memref<10x32x128xf32, #tpu.memory_space<vmem>>, vector<1x16x128xf32>
    tpu.vector_store %arg7[%696, %c0_223, %c0_224], %695 {strides = array<i32>} : memref<10x32x128xf32, #tpu.memory_space<vmem>>, vector<1x16x128xf32>,
    %698 = vector.shape_cast %694 : vector<16x128xf32> to vector<1x16x128xf32>
    %699 = arith.index_cast %632 : i32 to index
    %c16_225 = arith.constant 16 : index
    %c0_226 = arith.constant 0 : index
    %700 = vector.load %arg7[%699, %c16_225, %c0_226] : memref<10x32x128xf32, #tpu.memory_space<vmem>>, vector<1x16x128xf32>
    tpu.vector_store %arg7[%699, %c16_225, %c0_226], %698 {strides = array<i32>} : memref<10x32x128xf32, #tpu.memory_space<vmem>>, vector<1x16x128xf32>,
    %c10_i32 = arith.constant 10 : i32
    return
  }
  func.func @transform_0(%arg0: i32) -> (i32, i32, i32) {
    %c0_i32 = arith.constant 0 : i32
    %c0_i32_0 = arith.constant 0 : i32
    %c0_i32_1 = arith.constant 0 : i32
    return %c0_i32, %arg0, %c0_i32_0 : i32, i32, i32
  }
  func.func @transform_1(%arg0: i32) -> (i32, i32, i32) {
    %c0_i32 = arith.constant 0 : i32
    %c0_i32_0 = arith.constant 0 : i32
    %c0_i32_1 = arith.constant 0 : i32
    return %c0_i32, %c0_i32_0, %arg0 : i32, i32, i32
  }
  func.func @transform_2(%arg0: i32) -> (i32, i32) {
    %c0_i32 = arith.constant 0 : i32
    %c0_i32_0 = arith.constant 0 : i32
    %c0_i32_1 = arith.constant 0 : i32
    return %c0_i32, %c0_i32_0 : i32, i32
  }
  func.func @transform_3(%arg0: i32) -> (i32, i32) {
    %c0_i32 = arith.constant 0 : i32
    %c0_i32_0 = arith.constant 0 : i32
    %c0_i32_1 = arith.constant 0 : i32
    return %c0_i32, %c0_i32_0 : i32, i32
  }
  func.func @transform_4(%arg0: i32) -> (i32, i32) {
    %c0_i32 = arith.constant 0 : i32
    %c0_i32_0 = arith.constant 0 : i32
    %c0_i32_1 = arith.constant 0 : i32
    return %c0_i32, %c0_i32_0 : i32, i32
  }
  func.func @transform_5(%arg0: i32) -> (i32, i32) {
    %c0_i32 = arith.constant 0 : i32
    %c0_i32_0 = arith.constant 0 : i32
    %c0_i32_1 = arith.constant 0 : i32
    return %c0_i32, %c0_i32_0 : i32, i32
  }
  func.func @transform_6(%arg0: i32) -> (i32, i32, i32) {
    %c0_i32 = arith.constant 0 : i32
    %c0_i32_0 = arith.constant 0 : i32
    %c0_i32_1 = arith.constant 0 : i32
    return %c0_i32, %c0_i32_0, %arg0 : i32, i32, i32
  }
}

</mosaic_0001>

<llo_original>
// kernel: tpu_custom_call.1
$region0: #{tpu_custom_call.1}
  #allocation0 [shape = 'u32[]', space=smem, size = 0x4, offset = 0x4, fixed_abs, tag = 'smem constant byte address 0x4 - core index']
  #allocation1 [shape = 'u32[144,128]{1,0:T(1,128)}', space=vmem, size = 0x12000, scoped, tag = 'internal scratch']
  %s0 = inlined_call_operand.vmem [shape: f32[10,128,16], index: 0, kind: input, shape index: {}]
  %s1 = inlined_call_operand.vmem [shape: f32[10,1,128], index: 1, kind: input, shape index: {}]
  %s2 = inlined_call_operand.vmem [shape: f32[128,16], index: 2, kind: input, shape index: {}]
  %s3 = inlined_call_operand.vmem [shape: f32[128,16], index: 3, kind: input, shape index: {}]
  %s4 = inlined_call_operand.vmem [shape: f32[128,32], index: 4, kind: input, shape index: {}]
  %s5 = inlined_call_operand.vmem [shape: f32[128,1], index: 5, kind: input, shape index: {}]
  %s6 = inlined_call_operand.hbm [shape: f32[10,32,128], index: 6, kind: output, shape index: {}]
  %s7 = sld [smem:[#allocation0]]
  $region34: #{tpu_custom_call.1} parent=0
    _
  %s9 = ssub.s32 1, %s7
  %s10 = scalar_select 0, %s9, %s7
  $region1: #{tpu_custom_call.1} parent=0
    #allocation2 [shape = 'u8[163840]{0}', space=vmem, size = 0x28000, scoped, tag = 'output window, operand 0, single buffered']
    #allocation3 [shape = 's32[1]{0}', space=sflag, size = 0x4, scoped, tag = 'scoped memory for tpu_custom_call.1']
    %11 = vsyncpa [#allocation3], 0
    // Predicated region
    $region2: #{tpu_custom_call.1} parent=1 // pred_check
      _
    $region3: #{tpu_custom_call.1} parent=1 // pred_check_branch
      %13 = sbr.rel (0) target = $region5
    $region4: #{tpu_custom_call.1} parent=1 // pred_region
      _
    $region5: #{tpu_custom_call.1} parent=1 // pred_fallthru
      _
    // Predicated region
    $region6: #{tpu_custom_call.1} parent=1 // pred_check
      _
    $region7: #{tpu_custom_call.1} parent=1 // pred_check_branch
      %15 = sbr.rel (0) target = $region9
    $region8: #{tpu_custom_call.1} parent=1 // pred_region
      _
    $region9: #{tpu_custom_call.1} parent=1 // pred_fallthru
      _
    // Predicated region
    $region10: #{tpu_custom_call.1} parent=1 // pred_check
      _
    $region11: #{tpu_custom_call.1} parent=1 // pred_check_branch
      %17 = sbr.rel (0) target = $region13
    $region12: #{tpu_custom_call.1} parent=1 // pred_region
      _
    $region13: #{tpu_custom_call.1} parent=1 // pred_fallthru
      _
    // Predicated region
    $region14: #{tpu_custom_call.1} parent=1 // pred_check
      _
    $region15: #{tpu_custom_call.1} parent=1 // pred_check_branch
      %19 = sbr.rel (0) target = $region17
    $region16: #{tpu_custom_call.1} parent=1 // pred_region
      _
    $region17: #{tpu_custom_call.1} parent=1 // pred_fallthru
      _
    // Predicated region
    $region18: #{tpu_custom_call.1} parent=1 // pred_check
      _
    $region19: #{tpu_custom_call.1} parent=1 // pred_check_branch
      %21 = sbr.rel (0) target = $region21
    $region20: #{tpu_custom_call.1} parent=1 // pred_region
      _
    $region21: #{tpu_custom_call.1} parent=1 // pred_fallthru
      _
    // Predicated region
    $region22: #{tpu_custom_call.1} parent=1 // pred_check
      _
    $region23: #{tpu_custom_call.1} parent=1 // pred_check_branch
      %23 = sbr.rel (0) target = $region25
    $region24: #{tpu_custom_call.1} parent=1 // pred_region
      _
    $region25: #{tpu_custom_call.1} parent=1 // pred_fallthru
      _
    %v24 = vld [vmem:[%s2] sm:$0xff]
    %v25 = vld [vmem:[%s2 + $0x8] sm:$0xff]
    %v26 = vld [vmem:[%s2 + $0x10] sm:$0xff]
    %v27 = vld [vmem:[%s2 + $0x18] sm:$0xff]
    %v28 = vld [vmem:[%s2 + $0x20] sm:$0xff]
    %v29 = vld [vmem:[%s2 + $0x28] sm:$0xff]
    %v30 = vld [vmem:[%s2 + $0x30] sm:$0xff]
    %v31 = vld [vmem:[%s2 + $0x38] sm:$0xff]
    %v32 = vld [vmem:[%s2 + $0x40] sm:$0xff]
    %v33 = vld [vmem:[%s2 + $0x48] sm:$0xff]
    %v34 = vld [vmem:[%s2 + $0x50] sm:$0xff]
    %v35 = vld [vmem:[%s2 + $0x58] sm:$0xff]
    %v36 = vld [vmem:[%s2 + $0x60] sm:$0xff]
    %v37 = vld [vmem:[%s2 + $0x68] sm:$0xff]
    %v38 = vld [vmem:[%s2 + $0x70] sm:$0xff]
    %v39 = vld [vmem:[%s2 + $0x78] sm:$0xff]
    %v40 = vld [vmem:[%s3] sm:$0xff]
    %v41 = vld [vmem:[%s3 + $0x8] sm:$0xff]
    %v42 = vld [vmem:[%s3 + $0x10] sm:$0xff]
    %v43 = vld [vmem:[%s3 + $0x18] sm:$0xff]
    %v44 = vld [vmem:[%s3 + $0x20] sm:$0xff]
    %v45 = vld [vmem:[%s3 + $0x28] sm:$0xff]
    %v46 = vld [vmem:[%s3 + $0x30] sm:$0xff]
    %v47 = vld [vmem:[%s3 + $0x38] sm:$0xff]
    %v48 = vld [vmem:[%s3 + $0x40] sm:$0xff]
    %v49 = vld [vmem:[%s3 + $0x48] sm:$0xff]
    %v50 = vld [vmem:[%s3 + $0x50] sm:$0xff]
    %v51 = vld [vmem:[%s3 + $0x58] sm:$0xff]
    %v52 = vld [vmem:[%s3 + $0x60] sm:$0xff]
    %v53 = vld [vmem:[%s3 + $0x68] sm:$0xff]
    %v54 = vld [vmem:[%s3 + $0x70] sm:$0xff]
    %v55 = vld [vmem:[%s3 + $0x78] sm:$0xff]
    %v56 = vld [vmem:[%s4] sm:$0xff]
    %v57 = vld [vmem:[%s4 + $0x8] sm:$0xff]
    %v58 = vld [vmem:[%s4 + $0x10] sm:$0xff]
    %v59 = vld [vmem:[%s4 + $0x18] sm:$0xff]
    %v60 = vld [vmem:[%s4 + $0x20] sm:$0xff]
    %v61 = vld [vmem:[%s4 + $0x28] sm:$0xff]
    %v62 = vld [vmem:[%s4 + $0x30] sm:$0xff]
    %v63 = vld [vmem:[%s4 + $0x38] sm:$0xff]
    %v64 = vld [vmem:[%s4 + $0x40] sm:$0xff]
    %v65 = vld [vmem:[%s4 + $0x48] sm:$0xff]
    %v66 = vld [vmem:[%s4 + $0x50] sm:$0xff]
    %v67 = vld [vmem:[%s4 + $0x58] sm:$0xff]
    %v68 = vld [vmem:[%s4 + $0x60] sm:$0xff]
    %v69 = vld [vmem:[%s4 + $0x68] sm:$0xff]
    %v70 = vld [vmem:[%s4 + $0x70] sm:$0xff]
    %v71 = vld [vmem:[%s4 + $0x78] sm:$0xff]
    %v72 = vld [vmem:[%s5] sm:$0xff]
    %v73 = vld [vmem:[%s5 + $0x8] sm:$0xff]
    %v74 = vld [vmem:[%s5 + $0x10] sm:$0xff]
    %v75 = vld [vmem:[%s5 + $0x18] sm:$0xff]
    %v76 = vld [vmem:[%s5 + $0x20] sm:$0xff]
    %v77 = vld [vmem:[%s5 + $0x28] sm:$0xff]
    %v78 = vld [vmem:[%s5 + $0x30] sm:$0xff]
    %v79 = vld [vmem:[%s5 + $0x38] sm:$0xff]
    %v80 = vld [vmem:[%s5 + $0x40] sm:$0xff]
    %v81 = vld [vmem:[%s5 + $0x48] sm:$0xff]
    %v82 = vld [vmem:[%s5 + $0x50] sm:$0xff]
    %v83 = vld [vmem:[%s5 + $0x58] sm:$0xff]
    %v84 = vld [vmem:[%s5 + $0x60] sm:$0xff]
    %v85 = vld [vmem:[%s5 + $0x68] sm:$0xff]
    %v86 = vld [vmem:[%s5 + $0x70] sm:$0xff]
    %v87 = vld [vmem:[%s5 + $0x78] sm:$0xff]
    %89 = vset.pattern.permute.xlu0 0
    %90 = vperm.xlu0 %89, %v72
    %v91 = vpop.permute.xlu0 %90
    %94 = vset.pattern.permute.xlu0 0
    %95 = vperm.xlu0 %94, %v73
    %v96 = vpop.permute.xlu0 %95
    %99 = vset.pattern.permute.xlu0 0
    %100 = vperm.xlu0 %99, %v74
    %v101 = vpop.permute.xlu0 %100
    %104 = vset.pattern.permute.xlu0 0
    %105 = vperm.xlu0 %104, %v75
    %v106 = vpop.permute.xlu0 %105
    %109 = vset.pattern.permute.xlu0 0
    %110 = vperm.xlu0 %109, %v76
    %v111 = vpop.permute.xlu0 %110
    %114 = vset.pattern.permute.xlu0 0
    %115 = vperm.xlu0 %114, %v77
    %v116 = vpop.permute.xlu0 %115
    %119 = vset.pattern.permute.xlu0 0
    %120 = vperm.xlu0 %119, %v78
    %v121 = vpop.permute.xlu0 %120
    %124 = vset.pattern.permute.xlu0 0
    %125 = vperm.xlu0 %124, %v79
    %v126 = vpop.permute.xlu0 %125
    %129 = vset.pattern.permute.xlu0 0
    %130 = vperm.xlu0 %129, %v80
    %v131 = vpop.permute.xlu0 %130
    %134 = vset.pattern.permute.xlu0 0
    %135 = vperm.xlu0 %134, %v81
    %v136 = vpop.permute.xlu0 %135
    %139 = vset.pattern.permute.xlu0 0
    %140 = vperm.xlu0 %139, %v82
    %v141 = vpop.permute.xlu0 %140
    %144 = vset.pattern.permute.xlu0 0
    %145 = vperm.xlu0 %144, %v83
    %v146 = vpop.permute.xlu0 %145
    %149 = vset.pattern.permute.xlu0 0
    %150 = vperm.xlu0 %149, %v84
    %v151 = vpop.permute.xlu0 %150
    %154 = vset.pattern.permute.xlu0 0
    %155 = vperm.xlu0 %154, %v85
    %v156 = vpop.permute.xlu0 %155
    %159 = vset.pattern.permute.xlu0 0
    %160 = vperm.xlu0 %159, %v86
    %v161 = vpop.permute.xlu0 %160
    %164 = vset.pattern.permute.xlu0 0
    %165 = vperm.xlu0 %164, %v87
    %v166 = vpop.permute.xlu0 %165
    %v168 = vlaneseq
    %v169 = vshrl.u32 %v168, 7
    %v170 = vadd.s32 %v169, 8
    %v171 = vadd.s32 %v169, 16
    %v172 = vadd.s32 %v169, 24
    %vm173 = vcmp.lt.s32.totalorder %v169, 16
    %vm174 = vcmp.lt.s32.totalorder %v170, 16
    %vm175 = vcmp.lt.s32.totalorder %v171, 16
    %vm176 = vcmp.lt.s32.totalorder %v172, 16
    %v177 = vld [vmem:[%s0] sm:$0xff]
    %v178 = vld [vmem:[%s0 + $0x8] sm:$0xff]
    %v179 = vld [vmem:[%s0 + $0x10] sm:$0xff]
    %v180 = vld [vmem:[%s0 + $0x18] sm:$0xff]
    %v181 = vld [vmem:[%s0 + $0x20] sm:$0xff]
    %v182 = vld [vmem:[%s0 + $0x28] sm:$0xff]
    %v183 = vld [vmem:[%s0 + $0x30] sm:$0xff]
    %v184 = vld [vmem:[%s0 + $0x38] sm:$0xff]
    %v185 = vld [vmem:[%s0 + $0x40] sm:$0xff]
    %v186 = vld [vmem:[%s0 + $0x48] sm:$0xff]
    %v187 = vld [vmem:[%s0 + $0x50] sm:$0xff]
    %v188 = vld [vmem:[%s0 + $0x58] sm:$0xff]
    %v189 = vld [vmem:[%s0 + $0x60] sm:$0xff]
    %v190 = vld [vmem:[%s0 + $0x68] sm:$0xff]
    %v191 = vld [vmem:[%s0 + $0x70] sm:$0xff]
    %v192 = vld [vmem:[%s0 + $0x78] sm:$0xff]
    %s193 = scalar_lea.vmem %s0, 1152
    %v194 = vld [vmem:[%s193] sm:$0xff]
    %v195 = vld [vmem:[%s193 + $0x8] sm:$0xff]
    %v196 = vld [vmem:[%s193 + $0x10] sm:$0xff]
    %v197 = vld [vmem:[%s193 + $0x18] sm:$0xff]
    %v198 = vld [vmem:[%s193 + $0x20] sm:$0xff]
    %v199 = vld [vmem:[%s193 + $0x28] sm:$0xff]
    %v200 = vld [vmem:[%s193 + $0x30] sm:$0xff]
    %v201 = vld [vmem:[%s193 + $0x38] sm:$0xff]
    %v202 = vld [vmem:[%s193 + $0x40] sm:$0xff]
    %v203 = vld [vmem:[%s193 + $0x48] sm:$0xff]
    %v204 = vld [vmem:[%s193 + $0x50] sm:$0xff]
    %v205 = vld [vmem:[%s193 + $0x58] sm:$0xff]
    %v206 = vld [vmem:[%s193 + $0x60] sm:$0xff]
    %v207 = vld [vmem:[%s193 + $0x68] sm:$0xff]
    %v208 = vld [vmem:[%s193 + $0x70] sm:$0xff]
    %v209 = vld [vmem:[%s193 + $0x78] sm:$0xff]
    %vm210 = vcmask 130048
    %v212 = vsel %vm210, %v40, 0
    %v215 = vsel %vm210, %v41, 0
    %v218 = vsel %vm210, %v42, 0
    %v221 = vsel %vm210, %v43, 0
    %v224 = vsel %vm210, %v44, 0
    %v227 = vsel %vm210, %v45, 0
    %v230 = vsel %vm210, %v46, 0
    %v233 = vsel %vm210, %v47, 0
    %v236 = vsel %vm210, %v48, 0
    %v239 = vsel %vm210, %v49, 0
    %v242 = vsel %vm210, %v50, 0
    %v245 = vsel %vm210, %v51, 0
    %v248 = vsel %vm210, %v52, 0
    %v251 = vsel %vm210, %v53, 0
    %v254 = vsel %vm210, %v54, 0
    %v257 = vsel %vm210, %v55, 0
    %v260 = vsel %vm210, %v194, 0
    %v263 = vsel %vm210, %v195, 0
    %v266 = vsel %vm210, %v196, 0
    %v269 = vsel %vm210, %v197, 0
    %v272 = vsel %vm210, %v198, 0
    %v275 = vsel %vm210, %v199, 0
    %v278 = vsel %vm210, %v200, 0
    %v281 = vsel %vm210, %v201, 0
    %v284 = vsel %vm210, %v202, 0
    %v287 = vsel %vm210, %v203, 0
    %v290 = vsel %vm210, %v204, 0
    %v293 = vsel %vm210, %v205, 0
    %v296 = vsel %vm210, %v206, 0
    %v299 = vsel %vm210, %v207, 0
    %v302 = vsel %vm210, %v208, 0
    %v305 = vsel %vm210, %v209, 0
    %307 = vmatprep.subr.mxu0 0.0
    %308 = vmatpush1.xpose.msra.mxu0 %v260
    %309 = vmatprep.subr.mxu0 0.0
    %310 = vmatpush1.xpose.msra.mxu0 %v263
    %311 = vmatprep.subr.mxu0 0.0
    %312 = vmatpush1.xpose.msra.mxu0 %v266
    %313 = vmatprep.subr.mxu0 0.0
    %314 = vmatpush1.xpose.msra.mxu0 %v269
    %315 = vmatprep.subr.mxu0 0.0
    %316 = vmatpush1.xpose.msra.mxu0 %v272
    %317 = vmatprep.subr.mxu0 0.0
    %318 = vmatpush1.xpose.msra.mxu0 %v275
    %319 = vmatprep.subr.mxu0 0.0
    %320 = vmatpush1.xpose.msra.mxu0 %v278
    %321 = vmatprep.subr.mxu0 0.0
    %322 = vmatpush1.xpose.msra.mxu0 %v281
    %323 = vmatprep.subr.mxu0 0.0
    %324 = vmatpush1.xpose.msra.mxu0 %v284
    %325 = vmatprep.subr.mxu0 0.0
    %326 = vmatpush1.xpose.msra.mxu0 %v287
    %327 = vmatprep.subr.mxu0 0.0
    %328 = vmatpush1.xpose.msra.mxu0 %v290
    %329 = vmatprep.subr.mxu0 0.0
    %330 = vmatpush1.xpose.msra.mxu0 %v293
    %331 = vmatprep.subr.mxu0 0.0
    %332 = vmatpush1.xpose.msra.mxu0 %v296
    %333 = vmatprep.subr.mxu0 0.0
    %334 = vmatpush1.xpose.msra.mxu0 %v299
    %335 = vmatprep.subr.mxu0 0.0
    %336 = vmatpush1.xpose.msra.mxu0 %v302
    %337 = vmatprep.subr.mxu0 0.0
    %338 = vmatpush1.xpose.msra.mxu0 %v305
    %339 = vmatprep.subr.mxu0 0.0
    %340 = vmatpush1.xpose.msra.mxu0 0.0
    %341 = vmatprep.subr.mxu0 0.0
    %342 = vmatpush1.xpose.msra.mxu0 0.0
    %343 = vmatprep.subr.mxu0 0.0
    %344 = vmatpush1.xpose.msra.mxu0 0.0
    %345 = vmatprep.subr.mxu0 0.0
    %346 = vmatpush1.xpose.msra.mxu0 0.0
    %347 = vmatprep.subr.mxu0 0.0
    %348 = vmatpush1.xpose.msra.mxu0 0.0
    %349 = vmatprep.subr.mxu0 0.0
    %350 = vmatpush1.xpose.msra.mxu0 0.0
    %351 = vmatprep.subr.mxu0 0.0
    %352 = vmatpush1.xpose.msra.mxu0 0.0
    %353 = vmatprep.subr.mxu0 0.0
    %354 = vmatpush1.xpose.msra.mxu0 0.0
    %355 = vmatprep.subr.mxu0 0.0
    %356 = vmatpush1.xpose.msra.mxu0 0.0
    %357 = vmatprep.subr.mxu0 0.0
    %358 = vmatpush1.xpose.msra.mxu0 0.0
    %359 = vmatprep.subr.mxu0 0.0
    %360 = vmatpush1.xpose.msra.mxu0 0.0
    %361 = vmatprep.subr.mxu0 0.0
    %362 = vmatpush1.xpose.msra.mxu0 0.0
    %363 = vmatprep.subr.mxu0 0.0
    %364 = vmatpush1.xpose.msra.mxu0 0.0
    %365 = vmatprep.subr.mxu0 0.0
    %366 = vmatpush1.xpose.msra.mxu0 0.0
    %367 = vmatprep.subr.mxu0 0.0
    %368 = vmatpush1.xpose.msra.mxu0 0.0
    %369 = vmatprep.subr.mxu0 0.0
    %370 = vmatpush1.xpose.msra.mxu0 0.0
    %371 = vmatprep.mubr.f32.mxu0 0.0
    %372 = vmatmul.mubr.f32.gmra.mrb[0].mxu0 %v212
    %v373 = vpop.f32.mrb[0].mxu0
    %v374 = vadd.f32 0.0, %v373
    %v375 = vpop.f32.mrb[0].mxu0
    %376 = vmatprep.mubr.f32.mxu0 0.0
    %377 = vmatmul.mubr.f32.gmra.mrb[0].mxu0 %v215
    %v378 = vpop.f32.mrb[0].mxu0
    %v379 = vadd.f32 0.0, %v378
    %v380 = vpop.f32.mrb[0].mxu0
    %381 = vmatprep.mubr.f32.mxu0 0.0
    %382 = vmatmul.mubr.f32.gmra.mrb[0].mxu0 %v218
    %v383 = vpop.f32.mrb[0].mxu0
    %v384 = vadd.f32 0.0, %v383
    %v385 = vpop.f32.mrb[0].mxu0
    %386 = vmatprep.mubr.f32.mxu0 0.0
    %387 = vmatmul.mubr.f32.gmra.mrb[0].mxu0 %v221
    %v388 = vpop.f32.mrb[0].mxu0
    %v389 = vadd.f32 0.0, %v388
    %v390 = vpop.f32.mrb[0].mxu0
    %391 = vmatprep.mubr.f32.mxu0 0.0
    %392 = vmatmul.mubr.f32.gmra.mrb[0].mxu0 %v224
    %v393 = vpop.f32.mrb[0].mxu0
    %v394 = vadd.f32 0.0, %v393
    %v395 = vpop.f32.mrb[0].mxu0
    %396 = vmatprep.mubr.f32.mxu0 0.0
    %397 = vmatmul.mubr.f32.gmra.mrb[0].mxu0 %v227
    %v398 = vpop.f32.mrb[0].mxu0
    %v399 = vadd.f32 0.0, %v398
    %v400 = vpop.f32.mrb[0].mxu0
    %401 = vmatprep.mubr.f32.mxu0 0.0
    %402 = vmatmul.mubr.f32.gmra.mrb[0].mxu0 %v230
    %v403 = vpop.f32.mrb[0].mxu0
    %v404 = vadd.f32 0.0, %v403
    %v405 = vpop.f32.mrb[0].mxu0
    %406 = vmatprep.mubr.f32.mxu0 0.0
    %407 = vmatmul.mubr.f32.gmra.mrb[0].mxu0 %v233
    %v408 = vpop.f32.mrb[0].mxu0
    %v409 = vadd.f32 0.0, %v408
    %v410 = vpop.f32.mrb[0].mxu0
    %411 = vmatprep.mubr.f32.mxu0 0.0
    %412 = vmatmul.mubr.f32.gmra.mrb[0].mxu0 %v236
    %v413 = vpop.f32.mrb[0].mxu0
    %v414 = vadd.f32 0.0, %v413
    %v415 = vpop.f32.mrb[0].mxu0
    %416 = vmatprep.mubr.f32.mxu0 0.0
    %417 = vmatmul.mubr.f32.gmra.mrb[0].mxu0 %v239
    %v418 = vpop.f32.mrb[0].mxu0
    %v419 = vadd.f32 0.0, %v418
    %v420 = vpop.f32.mrb[0].mxu0
    %421 = vmatprep.mubr.f32.mxu0 0.0
    %422 = vmatmul.mubr.f32.gmra.mrb[0].mxu0 %v242
    %v423 = vpop.f32.mrb[0].mxu0
    %v424 = vadd.f32 0.0, %v423
    %v425 = vpop.f32.mrb[0].mxu0
    %426 = vmatprep.mubr.f32.mxu0 0.0
    %427 = vmatmul.mubr.f32.gmra.mrb[0].mxu0 %v245
    %v428 = vpop.f32.mrb[0].mxu0
    %v429 = vadd.f32 0.0, %v428
    %v430 = vpop.f32.mrb[0].mxu0
    %431 = vmatprep.mubr.f32.mxu0 0.0
    %432 = vmatmul.mubr.f32.gmra.mrb[0].mxu0 %v248
    %v433 = vpop.f32.mrb[0].mxu0
    %v434 = vadd.f32 0.0, %v433
    %v435 = vpop.f32.mrb[0].mxu0
    %436 = vmatprep.mubr.f32.mxu0 0.0
    %437 = vmatmul.mubr.f32.gmra.mrb[0].mxu0 %v251
    %v438 = vpop.f32.mrb[0].mxu0
    %v439 = vadd.f32 0.0, %v438
    %v440 = vpop.f32.mrb[0].mxu0
    %441 = vmatprep.mubr.f32.mxu0 0.0
    %442 = vmatmul.mubr.f32.gmra.mrb[0].mxu0 %v254
    %v443 = vpop.f32.mrb[0].mxu0
    %v444 = vadd.f32 0.0, %v443
    %v445 = vpop.f32.mrb[0].mxu0
    %446 = vmatprep.mubr.f32.mxu0 0.0
    %447 = vmatmul.mubr.f32.gmra.mrb[0].mxu0 %v257
    %v448 = vpop.f32.mrb[0].mxu0
    %v449 = vadd.f32 0.0, %v448
    %v450 = vpop.f32.mrb[0].mxu0
    %451 = vdwg.mxu0
    %v453 = vsel %vm210, %v24, 0
    %v456 = vsel %vm210, %v25, 0
    %v459 = vsel %vm210, %v26, 0
    %v462 = vsel %vm210, %v27, 0
    %v465 = vsel %vm210, %v28, 0
    %v468 = vsel %vm210, %v29, 0
    %v471 = vsel %vm210, %v30, 0
    %v474 = vsel %vm210, %v31, 0
    %v477 = vsel %vm210, %v32, 0
    %v480 = vsel %vm210, %v33, 0
    %v483 = vsel %vm210, %v34, 0
    %v486 = vsel %vm210, %v35, 0
    %v489 = vsel %vm210, %v36, 0
    %v492 = vsel %vm210, %v37, 0
    %v495 = vsel %vm210, %v38, 0
    %v498 = vsel %vm210, %v39, 0
    %v501 = vsel %vm210, %v177, 0
    %v504 = vsel %vm210, %v178, 0
    %v507 = vsel %vm210, %v179, 0
    %v510 = vsel %vm210, %v180, 0
    %v513 = vsel %vm210, %v181, 0
    %v516 = vsel %vm210, %v182, 0
    %v519 = vsel %vm210, %v183, 0
    %v522 = vsel %vm210, %v184, 0
    %v525 = vsel %vm210, %v185, 0
    %v528 = vsel %vm210, %v186, 0
    %v531 = vsel %vm210, %v187, 0
    %v534 = vsel %vm210, %v188, 0
    %v537 = vsel %vm210, %v189, 0
    %v540 = vsel %vm210, %v190, 0
    %v543 = vsel %vm210, %v191, 0
    %v546 = vsel %vm210, %v192, 0
    %548 = vmatprep.subr.mxu0 0.0
    %549 = vmatpush1.xpose.msra.mxu0 %v501
    %550 = vmatprep.subr.mxu0 0.0
    %551 = vmatpush1.xpose.msra.mxu0 %v504
    %552 = vmatprep.subr.mxu0 0.0
    %553 = vmatpush1.xpose.msra.mxu0 %v507
    %554 = vmatprep.subr.mxu0 0.0
    %555 = vmatpush1.xpose.msra.mxu0 %v510
    %556 = vmatprep.subr.mxu0 0.0
    %557 = vmatpush1.xpose.msra.mxu0 %v513
    %558 = vmatprep.subr.mxu0 0.0
    %559 = vmatpush1.xpose.msra.mxu0 %v516
    %560 = vmatprep.subr.mxu0 0.0
    %561 = vmatpush1.xpose.msra.mxu0 %v519
    %562 = vmatprep.subr.mxu0 0.0
    %563 = vmatpush1.xpose.msra.mxu0 %v522
    %564 = vmatprep.subr.mxu0 0.0
    %565 = vmatpush1.xpose.msra.mxu0 %v525
    %566 = vmatprep.subr.mxu0 0.0
    %567 = vmatpush1.xpose.msra.mxu0 %v528
    %568 = vmatprep.subr.mxu0 0.0
    %569 = vmatpush1.xpose.msra.mxu0 %v531
    %570 = vmatprep.subr.mxu0 0.0
    %571 = vmatpush1.xpose.msra.mxu0 %v534
    %572 = vmatprep.subr.mxu0 0.0
    %573 = vmatpush1.xpose.msra.mxu0 %v537
    %574 = vmatprep.subr.mxu0 0.0
    %575 = vmatpush1.xpose.msra.mxu0 %v540
    %576 = vmatprep.subr.mxu0 0.0
    %577 = vmatpush1.xpose.msra.mxu0 %v543
    %578 = vmatprep.subr.mxu0 0.0
    %579 = vmatpush1.xpose.msra.mxu0 %v546
    %580 = vmatprep.subr.mxu0 0.0
    %581 = vmatpush1.xpose.msra.mxu0 0.0
    %582 = vmatprep.subr.mxu0 0.0
    %583 = vmatpush1.xpose.msra.mxu0 0.0
    %584 = vmatprep.subr.mxu0 0.0
    %585 = vmatpush1.xpose.msra.mxu0 0.0
    %586 = vmatprep.subr.mxu0 0.0
    %587 = vmatpush1.xpose.msra.mxu0 0.0
    %588 = vmatprep.subr.mxu0 0.0
    %589 = vmatpush1.xpose.msra.mxu0 0.0
    %590 = vmatprep.subr.mxu0 0.0
    %591 = vmatpush1.xpose.msra.mxu0 0.0
    %592 = vmatprep.subr.mxu0 0.0
    %593 = vmatpush1.xpose.msra.mxu0 0.0
    %594 = vmatprep.subr.mxu0 0.0
    %595 = vmatpush1.xpose.msra.mxu0 0.0
    %596 = vmatprep.subr.mxu0 0.0
    %597 = vmatpush1.xpose.msra.mxu0 0.0
    %598 = vmatprep.subr.mxu0 0.0
    %599 = vmatpush1.xpose.msra.mxu0 0.0
    %600 = vmatprep.subr.mxu0 0.0
    %601 = vmatpush1.xpose.msra.mxu0 0.0
    %602 = vmatprep.subr.mxu0 0.0
    %603 = vmatpush1.xpose.msra.mxu0 0.0
    %604 = vmatprep.subr.mxu0 0.0
    %605 = vmatpush1.xpose.msra.mxu0 0.0
    %606 = vmatprep.subr.mxu0 0.0
    %607 = vmatpush1.xpose.msra.mxu0 0.0
    %608 = vmatprep.subr.mxu0 0.0
    %609 = vmatpush1.xpose.msra.mxu0 0.0
    %610 = vmatprep.subr.mxu0 0.0
    %611 = vmatpush1.xpose.msra.mxu0 0.0
    %612 = vmatprep.mubr.f32.mxu0 0.0
    %613 = vmatmul.mubr.f32.gmra.mrb[0].mxu0 %v453
    %v614 = vpop.f32.mrb[0].mxu0
    %v615 = vadd.f32 %v374, %v614
    %v616 = vpop.f32.mrb[0].mxu0
    %617 = vmatprep.mubr.f32.mxu0 0.0
    %618 = vmatmul.mubr.f32.gmra.mrb[0].mxu0 %v456
    %v619 = vpop.f32.mrb[0].mxu0
    %v620 = vadd.f32 %v379, %v619
    %v621 = vpop.f32.mrb[0].mxu0
    %622 = vmatprep.mubr.f32.mxu0 0.0
    %623 = vmatmul.mubr.f32.gmra.mrb[0].mxu0 %v459
    %v624 = vpop.f32.mrb[0].mxu0
    %v625 = vadd.f32 %v384, %v624
    %v626 = vpop.f32.mrb[0].mxu0
    %627 = vmatprep.mubr.f32.mxu0 0.0
    %628 = vmatmul.mubr.f32.gmra.mrb[0].mxu0 %v462
    %v629 = vpop.f32.mrb[0].mxu0
    %v630 = vadd.f32 %v389, %v629
    %v631 = vpop.f32.mrb[0].mxu0
    %632 = vmatprep.mubr.f32.mxu0 0.0
    %633 = vmatmul.mubr.f32.gmra.mrb[0].mxu0 %v465
    %v634 = vpop.f32.mrb[0].mxu0
    %v635 = vadd.f32 %v394, %v634
    %v636 = vpop.f32.mrb[0].mxu0
    %637 = vmatprep.mubr.f32.mxu0 0.0
    %638 = vmatmul.mubr.f32.gmra.mrb[0].mxu0 %v468
    %v639 = vpop.f32.mrb[0].mxu0
    %v640 = vadd.f32 %v399, %v639
    %v641 = vpop.f32.mrb[0].mxu0
    %642 = vmatprep.mubr.f32.mxu0 0.0
    %643 = vmatmul.mubr.f32.gmra.mrb[0].mxu0 %v471
    %v644 = vpop.f32.mrb[0].mxu0
    %v645 = vadd.f32 %v404, %v644
    %v646 = vpop.f32.mrb[0].mxu0
    %647 = vmatprep.mubr.f32.mxu0 0.0
    %648 = vmatmul.mubr.f32.gmra.mrb[0].mxu0 %v474
    %v649 = vpop.f32.mrb[0].mxu0
    %v650 = vadd.f32 %v409, %v649
    %v651 = vpop.f32.mrb[0].mxu0
    %652 = vmatprep.mubr.f32.mxu0 0.0
    %653 = vmatmul.mubr.f32.gmra.mrb[0].mxu0 %v477
    %v654 = vpop.f32.mrb[0].mxu0
    %v655 = vadd.f32 %v414, %v654
    %v656 = vpop.f32.mrb[0].mxu0
    %657 = vmatprep.mubr.f32.mxu0 0.0
    %658 = vmatmul.mubr.f32.gmra.mrb[0].mxu0 %v480
    %v659 = vpop.f32.mrb[0].mxu0
    %v660 = vadd.f32 %v419, %v659
    %v661 = vpop.f32.mrb[0].mxu0
    %662 = vmatprep.mubr.f32.mxu0 0.0
    %663 = vmatmul.mubr.f32.gmra.mrb[0].mxu0 %v483
    %v664 = vpop.f32.mrb[0].mxu0
    %v665 = vadd.f32 %v424, %v664
    %v666 = vpop.f32.mrb[0].mxu0
    %667 = vmatprep.mubr.f32.mxu0 0.0
    %668 = vmatmul.mubr.f32.gmra.mrb[0].mxu0 %v486
    %v669 = vpop.f32.mrb[0].mxu0
    %v670 = vadd.f32 %v429, %v669
    %v671 = vpop.f32.mrb[0].mxu0
    %672 = vmatprep.mubr.f32.mxu0 0.0
    %673 = vmatmul.mubr.f32.gmra.mrb[0].mxu0 %v489
    %v674 = vpop.f32.mrb[0].mxu0
    %v675 = vadd.f32 %v434, %v674
    %v676 = vpop.f32.mrb[0].mxu0
    %677 = vmatprep.mubr.f32.mxu0 0.0
    %678 = vmatmul.mubr.f32.gmra.mrb[0].mxu0 %v492
    %v679 = vpop.f32.mrb[0].mxu0
    %v680 = vadd.f32 %v439, %v679
    %v681 = vpop.f32.mrb[0].mxu0
    %682 = vmatprep.mubr.f32.mxu0 0.0
    %683 = vmatmul.mubr.f32.gmra.mrb[0].mxu0 %v495
    %v684 = vpop.f32.mrb[0].mxu0
    %v685 = vadd.f32 %v444, %v684
    %v686 = vpop.f32.mrb[0].mxu0
    %687 = vmatprep.mubr.f32.mxu0 0.0
    %688 = vmatmul.mubr.f32.gmra.mrb[0].mxu0 %v498
    %v689 = vpop.f32.mrb[0].mxu0
    %v690 = vadd.f32 %v449, %v689
    %v691 = vpop.f32.mrb[0].mxu0
    %692 = vdwg.mxu0
    %vm693 = vcmask 261120
    %v695 = vsel %vm693, %v56, 0
    %v698 = vsel %vm693, %v57, 0
    %v701 = vsel %vm693, %v58, 0
    %v704 = vsel %vm693, %v59, 0
    %v707 = vsel %vm693, %v60, 0
    %v710 = vsel %vm693, %v61, 0
    %v713 = vsel %vm693, %v62, 0
    %v716 = vsel %vm693, %v63, 0
    %v719 = vsel %vm693, %v64, 0
    %v722 = vsel %vm693, %v65, 0
    %v725 = vsel %vm693, %v66, 0
    %v728 = vsel %vm693, %v67, 0
    %v731 = vsel %vm693, %v68, 0
    %v734 = vsel %vm693, %v69, 0
    %v737 = vsel %vm693, %v70, 0
    %v740 = vsel %vm693, %v71, 0
    %742 = vmatprep.subr.mxu0 0.0
    %743 = vmatpush1.msra.mxu0 0.0
    %744 = vmatprep.subr.mxu0 0.0
    %745 = vmatpush1.msra.mxu0 0.0
    %746 = vmatprep.subr.mxu0 0.0
    %747 = vmatpush1.msra.mxu0 0.0
    %748 = vmatprep.subr.mxu0 0.0
    %749 = vmatpush1.msra.mxu0 0.0
    %750 = vmatprep.subr.mxu0 0.0
    %751 = vmatpush1.msra.mxu0 0.0
    %752 = vmatprep.subr.mxu0 0.0
    %753 = vmatpush1.msra.mxu0 0.0
    %754 = vmatprep.subr.mxu0 0.0
    %755 = vmatpush1.msra.mxu0 0.0
    %756 = vmatprep.subr.mxu0 0.0
    %757 = vmatpush1.msra.mxu0 0.0
    %758 = vmatprep.subr.mxu0 0.0
    %759 = vmatpush1.msra.mxu0 0.0
    %760 = vmatprep.subr.mxu0 0.0
    %761 = vmatpush1.msra.mxu0 0.0
    %762 = vmatprep.subr.mxu0 0.0
    %763 = vmatpush1.msra.mxu0 0.0
    %764 = vmatprep.subr.mxu0 0.0
    %765 = vmatpush1.msra.mxu0 0.0
    %766 = vmatprep.subr.mxu0 0.0
    %767 = vmatpush1.msra.mxu0 0.0
    %768 = vmatprep.subr.mxu0 0.0
    %769 = vmatpush1.msra.mxu0 0.0
    %770 = vmatprep.subr.mxu0 0.0
    %771 = vmatpush1.msra.mxu0 0.0
    %772 = vmatprep.subr.mxu0 0.0
    %773 = vmatpush1.msra.mxu0 0.0
    %774 = vmatprep.subr.mxu0 0.0
    %775 = vmatpush1.msra.mxu0 0.0
    %776 = vmatprep.subr.mxu0 0.0
    %777 = vmatpush1.msra.mxu0 0.0
    %778 = vmatprep.subr.mxu0 0.0
    %779 = vmatpush1.msra.mxu0 0.0
    %780 = vmatprep.subr.mxu0 0.0
    %781 = vmatpush1.msra.mxu0 0.0
    %782 = vmatprep.subr.mxu0 0.0
    %783 = vmatpush1.msra.mxu0 0.0
    %784 = vmatprep.subr.mxu0 0.0
    %785 = vmatpush1.msra.mxu0 0.0
    %786 = vmatprep.subr.mxu0 0.0
    %787 = vmatpush1.msra.mxu0 0.0
    %788 = vmatprep.subr.mxu0 0.0
    %789 = vmatpush1.msra.mxu0 0.0
    %790 = vmatprep.subr.mxu0 0.0
    %791 = vmatpush1.msra.mxu0 0.0
    %792 = vmatprep.subr.mxu0 0.0
    %793 = vmatpush1.msra.mxu0 0.0
    %794 = vmatprep.subr.mxu0 0.0
    %795 = vmatpush1.msra.mxu0 0.0
    %796 = vmatprep.subr.mxu0 0.0
    %797 = vmatpush1.msra.mxu0 0.0
    %798 = vmatprep.subr.mxu0 0.0
    %799 = vmatpush1.msra.mxu0 0.0
    %800 = vmatprep.subr.mxu0 0.0
    %801 = vmatpush1.msra.mxu0 0.0
    %802 = vmatprep.subr.mxu0 0.0
    %803 = vmatpush1.msra.mxu0 0.0
    %804 = vmatprep.subr.mxu0 0.0
    %805 = vmatpush1.msra.mxu0 0.0
    %806 = vmatprep.mubr.f32.mxu0 0.0
    %807 = vmatmul.mubr.f32.gmra.mrb[0].mxu0 %v695
    %v808 = vpop.f32.mrb[0].mxu0
    %v809 = vadd.f32 0.0, %v808
    %v810 = vpop.f32.mrb[0].mxu0
    %811 = vmatprep.mubr.f32.mxu0 0.0
    %812 = vmatmul.mubr.f32.gmra.mrb[0].mxu0 %v698
    %v813 = vpop.f32.mrb[0].mxu0
    %v814 = vadd.f32 0.0, %v813
    %v815 = vpop.f32.mrb[0].mxu0
    %816 = vmatprep.mubr.f32.mxu0 0.0
    %817 = vmatmul.mubr.f32.gmra.mrb[0].mxu0 %v701
    %v818 = vpop.f32.mrb[0].mxu0
    %v819 = vadd.f32 0.0, %v818
    %v820 = vpop.f32.mrb[0].mxu0
    %821 = vmatprep.mubr.f32.mxu0 0.0
    %822 = vmatmul.mubr.f32.gmra.mrb[0].mxu0 %v704
    %v823 = vpop.f32.mrb[0].mxu0
    %v824 = vadd.f32 0.0, %v823
    %v825 = vpop.f32.mrb[0].mxu0
    %826 = vmatprep.mubr.f32.mxu0 0.0
    %827 = vmatmul.mubr.f32.gmra.mrb[0].mxu0 %v707
    %v828 = vpop.f32.mrb[0].mxu0
    %v829 = vadd.f32 0.0, %v828
    %v830 = vpop.f32.mrb[0].mxu0
    %831 = vmatprep.mubr.f32.mxu0 0.0
    %832 = vmatmul.mubr.f32.gmra.mrb[0].mxu0 %v710
    %v833 = vpop.f32.mrb[0].mxu0
    %v834 = vadd.f32 0.0, %v833
    %v835 = vpop.f32.mrb[0].mxu0
    %836 = vmatprep.mubr.f32.mxu0 0.0
    %837 = vmatmul.mubr.f32.gmra.mrb[0].mxu0 %v713
    %v838 = vpop.f32.mrb[0].mxu0
    %v839 = vadd.f32 0.0, %v838
    %v840 = vpop.f32.mrb[0].mxu0
    %841 = vmatprep.mubr.f32.mxu0 0.0
    %842 = vmatmul.mubr.f32.gmra.mrb[0].mxu0 %v716
    %v843 = vpop.f32.mrb[0].mxu0
    %v844 = vadd.f32 0.0, %v843
    %v845 = vpop.f32.mrb[0].mxu0
    %846 = vmatprep.mubr.f32.mxu0 0.0
    %847 = vmatmul.mubr.f32.gmra.mrb[0].mxu0 %v719
    %v848 = vpop.f32.mrb[0].mxu0
    %v849 = vadd.f32 0.0, %v848
    %v850 = vpop.f32.mrb[0].mxu0
    %851 = vmatprep.mubr.f32.mxu0 0.0
    %852 = vmatmul.mubr.f32.gmra.mrb[0].mxu0 %v722
    %v853 = vpop.f32.mrb[0].mxu0
    %v854 = vadd.f32 0.0, %v853
    %v855 = vpop.f32.mrb[0].mxu0
    %856 = vmatprep.mubr.f32.mxu0 0.0
    %857 = vmatmul.mubr.f32.gmra.mrb[0].mxu0 %v725
    %v858 = vpop.f32.mrb[0].mxu0
    %v859 = vadd.f32 0.0, %v858
    %v860 = vpop.f32.mrb[0].mxu0
    %861 = vmatprep.mubr.f32.mxu0 0.0
    %862 = vmatmul.mubr.f32.gmra.mrb[0].mxu0 %v728
    %v863 = vpop.f32.mrb[0].mxu0
    %v864 = vadd.f32 0.0, %v863
    %v865 = vpop.f32.mrb[0].mxu0
    %866 = vmatprep.mubr.f32.mxu0 0.0
    %867 = vmatmul.mubr.f32.gmra.mrb[0].mxu0 %v731
    %v868 = vpop.f32.mrb[0].mxu0
    %v869 = vadd.f32 0.0, %v868
    %v870 = vpop.f32.mrb[0].mxu0
    %871 = vmatprep.mubr.f32.mxu0 0.0
    %872 = vmatmul.mubr.f32.gmra.mrb[0].mxu0 %v734
    %v873 = vpop.f32.mrb[0].mxu0
    %v874 = vadd.f32 0.0, %v873
    %v875 = vpop.f32.mrb[0].mxu0
    %876 = vmatprep.mubr.f32.mxu0 0.0
    %877 = vmatmul.mubr.f32.gmra.mrb[0].mxu0 %v737
    %v878 = vpop.f32.mrb[0].mxu0
    %v879 = vadd.f32 0.0, %v878
    %v880 = vpop.f32.mrb[0].mxu0
    %881 = vmatprep.mubr.f32.mxu0 0.0
    %882 = vmatmul.mubr.f32.gmra.mrb[0].mxu0 %v740
    %v883 = vpop.f32.mrb[0].mxu0
    %v884 = vadd.f32 0.0, %v883
    %v885 = vpop.f32.mrb[0].mxu0
    %886 = vdwg.mxu0
    %v887 = vadd.f32 %v615, %v809
    %v888 = vadd.f32 %v620, %v814
    %v889 = vadd.f32 %v625, %v819
    %v890 = vadd.f32 %v630, %v824
    %v891 = vadd.f32 %v635, %v829
    %v892 = vadd.f32 %v640, %v834
    %v893 = vadd.f32 %v645, %v839
    %v894 = vadd.f32 %v650, %v844
    %v895 = vadd.f32 %v655, %v849
    %v896 = vadd.f32 %v660, %v854
    %v897 = vadd.f32 %v665, %v859
    %v898 = vadd.f32 %v670, %v864
    %v899 = vadd.f32 %v675, %v869
    %v900 = vadd.f32 %v680, %v874
    %v901 = vadd.f32 %v685, %v879
    %v902 = vadd.f32 %v690, %v884
    %v903 = vadd.f32 %v887, %v91
    %v904 = vadd.f32 %v888, %v96
    %v905 = vadd.f32 %v889, %v101
    %v906 = vadd.f32 %v890, %v106
    %v907 = vadd.f32 %v891, %v111
    %v908 = vadd.f32 %v892, %v116
    %v909 = vadd.f32 %v893, %v121
    %v910 = vadd.f32 %v894, %v126
    %v911 = vadd.f32 %v895, %v131
    %v912 = vadd.f32 %v896, %v136
    %v913 = vadd.f32 %v897, %v141
    %v914 = vadd.f32 %v898, %v146
    %v915 = vadd.f32 %v899, %v151
    %v916 = vadd.f32 %v900, %v156
    %v917 = vadd.f32 %v901, %v161
    %v918 = vadd.f32 %v902, %v166
    %v919 = vxor.u32 %v903, 2147483648
    %v920 = vxor.u32 %v904, 2147483648
    %v921 = vxor.u32 %v905, 2147483648
    %v922 = vxor.u32 %v906, 2147483648
    %v923 = vmul.f32 %v919, 1.442695
    %v924 = vpow.pop %v923
    %v925 = vmul.f32 %v920, 1.442695
    %v926 = vpow.pop %v925
    %v927 = vmul.f32 %v921, 1.442695
    %v928 = vpow.pop %v927
    %v929 = vmul.f32 %v922, 1.442695
    %v930 = vpow.pop %v929
    %v931 = vadd.f32 %v924, 1.0
    %v932 = vadd.f32 %v926, 1.0
    %v933 = vadd.f32 %v928, 1.0
    %v934 = vadd.f32 %v930, 1.0
    %v935 = vrcp.pop %v931
    %v936 = vmul.f32 1.0, %v935
    %v937 = vrcp.pop %v932
    %v938 = vmul.f32 1.0, %v937
    %v939 = vrcp.pop %v933
    %v940 = vmul.f32 1.0, %v939
    %v941 = vrcp.pop %v934
    %v942 = vmul.f32 1.0, %v941
    %v943 = vxor.u32 %v907, 2147483648
    %v944 = vxor.u32 %v908, 2147483648
    %v945 = vxor.u32 %v909, 2147483648
    %v946 = vxor.u32 %v910, 2147483648
    %v947 = vmul.f32 %v943, 1.442695
    %v948 = vpow.pop %v947
    %v949 = vmul.f32 %v944, 1.442695
    %v950 = vpow.pop %v949
    %v951 = vmul.f32 %v945, 1.442695
    %v952 = vpow.pop %v951
    %v953 = vmul.f32 %v946, 1.442695
    %v954 = vpow.pop %v953
    %v955 = vadd.f32 %v948, 1.0
    %v956 = vadd.f32 %v950, 1.0
    %v957 = vadd.f32 %v952, 1.0
    %v958 = vadd.f32 %v954, 1.0
    %v959 = vrcp.pop %v955
    %v960 = vmul.f32 1.0, %v959
    %v961 = vrcp.pop %v956
    %v962 = vmul.f32 1.0, %v961
    %v963 = vrcp.pop %v957
    %v964 = vmul.f32 1.0, %v963
    %v965 = vrcp.pop %v958
    %v966 = vmul.f32 1.0, %v965
    %v967 = vtanh.pop %v911
    %v968 = vtanh.pop %v912
    %v969 = vtanh.pop %v913
    %v970 = vtanh.pop %v914
    %v971 = vxor.u32 %v915, 2147483648
    %v972 = vxor.u32 %v916, 2147483648
    %v973 = vxor.u32 %v917, 2147483648
    %v974 = vxor.u32 %v918, 2147483648
    %v975 = vmul.f32 %v971, 1.442695
    %v976 = vpow.pop %v975
    %v977 = vmul.f32 %v972, 1.442695
    %v978 = vpow.pop %v977
    %v979 = vmul.f32 %v973, 1.442695
    %v980 = vpow.pop %v979
    %v981 = vmul.f32 %v974, 1.442695
    %v982 = vpow.pop %v981
    %v983 = vadd.f32 %v976, 1.0
    %v984 = vadd.f32 %v978, 1.0
    %v985 = vadd.f32 %v980, 1.0
    %v986 = vadd.f32 %v982, 1.0
    %v987 = vrcp.pop %v983
    %v988 = vmul.f32 1.0, %v987
    %v989 = vrcp.pop %v984
    %v990 = vmul.f32 1.0, %v989
    %v991 = vrcp.pop %v985
    %v992 = vmul.f32 1.0, %v991
    %v993 = vrcp.pop %v986
    %v994 = vmul.f32 1.0, %v993
    %v995 = vmul.f32 %v960, 0.0
    %v996 = vmul.f32 %v962, 0.0
    %v997 = vmul.f32 %v964, 0.0
    %v998 = vmul.f32 %v966, 0.0
    %v999 = vmul.f32 %v936, %v967
    %v1000 = vmul.f32 %v938, %v968
    %v1001 = vmul.f32 %v940, %v969
    %v1002 = vmul.f32 %v942, %v970
    %v1003 = vadd.f32 %v995, %v999
    %v1004 = vadd.f32 %v996, %v1000
    %v1005 = vadd.f32 %v997, %v1001
    %v1006 = vadd.f32 %v998, %v1002
    %v1007 = vtanh.pop %v1003
    %v1008 = vtanh.pop %v1004
    %v1009 = vtanh.pop %v1005
    %v1010 = vtanh.pop %v1006
    %v1011 = vmul.f32 %v988, %v1007
    %v1012 = vmul.f32 %v990, %v1008
    %v1013 = vmul.f32 %v992, %v1009
    %v1014 = vmul.f32 %v994, %v1010
    %v1015 = vld [vmem:[%s1] sm:$0x1]
    %s1016 = scalar_lea.vmem %s1, 9
    %v1017 = vld [vmem:[%s1016] sm:$0x1]
    %v1019 = vlaneseq
    %v1020 = vshrl.u32 %v1019, 7
    %v1021 = vsub.s32 0, %v1020
    %v1022 = vrot.slane %v1015, %v1021
    %v1025 = vlaneseq
    %v1026 = vshrl.u32 %v1025, 7
    %v1027 = vsub.s32 0, %v1026
    %v1028 = vrot.slane %v1017, %v1027
    %v1030 = vsel %vm173, %v1022, %v1028
    %v1031 = vsel %vm174, %v1022, %v1028
    %v1032 = vsel %vm175, %v1022, %v1028
    %v1033 = vsel %vm176, %v1022, %v1028
    %vm1034 = vcmp.gt.f32.partialorder %v1030, 0.5
    %vm1035 = vcmp.gt.f32.partialorder %v1031, 0.5
    %vm1036 = vcmp.gt.f32.partialorder %v1032, 0.5
    %vm1037 = vcmp.gt.f32.partialorder %v1033, 0.5
    %v1038 = vsel %vm1034, %v1011, 0.0
    %v1039 = vsel %vm1035, %v1012, 0.0
    %v1040 = vsel %vm1036, %v1013, 0.0
    %v1041 = vsel %vm1037, %v1014, 0.0
    %v1042 = vsel %vm1034, %v1003, 0.0
    %v1043 = vsel %vm1035, %v1004, 0.0
    %v1044 = vsel %vm1036, %v1005, 0.0
    %v1045 = vsel %vm1037, %v1006, 0.0
    %1046 = vst [vmem:[#allocation2] sm:$0xff] %v1038
    %1047 = vst [vmem:[#allocation2 + $0x8] sm:$0xff] %v1039
    %s1048 = scalar_lea.vmem [#allocation2], 288
    %1049 = vst [vmem:[%s1048 + $0x10] sm:$0xff] %v1040
    %1050 = vst [vmem:[%s1048 + $0x18] sm:$0xff] %v1041
    %s1051 = scalar_lea.vmem %s0, 128
    %v1052 = vld [vmem:[%s1051] sm:$0xff]
    %v1053 = vld [vmem:[%s1051 + $0x8] sm:$0xff]
    %v1054 = vld [vmem:[%s1051 + $0x10] sm:$0xff]
    %v1055 = vld [vmem:[%s1051 + $0x18] sm:$0xff]
    %v1056 = vld [vmem:[%s1051 + $0x20] sm:$0xff]
    %v1057 = vld [vmem:[%s1051 + $0x28] sm:$0xff]
    %v1058 = vld [vmem:[%s1051 + $0x30] sm:$0xff]
    %v1059 = vld [vmem:[%s1051 + $0x38] sm:$0xff]
    %v1060 = vld [vmem:[%s1051 + $0x40] sm:$0xff]
    %v1061 = vld [vmem:[%s1051 + $0x48] sm:$0xff]
    %v1062 = vld [vmem:[%s1051 + $0x50] sm:$0xff]
    %v1063 = vld [vmem:[%s1051 + $0x58] sm:$0xff]
    %v1064 = vld [vmem:[%s1051 + $0x60] sm:$0xff]
    %v1065 = vld [vmem:[%s1051 + $0x68] sm:$0xff]
    %v1066 = vld [vmem:[%s1051 + $0x70] sm:$0xff]
    %v1067 = vld [vmem:[%s1051 + $0x78] sm:$0xff]
    %s1068 = scalar_lea.vmem %s0, 1024
    %v1069 = vld [vmem:[%s1068] sm:$0xff]
    %v1070 = vld [vmem:[%s1068 + $0x8] sm:$0xff]
    %v1071 = vld [vmem:[%s1068 + $0x10] sm:$0xff]
    %v1072 = vld [vmem:[%s1068 + $0x18] sm:$0xff]
    %v1073 = vld [vmem:[%s1068 + $0x20] sm:$0xff]
    %v1074 = vld [vmem:[%s1068 + $0x28] sm:$0xff]
    %v1075 = vld [vmem:[%s1068 + $0x30] sm:$0xff]
    %v1076 = vld [vmem:[%s1068 + $0x38] sm:$0xff]
    %v1077 = vld [vmem:[%s1068 + $0x40] sm:$0xff]
    %v1078 = vld [vmem:[%s1068 + $0x48] sm:$0xff]
    %v1079 = vld [vmem:[%s1068 + $0x50] sm:$0xff]
    %v1080 = vld [vmem:[%s1068 + $0x58] sm:$0xff]
    %v1081 = vld [vmem:[%s1068 + $0x60] sm:$0xff]
    %v1082 = vld [vmem:[%s1068 + $0x68] sm:$0xff]
    %v1083 = vld [vmem:[%s1068 + $0x70] sm:$0xff]
    %v1084 = vld [vmem:[%s1068 + $0x78] sm:$0xff]
    %v1086 = vsel %vm210, %v1069, 0
    %v1089 = vsel %vm210, %v1070, 0
    %v1092 = vsel %vm210, %v1071, 0
    %v1095 = vsel %vm210, %v1072, 0
    %v1098 = vsel %vm210, %v1073, 0
    %v1101 = vsel %vm210, %v1074, 0
    %v1104 = vsel %vm210, %v1075, 0
    %v1107 = vsel %vm210, %v1076, 0
    %v1110 = vsel %vm210, %v1077, 0
    %v1113 = vsel %vm210, %v1078, 0
    %v1116 = vsel %vm210, %v1079, 0
    %v1119 = vsel %vm210, %v1080, 0
    %v1122 = vsel %vm210, %v1081, 0
    %v1125 = vsel %vm210, %v1082, 0
    %v1128 = vsel %vm210, %v1083, 0
    %v1131 = vsel %vm210, %v1084, 0
    %1133 = vmatprep.subr.mxu0 0.0
    %1134 = vmatpush1.xpose.msra.mxu0 %v1086
    %1135 = vmatprep.subr.mxu0 0.0
    %1136 = vmatpush1.xpose.msra.mxu0 %v1089
    %1137 = vmatprep.subr.mxu0 0.0
    %1138 = vmatpush1.xpose.msra.mxu0 %v1092
    %1139 = vmatprep.subr.mxu0 0.0
    %1140 = vmatpush1.xpose.msra.mxu0 %v1095
    %1141 = vmatprep.subr.mxu0 0.0
    %1142 = vmatpush1.xpose.msra.mxu0 %v1098
    %1143 = vmatprep.subr.mxu0 0.0
    %1144 = vmatpush1.xpose.msra.mxu0 %v1101
    %1145 = vmatprep.subr.mxu0 0.0
    %1146 = vmatpush1.xpose.msra.mxu0 %v1104
    %1147 = vmatprep.subr.mxu0 0.0
    %1148 = vmatpush1.xpose.msra.mxu0 %v1107
    %1149 = vmatprep.subr.mxu0 0.0
    %1150 = vmatpush1.xpose.msra.mxu0 %v1110
    %1151 = vmatprep.subr.mxu0 0.0
    %1152 = vmatpush1.xpose.msra.mxu0 %v1113
    %1153 = vmatprep.subr.mxu0 0.0
    %1154 = vmatpush1.xpose.msra.mxu0 %v1116
    %1155 = vmatprep.subr.mxu0 0.0
    %1156 = vmatpush1.xpose.msra.mxu0 %v1119
    %1157 = vmatprep.subr.mxu0 0.0
    %1158 = vmatpush1.xpose.msra.mxu0 %v1122
    %1159 = vmatprep.subr.mxu0 0.0
    %1160 = vmatpush1.xpose.msra.mxu0 %v1125
    %1161 = vmatprep.subr.mxu0 0.0
    %1162 = vmatpush1.xpose.msra.mxu0 %v1128
    %1163 = vmatprep.subr.mxu0 0.0
    %1164 = vmatpush1.xpose.msra.mxu0 %v1131
    %1165 = vmatprep.subr.mxu0 0.0
    %1166 = vmatpush1.xpose.msra.mxu0 0.0
    %1167 = vmatprep.subr.mxu0 0.0
    %1168 = vmatpush1.xpose.msra.mxu0 0.0
    %1169 = vmatprep.subr.mxu0 0.0
    %1170 = vmatpush1.xpose.msra.mxu0 0.0
    %1171 = vmatprep.subr.mxu0 0.0
    %1172 = vmatpush1.xpose.msra.mxu0 0.0
    %1173 = vmatprep.subr.mxu0 0.0
    %1174 = vmatpush1.xpose.msra.mxu0 0.0
    %1175 = vmatprep.subr.mxu0 0.0
    %1176 = vmatpush1.xpose.msra.mxu0 0.0
    %1177 = vmatprep.subr.mxu0 0.0
    %1178 = vmatpush1.xpose.msra.mxu0 0.0
    %1179 = vmatprep.subr.mxu0 0.0
    %1180 = vmatpush1.xpose.msra.mxu0 0.0
    %1181 = vmatprep.subr.mxu0 0.0
    %1182 = vmatpush1.xpose.msra.mxu0 0.0
    %1183 = vmatprep.subr.mxu0 0.0
    %1184 = vmatpush1.xpose.msra.mxu0 0.0
    %1185 = vmatprep.subr.mxu0 0.0
    %1186 = vmatpush1.xpose.msra.mxu0 0.0
    %1187 = vmatprep.subr.mxu0 0.0
    %1188 = vmatpush1.xpose.msra.mxu0 0.0
    %1189 = vmatprep.subr.mxu0 0.0
    %1190 = vmatpush1.xpose.msra.mxu0 0.0
    %1191 = vmatprep.subr.mxu0 0.0
    %1192 = vmatpush1.xpose.msra.mxu0 0.0
    %1193 = vmatprep.subr.mxu0 0.0
    %1194 = vmatpush1.xpose.msra.mxu0 0.0
    %1195 = vmatprep.subr.mxu0 0.0
    %1196 = vmatpush1.xpose.msra.mxu0 0.0
    %1197 = vmatprep.mubr.f32.mxu0 0.0
    %1198 = vmatmul.mubr.f32.gmra.mrb[0].mxu0 %v212
    %v1199 = vpop.f32.mrb[0].mxu0
    %v1200 = vadd.f32 0.0, %v1199
    %v1201 = vpop.f32.mrb[0].mxu0
    %1202 = vmatprep.mubr.f32.mxu0 0.0
    %1203 = vmatmul.mubr.f32.gmra.mrb[0].mxu0 %v215
    %v1204 = vpop.f32.mrb[0].mxu0
    %v1205 = vadd.f32 0.0, %v1204
    %v1206 = vpop.f32.mrb[0].mxu0
    %1207 = vmatprep.mubr.f32.mxu0 0.0
    %1208 = vmatmul.mubr.f32.gmra.mrb[0].mxu0 %v218
    %v1209 = vpop.f32.mrb[0].mxu0
    %v1210 = vadd.f32 0.0, %v1209
    %v1211 = vpop.f32.mrb[0].mxu0
    %1212 = vmatprep.mubr.f32.mxu0 0.0
    %1213 = vmatmul.mubr.f32.gmra.mrb[0].mxu0 %v221
    %v1214 = vpop.f32.mrb[0].mxu0
    %v1215 = vadd.f32 0.0, %v1214
    %v1216 = vpop.f32.mrb[0].mxu0
    %1217 = vmatprep.mubr.f32.mxu0 0.0
    %1218 = vmatmul.mubr.f32.gmra.mrb[0].mxu0 %v224
    %v1219 = vpop.f32.mrb[0].mxu0
    %v1220 = vadd.f32 0.0, %v1219
    %v1221 = vpop.f32.mrb[0].mxu0
    %1222 = vmatprep.mubr.f32.mxu0 0.0
    %1223 = vmatmul.mubr.f32.gmra.mrb[0].mxu0 %v227
    %v1224 = vpop.f32.mrb[0].mxu0
    %v1225 = vadd.f32 0.0, %v1224
    %v1226 = vpop.f32.mrb[0].mxu0
    %1227 = vmatprep.mubr.f32.mxu0 0.0
    %1228 = vmatmul.mubr.f32.gmra.mrb[0].mxu0 %v230
    %v1229 = vpop.f32.mrb[0].mxu0
    %v1230 = vadd.f32 0.0, %v1229
    %v1231 = vpop.f32.mrb[0].mxu0
    %1232 = vmatprep.mubr.f32.mxu0 0.0
    %1233 = vmatmul.mubr.f32.gmra.mrb[0].mxu0 %v233
    %v1234 = vpop.f32.mrb[0].mxu0
    %v1235 = vadd.f32 0.0, %v1234
    %v1236 = vpop.f32.mrb[0].mxu0
    %1237 = vmatprep.mubr.f32.mxu0 0.0
    %1238 = vmatmul.mubr.f32.gmra.mrb[0].mxu0 %v236
    %v1239 = vpop.f32.mrb[0].mxu0
    %v1240 = vadd.f32 0.0, %v1239
    %v1241 = vpop.f32.mrb[0].mxu0
    %1242 = vmatprep.mubr.f32.mxu0 0.0
    %1243 = vmatmul.mubr.f32.gmra.mrb[0].mxu0 %v239
    %v1244 = vpop.f32.mrb[0].mxu0
    %v1245 = vadd.f32 0.0, %v1244
    %v1246 = vpop.f32.mrb[0].mxu0
    %1247 = vmatprep.mubr.f32.mxu0 0.0
    %1248 = vmatmul.mubr.f32.gmra.mrb[0].mxu0 %v242
    %v1249 = vpop.f32.mrb[0].mxu0
    %v1250 = vadd.f32 0.0, %v1249
    %v1251 = vpop.f32.mrb[0].mxu0
    %1252 = vmatprep.mubr.f32.mxu0 0.0
    %1253 = vmatmul.mubr.f32.gmra.mrb[0].mxu0 %v245
    %v1254 = vpop.f32.mrb[0].mxu0
    %v1255 = vadd.f32 0.0, %v1254
    %v1256 = vpop.f32.mrb[0].mxu0
    %1257 = vmatprep.mubr.f32.mxu0 0.0
    %1258 = vmatmul.mubr.f32.gmra.mrb[0].mxu0 %v248
    %v1259 = vpop.f32.mrb[0].mxu0
    %v1260 = vadd.f32 0.0, %v1259
    %v1261 = vpop.f32.mrb[0].mxu0
    %1262 = vmatprep.mubr.f32.mxu0 0.0
    %1263 = vmatmul.mubr.f32.gmra.mrb[0].mxu0 %v251
    %v1264 = vpop.f32.mrb[0].mxu0
    %v1265 = vadd.f32 0.0, %v1264
    %v1266 = vpop.f32.mrb[0].mxu0
    %1267 = vmatprep.mubr.f32.mxu0 0.0
    %1268 = vmatmul.mubr.f32.gmra.mrb[0].mxu0 %v254
    %v1269 = vpop.f32.mrb[0].mxu0
    %v1270 = vadd.f32 0.0, %v1269
    %v1271 = vpop.f32.mrb[0].mxu0
    %1272 = vmatprep.mubr.f32.mxu0 0.0
    %1273 = vmatmul.mubr.f32.gmra.mrb[0].mxu0 %v257
    %v1274 = vpop.f32.mrb[0].mxu0
    %v1275 = vadd.f32 0.0, %v1274
    %v1276 = vpop.f32.mrb[0].mxu0
    %1277 = vdwg.mxu0
    %v1279 = vsel %vm210, %v1052, 0
    %v1282 = vsel %vm210, %v1053, 0
    %v1285 = vsel %vm210, %v1054, 0
    %v1288 = vsel %vm210, %v1055, 0
    %v1291 = vsel %vm210, %v1056, 0
    %v1294 = vsel %vm210, %v1057, 0
    %v1297 = vsel %vm210, %v1058, 0
    %v1300 = vsel %vm210, %v1059, 0
    %v1303 = vsel %vm210, %v1060, 0
    %v1306 = vsel %vm210, %v1061, 0
    %v1309 = vsel %vm210, %v1062, 0
    %v1312 = vsel %vm210, %v1063, 0
    %v1315 = vsel %vm210, %v1064, 0
    %v1318 = vsel %vm210, %v1065, 0
    %v1321 = vsel %vm210, %v1066, 0
    %v1324 = vsel %vm210, %v1067, 0
    %1326 = vmatprep.subr.mxu0 0.0
    %1327 = vmatpush1.xpose.msra.mxu0 %v1279
    %1328 = vmatprep.subr.mxu0 0.0
    %1329 = vmatpush1.xpose.msra.mxu0 %v1282
    %1330 = vmatprep.subr.mxu0 0.0
    %1331 = vmatpush1.xpose.msra.mxu0 %v1285
    %1332 = vmatprep.subr.mxu0 0.0
    %1333 = vmatpush1.xpose.msra.mxu0 %v1288
    %1334 = vmatprep.subr.mxu0 0.0
    %1335 = vmatpush1.xpose.msra.mxu0 %v1291
    %1336 = vmatprep.subr.mxu0 0.0
    %1337 = vmatpush1.xpose.msra.mxu0 %v1294
    %1338 = vmatprep.subr.mxu0 0.0
    %1339 = vmatpush1.xpose.msra.mxu0 %v1297
    %1340 = vmatprep.subr.mxu0 0.0
    %1341 = vmatpush1.xpose.msra.mxu0 %v1300
    %1342 = vmatprep.subr.mxu0 0.0
    %1343 = vmatpush1.xpose.msra.mxu0 %v1303
    %1344 = vmatprep.subr.mxu0 0.0
    %1345 = vmatpush1.xpose.msra.mxu0 %v1306
    %1346 = vmatprep.subr.mxu0 0.0
    %1347 = vmatpush1.xpose.msra.mxu0 %v1309
    %1348 = vmatprep.subr.mxu0 0.0
    %1349 = vmatpush1.xpose.msra.mxu0 %v1312
    %1350 = vmatprep.subr.mxu0 0.0
    %1351 = vmatpush1.xpose.msra.mxu0 %v1315
    %1352 = vmatprep.subr.mxu0 0.0
    %1353 = vmatpush1.xpose.msra.mxu0 %v1318
    %1354 = vmatprep.subr.mxu0 0.0
    %1355 = vmatpush1.xpose.msra.mxu0 %v1321
    %1356 = vmatprep.subr.mxu0 0.0
    %1357 = vmatpush1.xpose.msra.mxu0 %v1324
    %1358 = vmatprep.subr.mxu0 0.0
    %1359 = vmatpush1.xpose.msra.mxu0 0.0
    %1360 = vmatprep.subr.mxu0 0.0
    %1361 = vmatpush1.xpose.msra.mxu0 0.0
    %1362 = vmatprep.subr.mxu0 0.0
    %1363 = vmatpush1.xpose.msra.mxu0 0.0
    %1364 = vmatprep.subr.mxu0 0.0
    %1365 = vmatpush1.xpose.msra.mxu0 0.0
    %1366 = vmatprep.subr.mxu0 0.0
    %1367 = vmatpush1.xpose.msra.mxu0 0.0
    %1368 = vmatprep.subr.mxu0 0.0
    %1369 = vmatpush1.xpose.msra.mxu0 0.0
    %1370 = vmatprep.subr.mxu0 0.0
    %1371 = vmatpush1.xpose.msra.mxu0 0.0
    %1372 = vmatprep.subr.mxu0 0.0
    %1373 = vmatpush1.xpose.msra.mxu0 0.0
    %1374 = vmatprep.subr.mxu0 0.0
    %1375 = vmatpush1.xpose.msra.mxu0 0.0
    %1376 = vmatprep.subr.mxu0 0.0
    %1377 = vmatpush1.xpose.msra.mxu0 0.0
    %1378 = vmatprep.subr.mxu0 0.0
    %1379 = vmatpush1.xpose.msra.mxu0 0.0
    %1380 = vmatprep.subr.mxu0 0.0
    %1381 = vmatpush1.xpose.msra.mxu0 0.0
    %1382 = vmatprep.subr.mxu0 0.0
    %1383 = vmatpush1.xpose.msra.mxu0 0.0
    %1384 = vmatprep.subr.mxu0 0.0
    %1385 = vmatpush1.xpose.msra.mxu0 0.0
    %1386 = vmatprep.subr.mxu0 0.0
    %1387 = vmatpush1.xpose.msra.mxu0 0.0
    %1388 = vmatprep.subr.mxu0 0.0
    %1389 = vmatpush1.xpose.msra.mxu0 0.0
    %1390 = vmatprep.mubr.f32.mxu0 0.0
    %1391 = vmatmul.mubr.f32.gmra.mrb[0].mxu0 %v453
    %v1392 = vpop.f32.mrb[0].mxu0
    %v1393 = vadd.f32 %v1200, %v1392
    %v1394 = vpop.f32.mrb[0].mxu0
    %1395 = vmatprep.mubr.f32.mxu0 0.0
    %1396 = vmatmul.mubr.f32.gmra.mrb[0].mxu0 %v456
    %v1397 = vpop.f32.mrb[0].mxu0
    %v1398 = vadd.f32 %v1205, %v1397
    %v1399 = vpop.f32.mrb[0].mxu0
    %1400 = vmatprep.mubr.f32.mxu0 0.0
    %1401 = vmatmul.mubr.f32.gmra.mrb[0].mxu0 %v459
    %v1402 = vpop.f32.mrb[0].mxu0
    %v1403 = vadd.f32 %v1210, %v1402
    %v1404 = vpop.f32.mrb[0].mxu0
    %1405 = vmatprep.mubr.f32.mxu0 0.0
    %1406 = vmatmul.mubr.f32.gmra.mrb[0].mxu0 %v462
    %v1407 = vpop.f32.mrb[0].mxu0
    %v1408 = vadd.f32 %v1215, %v1407
    %v1409 = vpop.f32.mrb[0].mxu0
    %1410 = vmatprep.mubr.f32.mxu0 0.0
    %1411 = vmatmul.mubr.f32.gmra.mrb[0].mxu0 %v465
    %v1412 = vpop.f32.mrb[0].mxu0
    %v1413 = vadd.f32 %v1220, %v1412
    %v1414 = vpop.f32.mrb[0].mxu0
    %1415 = vmatprep.mubr.f32.mxu0 0.0
    %1416 = vmatmul.mubr.f32.gmra.mrb[0].mxu0 %v468
    %v1417 = vpop.f32.mrb[0].mxu0
    %v1418 = vadd.f32 %v1225, %v1417
    %v1419 = vpop.f32.mrb[0].mxu0
    %1420 = vmatprep.mubr.f32.mxu0 0.0
    %1421 = vmatmul.mubr.f32.gmra.mrb[0].mxu0 %v471
    %v1422 = vpop.f32.mrb[0].mxu0
    %v1423 = vadd.f32 %v1230, %v1422
    %v1424 = vpop.f32.mrb[0].mxu0
    %1425 = vmatprep.mubr.f32.mxu0 0.0
    %1426 = vmatmul.mubr.f32.gmra.mrb[0].mxu0 %v474
    %v1427 = vpop.f32.mrb[0].mxu0
    %v1428 = vadd.f32 %v1235, %v1427
    %v1429 = vpop.f32.mrb[0].mxu0
    %1430 = vmatprep.mubr.f32.mxu0 0.0
    %1431 = vmatmul.mubr.f32.gmra.mrb[0].mxu0 %v477
    %v1432 = vpop.f32.mrb[0].mxu0
    %v1433 = vadd.f32 %v1240, %v1432
    %v1434 = vpop.f32.mrb[0].mxu0
    %1435 = vmatprep.mubr.f32.mxu0 0.0
    %1436 = vmatmul.mubr.f32.gmra.mrb[0].mxu0 %v480
    %v1437 = vpop.f32.mrb[0].mxu0
    %v1438 = vadd.f32 %v1245, %v1437
    %v1439 = vpop.f32.mrb[0].mxu0
    %1440 = vmatprep.mubr.f32.mxu0 0.0
    %1441 = vmatmul.mubr.f32.gmra.mrb[0].mxu0 %v483
    %v1442 = vpop.f32.mrb[0].mxu0
    %v1443 = vadd.f32 %v1250, %v1442
    %v1444 = vpop.f32.mrb[0].mxu0
    %1445 = vmatprep.mubr.f32.mxu0 0.0
    %1446 = vmatmul.mubr.f32.gmra.mrb[0].mxu0 %v486
    %v1447 = vpop.f32.mrb[0].mxu0
    %v1448 = vadd.f32 %v1255, %v1447
    %v1449 = vpop.f32.mrb[0].mxu0
    %1450 = vmatprep.mubr.f32.mxu0 0.0
    %1451 = vmatmul.mubr.f32.gmra.mrb[0].mxu0 %v489
    %v1452 = vpop.f32.mrb[0].mxu0
    %v1453 = vadd.f32 %v1260, %v1452
    %v1454 = vpop.f32.mrb[0].mxu0
    %1455 = vmatprep.mubr.f32.mxu0 0.0
    %1456 = vmatmul.mubr.f32.gmra.mrb[0].mxu0 %v492
    %v1457 = vpop.f32.mrb[0].mxu0
    %v1458 = vadd.f32 %v1265, %v1457
    %v1459 = vpop.f32.mrb[0].mxu0
    %1460 = vmatprep.mubr.f32.mxu0 0.0
    %1461 = vmatmul.mubr.f32.gmra.mrb[0].mxu0 %v495
    %v1462 = vpop.f32.mrb[0].mxu0
    %v1463 = vadd.f32 %v1270, %v1462
    %v1464 = vpop.f32.mrb[0].mxu0
    %1465 = vmatprep.mubr.f32.mxu0 0.0
    %1466 = vmatmul.mubr.f32.gmra.mrb[0].mxu0 %v498
    %v1467 = vpop.f32.mrb[0].mxu0
    %v1468 = vadd.f32 %v1275, %v1467
    %v1469 = vpop.f32.mrb[0].mxu0
    %1470 = vdwg.mxu0
    %1471 = vmatprep.subr.mxu0 0.0
    %1472 = vmatpush1.msra.mxu0 %v1038
    %1473 = vmatprep.subr.mxu0 0.0
    %1474 = vmatpush1.msra.mxu0 %v1039
    %1475 = vmatprep.subr.mxu0 0.0
    %1476 = vmatpush1.msra.mxu0 %v1040
    %1477 = vmatprep.subr.mxu0 0.0
    %1478 = vmatpush1.msra.mxu0 %v1041
    %1479 = vmatprep.subr.mxu0 0.0
    %1480 = vmatpush1.msra.mxu0 0.0
    %1481 = vmatprep.subr.mxu0 0.0
    %1482 = vmatpush1.msra.mxu0 0.0
    %1483 = vmatprep.subr.mxu0 0.0
    %1484 = vmatpush1.msra.mxu0 0.0
    %1485 = vmatprep.subr.mxu0 0.0
    %1486 = vmatpush1.msra.mxu0 0.0
    %1487 = vmatprep.subr.mxu0 0.0
    %1488 = vmatpush1.msra.mxu0 0.0
    %1489 = vmatprep.subr.mxu0 0.0
    %1490 = vmatpush1.msra.mxu0 0.0
    %1491 = vmatprep.subr.mxu0 0.0
    %1492 = vmatpush1.msra.mxu0 0.0
    %1493 = vmatprep.subr.mxu0 0.0
    %1494 = vmatpush1.msra.mxu0 0.0
    %1495 = vmatprep.subr.mxu0 0.0
    %1496 = vmatpush1.msra.mxu0 0.0
    %1497 = vmatprep.subr.mxu0 0.0
    %1498 = vmatpush1.msra.mxu0 0.0
    %1499 = vmatprep.subr.mxu0 0.0
    %1500 = vmatpush1.msra.mxu0 0.0
    %1501 = vmatprep.subr.mxu0 0.0
    %1502 = vmatpush1.msra.mxu0 0.0
    %1503 = vmatprep.subr.mxu0 0.0
    %1504 = vmatpush1.msra.mxu0 0.0
    %1505 = vmatprep.subr.mxu0 0.0
    %1506 = vmatpush1.msra.mxu0 0.0
    %1507 = vmatprep.subr.mxu0 0.0
    %1508 = vmatpush1.msra.mxu0 0.0
    %1509 = vmatprep.subr.mxu0 0.0
    %1510 = vmatpush1.msra.mxu0 0.0
    %1511 = vmatprep.subr.mxu0 0.0
    %1512 = vmatpush1.msra.mxu0 0.0
    %1513 = vmatprep.subr.mxu0 0.0
    %1514 = vmatpush1.msra.mxu0 0.0
    %1515 = vmatprep.subr.mxu0 0.0
    %1516 = vmatpush1.msra.mxu0 0.0
    %1517 = vmatprep.subr.mxu0 0.0
    %1518 = vmatpush1.msra.mxu0 0.0
    %1519 = vmatprep.subr.mxu0 0.0
    %1520 = vmatpush1.msra.mxu0 0.0
    %1521 = vmatprep.subr.mxu0 0.0
    %1522 = vmatpush1.msra.mxu0 0.0
    %1523 = vmatprep.subr.mxu0 0.0
    %1524 = vmatpush1.msra.mxu0 0.0
    %1525 = vmatprep.subr.mxu0 0.0
    %1526 = vmatpush1.msra.mxu0 0.0
    %1527 = vmatprep.subr.mxu0 0.0
    %1528 = vmatpush1.msra.mxu0 0.0
    %1529 = vmatprep.subr.mxu0 0.0
    %1530 = vmatpush1.msra.mxu0 0.0
    %1531 = vmatprep.subr.mxu0 0.0
    %1532 = vmatpush1.msra.mxu0 0.0
    %1533 = vmatprep.subr.mxu0 0.0
    %1534 = vmatpush1.msra.mxu0 0.0
    %1535 = vmatprep.mubr.f32.mxu0 0.0
    %1536 = vmatmul.mubr.f32.gmra.mrb[0].mxu0 %v695
    %v1537 = vpop.f32.mrb[0].mxu0
    %v1538 = vadd.f32 0.0, %v1537
    %v1539 = vpop.f32.mrb[0].mxu0
    %1540 = vmatprep.mubr.f32.mxu0 0.0
    %1541 = vmatmul.mubr.f32.gmra.mrb[0].mxu0 %v698
    %v1542 = vpop.f32.mrb[0].mxu0
    %v1543 = vadd.f32 0.0, %v1542
    %v1544 = vpop.f32.mrb[0].mxu0
    %1545 = vmatprep.mubr.f32.mxu0 0.0
    %1546 = vmatmul.mubr.f32.gmra.mrb[0].mxu0 %v701
    %v1547 = vpop.f32.mrb[0].mxu0
    %v1548 = vadd.f32 0.0, %v1547
    %v1549 = vpop.f32.mrb[0].mxu0
    %1550 = vmatprep.mubr.f32.mxu0 0.0
    %1551 = vmatmul.mubr.f32.gmra.mrb[0].mxu0 %v704
    %v1552 = vpop.f32.mrb[0].mxu0
    %v1553 = vadd.f32 0.0, %v1552
    %v1554 = vpop.f32.mrb[0].mxu0
    %1555 = vmatprep.mubr.f32.mxu0 0.0
    %1556 = vmatmul.mubr.f32.gmra.mrb[0].mxu0 %v707
    %v1557 = vpop.f32.mrb[0].mxu0
    %v1558 = vadd.f32 0.0, %v1557
    %v1559 = vpop.f32.mrb[0].mxu0
    %1560 = vmatprep.mubr.f32.mxu0 0.0
    %1561 = vmatmul.mubr.f32.gmra.mrb[0].mxu0 %v710
    %v1562 = vpop.f32.mrb[0].mxu0
    %v1563 = vadd.f32 0.0, %v1562
    %v1564 = vpop.f32.mrb[0].mxu0
    %1565 = vmatprep.mubr.f32.mxu0 0.0
    %1566 = vmatmul.mubr.f32.gmra.mrb[0].mxu0 %v713
    %v1567 = vpop.f32.mrb[0].mxu0
    %v1568 = vadd.f32 0.0, %v1567
    %v1569 = vpop.f32.mrb[0].mxu0
    %1570 = vmatprep.mubr.f32.mxu0 0.0
    %1571 = vmatmul.mubr.f32.gmra.mrb[0].mxu0 %v716
    %v1572 = vpop.f32.mrb[0].mxu0
    %v1573 = vadd.f32 0.0, %v1572
    %v1574 = vpop.f32.mrb[0].mxu0
    %1575 = vmatprep.mubr.f32.mxu0 0.0
    %1576 = vmatmul.mubr.f32.gmra.mrb[0].mxu0 %v719
    %v1577 = vpop.f32.mrb[0].mxu0
    %v1578 = vadd.f32 0.0, %v1577
    %v1579 = vpop.f32.mrb[0].mxu0
    %1580 = vmatprep.mubr.f32.mxu0 0.0
    %1581 = vmatmul.mubr.f32.gmra.mrb[0].mxu0 %v722
    %v1582 = vpop.f32.mrb[0].mxu0
    %v1583 = vadd.f32 0.0, %v1582
    %v1584 = vpop.f32.mrb[0].mxu0
    %1585 = vmatprep.mubr.f32.mxu0 0.0
    %1586 = vmatmul.mubr.f32.gmra.mrb[0].mxu0 %v725
    %v1587 = vpop.f32.mrb[0].mxu0
    %v1588 = vadd.f32 0.0, %v1587
    %v1589 = vpop.f32.mrb[0].mxu0
    %1590 = vmatprep.mubr.f32.mxu0 0.0
    %1591 = vmatmul.mubr.f32.gmra.mrb[0].mxu0 %v728
    %v1592 = vpop.f32.mrb[0].mxu0
    %v1593 = vadd.f32 0.0, %v1592
    %v1594 = vpop.f32.mrb[0].mxu0
    %1595 = vmatprep.mubr.f32.mxu0 0.0
    %1596 = vmatmul.mubr.f32.gmra.mrb[0].mxu0 %v731
    %v1597 = vpop.f32.mrb[0].mxu0
    %v1598 = vadd.f32 0.0, %v1597
    %v1599 = vpop.f32.mrb[0].mxu0
    %1600 = vmatprep.mubr.f32.mxu0 0.0
    %1601 = vmatmul.mubr.f32.gmra.mrb[0].mxu0 %v734
    %v1602 = vpop.f32.mrb[0].mxu0
    %v1603 = vadd.f32 0.0, %v1602
    %v1604 = vpop.f32.mrb[0].mxu0
    %1605 = vmatprep.mubr.f32.mxu0 0.0
    %1606 = vmatmul.mubr.f32.gmra.mrb[0].mxu0 %v737
    %v1607 = vpop.f32.mrb[0].mxu0
    %v1608 = vadd.f32 0.0, %v1607
    %v1609 = vpop.f32.mrb[0].mxu0
    %1610 = vmatprep.mubr.f32.mxu0 0.0
    %1611 = vmatmul.mubr.f32.gmra.mrb[0].mxu0 %v740
    %v1612 = vpop.f32.mrb[0].mxu0
    %v1613 = vadd.f32 0.0, %v1612
    %v1614 = vpop.f32.mrb[0].mxu0
    %1615 = vdwg.mxu0
    %v1616 = vadd.f32 %v1393, %v1538
    %v1617 = vadd.f32 %v1398, %v1543
    %v1618 = vadd.f32 %v1403, %v1548
    %v1619 = vadd.f32 %v1408, %v1553
    %v1620 = vadd.f32 %v1413, %v1558
    %v1621 = vadd.f32 %v1418, %v1563
    %v1622 = vadd.f32 %v1423, %v1568
    %v1623 = vadd.f32 %v1428, %v1573
    %v1624 = vadd.f32 %v1433, %v1578
    %v1625 = vadd.f32 %v1438, %v1583
    %v1626 = vadd.f32 %v1443, %v1588
    %v1627 = vadd.f32 %v1448, %v1593
    %v1628 = vadd.f32 %v1453, %v1598
    %v1629 = vadd.f32 %v1458, %v1603
    %v1630 = vadd.f32 %v1463, %v1608
    %v1631 = vadd.f32 %v1468, %v1613
    %v1632 = vadd.f32 %v1616, %v91
    %v1633 = vadd.f32 %v1617, %v96
    %v1634 = vadd.f32 %v1618, %v101
    %v1635 = vadd.f32 %v1619, %v106
    %v1636 = vadd.f32 %v1620, %v111
    %v1637 = vadd.f32 %v1621, %v116
    %v1638 = vadd.f32 %v1622, %v121
    %v1639 = vadd.f32 %v1623, %v126
    %v1640 = vadd.f32 %v1624, %v131
    %v1641 = vadd.f32 %v1625, %v136
    %v1642 = vadd.f32 %v1626, %v141
    %v1643 = vadd.f32 %v1627, %v146
    %v1644 = vadd.f32 %v1628, %v151
    %v1645 = vadd.f32 %v1629, %v156
    %v1646 = vadd.f32 %v1630, %v161
    %v1647 = vadd.f32 %v1631, %v166
    %v1648 = vxor.u32 %v1632, 2147483648
    %v1649 = vxor.u32 %v1633, 2147483648
    %v1650 = vxor.u32 %v1634, 2147483648
    %v1651 = vxor.u32 %v1635, 2147483648
    %v1652 = vmul.f32 %v1648, 1.442695
    %v1653 = vpow.pop %v1652
    %v1654 = vmul.f32 %v1649, 1.442695
    %v1655 = vpow.pop %v1654
    %v1656 = vmul.f32 %v1650, 1.442695
    %v1657 = vpow.pop %v1656
    %v1658 = vmul.f32 %v1651, 1.442695
    %v1659 = vpow.pop %v1658
    %v1660 = vadd.f32 %v1653, 1.0
    %v1661 = vadd.f32 %v1655, 1.0
    %v1662 = vadd.f32 %v1657, 1.0
    %v1663 = vadd.f32 %v1659, 1.0
    %v1664 = vrcp.pop %v1660
    %v1665 = vmul.f32 1.0, %v1664
    %v1666 = vrcp.pop %v1661
    %v1667 = vmul.f32 1.0, %v1666
    %v1668 = vrcp.pop %v1662
    %v1669 = vmul.f32 1.0, %v1668
    %v1670 = vrcp.pop %v1663
    %v1671 = vmul.f32 1.0, %v1670
    %v1672 = vxor.u32 %v1636, 2147483648
    %v1673 = vxor.u32 %v1637, 2147483648
    %v1674 = vxor.u32 %v1638, 2147483648
    %v1675 = vxor.u32 %v1639, 2147483648
    %v1676 = vmul.f32 %v1672, 1.442695
    %v1677 = vpow.pop %v1676
    %v1678 = vmul.f32 %v1673, 1.442695
    %v1679 = vpow.pop %v1678
    %v1680 = vmul.f32 %v1674, 1.442695
    %v1681 = vpow.pop %v1680
    %v1682 = vmul.f32 %v1675, 1.442695
    %v1683 = vpow.pop %v1682
    %v1684 = vadd.f32 %v1677, 1.0
    %v1685 = vadd.f32 %v1679, 1.0
    %v1686 = vadd.f32 %v1681, 1.0
    %v1687 = vadd.f32 %v1683, 1.0
    %v1688 = vrcp.pop %v1684
    %v1689 = vmul.f32 1.0, %v1688
    %v1690 = vrcp.pop %v1685
    %v1691 = vmul.f32 1.0, %v1690
    %v1692 = vrcp.pop %v1686
    %v1693 = vmul.f32 1.0, %v1692
    %v1694 = vrcp.pop %v1687
    %v1695 = vmul.f32 1.0, %v1694
    %v1696 = vtanh.pop %v1640
    %v1697 = vtanh.pop %v1641
    %v1698 = vtanh.pop %v1642
    %v1699 = vtanh.pop %v1643
    %v1700 = vxor.u32 %v1644, 2147483648
    %v1701 = vxor.u32 %v1645, 2147483648
    %v1702 = vxor.u32 %v1646, 2147483648
    %v1703 = vxor.u32 %v1647, 2147483648
    %v1704 = vmul.f32 %v1700, 1.442695
    %v1705 = vpow.pop %v1704
    %v1706 = vmul.f32 %v1701, 1.442695
    %v1707 = vpow.pop %v1706
    %v1708 = vmul.f32 %v1702, 1.442695
    %v1709 = vpow.pop %v1708
    %v1710 = vmul.f32 %v1703, 1.442695
    %v1711 = vpow.pop %v1710
    %v1712 = vadd.f32 %v1705, 1.0
    %v1713 = vadd.f32 %v1707, 1.0
    %v1714 = vadd.f32 %v1709, 1.0
    %v1715 = vadd.f32 %v1711, 1.0
    %v1716 = vrcp.pop %v1712
    %v1717 = vmul.f32 1.0, %v1716
    %v1718 = vrcp.pop %v1713
    %v1719 = vmul.f32 1.0, %v1718
    %v1720 = vrcp.pop %v1714
    %v1721 = vmul.f32 1.0, %v1720
    %v1722 = vrcp.pop %v1715
    %v1723 = vmul.f32 1.0, %v1722
    %v1724 = vmul.f32 %v1689, %v1042
    %v1725 = vmul.f32 %v1691, %v1043
    %v1726 = vmul.f32 %v1693, %v1044
    %v1727 = vmul.f32 %v1695, %v1045
    %v1728 = vmul.f32 %v1665, %v1696
    %v1729 = vmul.f32 %v1667, %v1697
    %v1730 = vmul.f32 %v1669, %v1698
    %v1731 = vmul.f32 %v1671, %v1699
    %v1732 = vadd.f32 %v1724, %v1728
    %v1733 = vadd.f32 %v1725, %v1729
    %v1734 = vadd.f32 %v1726, %v1730
    %v1735 = vadd.f32 %v1727, %v1731
    %v1736 = vtanh.pop %v1732
    %v1737 = vtanh.pop %v1733
    %v1738 = vtanh.pop %v1734
    %v1739 = vtanh.pop %v1735
    %v1740 = vmul.f32 %v1717, %v1736
    %v1741 = vmul.f32 %v1719, %v1737
    %v1742 = vmul.f32 %v1721, %v1738
    %v1743 = vmul.f32 %v1723, %v1739
    %s1744 = scalar_lea.vmem %s1, 1
    %v1745 = vld [vmem:[%s1744] sm:$0x1]
    %s1746 = scalar_lea.vmem %s1, 8
    %v1747 = vld [vmem:[%s1746] sm:$0x1]
    %v1749 = vlaneseq
    %v1750 = vshrl.u32 %v1749, 7
    %v1751 = vsub.s32 0, %v1750
    %v1752 = vrot.slane %v1745, %v1751
    %v1755 = vlaneseq
    %v1756 = vshrl.u32 %v1755, 7
    %v1757 = vsub.s32 0, %v1756
    %v1758 = vrot.slane %v1747, %v1757
    %v1760 = vsel %vm173, %v1752, %v1758
    %v1761 = vsel %vm174, %v1752, %v1758
    %v1762 = vsel %vm175, %v1752, %v1758
    %v1763 = vsel %vm176, %v1752, %v1758
    %vm1764 = vcmp.gt.f32.partialorder %v1760, 0.5
    %vm1765 = vcmp.gt.f32.partialorder %v1761, 0.5
    %vm1766 = vcmp.gt.f32.partialorder %v1762, 0.5
    %vm1767 = vcmp.gt.f32.partialorder %v1763, 0.5
    %v1768 = vsel %vm1764, %v1740, %v1038
    %v1769 = vsel %vm1765, %v1741, %v1039
    %v1770 = vsel %vm1766, %v1742, %v1040
    %v1771 = vsel %vm1767, %v1743, %v1041
    %v1772 = vsel %vm1764, %v1732, %v1042
    %v1773 = vsel %vm1765, %v1733, %v1043
    %v1774 = vsel %vm1766, %v1734, %v1044
    %v1775 = vsel %vm1767, %v1735, %v1045
    %v1776 = vsel %vm1764, %v1740, 0.0
    %v1777 = vsel %vm1765, %v1741, 0.0
    %v1778 = vsel %vm1766, %v1742, 0.0
    %v1779 = vsel %vm1767, %v1743, 0.0
    %s1780 = scalar_lea.vmem [#allocation2], 32
    %1781 = vst [vmem:[%s1780] sm:$0xff] %v1776
    %1782 = vst [vmem:[%s1780 + $0x8] sm:$0xff] %v1777
    %s1783 = scalar_lea.vmem [#allocation2], 256
    %1784 = vst [vmem:[%s1783 + $0x10] sm:$0xff] %v1778
    %1785 = vst [vmem:[%s1783 + $0x18] sm:$0xff] %v1779
    %s1786 = scalar_lea.vmem %s0, 256
    %v1787 = vld [vmem:[%s1786] sm:$0xff]
    %v1788 = vld [vmem:[%s1786 + $0x8] sm:$0xff]
    %v1789 = vld [vmem:[%s1786 + $0x10] sm:$0xff]
    %v1790 = vld [vmem:[%s1786 + $0x18] sm:$0xff]
    %v1791 = vld [vmem:[%s1786 + $0x20] sm:$0xff]
    %v1792 = vld [vmem:[%s1786 + $0x28] sm:$0xff]
    %v1793 = vld [vmem:[%s1786 + $0x30] sm:$0xff]
    %v1794 = vld [vmem:[%s1786 + $0x38] sm:$0xff]
    %v1795 = vld [vmem:[%s1786 + $0x40] sm:$0xff]
    %v1796 = vld [vmem:[%s1786 + $0x48] sm:$0xff]
    %v1797 = vld [vmem:[%s1786 + $0x50] sm:$0xff]
    %v1798 = vld [vmem:[%s1786 + $0x58] sm:$0xff]
    %v1799 = vld [vmem:[%s1786 + $0x60] sm:$0xff]
    %v1800 = vld [vmem:[%s1786 + $0x68] sm:$0xff]
    %v1801 = vld [vmem:[%s1786 + $0x70] sm:$0xff]
    %v1802 = vld [vmem:[%s1786 + $0x78] sm:$0xff]
    %s1803 = scalar_lea.vmem %s0, 896
    %v1804 = vld [vmem:[%s1803] sm:$0xff]
    %v1805 = vld [vmem:[%s1803 + $0x8] sm:$0xff]
    %v1806 = vld [vmem:[%s1803 + $0x10] sm:$0xff]
    %v1807 = vld [vmem:[%s1803 + $0x18] sm:$0xff]
    %v1808 = vld [vmem:[%s1803 + $0x20] sm:$0xff]
    %v1809 = vld [vmem:[%s1803 + $0x28] sm:$0xff]
    %v1810 = vld [vmem:[%s1803 + $0x30] sm:$0xff]
    %v1811 = vld [vmem:[%s1803 + $0x38] sm:$0xff]
    %v1812 = vld [vmem:[%s1803 + $0x40] sm:$0xff]
    %v1813 = vld [vmem:[%s1803 + $0x48] sm:$0xff]
    %v1814 = vld [vmem:[%s1803 + $0x50] sm:$0xff]
    %v1815 = vld [vmem:[%s1803 + $0x58] sm:$0xff]
    %v1816 = vld [vmem:[%s1803 + $0x60] sm:$0xff]
    %v1817 = vld [vmem:[%s1803 + $0x68] sm:$0xff]
    %v1818 = vld [vmem:[%s1803 + $0x70] sm:$0xff]
    %v1819 = vld [vmem:[%s1803 + $0x78] sm:$0xff]
    %v1821 = vsel %vm210, %v1804, 0
    %v1824 = vsel %vm210, %v1805, 0
    %v1827 = vsel %vm210, %v1806, 0
    %v1830 = vsel %vm210, %v1807, 0
    %v1833 = vsel %vm210, %v1808, 0
    %v1836 = vsel %vm210, %v1809, 0
    %v1839 = vsel %vm210, %v1810, 0
    %v1842 = vsel %vm210, %v1811, 0
    %v1845 = vsel %vm210, %v1812, 0
    %v1848 = vsel %vm210, %v1813, 0
    %v1851 = vsel %vm210, %v1814, 0
    %v1854 = vsel %vm210, %v1815, 0
    %v1857 = vsel %vm210, %v1816, 0
    %v1860 = vsel %vm210, %v1817, 0
    %v1863 = vsel %vm210, %v1818, 0
    %v1866 = vsel %vm210, %v1819, 0
    %1868 = vmatprep.subr.mxu0 0.0
    %1869 = vmatpush1.xpose.msra.mxu0 %v1821
    %1870 = vmatprep.subr.mxu0 0.0
    %1871 = vmatpush1.xpose.msra.mxu0 %v1824
    %1872 = vmatprep.subr.mxu0 0.0
    %1873 = vmatpush1.xpose.msra.mxu0 %v1827
    %1874 = vmatprep.subr.mxu0 0.0
    %1875 = vmatpush1.xpose.msra.mxu0 %v1830
    %1876 = vmatprep.subr.mxu0 0.0
    %1877 = vmatpush1.xpose.msra.mxu0 %v1833
    %1878 = vmatprep.subr.mxu0 0.0
    %1879 = vmatpush1.xpose.msra.mxu0 %v1836
    %1880 = vmatprep.subr.mxu0 0.0
    %1881 = vmatpush1.xpose.msra.mxu0 %v1839
    %1882 = vmatprep.subr.mxu0 0.0
    %1883 = vmatpush1.xpose.msra.mxu0 %v1842
    %1884 = vmatprep.subr.mxu0 0.0
    %1885 = vmatpush1.xpose.msra.mxu0 %v1845
    %1886 = vmatprep.subr.mxu0 0.0
    %1887 = vmatpush1.xpose.msra.mxu0 %v1848
    %1888 = vmatprep.subr.mxu0 0.0
    %1889 = vmatpush1.xpose.msra.mxu0 %v1851
    %1890 = vmatprep.subr.mxu0 0.0
    %1891 = vmatpush1.xpose.msra.mxu0 %v1854
    %1892 = vmatprep.subr.mxu0 0.0
    %1893 = vmatpush1.xpose.msra.mxu0 %v1857
    %1894 = vmatprep.subr.mxu0 0.0
    %1895 = vmatpush1.xpose.msra.mxu0 %v1860
    %1896 = vmatprep.subr.mxu0 0.0
    %1897 = vmatpush1.xpose.msra.mxu0 %v1863
    %1898 = vmatprep.subr.mxu0 0.0
    %1899 = vmatpush1.xpose.msra.mxu0 %v1866
    %1900 = vmatprep.subr.mxu0 0.0
    %1901 = vmatpush1.xpose.msra.mxu0 0.0
    %1902 = vmatprep.subr.mxu0 0.0
    %1903 = vmatpush1.xpose.msra.mxu0 0.0
    %1904 = vmatprep.subr.mxu0 0.0
    %1905 = vmatpush1.xpose.msra.mxu0 0.0
    %1906 = vmatprep.subr.mxu0 0.0
    %1907 = vmatpush1.xpose.msra.mxu0 0.0
    %1908 = vmatprep.subr.mxu0 0.0
    %1909 = vmatpush1.xpose.msra.mxu0 0.0
    %1910 = vmatprep.subr.mxu0 0.0
    %1911 = vmatpush1.xpose.msra.mxu0 0.0
    %1912 = vmatprep.subr.mxu0 0.0
    %1913 = vmatpush1.xpose.msra.mxu0 0.0
    %1914 = vmatprep.subr.mxu0 0.0
    %1915 = vmatpush1.xpose.msra.mxu0 0.0
    %1916 = vmatprep.subr.mxu0 0.0
    %1917 = vmatpush1.xpose.msra.mxu0 0.0
    %1918 = vmatprep.subr.mxu0 0.0
    %1919 = vmatpush1.xpose.msra.mxu0 0.0
    %1920 = vmatprep.subr.mxu0 0.0
    %1921 = vmatpush1.xpose.msra.mxu0 0.0
    %1922 = vmatprep.subr.mxu0 0.0
    %1923 = vmatpush1.xpose.msra.mxu0 0.0
    %1924 = vmatprep.subr.mxu0 0.0
    %1925 = vmatpush1.xpose.msra.mxu0 0.0
    %1926 = vmatprep.subr.mxu0 0.0
    %1927 = vmatpush1.xpose.msra.mxu0 0.0
    %1928 = vmatprep.subr.mxu0 0.0
    %1929 = vmatpush1.xpose.msra.mxu0 0.0
    %1930 = vmatprep.subr.mxu0 0.0
    %1931 = vmatpush1.xpose.msra.mxu0 0.0
    %1932 = vmatprep.mubr.f32.mxu0 0.0
    %1933 = vmatmul.mubr.f32.gmra.mrb[0].mxu0 %v212
    %v1934 = vpop.f32.mrb[0].mxu0
    %v1935 = vadd.f32 0.0, %v1934
    %v1936 = vpop.f32.mrb[0].mxu0
    %1937 = vmatprep.mubr.f32.mxu0 0.0
    %1938 = vmatmul.mubr.f32.gmra.mrb[0].mxu0 %v215
    %v1939 = vpop.f32.mrb[0].mxu0
    %v1940 = vadd.f32 0.0, %v1939
    %v1941 = vpop.f32.mrb[0].mxu0
    %1942 = vmatprep.mubr.f32.mxu0 0.0
    %1943 = vmatmul.mubr.f32.gmra.mrb[0].mxu0 %v218
    %v1944 = vpop.f32.mrb[0].mxu0
    %v1945 = vadd.f32 0.0, %v1944
    %v1946 = vpop.f32.mrb[0].mxu0
    %1947 = vmatprep.mubr.f32.mxu0 0.0
    %1948 = vmatmul.mubr.f32.gmra.mrb[0].mxu0 %v221
    %v1949 = vpop.f32.mrb[0].mxu0
    %v1950 = vadd.f32 0.0, %v1949
    %v1951 = vpop.f32.mrb[0].mxu0
    %1952 = vmatprep.mubr.f32.mxu0 0.0
    %1953 = vmatmul.mubr.f32.gmra.mrb[0].mxu0 %v224
    %v1954 = vpop.f32.mrb[0].mxu0
    %v1955 = vadd.f32 0.0, %v1954
    %v1956 = vpop.f32.mrb[0].mxu0
    %1957 = vmatprep.mubr.f32.mxu0 0.0
    %1958 = vmatmul.mubr.f32.gmra.mrb[0].mxu0 %v227
    %v1959 = vpop.f32.mrb[0].mxu0
    %v1960 = vadd.f32 0.0, %v1959
    %v1961 = vpop.f32.mrb[0].mxu0
    %1962 = vmatprep.mubr.f32.mxu0 0.0
    %1963 = vmatmul.mubr.f32.gmra.mrb[0].mxu0 %v230
    %v1964 = vpop.f32.mrb[0].mxu0
    %v1965 = vadd.f32 0.0, %v1964
    %v1966 = vpop.f32.mrb[0].mxu0
    %1967 = vmatprep.mubr.f32.mxu0 0.0
    %1968 = vmatmul.mubr.f32.gmra.mrb[0].mxu0 %v233
    %v1969 = vpop.f32.mrb[0].mxu0
    %v1970 = vadd.f32 0.0, %v1969
    %v1971 = vpop.f32.mrb[0].mxu0
    %1972 = vmatprep.mubr.f32.mxu0 0.0
    %1973 = vmatmul.mubr.f32.gmra.mrb[0].mxu0 %v236
    %v1974 = vpop.f32.mrb[0].mxu0
    %v1975 = vadd.f32 0.0, %v1974
    %v1976 = vpop.f32.mrb[0].mxu0
    %1977 = vmatprep.mubr.f32.mxu0 0.0
    %1978 = vmatmul.mubr.f32.gmra.mrb[0].mxu0 %v239
    %v1979 = vpop.f32.mrb[0].mxu0
    %v1980 = vadd.f32 0.0, %v1979
    %v1981 = vpop.f32.mrb[0].mxu0
    %1982 = vmatprep.mubr.f32.mxu0 0.0
    %1983 = vmatmul.mubr.f32.gmra.mrb[0].mxu0 %v242
    %v1984 = vpop.f32.mrb[0].mxu0
    %v1985 = vadd.f32 0.0, %v1984
    %v1986 = vpop.f32.mrb[0].mxu0
    %1987 = vmatprep.mubr.f32.mxu0 0.0
    %1988 = vmatmul.mubr.f32.gmra.mrb[0].mxu0 %v245
    %v1989 = vpop.f32.mrb[0].mxu0
    %v1990 = vadd.f32 0.0, %v1989
    %v1991 = vpop.f32.mrb[0].mxu0
    %1992 = vmatprep.mubr.f32.mxu0 0.0
    %1993 = vmatmul.mubr.f32.gmra.mrb[0].mxu0 %v248
    %v1994 = vpop.f32.mrb[0].mxu0
    %v1995 = vadd.f32 0.0, %v1994
    %v1996 = vpop.f32.mrb[0].mxu0
    %1997 = vmatprep.mubr.f32.mxu0 0.0
    %1998 = vmatmul.mubr.f32.gmra.mrb[0].mxu0 %v251
    %v1999 = vpop.f32.mrb[0].mxu0
    %v2000 = vadd.f32 0.0, %v1999
    %v2001 = vpop.f32.mrb[0].mxu0
    %2002 = vmatprep.mubr.f32.mxu0 0.0
    %2003 = vmatmul.mubr.f32.gmra.mrb[0].mxu0 %v254
    %v2004 = vpop.f32.mrb[0].mxu0
    %v2005 = vadd.f32 0.0, %v2004
    %v2006 = vpop.f32.mrb[0].mxu0
    %2007 = vmatprep.mubr.f32.mxu0 0.0
    %2008 = vmatmul.mubr.f32.gmra.mrb[0].mxu0 %v257
    %v2009 = vpop.f32.mrb[0].mxu0
    %v2010 = vadd.f32 0.0, %v2009
    %v2011 = vpop.f32.mrb[0].mxu0
    %2012 = vdwg.mxu0
    %v2014 = vsel %vm210, %v1787, 0
    %v2017 = vsel %vm210, %v1788, 0
    %v2020 = vsel %vm210, %v1789, 0
    %v2023 = vsel %vm210, %v1790, 0
    %v2026 = vsel %vm210, %v1791, 0
    %v2029 = vsel %vm210, %v1792, 0
    %v2032 = vsel %vm210, %v1793, 0
    %v2035 = vsel %vm210, %v1794, 0
    %v2038 = vsel %vm210, %v1795, 0
    %v2041 = vsel %vm210, %v1796, 0
    %v2044 = vsel %vm210, %v1797, 0
    %v2047 = vsel %vm210, %v1798, 0
    %v2050 = vsel %vm210, %v1799, 0
    %v2053 = vsel %vm210, %v1800, 0
    %v2056 = vsel %vm210, %v1801, 0
    %v2059 = vsel %vm210, %v1802, 0
    %2061 = vmatprep.subr.mxu0 0.0
    %2062 = vmatpush1.xpose.msra.mxu0 %v2014
    %2063 = vmatprep.subr.mxu0 0.0
    %2064 = vmatpush1.xpose.msra.mxu0 %v2017
    %2065 = vmatprep.subr.mxu0 0.0
    %2066 = vmatpush1.xpose.msra.mxu0 %v2020
    %2067 = vmatprep.subr.mxu0 0.0
    %2068 = vmatpush1.xpose.msra.mxu0 %v2023
    %2069 = vmatprep.subr.mxu0 0.0
    %2070 = vmatpush1.xpose.msra.mxu0 %v2026
    %2071 = vmatprep.subr.mxu0 0.0
    %2072 = vmatpush1.xpose.msra.mxu0 %v2029
    %2073 = vmatprep.subr.mxu0 0.0
    %2074 = vmatpush1.xpose.msra.mxu0 %v2032
    %2075 = vmatprep.subr.mxu0 0.0
    %2076 = vmatpush1.xpose.msra.mxu0 %v2035
    %2077 = vmatprep.subr.mxu0 0.0
    %2078 = vmatpush1.xpose.msra.mxu0 %v2038
    %2079 = vmatprep.subr.mxu0 0.0
    %2080 = vmatpush1.xpose.msra.mxu0 %v2041
    %2081 = vmatprep.subr.mxu0 0.0
    %2082 = vmatpush1.xpose.msra.mxu0 %v2044
    %2083 = vmatprep.subr.mxu0 0.0
    %2084 = vmatpush1.xpose.msra.mxu0 %v2047
    %2085 = vmatprep.subr.mxu0 0.0
    %2086 = vmatpush1.xpose.msra.mxu0 %v2050
    %2087 = vmatprep.subr.mxu0 0.0
    %2088 = vmatpush1.xpose.msra.mxu0 %v2053
    %2089 = vmatprep.subr.mxu0 0.0
    %2090 = vmatpush1.xpose.msra.mxu0 %v2056
    %2091 = vmatprep.subr.mxu0 0.0
    %2092 = vmatpush1.xpose.msra.mxu0 %v2059
    %2093 = vmatprep.subr.mxu0 0.0
    %2094 = vmatpush1.xpose.msra.mxu0 0.0
    %2095 = vmatprep.subr.mxu0 0.0
    %2096 = vmatpush1.xpose.msra.mxu0 0.0
    %2097 = vmatprep.subr.mxu0 0.0
    %2098 = vmatpush1.xpose.msra.mxu0 0.0
    %2099 = vmatprep.subr.mxu0 0.0
    %2100 = vmatpush1.xpose.msra.mxu0 0.0
    %2101 = vmatprep.subr.mxu0 0.0
    %2102 = vmatpush1.xpose.msra.mxu0 0.0
    %2103 = vmatprep.subr.mxu0 0.0
    %2104 = vmatpush1.xpose.msra.mxu0 0.0
    %2105 = vmatprep.subr.mxu0 0.0
    %2106 = vmatpush1.xpose.msra.mxu0 0.0
    %2107 = vmatprep.subr.mxu0 0.0
    %2108 = vmatpush1.xpose.msra.mxu0 0.0
    %2109 = vmatprep.subr.mxu0 0.0
    %2110 = vmatpush1.xpose.msra.mxu0 0.0
    %2111 = vmatprep.subr.mxu0 0.0
    %2112 = vmatpush1.xpose.msra.mxu0 0.0
    %2113 = vmatprep.subr.mxu0 0.0
    %2114 = vmatpush1.xpose.msra.mxu0 0.0
    %2115 = vmatprep.subr.mxu0 0.0
    %2116 = vmatpush1.xpose.msra.mxu0 0.0
    %2117 = vmatprep.subr.mxu0 0.0
    %2118 = vmatpush1.xpose.msra.mxu0 0.0
    %2119 = vmatprep.subr.mxu0 0.0
    %2120 = vmatpush1.xpose.msra.mxu0 0.0
    %2121 = vmatprep.subr.mxu0 0.0
    %2122 = vmatpush1.xpose.msra.mxu0 0.0
    %2123 = vmatprep.subr.mxu0 0.0
    %2124 = vmatpush1.xpose.msra.mxu0 0.0
    %2125 = vmatprep.mubr.f32.mxu0 0.0
    %2126 = vmatmul.mubr.f32.gmra.mrb[0].mxu0 %v453
    %v2127 = vpop.f32.mrb[0].mxu0
    %v2128 = vadd.f32 %v1935, %v2127
    %v2129 = vpop.f32.mrb[0].mxu0
    %2130 = vmatprep.mubr.f32.mxu0 0.0
    %2131 = vmatmul.mubr.f32.gmra.mrb[0].mxu0 %v456
    %v2132 = vpop.f32.mrb[0].mxu0
    %v2133 = vadd.f32 %v1940, %v2132
    %v2134 = vpop.f32.mrb[0].mxu0
    %2135 = vmatprep.mubr.f32.mxu0 0.0
    %2136 = vmatmul.mubr.f32.gmra.mrb[0].mxu0 %v459
    %v2137 = vpop.f32.mrb[0].mxu0
    %v2138 = vadd.f32 %v1945, %v2137
    %v2139 = vpop.f32.mrb[0].mxu0
    %2140 = vmatprep.mubr.f32.mxu0 0.0
    %2141 = vmatmul.mubr.f32.gmra.mrb[0].mxu0 %v462
    %v2142 = vpop.f32.mrb[0].mxu0
    %v2143 = vadd.f32 %v1950, %v2142
    %v2144 = vpop.f32.mrb[0].mxu0
    %2145 = vmatprep.mubr.f32.mxu0 0.0
    %2146 = vmatmul.mubr.f32.gmra.mrb[0].mxu0 %v465
    %v2147 = vpop.f32.mrb[0].mxu0
    %v2148 = vadd.f32 %v1955, %v2147
    %v2149 = vpop.f32.mrb[0].mxu0
    %2150 = vmatprep.mubr.f32.mxu0 0.0
    %2151 = vmatmul.mubr.f32.gmra.mrb[0].mxu0 %v468
    %v2152 = vpop.f32.mrb[0].mxu0
    %v2153 = vadd.f32 %v1960, %v2152
    %v2154 = vpop.f32.mrb[0].mxu0
    %2155 = vmatprep.mubr.f32.mxu0 0.0
    %2156 = vmatmul.mubr.f32.gmra.mrb[0].mxu0 %v471
    %v2157 = vpop.f32.mrb[0].mxu0
    %v2158 = vadd.f32 %v1965, %v2157
    %v2159 = vpop.f32.mrb[0].mxu0
    %2160 = vmatprep.mubr.f32.mxu0 0.0
    %2161 = vmatmul.mubr.f32.gmra.mrb[0].mxu0 %v474
    %v2162 = vpop.f32.mrb[0].mxu0
    %v2163 = vadd.f32 %v1970, %v2162
    %v2164 = vpop.f32.mrb[0].mxu0
    %2165 = vmatprep.mubr.f32.mxu0 0.0
    %2166 = vmatmul.mubr.f32.gmra.mrb[0].mxu0 %v477
    %v2167 = vpop.f32.mrb[0].mxu0
    %v2168 = vadd.f32 %v1975, %v2167
    %v2169 = vpop.f32.mrb[0].mxu0
    %2170 = vmatprep.mubr.f32.mxu0 0.0
    %2171 = vmatmul.mubr.f32.gmra.mrb[0].mxu0 %v480
    %v2172 = vpop.f32.mrb[0].mxu0
    %v2173 = vadd.f32 %v1980, %v2172
    %v2174 = vpop.f32.mrb[0].mxu0
    %2175 = vmatprep.mubr.f32.mxu0 0.0
    %2176 = vmatmul.mubr.f32.gmra.mrb[0].mxu0 %v483
    %v2177 = vpop.f32.mrb[0].mxu0
    %v2178 = vadd.f32 %v1985, %v2177
    %v2179 = vpop.f32.mrb[0].mxu0
    %2180 = vmatprep.mubr.f32.mxu0 0.0
    %2181 = vmatmul.mubr.f32.gmra.mrb[0].mxu0 %v486
    %v2182 = vpop.f32.mrb[0].mxu0
    %v2183 = vadd.f32 %v1990, %v2182
    %v2184 = vpop.f32.mrb[0].mxu0
    %2185 = vmatprep.mubr.f32.mxu0 0.0
    %2186 = vmatmul.mubr.f32.gmra.mrb[0].mxu0 %v489
    %v2187 = vpop.f32.mrb[0].mxu0
    %v2188 = vadd.f32 %v1995, %v2187
    %v2189 = vpop.f32.mrb[0].mxu0
    %2190 = vmatprep.mubr.f32.mxu0 0.0
    %2191 = vmatmul.mubr.f32.gmra.mrb[0].mxu0 %v492
    %v2192 = vpop.f32.mrb[0].mxu0
    %v2193 = vadd.f32 %v2000, %v2192
    %v2194 = vpop.f32.mrb[0].mxu0
    %2195 = vmatprep.mubr.f32.mxu0 0.0
    %2196 = vmatmul.mubr.f32.gmra.mrb[0].mxu0 %v495
    %v2197 = vpop.f32.mrb[0].mxu0
    %v2198 = vadd.f32 %v2005, %v2197
    %v2199 = vpop.f32.mrb[0].mxu0
    %2200 = vmatprep.mubr.f32.mxu0 0.0
    %2201 = vmatmul.mubr.f32.gmra.mrb[0].mxu0 %v498
    %v2202 = vpop.f32.mrb[0].mxu0
    %v2203 = vadd.f32 %v2010, %v2202
    %v2204 = vpop.f32.mrb[0].mxu0
    %2205 = vdwg.mxu0
    %2206 = vmatprep.subr.mxu0 0.0
    %2207 = vmatpush1.msra.mxu0 %v1768
    %2208 = vmatprep.subr.mxu0 0.0
    %2209 = vmatpush1.msra.mxu0 %v1769
    %2210 = vmatprep.subr.mxu0 0.0
    %2211 = vmatpush1.msra.mxu0 %v1770
    %2212 = vmatprep.subr.mxu0 0.0
    %2213 = vmatpush1.msra.mxu0 %v1771
    %2214 = vmatprep.subr.mxu0 0.0
    %2215 = vmatpush1.msra.mxu0 0.0
    %2216 = vmatprep.subr.mxu0 0.0
    %2217 = vmatpush1.msra.mxu0 0.0
    %2218 = vmatprep.subr.mxu0 0.0
    %2219 = vmatpush1.msra.mxu0 0.0
    %2220 = vmatprep.subr.mxu0 0.0
    %2221 = vmatpush1.msra.mxu0 0.0
    %2222 = vmatprep.subr.mxu0 0.0
    %2223 = vmatpush1.msra.mxu0 0.0
    %2224 = vmatprep.subr.mxu0 0.0
    %2225 = vmatpush1.msra.mxu0 0.0
    %2226 = vmatprep.subr.mxu0 0.0
    %2227 = vmatpush1.msra.mxu0 0.0
    %2228 = vmatprep.subr.mxu0 0.0
    %2229 = vmatpush1.msra.mxu0 0.0
    %2230 = vmatprep.subr.mxu0 0.0
    %2231 = vmatpush1.msra.mxu0 0.0
    %2232 = vmatprep.subr.mxu0 0.0
    %2233 = vmatpush1.msra.mxu0 0.0
    %2234 = vmatprep.subr.mxu0 0.0
    %2235 = vmatpush1.msra.mxu0 0.0
    %2236 = vmatprep.subr.mxu0 0.0
    %2237 = vmatpush1.msra.mxu0 0.0
    %2238 = vmatprep.subr.mxu0 0.0
    %2239 = vmatpush1.msra.mxu0 0.0
    %2240 = vmatprep.subr.mxu0 0.0
    %2241 = vmatpush1.msra.mxu0 0.0
    %2242 = vmatprep.subr.mxu0 0.0
    %2243 = vmatpush1.msra.mxu0 0.0
    %2244 = vmatprep.subr.mxu0 0.0
    %2245 = vmatpush1.msra.mxu0 0.0
    %2246 = vmatprep.subr.mxu0 0.0
    %2247 = vmatpush1.msra.mxu0 0.0
    %2248 = vmatprep.subr.mxu0 0.0
    %2249 = vmatpush1.msra.mxu0 0.0
    %2250 = vmatprep.subr.mxu0 0.0
    %2251 = vmatpush1.msra.mxu0 0.0
    %2252 = vmatprep.subr.mxu0 0.0
    %2253 = vmatpush1.msra.mxu0 0.0
    %2254 = vmatprep.subr.mxu0 0.0
    %2255 = vmatpush1.msra.mxu0 0.0
    %2256 = vmatprep.subr.mxu0 0.0
    %2257 = vmatpush1.msra.mxu0 0.0
    %2258 = vmatprep.subr.mxu0 0.0
    %2259 = vmatpush1.msra.mxu0 0.0
    %2260 = vmatprep.subr.mxu0 0.0
    %2261 = vmatpush1.msra.mxu0 0.0
    %2262 = vmatprep.subr.mxu0 0.0
    %2263 = vmatpush1.msra.mxu0 0.0
    %2264 = vmatprep.subr.mxu0 0.0
    %2265 = vmatpush1.msra.mxu0 0.0
    %2266 = vmatprep.subr.mxu0 0.0
    %2267 = vmatpush1.msra.mxu0 0.0
    %2268 = vmatprep.subr.mxu0 0.0
    %2269 = vmatpush1.msra.mxu0 0.0
    %2270 = vmatprep.mubr.f32.mxu0 0.0
    %2271 = vmatmul.mubr.f32.gmra.mrb[0].mxu0 %v695
    %v2272 = vpop.f32.mrb[0].mxu0
    %v2273 = vadd.f32 0.0, %v2272
    %v2274 = vpop.f32.mrb[0].mxu0
    %2275 = vmatprep.mubr.f32.mxu0 0.0
    %2276 = vmatmul.mubr.f32.gmra.mrb[0].mxu0 %v698
    %v2277 = vpop.f32.mrb[0].mxu0
    %v2278 = vadd.f32 0.0, %v2277
    %v2279 = vpop.f32.mrb[0].mxu0
    %2280 = vmatprep.mubr.f32.mxu0 0.0
    %2281 = vmatmul.mubr.f32.gmra.mrb[0].mxu0 %v701
    %v2282 = vpop.f32.mrb[0].mxu0
    %v2283 = vadd.f32 0.0, %v2282
    %v2284 = vpop.f32.mrb[0].mxu0
    %2285 = vmatprep.mubr.f32.mxu0 0.0
    %2286 = vmatmul.mubr.f32.gmra.mrb[0].mxu0 %v704
    %v2287 = vpop.f32.mrb[0].mxu0
    %v2288 = vadd.f32 0.0, %v2287
    %v2289 = vpop.f32.mrb[0].mxu0
    %2290 = vmatprep.mubr.f32.mxu0 0.0
    %2291 = vmatmul.mubr.f32.gmra.mrb[0].mxu0 %v707
    %v2292 = vpop.f32.mrb[0].mxu0
    %v2293 = vadd.f32 0.0, %v2292
    %v2294 = vpop.f32.mrb[0].mxu0
    %2295 = vmatprep.mubr.f32.mxu0 0.0
    %2296 = vmatmul.mubr.f32.gmra.mrb[0].mxu0 %v710
    %v2297 = vpop.f32.mrb[0].mxu0
    %v2298 = vadd.f32 0.0, %v2297
    %v2299 = vpop.f32.mrb[0].mxu0
    %2300 = vmatprep.mubr.f32.mxu0 0.0
    %2301 = vmatmul.mubr.f32.gmra.mrb[0].mxu0 %v713
    %v2302 = vpop.f32.mrb[0].mxu0
    %v2303 = vadd.f32 0.0, %v2302
    %v2304 = vpop.f32.mrb[0].mxu0
    %2305 = vmatprep.mubr.f32.mxu0 0.0
    %2306 = vmatmul.mubr.f32.gmra.mrb[0].mxu0 %v716
    %v2307 = vpop.f32.mrb[0].mxu0
    %v2308 = vadd.f32 0.0, %v2307
    %v2309 = vpop.f32.mrb[0].mxu0
    %2310 = vmatprep.mubr.f32.mxu0 0.0
    %2311 = vmatmul.mubr.f32.gmra.mrb[0].mxu0 %v719
    %v2312 = vpop.f32.mrb[0].mxu0
    %v2313 = vadd.f32 0.0, %v2312
    %v2314 = vpop.f32.mrb[0].mxu0
    %2315 = vmatprep.mubr.f32.mxu0 0.0
    %2316 = vmatmul.mubr.f32.gmra.mrb[0].mxu0 %v722
    %v2317 = vpop.f32.mrb[0].mxu0
    %v2318 = vadd.f32 0.0, %v2317
    %v2319 = vpop.f32.mrb[0].mxu0
    %2320 = vmatprep.mubr.f32.mxu0 0.0
    %2321 = vmatmul.mubr.f32.gmra.mrb[0].mxu0 %v725
    %v2322 = vpop.f32.mrb[0].mxu0
    %v2323 = vadd.f32 0.0, %v2322
    %v2324 = vpop.f32.mrb[0].mxu0
    %2325 = vmatprep.mubr.f32.mxu0 0.0
    %2326 = vmatmul.mubr.f32.gmra.mrb[0].mxu0 %v728
    %v2327 = vpop.f32.mrb[0].mxu0
    %v2328 = vadd.f32 0.0, %v2327
    %v2329 = vpop.f32.mrb[0].mxu0
    %2330 = vmatprep.mubr.f32.mxu0 0.0
    %2331 = vmatmul.mubr.f32.gmra.mrb[0].mxu0 %v731
    %v2332 = vpop.f32.mrb[0].mxu0
    %v2333 = vadd.f32 0.0, %v2332
    %v2334 = vpop.f32.mrb[0].mxu0
    %2335 = vmatprep.mubr.f32.mxu0 0.0
    %2336 = vmatmul.mubr.f32.gmra.mrb[0].mxu0 %v734
    %v2337 = vpop.f32.mrb[0].mxu0
    %v2338 = vadd.f32 0.0, %v2337
    %v2339 = vpop.f32.mrb[0].mxu0
    %2340 = vmatprep.mubr.f32.mxu0 0.0
    %2341 = vmatmul.mubr.f32.gmra.mrb[0].mxu0 %v737
    %v2342 = vpop.f32.mrb[0].mxu0
    %v2343 = vadd.f32 0.0, %v2342
    %v2344 = vpop.f32.mrb[0].mxu0
    %2345 = vmatprep.mubr.f32.mxu0 0.0
    %2346 = vmatmul.mubr.f32.gmra.mrb[0].mxu0 %v740
    %v2347 = vpop.f32.mrb[0].mxu0
    %v2348 = vadd.f32 0.0, %v2347
    %v2349 = vpop.f32.mrb[0].mxu0
    %2350 = vdwg.mxu0
    %v2351 = vadd.f32 %v2128, %v2273
    %v2352 = vadd.f32 %v2133, %v2278
    %v2353 = vadd.f32 %v2138, %v2283
    %v2354 = vadd.f32 %v2143, %v2288
    %v2355 = vadd.f32 %v2148, %v2293
    %v2356 = vadd.f32 %v2153, %v2298
    %v2357 = vadd.f32 %v2158, %v2303
    %v2358 = vadd.f32 %v2163, %v2308
    %v2359 = vadd.f32 %v2168, %v2313
    %v2360 = vadd.f32 %v2173, %v2318
    %v2361 = vadd.f32 %v2178, %v2323
    %v2362 = vadd.f32 %v2183, %v2328
    %v2363 = vadd.f32 %v2188, %v2333
    %v2364 = vadd.f32 %v2193, %v2338
    %v2365 = vadd.f32 %v2198, %v2343
    %v2366 = vadd.f32 %v2203, %v2348
    %v2367 = vadd.f32 %v2351, %v91
    %v2368 = vadd.f32 %v2352, %v96
    %v2369 = vadd.f32 %v2353, %v101
    %v2370 = vadd.f32 %v2354, %v106
    %v2371 = vadd.f32 %v2355, %v111
    %v2372 = vadd.f32 %v2356, %v116
    %v2373 = vadd.f32 %v2357, %v121
    %v2374 = vadd.f32 %v2358, %v126
    %v2375 = vadd.f32 %v2359, %v131
    %v2376 = vadd.f32 %v2360, %v136
    %v2377 = vadd.f32 %v2361, %v141
    %v2378 = vadd.f32 %v2362, %v146
    %v2379 = vadd.f32 %v2363, %v151
    %v2380 = vadd.f32 %v2364, %v156
    %v2381 = vadd.f32 %v2365, %v161
    %v2382 = vadd.f32 %v2366, %v166
    %v2383 = vxor.u32 %v2367, 2147483648
    %v2384 = vxor.u32 %v2368, 2147483648
    %v2385 = vxor.u32 %v2369, 2147483648
    %v2386 = vxor.u32 %v2370, 2147483648
    %v2387 = vmul.f32 %v2383, 1.442695
    %v2388 = vpow.pop %v2387
    %v2389 = vmul.f32 %v2384, 1.442695
    %v2390 = vpow.pop %v2389
    %v2391 = vmul.f32 %v2385, 1.442695
    %v2392 = vpow.pop %v2391
    %v2393 = vmul.f32 %v2386, 1.442695
    %v2394 = vpow.pop %v2393
    %v2395 = vadd.f32 %v2388, 1.0
    %v2396 = vadd.f32 %v2390, 1.0
    %v2397 = vadd.f32 %v2392, 1.0
    %v2398 = vadd.f32 %v2394, 1.0
    %v2399 = vrcp.pop %v2395
    %v2400 = vmul.f32 1.0, %v2399
    %v2401 = vrcp.pop %v2396
    %v2402 = vmul.f32 1.0, %v2401
    %v2403 = vrcp.pop %v2397
    %v2404 = vmul.f32 1.0, %v2403
    %v2405 = vrcp.pop %v2398
    %v2406 = vmul.f32 1.0, %v2405
    %v2407 = vxor.u32 %v2371, 2147483648
    %v2408 = vxor.u32 %v2372, 2147483648
    %v2409 = vxor.u32 %v2373, 2147483648
    %v2410 = vxor.u32 %v2374, 2147483648
    %v2411 = vmul.f32 %v2407, 1.442695
    %v2412 = vpow.pop %v2411
    %v2413 = vmul.f32 %v2408, 1.442695
    %v2414 = vpow.pop %v2413
    %v2415 = vmul.f32 %v2409, 1.442695
    %v2416 = vpow.pop %v2415
    %v2417 = vmul.f32 %v2410, 1.442695
    %v2418 = vpow.pop %v2417
    %v2419 = vadd.f32 %v2412, 1.0
    %v2420 = vadd.f32 %v2414, 1.0
    %v2421 = vadd.f32 %v2416, 1.0
    %v2422 = vadd.f32 %v2418, 1.0
    %v2423 = vrcp.pop %v2419
    %v2424 = vmul.f32 1.0, %v2423
    %v2425 = vrcp.pop %v2420
    %v2426 = vmul.f32 1.0, %v2425
    %v2427 = vrcp.pop %v2421
    %v2428 = vmul.f32 1.0, %v2427
    %v2429 = vrcp.pop %v2422
    %v2430 = vmul.f32 1.0, %v2429
    %v2431 = vtanh.pop %v2375
    %v2432 = vtanh.pop %v2376
    %v2433 = vtanh.pop %v2377
    %v2434 = vtanh.pop %v2378
    %v2435 = vxor.u32 %v2379, 2147483648
    %v2436 = vxor.u32 %v2380, 2147483648
    %v2437 = vxor.u32 %v2381, 2147483648
    %v2438 = vxor.u32 %v2382, 2147483648
    %v2439 = vmul.f32 %v2435, 1.442695
    %v2440 = vpow.pop %v2439
    %v2441 = vmul.f32 %v2436, 1.442695
    %v2442 = vpow.pop %v2441
    %v2443 = vmul.f32 %v2437, 1.442695
    %v2444 = vpow.pop %v2443
    %v2445 = vmul.f32 %v2438, 1.442695
    %v2446 = vpow.pop %v2445
    %v2447 = vadd.f32 %v2440, 1.0
    %v2448 = vadd.f32 %v2442, 1.0
    %v2449 = vadd.f32 %v2444, 1.0
    %v2450 = vadd.f32 %v2446, 1.0
    %v2451 = vrcp.pop %v2447
    %v2452 = vmul.f32 1.0, %v2451
    %v2453 = vrcp.pop %v2448
    %v2454 = vmul.f32 1.0, %v2453
    %v2455 = vrcp.pop %v2449
    %v2456 = vmul.f32 1.0, %v2455
    %v2457 = vrcp.pop %v2450
    %v2458 = vmul.f32 1.0, %v2457
    %v2459 = vmul.f32 %v2424, %v1772
    %v2460 = vmul.f32 %v2426, %v1773
    %v2461 = vmul.f32 %v2428, %v1774
    %v2462 = vmul.f32 %v2430, %v1775
    %v2463 = vmul.f32 %v2400, %v2431
    %v2464 = vmul.f32 %v2402, %v2432
    %v2465 = vmul.f32 %v2404, %v2433
    %v2466 = vmul.f32 %v2406, %v2434
    %v2467 = vadd.f32 %v2459, %v2463
    %v2468 = vadd.f32 %v2460, %v2464
    %v2469 = vadd.f32 %v2461, %v2465
    %v2470 = vadd.f32 %v2462, %v2466
    %v2471 = vtanh.pop %v2467
    %v2472 = vtanh.pop %v2468
    %v2473 = vtanh.pop %v2469
    %v2474 = vtanh.pop %v2470
    %v2475 = vmul.f32 %v2452, %v2471
    %v2476 = vmul.f32 %v2454, %v2472
    %v2477 = vmul.f32 %v2456, %v2473
    %v2478 = vmul.f32 %v2458, %v2474
    %s2479 = scalar_lea.vmem %s1, 2
    %v2480 = vld [vmem:[%s2479] sm:$0x1]
    %s2481 = scalar_lea.vmem %s1, 7
    %v2482 = vld [vmem:[%s2481] sm:$0x1]
    %v2484 = vlaneseq
    %v2485 = vshrl.u32 %v2484, 7
    %v2486 = vsub.s32 0, %v2485
    %v2487 = vrot.slane %v2480, %v2486
    %v2490 = vlaneseq
    %v2491 = vshrl.u32 %v2490, 7
    %v2492 = vsub.s32 0, %v2491
    %v2493 = vrot.slane %v2482, %v2492
    %v2495 = vsel %vm173, %v2487, %v2493
    %v2496 = vsel %vm174, %v2487, %v2493
    %v2497 = vsel %vm175, %v2487, %v2493
    %v2498 = vsel %vm176, %v2487, %v2493
    %vm2499 = vcmp.gt.f32.partialorder %v2495, 0.5
    %vm2500 = vcmp.gt.f32.partialorder %v2496, 0.5
    %vm2501 = vcmp.gt.f32.partialorder %v2497, 0.5
    %vm2502 = vcmp.gt.f32.partialorder %v2498, 0.5
    %v2503 = vsel %vm2499, %v2475, %v1768
    %v2504 = vsel %vm2500, %v2476, %v1769
    %v2505 = vsel %vm2501, %v2477, %v1770
    %v2506 = vsel %vm2502, %v2478, %v1771
    %v2507 = vsel %vm2499, %v2467, %v1772
    %v2508 = vsel %vm2500, %v2468, %v1773
    %v2509 = vsel %vm2501, %v2469, %v1774
    %v2510 = vsel %vm2502, %v2470, %v1775
    %v2511 = vsel %vm2499, %v2475, 0.0
    %v2512 = vsel %vm2500, %v2476, 0.0
    %v2513 = vsel %vm2501, %v2477, 0.0
    %v2514 = vsel %vm2502, %v2478, 0.0
    %s2515 = scalar_lea.vmem [#allocation2], 64
    %2516 = vst [vmem:[%s2515] sm:$0xff] %v2511
    %2517 = vst [vmem:[%s2515 + $0x8] sm:$0xff] %v2512
    %s2518 = scalar_lea.vmem [#allocation2], 224
    %2519 = vst [vmem:[%s2518 + $0x10] sm:$0xff] %v2513
    %2520 = vst [vmem:[%s2518 + $0x18] sm:$0xff] %v2514
    %s2521 = scalar_lea.vmem %s0, 384
    %v2522 = vld [vmem:[%s2521] sm:$0xff]
    %v2523 = vld [vmem:[%s2521 + $0x8] sm:$0xff]
    %v2524 = vld [vmem:[%s2521 + $0x10] sm:$0xff]
    %v2525 = vld [vmem:[%s2521 + $0x18] sm:$0xff]
    %v2526 = vld [vmem:[%s2521 + $0x20] sm:$0xff]
    %v2527 = vld [vmem:[%s2521 + $0x28] sm:$0xff]
    %v2528 = vld [vmem:[%s2521 + $0x30] sm:$0xff]
    %v2529 = vld [vmem:[%s2521 + $0x38] sm:$0xff]
    %v2530 = vld [vmem:[%s2521 + $0x40] sm:$0xff]
    %v2531 = vld [vmem:[%s2521 + $0x48] sm:$0xff]
    %v2532 = vld [vmem:[%s2521 + $0x50] sm:$0xff]
    %v2533 = vld [vmem:[%s2521 + $0x58] sm:$0xff]
    %v2534 = vld [vmem:[%s2521 + $0x60] sm:$0xff]
    %v2535 = vld [vmem:[%s2521 + $0x68] sm:$0xff]
    %v2536 = vld [vmem:[%s2521 + $0x70] sm:$0xff]
    %v2537 = vld [vmem:[%s2521 + $0x78] sm:$0xff]
    %s2538 = scalar_lea.vmem %s0, 768
    %v2539 = vld [vmem:[%s2538] sm:$0xff]
    %v2540 = vld [vmem:[%s2538 + $0x8] sm:$0xff]
    %v2541 = vld [vmem:[%s2538 + $0x10] sm:$0xff]
    %v2542 = vld [vmem:[%s2538 + $0x18] sm:$0xff]
    %v2543 = vld [vmem:[%s2538 + $0x20] sm:$0xff]
    %v2544 = vld [vmem:[%s2538 + $0x28] sm:$0xff]
    %v2545 = vld [vmem:[%s2538 + $0x30] sm:$0xff]
    %v2546 = vld [vmem:[%s2538 + $0x38] sm:$0xff]
    %v2547 = vld [vmem:[%s2538 + $0x40] sm:$0xff]
    %v2548 = vld [vmem:[%s2538 + $0x48] sm:$0xff]
    %v2549 = vld [vmem:[%s2538 + $0x50] sm:$0xff]
    %v2550 = vld [vmem:[%s2538 + $0x58] sm:$0xff]
    %v2551 = vld [vmem:[%s2538 + $0x60] sm:$0xff]
    %v2552 = vld [vmem:[%s2538 + $0x68] sm:$0xff]
    %v2553 = vld [vmem:[%s2538 + $0x70] sm:$0xff]
    %v2554 = vld [vmem:[%s2538 + $0x78] sm:$0xff]
    %v2556 = vsel %vm210, %v2539, 0
    %v2559 = vsel %vm210, %v2540, 0
    %v2562 = vsel %vm210, %v2541, 0
    %v2565 = vsel %vm210, %v2542, 0
    %v2568 = vsel %vm210, %v2543, 0
    %v2571 = vsel %vm210, %v2544, 0
    %v2574 = vsel %vm210, %v2545, 0
    %v2577 = vsel %vm210, %v2546, 0
    %v2580 = vsel %vm210, %v2547, 0
    %v2583 = vsel %vm210, %v2548, 0
    %v2586 = vsel %vm210, %v2549, 0
    %v2589 = vsel %vm210, %v2550, 0
    %v2592 = vsel %vm210, %v2551, 0
    %v2595 = vsel %vm210, %v2552, 0
    %v2598 = vsel %vm210, %v2553, 0
    %v2601 = vsel %vm210, %v2554, 0
    %2603 = vmatprep.subr.mxu0 0.0
    %2604 = vmatpush1.xpose.msra.mxu0 %v2556
    %2605 = vmatprep.subr.mxu0 0.0
    %2606 = vmatpush1.xpose.msra.mxu0 %v2559
    %2607 = vmatprep.subr.mxu0 0.0
    %2608 = vmatpush1.xpose.msra.mxu0 %v2562
    %2609 = vmatprep.subr.mxu0 0.0
    %2610 = vmatpush1.xpose.msra.mxu0 %v2565
    %2611 = vmatprep.subr.mxu0 0.0
    %2612 = vmatpush1.xpose.msra.mxu0 %v2568
    %2613 = vmatprep.subr.mxu0 0.0
    %2614 = vmatpush1.xpose.msra.mxu0 %v2571
    %2615 = vmatprep.subr.mxu0 0.0
    %2616 = vmatpush1.xpose.msra.mxu0 %v2574
    %2617 = vmatprep.subr.mxu0 0.0
    %2618 = vmatpush1.xpose.msra.mxu0 %v2577
    %2619 = vmatprep.subr.mxu0 0.0
    %2620 = vmatpush1.xpose.msra.mxu0 %v2580
    %2621 = vmatprep.subr.mxu0 0.0
    %2622 = vmatpush1.xpose.msra.mxu0 %v2583
    %2623 = vmatprep.subr.mxu0 0.0
    %2624 = vmatpush1.xpose.msra.mxu0 %v2586
    %2625 = vmatprep.subr.mxu0 0.0
    %2626 = vmatpush1.xpose.msra.mxu0 %v2589
    %2627 = vmatprep.subr.mxu0 0.0
    %2628 = vmatpush1.xpose.msra.mxu0 %v2592
    %2629 = vmatprep.subr.mxu0 0.0
    %2630 = vmatpush1.xpose.msra.mxu0 %v2595
    %2631 = vmatprep.subr.mxu0 0.0
    %2632 = vmatpush1.xpose.msra.mxu0 %v2598
    %2633 = vmatprep.subr.mxu0 0.0
    %2634 = vmatpush1.xpose.msra.mxu0 %v2601
    %2635 = vmatprep.subr.mxu0 0.0
    %2636 = vmatpush1.xpose.msra.mxu0 0.0
    %2637 = vmatprep.subr.mxu0 0.0
    %2638 = vmatpush1.xpose.msra.mxu0 0.0
    %2639 = vmatprep.subr.mxu0 0.0
    %2640 = vmatpush1.xpose.msra.mxu0 0.0
    %2641 = vmatprep.subr.mxu0 0.0
    %2642 = vmatpush1.xpose.msra.mxu0 0.0
    %2643 = vmatprep.subr.mxu0 0.0
    %2644 = vmatpush1.xpose.msra.mxu0 0.0
    %2645 = vmatprep.subr.mxu0 0.0
    %2646 = vmatpush1.xpose.msra.mxu0 0.0
    %2647 = vmatprep.subr.mxu0 0.0
    %2648 = vmatpush1.xpose.msra.mxu0 0.0
    %2649 = vmatprep.subr.mxu0 0.0
    %2650 = vmatpush1.xpose.msra.mxu0 0.0
    %2651 = vmatprep.subr.mxu0 0.0
    %2652 = vmatpush1.xpose.msra.mxu0 0.0
    %2653 = vmatprep.subr.mxu0 0.0
    %2654 = vmatpush1.xpose.msra.mxu0 0.0
    %2655 = vmatprep.subr.mxu0 0.0
    %2656 = vmatpush1.xpose.msra.mxu0 0.0
    %2657 = vmatprep.subr.mxu0 0.0
    %2658 = vmatpush1.xpose.msra.mxu0 0.0
    %2659 = vmatprep.subr.mxu0 0.0
    %2660 = vmatpush1.xpose.msra.mxu0 0.0
    %2661 = vmatprep.subr.mxu0 0.0
    %2662 = vmatpush1.xpose.msra.mxu0 0.0
    %2663 = vmatprep.subr.mxu0 0.0
    %2664 = vmatpush1.xpose.msra.mxu0 0.0
    %2665 = vmatprep.subr.mxu0 0.0
    %2666 = vmatpush1.xpose.msra.mxu0 0.0
    %2667 = vmatprep.mubr.f32.mxu0 0.0
    %2668 = vmatmul.mubr.f32.gmra.mrb[0].mxu0 %v212
    %v2669 = vpop.f32.mrb[0].mxu0
    %v2670 = vadd.f32 0.0, %v2669
    %v2671 = vpop.f32.mrb[0].mxu0
    %2672 = vmatprep.mubr.f32.mxu0 0.0
    %2673 = vmatmul.mubr.f32.gmra.mrb[0].mxu0 %v215
    %v2674 = vpop.f32.mrb[0].mxu0
    %v2675 = vadd.f32 0.0, %v2674
    %v2676 = vpop.f32.mrb[0].mxu0
    %2677 = vmatprep.mubr.f32.mxu0 0.0
    %2678 = vmatmul.mubr.f32.gmra.mrb[0].mxu0 %v218
    %v2679 = vpop.f32.mrb[0].mxu0
    %v2680 = vadd.f32 0.0, %v2679
    %v2681 = vpop.f32.mrb[0].mxu0
    %2682 = vmatprep.mubr.f32.mxu0 0.0
    %2683 = vmatmul.mubr.f32.gmra.mrb[0].mxu0 %v221
    %v2684 = vpop.f32.mrb[0].mxu0
    %v2685 = vadd.f32 0.0, %v2684
    %v2686 = vpop.f32.mrb[0].mxu0
    %2687 = vmatprep.mubr.f32.mxu0 0.0
    %2688 = vmatmul.mubr.f32.gmra.mrb[0].mxu0 %v224
    %v2689 = vpop.f32.mrb[0].mxu0
    %v2690 = vadd.f32 0.0, %v2689
    %v2691 = vpop.f32.mrb[0].mxu0
    %2692 = vmatprep.mubr.f32.mxu0 0.0
    %2693 = vmatmul.mubr.f32.gmra.mrb[0].mxu0 %v227
    %v2694 = vpop.f32.mrb[0].mxu0
    %v2695 = vadd.f32 0.0, %v2694
    %v2696 = vpop.f32.mrb[0].mxu0
    %2697 = vmatprep.mubr.f32.mxu0 0.0
    %2698 = vmatmul.mubr.f32.gmra.mrb[0].mxu0 %v230
    %v2699 = vpop.f32.mrb[0].mxu0
    %v2700 = vadd.f32 0.0, %v2699
    %v2701 = vpop.f32.mrb[0].mxu0
    %2702 = vmatprep.mubr.f32.mxu0 0.0
    %2703 = vmatmul.mubr.f32.gmra.mrb[0].mxu0 %v233
    %v2704 = vpop.f32.mrb[0].mxu0
    %v2705 = vadd.f32 0.0, %v2704
    %v2706 = vpop.f32.mrb[0].mxu0
    %2707 = vmatprep.mubr.f32.mxu0 0.0
    %2708 = vmatmul.mubr.f32.gmra.mrb[0].mxu0 %v236
    %v2709 = vpop.f32.mrb[0].mxu0
    %v2710 = vadd.f32 0.0, %v2709
    %v2711 = vpop.f32.mrb[0].mxu0
    %2712 = vmatprep.mubr.f32.mxu0 0.0
    %2713 = vmatmul.mubr.f32.gmra.mrb[0].mxu0 %v239
    %v2714 = vpop.f32.mrb[0].mxu0
    %v2715 = vadd.f32 0.0, %v2714
    %v2716 = vpop.f32.mrb[0].mxu0
    %2717 = vmatprep.mubr.f32.mxu0 0.0
    %2718 = vmatmul.mubr.f32.gmra.mrb[0].mxu0 %v242
    %v2719 = vpop.f32.mrb[0].mxu0
    %v2720 = vadd.f32 0.0, %v2719
    %v2721 = vpop.f32.mrb[0].mxu0
    %2722 = vmatprep.mubr.f32.mxu0 0.0
    %2723 = vmatmul.mubr.f32.gmra.mrb[0].mxu0 %v245
    %v2724 = vpop.f32.mrb[0].mxu0
    %v2725 = vadd.f32 0.0, %v2724
    %v2726 = vpop.f32.mrb[0].mxu0
    %2727 = vmatprep.mubr.f32.mxu0 0.0
    %2728 = vmatmul.mubr.f32.gmra.mrb[0].mxu0 %v248
    %v2729 = vpop.f32.mrb[0].mxu0
    %v2730 = vadd.f32 0.0, %v2729
    %v2731 = vpop.f32.mrb[0].mxu0
    %2732 = vmatprep.mubr.f32.mxu0 0.0
    %2733 = vmatmul.mubr.f32.gmra.mrb[0].mxu0 %v251
    %v2734 = vpop.f32.mrb[0].mxu0
    %v2735 = vadd.f32 0.0, %v2734
    %v2736 = vpop.f32.mrb[0].mxu0
    %2737 = vmatprep.mubr.f32.mxu0 0.0
    %2738 = vmatmul.mubr.f32.gmra.mrb[0].mxu0 %v254
    %v2739 = vpop.f32.mrb[0].mxu0
    %v2740 = vadd.f32 0.0, %v2739
    %v2741 = vpop.f32.mrb[0].mxu0
    %2742 = vmatprep.mubr.f32.mxu0 0.0
    %2743 = vmatmul.mubr.f32.gmra.mrb[0].mxu0 %v257
    %v2744 = vpop.f32.mrb[0].mxu0
    %v2745 = vadd.f32 0.0, %v2744
    %v2746 = vpop.f32.mrb[0].mxu0
    %2747 = vdwg.mxu0
    %v2749 = vsel %vm210, %v2522, 0
    %v2752 = vsel %vm210, %v2523, 0
    %v2755 = vsel %vm210, %v2524, 0
    %v2758 = vsel %vm210, %v2525, 0
    %v2761 = vsel %vm210, %v2526, 0
    %v2764 = vsel %vm210, %v2527, 0
    %v2767 = vsel %vm210, %v2528, 0
    %v2770 = vsel %vm210, %v2529, 0
    %v2773 = vsel %vm210, %v2530, 0
    %v2776 = vsel %vm210, %v2531, 0
    %v2779 = vsel %vm210, %v2532, 0
    %v2782 = vsel %vm210, %v2533, 0
    %v2785 = vsel %vm210, %v2534, 0
    %v2788 = vsel %vm210, %v2535, 0
    %v2791 = vsel %vm210, %v2536, 0
    %v2794 = vsel %vm210, %v2537, 0
    %2796 = vmatprep.subr.mxu0 0.0
    %2797 = vmatpush1.xpose.msra.mxu0 %v2749
    %2798 = vmatprep.subr.mxu0 0.0
    %2799 = vmatpush1.xpose.msra.mxu0 %v2752
    %2800 = vmatprep.subr.mxu0 0.0
    %2801 = vmatpush1.xpose.msra.mxu0 %v2755
    %2802 = vmatprep.subr.mxu0 0.0
    %2803 = vmatpush1.xpose.msra.mxu0 %v2758
    %2804 = vmatprep.subr.mxu0 0.0
    %2805 = vmatpush1.xpose.msra.mxu0 %v2761
    %2806 = vmatprep.subr.mxu0 0.0
    %2807 = vmatpush1.xpose.msra.mxu0 %v2764
    %2808 = vmatprep.subr.mxu0 0.0
    %2809 = vmatpush1.xpose.msra.mxu0 %v2767
    %2810 = vmatprep.subr.mxu0 0.0
    %2811 = vmatpush1.xpose.msra.mxu0 %v2770
    %2812 = vmatprep.subr.mxu0 0.0
    %2813 = vmatpush1.xpose.msra.mxu0 %v2773
    %2814 = vmatprep.subr.mxu0 0.0
    %2815 = vmatpush1.xpose.msra.mxu0 %v2776
    %2816 = vmatprep.subr.mxu0 0.0
    %2817 = vmatpush1.xpose.msra.mxu0 %v2779
    %2818 = vmatprep.subr.mxu0 0.0
    %2819 = vmatpush1.xpose.msra.mxu0 %v2782
    %2820 = vmatprep.subr.mxu0 0.0
    %2821 = vmatpush1.xpose.msra.mxu0 %v2785
    %2822 = vmatprep.subr.mxu0 0.0
    %2823 = vmatpush1.xpose.msra.mxu0 %v2788
    %2824 = vmatprep.subr.mxu0 0.0
    %2825 = vmatpush1.xpose.msra.mxu0 %v2791
    %2826 = vmatprep.subr.mxu0 0.0
    %2827 = vmatpush1.xpose.msra.mxu0 %v2794
    %2828 = vmatprep.subr.mxu0 0.0
    %2829 = vmatpush1.xpose.msra.mxu0 0.0
    %2830 = vmatprep.subr.mxu0 0.0
    %2831 = vmatpush1.xpose.msra.mxu0 0.0
    %2832 = vmatprep.subr.mxu0 0.0
    %2833 = vmatpush1.xpose.msra.mxu0 0.0
    %2834 = vmatprep.subr.mxu0 0.0
    %2835 = vmatpush1.xpose.msra.mxu0 0.0
    %2836 = vmatprep.subr.mxu0 0.0
    %2837 = vmatpush1.xpose.msra.mxu0 0.0
    %2838 = vmatprep.subr.mxu0 0.0
    %2839 = vmatpush1.xpose.msra.mxu0 0.0
    %2840 = vmatprep.subr.mxu0 0.0
    %2841 = vmatpush1.xpose.msra.mxu0 0.0
    %2842 = vmatprep.subr.mxu0 0.0
    %2843 = vmatpush1.xpose.msra.mxu0 0.0
    %2844 = vmatprep.subr.mxu0 0.0
    %2845 = vmatpush1.xpose.msra.mxu0 0.0
    %2846 = vmatprep.subr.mxu0 0.0
    %2847 = vmatpush1.xpose.msra.mxu0 0.0
    %2848 = vmatprep.subr.mxu0 0.0
    %2849 = vmatpush1.xpose.msra.mxu0 0.0
    %2850 = vmatprep.subr.mxu0 0.0
    %2851 = vmatpush1.xpose.msra.mxu0 0.0
    %2852 = vmatprep.subr.mxu0 0.0
    %2853 = vmatpush1.xpose.msra.mxu0 0.0
    %2854 = vmatprep.subr.mxu0 0.0
    %2855 = vmatpush1.xpose.msra.mxu0 0.0
    %2856 = vmatprep.subr.mxu0 0.0
    %2857 = vmatpush1.xpose.msra.mxu0 0.0
    %2858 = vmatprep.subr.mxu0 0.0
    %2859 = vmatpush1.xpose.msra.mxu0 0.0
    %2860 = vmatprep.mubr.f32.mxu0 0.0
    %2861 = vmatmul.mubr.f32.gmra.mrb[0].mxu0 %v453
    %v2862 = vpop.f32.mrb[0].mxu0
    %v2863 = vadd.f32 %v2670, %v2862
    %v2864 = vpop.f32.mrb[0].mxu0
    %2865 = vmatprep.mubr.f32.mxu0 0.0
    %2866 = vmatmul.mubr.f32.gmra.mrb[0].mxu0 %v456
    %v2867 = vpop.f32.mrb[0].mxu0
    %v2868 = vadd.f32 %v2675, %v2867
    %v2869 = vpop.f32.mrb[0].mxu0
    %2870 = vmatprep.mubr.f32.mxu0 0.0
    %2871 = vmatmul.mubr.f32.gmra.mrb[0].mxu0 %v459
    %v2872 = vpop.f32.mrb[0].mxu0
    %v2873 = vadd.f32 %v2680, %v2872
    %v2874 = vpop.f32.mrb[0].mxu0
    %2875 = vmatprep.mubr.f32.mxu0 0.0
    %2876 = vmatmul.mubr.f32.gmra.mrb[0].mxu0 %v462
    %v2877 = vpop.f32.mrb[0].mxu0
    %v2878 = vadd.f32 %v2685, %v2877
    %v2879 = vpop.f32.mrb[0].mxu0
    %2880 = vmatprep.mubr.f32.mxu0 0.0
    %2881 = vmatmul.mubr.f32.gmra.mrb[0].mxu0 %v465
    %v2882 = vpop.f32.mrb[0].mxu0
    %v2883 = vadd.f32 %v2690, %v2882
    %v2884 = vpop.f32.mrb[0].mxu0
    %2885 = vmatprep.mubr.f32.mxu0 0.0
    %2886 = vmatmul.mubr.f32.gmra.mrb[0].mxu0 %v468
    %v2887 = vpop.f32.mrb[0].mxu0
    %v2888 = vadd.f32 %v2695, %v2887
    %v2889 = vpop.f32.mrb[0].mxu0
    %2890 = vmatprep.mubr.f32.mxu0 0.0
    %2891 = vmatmul.mubr.f32.gmra.mrb[0].mxu0 %v471
    %v2892 = vpop.f32.mrb[0].mxu0
    %v2893 = vadd.f32 %v2700, %v2892
    %v2894 = vpop.f32.mrb[0].mxu0
    %2895 = vmatprep.mubr.f32.mxu0 0.0
    %2896 = vmatmul.mubr.f32.gmra.mrb[0].mxu0 %v474
    %v2897 = vpop.f32.mrb[0].mxu0
    %v2898 = vadd.f32 %v2705, %v2897
    %v2899 = vpop.f32.mrb[0].mxu0
    %2900 = vmatprep.mubr.f32.mxu0 0.0
    %2901 = vmatmul.mubr.f32.gmra.mrb[0].mxu0 %v477
    %v2902 = vpop.f32.mrb[0].mxu0
    %v2903 = vadd.f32 %v2710, %v2902
    %v2904 = vpop.f32.mrb[0].mxu0
    %2905 = vmatprep.mubr.f32.mxu0 0.0
    %2906 = vmatmul.mubr.f32.gmra.mrb[0].mxu0 %v480
    %v2907 = vpop.f32.mrb[0].mxu0
    %v2908 = vadd.f32 %v2715, %v2907
    %v2909 = vpop.f32.mrb[0].mxu0
    %2910 = vmatprep.mubr.f32.mxu0 0.0
    %2911 = vmatmul.mubr.f32.gmra.mrb[0].mxu0 %v483
    %v2912 = vpop.f32.mrb[0].mxu0
    %v2913 = vadd.f32 %v2720, %v2912
    %v2914 = vpop.f32.mrb[0].mxu0
    %2915 = vmatprep.mubr.f32.mxu0 0.0
    %2916 = vmatmul.mubr.f32.gmra.mrb[0].mxu0 %v486
    %v2917 = vpop.f32.mrb[0].mxu0
    %v2918 = vadd.f32 %v2725, %v2917
    %v2919 = vpop.f32.mrb[0].mxu0
    %2920 = vmatprep.mubr.f32.mxu0 0.0
    %2921 = vmatmul.mubr.f32.gmra.mrb[0].mxu0 %v489
    %v2922 = vpop.f32.mrb[0].mxu0
    %v2923 = vadd.f32 %v2730, %v2922
    %v2924 = vpop.f32.mrb[0].mxu0
    %2925 = vmatprep.mubr.f32.mxu0 0.0
    %2926 = vmatmul.mubr.f32.gmra.mrb[0].mxu0 %v492
    %v2927 = vpop.f32.mrb[0].mxu0
    %v2928 = vadd.f32 %v2735, %v2927
    %v2929 = vpop.f32.mrb[0].mxu0
    %2930 = vmatprep.mubr.f32.mxu0 0.0
    %2931 = vmatmul.mubr.f32.gmra.mrb[0].mxu0 %v495
    %v2932 = vpop.f32.mrb[0].mxu0
    %v2933 = vadd.f32 %v2740, %v2932
    %v2934 = vpop.f32.mrb[0].mxu0
    %2935 = vmatprep.mubr.f32.mxu0 0.0
    %2936 = vmatmul.mubr.f32.gmra.mrb[0].mxu0 %v498
    %v2937 = vpop.f32.mrb[0].mxu0
    %v2938 = vadd.f32 %v2745, %v2937
    %v2939 = vpop.f32.mrb[0].mxu0
    %2940 = vdwg.mxu0
    %2941 = vmatprep.subr.mxu0 0.0
    %2942 = vmatpush1.msra.mxu0 %v2503
    %2943 = vmatprep.subr.mxu0 0.0
    %2944 = vmatpush1.msra.mxu0 %v2504
    %2945 = vmatprep.subr.mxu0 0.0
    %2946 = vmatpush1.msra.mxu0 %v2505
    %2947 = vmatprep.subr.mxu0 0.0
    %2948 = vmatpush1.msra.mxu0 %v2506
    %2949 = vmatprep.subr.mxu0 0.0
    %2950 = vmatpush1.msra.mxu0 0.0
    %2951 = vmatprep.subr.mxu0 0.0
    %2952 = vmatpush1.msra.mxu0 0.0
    %2953 = vmatprep.subr.mxu0 0.0
    %2954 = vmatpush1.msra.mxu0 0.0
    %2955 = vmatprep.subr.mxu0 0.0
    %2956 = vmatpush1.msra.mxu0 0.0
    %2957 = vmatprep.subr.mxu0 0.0
    %2958 = vmatpush1.msra.mxu0 0.0
    %2959 = vmatprep.subr.mxu0 0.0
    %2960 = vmatpush1.msra.mxu0 0.0
    %2961 = vmatprep.subr.mxu0 0.0
    %2962 = vmatpush1.msra.mxu0 0.0
    %2963 = vmatprep.subr.mxu0 0.0
    %2964 = vmatpush1.msra.mxu0 0.0
    %2965 = vmatprep.subr.mxu0 0.0
    %2966 = vmatpush1.msra.mxu0 0.0
    %2967 = vmatprep.subr.mxu0 0.0
    %2968 = vmatpush1.msra.mxu0 0.0
    %2969 = vmatprep.subr.mxu0 0.0
    %2970 = vmatpush1.msra.mxu0 0.0
    %2971 = vmatprep.subr.mxu0 0.0
    %2972 = vmatpush1.msra.mxu0 0.0
    %2973 = vmatprep.subr.mxu0 0.0
    %2974 = vmatpush1.msra.mxu0 0.0
    %2975 = vmatprep.subr.mxu0 0.0
    %2976 = vmatpush1.msra.mxu0 0.0
    %2977 = vmatprep.subr.mxu0 0.0
    %2978 = vmatpush1.msra.mxu0 0.0
    %2979 = vmatprep.subr.mxu0 0.0
    %2980 = vmatpush1.msra.mxu0 0.0
    %2981 = vmatprep.subr.mxu0 0.0
    %2982 = vmatpush1.msra.mxu0 0.0
    %2983 = vmatprep.subr.mxu0 0.0
    %2984 = vmatpush1.msra.mxu0 0.0
    %2985 = vmatprep.subr.mxu0 0.0
    %2986 = vmatpush1.msra.mxu0 0.0
    %2987 = vmatprep.subr.mxu0 0.0
    %2988 = vmatpush1.msra.mxu0 0.0
    %2989 = vmatprep.subr.mxu0 0.0
    %2990 = vmatpush1.msra.mxu0 0.0
    %2991 = vmatprep.subr.mxu0 0.0
    %2992 = vmatpush1.msra.mxu0 0.0
    %2993 = vmatprep.subr.mxu0 0.0
    %2994 = vmatpush1.msra.mxu0 0.0
    %2995 = vmatprep.subr.mxu0 0.0
    %2996 = vmatpush1.msra.mxu0 0.0
    %2997 = vmatprep.subr.mxu0 0.0
    %2998 = vmatpush1.msra.mxu0 0.0
    %2999 = vmatprep.subr.mxu0 0.0
    %3000 = vmatpush1.msra.mxu0 0.0
    %3001 = vmatprep.subr.mxu0 0.0
    %3002 = vmatpush1.msra.mxu0 0.0
    %3003 = vmatprep.subr.mxu0 0.0
    %3004 = vmatpush1.msra.mxu0 0.0
    %3005 = vmatprep.mubr.f32.mxu0 0.0
    %3006 = vmatmul.mubr.f32.gmra.mrb[0].mxu0 %v695
    %v3007 = vpop.f32.mrb[0].mxu0
    %v3008 = vadd.f32 0.0, %v3007
    %v3009 = vpop.f32.mrb[0].mxu0
    %3010 = vmatprep.mubr.f32.mxu0 0.0
    %3011 = vmatmul.mubr.f32.gmra.mrb[0].mxu0 %v698
    %v3012 = vpop.f32.mrb[0].mxu0
    %v3013 = vadd.f32 0.0, %v3012
    %v3014 = vpop.f32.mrb[0].mxu0
    %3015 = vmatprep.mubr.f32.mxu0 0.0
    %3016 = vmatmul.mubr.f32.gmra.mrb[0].mxu0 %v701
    %v3017 = vpop.f32.mrb[0].mxu0
    %v3018 = vadd.f32 0.0, %v3017
    %v3019 = vpop.f32.mrb[0].mxu0
    %3020 = vmatprep.mubr.f32.mxu0 0.0
    %3021 = vmatmul.mubr.f32.gmra.mrb[0].mxu0 %v704
    %v3022 = vpop.f32.mrb[0].mxu0
    %v3023 = vadd.f32 0.0, %v3022
    %v3024 = vpop.f32.mrb[0].mxu0
    %3025 = vmatprep.mubr.f32.mxu0 0.0
    %3026 = vmatmul.mubr.f32.gmra.mrb[0].mxu0 %v707
    %v3027 = vpop.f32.mrb[0].mxu0
    %v3028 = vadd.f32 0.0, %v3027
    %v3029 = vpop.f32.mrb[0].mxu0
    %3030 = vmatprep.mubr.f32.mxu0 0.0
    %3031 = vmatmul.mubr.f32.gmra.mrb[0].mxu0 %v710
    %v3032 = vpop.f32.mrb[0].mxu0
    %v3033 = vadd.f32 0.0, %v3032
    %v3034 = vpop.f32.mrb[0].mxu0
    %3035 = vmatprep.mubr.f32.mxu0 0.0
    %3036 = vmatmul.mubr.f32.gmra.mrb[0].mxu0 %v713
    %v3037 = vpop.f32.mrb[0].mxu0
    %v3038 = vadd.f32 0.0, %v3037
    %v3039 = vpop.f32.mrb[0].mxu0
    %3040 = vmatprep.mubr.f32.mxu0 0.0
    %3041 = vmatmul.mubr.f32.gmra.mrb[0].mxu0 %v716
    %v3042 = vpop.f32.mrb[0].mxu0
    %v3043 = vadd.f32 0.0, %v3042
    %v3044 = vpop.f32.mrb[0].mxu0
    %3045 = vmatprep.mubr.f32.mxu0 0.0
    %3046 = vmatmul.mubr.f32.gmra.mrb[0].mxu0 %v719
    %v3047 = vpop.f32.mrb[0].mxu0
    %v3048 = vadd.f32 0.0, %v3047
    %v3049 = vpop.f32.mrb[0].mxu0
    %3050 = vmatprep.mubr.f32.mxu0 0.0
    %3051 = vmatmul.mubr.f32.gmra.mrb[0].mxu0 %v722
    %v3052 = vpop.f32.mrb[0].mxu0
    %v3053 = vadd.f32 0.0, %v3052
    %v3054 = vpop.f32.mrb[0].mxu0
    %3055 = vmatprep.mubr.f32.mxu0 0.0
    %3056 = vmatmul.mubr.f32.gmra.mrb[0].mxu0 %v725
    %v3057 = vpop.f32.mrb[0].mxu0
    %v3058 = vadd.f32 0.0, %v3057
    %v3059 = vpop.f32.mrb[0].mxu0
    %3060 = vmatprep.mubr.f32.mxu0 0.0
    %3061 = vmatmul.mubr.f32.gmra.mrb[0].mxu0 %v728
    %v3062 = vpop.f32.mrb[0].mxu0
    %v3063 = vadd.f32 0.0, %v3062
    %v3064 = vpop.f32.mrb[0].mxu0
    %3065 = vmatprep.mubr.f32.mxu0 0.0
    %3066 = vmatmul.mubr.f32.gmra.mrb[0].mxu0 %v731
    %v3067 = vpop.f32.mrb[0].mxu0
    %v3068 = vadd.f32 0.0, %v3067
    %v3069 = vpop.f32.mrb[0].mxu0
    %3070 = vmatprep.mubr.f32.mxu0 0.0
    %3071 = vmatmul.mubr.f32.gmra.mrb[0].mxu0 %v734
    %v3072 = vpop.f32.mrb[0].mxu0
    %v3073 = vadd.f32 0.0, %v3072
    %v3074 = vpop.f32.mrb[0].mxu0
    %3075 = vmatprep.mubr.f32.mxu0 0.0
    %3076 = vmatmul.mubr.f32.gmra.mrb[0].mxu0 %v737
    %v3077 = vpop.f32.mrb[0].mxu0
    %v3078 = vadd.f32 0.0, %v3077
    %v3079 = vpop.f32.mrb[0].mxu0
    %3080 = vmatprep.mubr.f32.mxu0 0.0
    %3081 = vmatmul.mubr.f32.gmra.mrb[0].mxu0 %v740
    %v3082 = vpop.f32.mrb[0].mxu0
    %v3083 = vadd.f32 0.0, %v3082
    %v3084 = vpop.f32.mrb[0].mxu0
    %3085 = vdwg.mxu0
    %v3086 = vadd.f32 %v2863, %v3008
    %v3087 = vadd.f32 %v2868, %v3013
    %v3088 = vadd.f32 %v2873, %v3018
    %v3089 = vadd.f32 %v2878, %v3023
    %v3090 = vadd.f32 %v2883, %v3028
    %v3091 = vadd.f32 %v2888, %v3033
    %v3092 = vadd.f32 %v2893, %v3038
    %v3093 = vadd.f32 %v2898, %v3043
    %v3094 = vadd.f32 %v2903, %v3048
    %v3095 = vadd.f32 %v2908, %v3053
    %v3096 = vadd.f32 %v2913, %v3058
    %v3097 = vadd.f32 %v2918, %v3063
    %v3098 = vadd.f32 %v2923, %v3068
    %v3099 = vadd.f32 %v2928, %v3073
    %v3100 = vadd.f32 %v2933, %v3078
    %v3101 = vadd.f32 %v2938, %v3083
    %v3102 = vadd.f32 %v3086, %v91
    %v3103 = vadd.f32 %v3087, %v96
    %v3104 = vadd.f32 %v3088, %v101
    %v3105 = vadd.f32 %v3089, %v106
    %v3106 = vadd.f32 %v3090, %v111
    %v3107 = vadd.f32 %v3091, %v116
    %v3108 = vadd.f32 %v3092, %v121
    %v3109 = vadd.f32 %v3093, %v126
    %v3110 = vadd.f32 %v3094, %v131
    %v3111 = vadd.f32 %v3095, %v136
    %v3112 = vadd.f32 %v3096, %v141
    %v3113 = vadd.f32 %v3097, %v146
    %v3114 = vadd.f32 %v3098, %v151
    %v3115 = vadd.f32 %v3099, %v156
    %v3116 = vadd.f32 %v3100, %v161
    %v3117 = vadd.f32 %v3101, %v166
    %v3118 = vxor.u32 %v3102, 2147483648
    %v3119 = vxor.u32 %v3103, 2147483648
    %v3120 = vxor.u32 %v3104, 2147483648
    %v3121 = vxor.u32 %v3105, 2147483648
    %v3122 = vmul.f32 %v3118, 1.442695
    %v3123 = vpow.pop %v3122
    %v3124 = vmul.f32 %v3119, 1.442695
    %v3125 = vpow.pop %v3124
    %v3126 = vmul.f32 %v3120, 1.442695
    %v3127 = vpow.pop %v3126
    %v3128 = vmul.f32 %v3121, 1.442695
    %v3129 = vpow.pop %v3128
    %v3130 = vadd.f32 %v3123, 1.0
    %v3131 = vadd.f32 %v3125, 1.0
    %v3132 = vadd.f32 %v3127, 1.0
    %v3133 = vadd.f32 %v3129, 1.0
    %v3134 = vrcp.pop %v3130
    %v3135 = vmul.f32 1.0, %v3134
    %v3136 = vrcp.pop %v3131
    %v3137 = vmul.f32 1.0, %v3136
    %v3138 = vrcp.pop %v3132
    %v3139 = vmul.f32 1.0, %v3138
    %v3140 = vrcp.pop %v3133
    %v3141 = vmul.f32 1.0, %v3140
    %v3142 = vxor.u32 %v3106, 2147483648
    %v3143 = vxor.u32 %v3107, 2147483648
    %v3144 = vxor.u32 %v3108, 2147483648
    %v3145 = vxor.u32 %v3109, 2147483648
    %v3146 = vmul.f32 %v3142, 1.442695
    %v3147 = vpow.pop %v3146
    %v3148 = vmul.f32 %v3143, 1.442695
    %v3149 = vpow.pop %v3148
    %v3150 = vmul.f32 %v3144, 1.442695
    %v3151 = vpow.pop %v3150
    %v3152 = vmul.f32 %v3145, 1.442695
    %v3153 = vpow.pop %v3152
    %v3154 = vadd.f32 %v3147, 1.0
    %v3155 = vadd.f32 %v3149, 1.0
    %v3156 = vadd.f32 %v3151, 1.0
    %v3157 = vadd.f32 %v3153, 1.0
    %v3158 = vrcp.pop %v3154
    %v3159 = vmul.f32 1.0, %v3158
    %v3160 = vrcp.pop %v3155
    %v3161 = vmul.f32 1.0, %v3160
    %v3162 = vrcp.pop %v3156
    %v3163 = vmul.f32 1.0, %v3162
    %v3164 = vrcp.pop %v3157
    %v3165 = vmul.f32 1.0, %v3164
    %v3166 = vtanh.pop %v3110
    %v3167 = vtanh.pop %v3111
    %v3168 = vtanh.pop %v3112
    %v3169 = vtanh.pop %v3113
    %v3170 = vxor.u32 %v3114, 2147483648
    %v3171 = vxor.u32 %v3115, 2147483648
    %v3172 = vxor.u32 %v3116, 2147483648
    %v3173 = vxor.u32 %v3117, 2147483648
    %v3174 = vmul.f32 %v3170, 1.442695
    %v3175 = vpow.pop %v3174
    %v3176 = vmul.f32 %v3171, 1.442695
    %v3177 = vpow.pop %v3176
    %v3178 = vmul.f32 %v3172, 1.442695
    %v3179 = vpow.pop %v3178
    %v3180 = vmul.f32 %v3173, 1.442695
    %v3181 = vpow.pop %v3180
    %v3182 = vadd.f32 %v3175, 1.0
    %v3183 = vadd.f32 %v3177, 1.0
    %v3184 = vadd.f32 %v3179, 1.0
    %v3185 = vadd.f32 %v3181, 1.0
    %v3186 = vrcp.pop %v3182
    %v3187 = vmul.f32 1.0, %v3186
    %v3188 = vrcp.pop %v3183
    %v3189 = vmul.f32 1.0, %v3188
    %v3190 = vrcp.pop %v3184
    %v3191 = vmul.f32 1.0, %v3190
    %v3192 = vrcp.pop %v3185
    %v3193 = vmul.f32 1.0, %v3192
    %v3194 = vmul.f32 %v3159, %v2507
    %v3195 = vmul.f32 %v3161, %v2508
    %v3196 = vmul.f32 %v3163, %v2509
    %v3197 = vmul.f32 %v3165, %v2510
    %v3198 = vmul.f32 %v3135, %v3166
    %v3199 = vmul.f32 %v3137, %v3167
    %v3200 = vmul.f32 %v3139, %v3168
    %v3201 = vmul.f32 %v3141, %v3169
    %v3202 = vadd.f32 %v3194, %v3198
    %v3203 = vadd.f32 %v3195, %v3199
    %v3204 = vadd.f32 %v3196, %v3200
    %v3205 = vadd.f32 %v3197, %v3201
    %v3206 = vtanh.pop %v3202
    %v3207 = vtanh.pop %v3203
    %v3208 = vtanh.pop %v3204
    %v3209 = vtanh.pop %v3205
    %v3210 = vmul.f32 %v3187, %v3206
    %v3211 = vmul.f32 %v3189, %v3207
    %v3212 = vmul.f32 %v3191, %v3208
    %v3213 = vmul.f32 %v3193, %v3209
    %s3214 = scalar_lea.vmem %s1, 3
    %v3215 = vld [vmem:[%s3214] sm:$0x1]
    %s3216 = scalar_lea.vmem %s1, 6
    %v3217 = vld [vmem:[%s3216] sm:$0x1]
    %v3219 = vlaneseq
    %v3220 = vshrl.u32 %v3219, 7
    %v3221 = vsub.s32 0, %v3220
    %v3222 = vrot.slane %v3215, %v3221
    %v3225 = vlaneseq
    %v3226 = vshrl.u32 %v3225, 7
    %v3227 = vsub.s32 0, %v3226
    %v3228 = vrot.slane %v3217, %v3227
    %v3230 = vsel %vm173, %v3222, %v3228
    %v3231 = vsel %vm174, %v3222, %v3228
    %v3232 = vsel %vm175, %v3222, %v3228
    %v3233 = vsel %vm176, %v3222, %v3228
    %vm3234 = vcmp.gt.f32.partialorder %v3230, 0.5
    %vm3235 = vcmp.gt.f32.partialorder %v3231, 0.5
    %vm3236 = vcmp.gt.f32.partialorder %v3232, 0.5
    %vm3237 = vcmp.gt.f32.partialorder %v3233, 0.5
    %v3238 = vsel %vm3234, %v3210, %v2503
    %v3239 = vsel %vm3235, %v3211, %v2504
    %v3240 = vsel %vm3236, %v3212, %v2505
    %v3241 = vsel %vm3237, %v3213, %v2506
    %v3242 = vsel %vm3234, %v3202, %v2507
    %v3243 = vsel %vm3235, %v3203, %v2508
    %v3244 = vsel %vm3236, %v3204, %v2509
    %v3245 = vsel %vm3237, %v3205, %v2510
    %v3246 = vsel %vm3234, %v3210, 0.0
    %v3247 = vsel %vm3235, %v3211, 0.0
    %v3248 = vsel %vm3236, %v3212, 0.0
    %v3249 = vsel %vm3237, %v3213, 0.0
    %s3250 = scalar_lea.vmem [#allocation2], 96
    %3251 = vst [vmem:[%s3250] sm:$0xff] %v3246
    %3252 = vst [vmem:[%s3250 + $0x8] sm:$0xff] %v3247
    %s3253 = scalar_lea.vmem [#allocation2], 192
    %3254 = vst [vmem:[%s3253 + $0x10] sm:$0xff] %v3248
    %3255 = vst [vmem:[%s3253 + $0x18] sm:$0xff] %v3249
    %s3256 = scalar_lea.vmem %s0, 512
    %v3257 = vld [vmem:[%s3256] sm:$0xff]
    %v3258 = vld [vmem:[%s3256 + $0x8] sm:$0xff]
    %v3259 = vld [vmem:[%s3256 + $0x10] sm:$0xff]
    %v3260 = vld [vmem:[%s3256 + $0x18] sm:$0xff]
    %v3261 = vld [vmem:[%s3256 + $0x20] sm:$0xff]
    %v3262 = vld [vmem:[%s3256 + $0x28] sm:$0xff]
    %v3263 = vld [vmem:[%s3256 + $0x30] sm:$0xff]
    %v3264 = vld [vmem:[%s3256 + $0x38] sm:$0xff]
    %v3265 = vld [vmem:[%s3256 + $0x40] sm:$0xff]
    %v3266 = vld [vmem:[%s3256 + $0x48] sm:$0xff]
    %v3267 = vld [vmem:[%s3256 + $0x50] sm:$0xff]
    %v3268 = vld [vmem:[%s3256 + $0x58] sm:$0xff]
    %v3269 = vld [vmem:[%s3256 + $0x60] sm:$0xff]
    %v3270 = vld [vmem:[%s3256 + $0x68] sm:$0xff]
    %v3271 = vld [vmem:[%s3256 + $0x70] sm:$0xff]
    %v3272 = vld [vmem:[%s3256 + $0x78] sm:$0xff]
    %s3273 = scalar_lea.vmem %s0, 640
    %v3274 = vld [vmem:[%s3273] sm:$0xff]
    %v3275 = vld [vmem:[%s3273 + $0x8] sm:$0xff]
    %v3276 = vld [vmem:[%s3273 + $0x10] sm:$0xff]
    %v3277 = vld [vmem:[%s3273 + $0x18] sm:$0xff]
    %v3278 = vld [vmem:[%s3273 + $0x20] sm:$0xff]
    %v3279 = vld [vmem:[%s3273 + $0x28] sm:$0xff]
    %v3280 = vld [vmem:[%s3273 + $0x30] sm:$0xff]
    %v3281 = vld [vmem:[%s3273 + $0x38] sm:$0xff]
    %v3282 = vld [vmem:[%s3273 + $0x40] sm:$0xff]
    %v3283 = vld [vmem:[%s3273 + $0x48] sm:$0xff]
    %v3284 = vld [vmem:[%s3273 + $0x50] sm:$0xff]
    %v3285 = vld [vmem:[%s3273 + $0x58] sm:$0xff]
    %v3286 = vld [vmem:[%s3273 + $0x60] sm:$0xff]
    %v3287 = vld [vmem:[%s3273 + $0x68] sm:$0xff]
    %v3288 = vld [vmem:[%s3273 + $0x70] sm:$0xff]
    %v3289 = vld [vmem:[%s3273 + $0x78] sm:$0xff]
    %v3291 = vsel %vm210, %v3274, 0
    %v3294 = vsel %vm210, %v3275, 0
    %v3297 = vsel %vm210, %v3276, 0
    %v3300 = vsel %vm210, %v3277, 0
    %v3303 = vsel %vm210, %v3278, 0
    %v3306 = vsel %vm210, %v3279, 0
    %v3309 = vsel %vm210, %v3280, 0
    %v3312 = vsel %vm210, %v3281, 0
    %v3315 = vsel %vm210, %v3282, 0
    %v3318 = vsel %vm210, %v3283, 0
    %v3321 = vsel %vm210, %v3284, 0
    %v3324 = vsel %vm210, %v3285, 0
    %v3327 = vsel %vm210, %v3286, 0
    %v3330 = vsel %vm210, %v3287, 0
    %v3333 = vsel %vm210, %v3288, 0
    %v3336 = vsel %vm210, %v3289, 0
    %3338 = vmatprep.subr.mxu0 0.0
    %3339 = vmatpush1.xpose.msra.mxu0 %v3291
    %3340 = vmatprep.subr.mxu0 0.0
    %3341 = vmatpush1.xpose.msra.mxu0 %v3294
    %3342 = vmatprep.subr.mxu0 0.0
    %3343 = vmatpush1.xpose.msra.mxu0 %v3297
    %3344 = vmatprep.subr.mxu0 0.0
    %3345 = vmatpush1.xpose.msra.mxu0 %v3300
    %3346 = vmatprep.subr.mxu0 0.0
    %3347 = vmatpush1.xpose.msra.mxu0 %v3303
    %3348 = vmatprep.subr.mxu0 0.0
    %3349 = vmatpush1.xpose.msra.mxu0 %v3306
    %3350 = vmatprep.subr.mxu0 0.0
    %3351 = vmatpush1.xpose.msra.mxu0 %v3309
    %3352 = vmatprep.subr.mxu0 0.0
    %3353 = vmatpush1.xpose.msra.mxu0 %v3312
    %3354 = vmatprep.subr.mxu0 0.0
    %3355 = vmatpush1.xpose.msra.mxu0 %v3315
    %3356 = vmatprep.subr.mxu0 0.0
    %3357 = vmatpush1.xpose.msra.mxu0 %v3318
    %3358 = vmatprep.subr.mxu0 0.0
    %3359 = vmatpush1.xpose.msra.mxu0 %v3321
    %3360 = vmatprep.subr.mxu0 0.0
    %3361 = vmatpush1.xpose.msra.mxu0 %v3324
    %3362 = vmatprep.subr.mxu0 0.0
    %3363 = vmatpush1.xpose.msra.mxu0 %v3327
    %3364 = vmatprep.subr.mxu0 0.0
    %3365 = vmatpush1.xpose.msra.mxu0 %v3330
    %3366 = vmatprep.subr.mxu0 0.0
    %3367 = vmatpush1.xpose.msra.mxu0 %v3333
    %3368 = vmatprep.subr.mxu0 0.0
    %3369 = vmatpush1.xpose.msra.mxu0 %v3336
    %3370 = vmatprep.subr.mxu0 0.0
    %3371 = vmatpush1.xpose.msra.mxu0 0.0
    %3372 = vmatprep.subr.mxu0 0.0
    %3373 = vmatpush1.xpose.msra.mxu0 0.0
    %3374 = vmatprep.subr.mxu0 0.0
    %3375 = vmatpush1.xpose.msra.mxu0 0.0
    %3376 = vmatprep.subr.mxu0 0.0
    %3377 = vmatpush1.xpose.msra.mxu0 0.0
    %3378 = vmatprep.subr.mxu0 0.0
    %3379 = vmatpush1.xpose.msra.mxu0 0.0
    %3380 = vmatprep.subr.mxu0 0.0
    %3381 = vmatpush1.xpose.msra.mxu0 0.0
    %3382 = vmatprep.subr.mxu0 0.0
    %3383 = vmatpush1.xpose.msra.mxu0 0.0
    %3384 = vmatprep.subr.mxu0 0.0
    %3385 = vmatpush1.xpose.msra.mxu0 0.0
    %3386 = vmatprep.subr.mxu0 0.0
    %3387 = vmatpush1.xpose.msra.mxu0 0.0
    %3388 = vmatprep.subr.mxu0 0.0
    %3389 = vmatpush1.xpose.msra.mxu0 0.0
    %3390 = vmatprep.subr.mxu0 0.0
    %3391 = vmatpush1.xpose.msra.mxu0 0.0
    %3392 = vmatprep.subr.mxu0 0.0
    %3393 = vmatpush1.xpose.msra.mxu0 0.0
    %3394 = vmatprep.subr.mxu0 0.0
    %3395 = vmatpush1.xpose.msra.mxu0 0.0
    %3396 = vmatprep.subr.mxu0 0.0
    %3397 = vmatpush1.xpose.msra.mxu0 0.0
    %3398 = vmatprep.subr.mxu0 0.0
    %3399 = vmatpush1.xpose.msra.mxu0 0.0
    %3400 = vmatprep.subr.mxu0 0.0
    %3401 = vmatpush1.xpose.msra.mxu0 0.0
    %3402 = vmatprep.mubr.f32.mxu0 0.0
    %3403 = vmatmul.mubr.f32.gmra.mrb[0].mxu0 %v212
    %v3404 = vpop.f32.mrb[0].mxu0
    %v3405 = vadd.f32 0.0, %v3404
    %v3406 = vpop.f32.mrb[0].mxu0
    %3407 = vmatprep.mubr.f32.mxu0 0.0
    %3408 = vmatmul.mubr.f32.gmra.mrb[0].mxu0 %v215
    %v3409 = vpop.f32.mrb[0].mxu0
    %v3410 = vadd.f32 0.0, %v3409
    %v3411 = vpop.f32.mrb[0].mxu0
    %3412 = vmatprep.mubr.f32.mxu0 0.0
    %3413 = vmatmul.mubr.f32.gmra.mrb[0].mxu0 %v218
    %v3414 = vpop.f32.mrb[0].mxu0
    %v3415 = vadd.f32 0.0, %v3414
    %v3416 = vpop.f32.mrb[0].mxu0
    %3417 = vmatprep.mubr.f32.mxu0 0.0
    %3418 = vmatmul.mubr.f32.gmra.mrb[0].mxu0 %v221
    %v3419 = vpop.f32.mrb[0].mxu0
    %v3420 = vadd.f32 0.0, %v3419
    %v3421 = vpop.f32.mrb[0].mxu0
    %3422 = vmatprep.mubr.f32.mxu0 0.0
    %3423 = vmatmul.mubr.f32.gmra.mrb[0].mxu0 %v224
    %v3424 = vpop.f32.mrb[0].mxu0
    %v3425 = vadd.f32 0.0, %v3424
    %v3426 = vpop.f32.mrb[0].mxu0
    %3427 = vmatprep.mubr.f32.mxu0 0.0
    %3428 = vmatmul.mubr.f32.gmra.mrb[0].mxu0 %v227
    %v3429 = vpop.f32.mrb[0].mxu0
    %v3430 = vadd.f32 0.0, %v3429
    %v3431 = vpop.f32.mrb[0].mxu0
    %3432 = vmatprep.mubr.f32.mxu0 0.0
    %3433 = vmatmul.mubr.f32.gmra.mrb[0].mxu0 %v230
    %v3434 = vpop.f32.mrb[0].mxu0
    %v3435 = vadd.f32 0.0, %v3434
    %v3436 = vpop.f32.mrb[0].mxu0
    %3437 = vmatprep.mubr.f32.mxu0 0.0
    %3438 = vmatmul.mubr.f32.gmra.mrb[0].mxu0 %v233
    %v3439 = vpop.f32.mrb[0].mxu0
    %v3440 = vadd.f32 0.0, %v3439
    %v3441 = vpop.f32.mrb[0].mxu0
    %3442 = vmatprep.mubr.f32.mxu0 0.0
    %3443 = vmatmul.mubr.f32.gmra.mrb[0].mxu0 %v236
    %v3444 = vpop.f32.mrb[0].mxu0
    %v3445 = vadd.f32 0.0, %v3444
    %v3446 = vpop.f32.mrb[0].mxu0
    %3447 = vmatprep.mubr.f32.mxu0 0.0
    %3448 = vmatmul.mubr.f32.gmra.mrb[0].mxu0 %v239
    %v3449 = vpop.f32.mrb[0].mxu0
    %v3450 = vadd.f32 0.0, %v3449
    %v3451 = vpop.f32.mrb[0].mxu0
    %3452 = vmatprep.mubr.f32.mxu0 0.0
    %3453 = vmatmul.mubr.f32.gmra.mrb[0].mxu0 %v242
    %v3454 = vpop.f32.mrb[0].mxu0
    %v3455 = vadd.f32 0.0, %v3454
    %v3456 = vpop.f32.mrb[0].mxu0
    %3457 = vmatprep.mubr.f32.mxu0 0.0
    %3458 = vmatmul.mubr.f32.gmra.mrb[0].mxu0 %v245
    %v3459 = vpop.f32.mrb[0].mxu0
    %v3460 = vadd.f32 0.0, %v3459
    %v3461 = vpop.f32.mrb[0].mxu0
    %3462 = vmatprep.mubr.f32.mxu0 0.0
    %3463 = vmatmul.mubr.f32.gmra.mrb[0].mxu0 %v248
    %v3464 = vpop.f32.mrb[0].mxu0
    %v3465 = vadd.f32 0.0, %v3464
    %v3466 = vpop.f32.mrb[0].mxu0
    %3467 = vmatprep.mubr.f32.mxu0 0.0
    %3468 = vmatmul.mubr.f32.gmra.mrb[0].mxu0 %v251
    %v3469 = vpop.f32.mrb[0].mxu0
    %v3470 = vadd.f32 0.0, %v3469
    %v3471 = vpop.f32.mrb[0].mxu0
    %3472 = vmatprep.mubr.f32.mxu0 0.0
    %3473 = vmatmul.mubr.f32.gmra.mrb[0].mxu0 %v254
    %v3474 = vpop.f32.mrb[0].mxu0
    %v3475 = vadd.f32 0.0, %v3474
    %v3476 = vpop.f32.mrb[0].mxu0
    %3477 = vmatprep.mubr.f32.mxu0 0.0
    %3478 = vmatmul.mubr.f32.gmra.mrb[0].mxu0 %v257
    %v3479 = vpop.f32.mrb[0].mxu0
    %v3480 = vadd.f32 0.0, %v3479
    %v3481 = vpop.f32.mrb[0].mxu0
    %3482 = vdwg.mxu0
    %v3484 = vsel %vm210, %v3257, 0
    %v3487 = vsel %vm210, %v3258, 0
    %v3490 = vsel %vm210, %v3259, 0
    %v3493 = vsel %vm210, %v3260, 0
    %v3496 = vsel %vm210, %v3261, 0
    %v3499 = vsel %vm210, %v3262, 0
    %v3502 = vsel %vm210, %v3263, 0
    %v3505 = vsel %vm210, %v3264, 0
    %v3508 = vsel %vm210, %v3265, 0
    %v3511 = vsel %vm210, %v3266, 0
    %v3514 = vsel %vm210, %v3267, 0
    %v3517 = vsel %vm210, %v3268, 0
    %v3520 = vsel %vm210, %v3269, 0
    %v3523 = vsel %vm210, %v3270, 0
    %v3526 = vsel %vm210, %v3271, 0
    %v3529 = vsel %vm210, %v3272, 0
    %3531 = vmatprep.subr.mxu0 0.0
    %3532 = vmatpush1.xpose.msra.mxu0 %v3484
    %3533 = vmatprep.subr.mxu0 0.0
    %3534 = vmatpush1.xpose.msra.mxu0 %v3487
    %3535 = vmatprep.subr.mxu0 0.0
    %3536 = vmatpush1.xpose.msra.mxu0 %v3490
    %3537 = vmatprep.subr.mxu0 0.0
    %3538 = vmatpush1.xpose.msra.mxu0 %v3493
    %3539 = vmatprep.subr.mxu0 0.0
    %3540 = vmatpush1.xpose.msra.mxu0 %v3496
    %3541 = vmatprep.subr.mxu0 0.0
    %3542 = vmatpush1.xpose.msra.mxu0 %v3499
    %3543 = vmatprep.subr.mxu0 0.0
    %3544 = vmatpush1.xpose.msra.mxu0 %v3502
    %3545 = vmatprep.subr.mxu0 0.0
    %3546 = vmatpush1.xpose.msra.mxu0 %v3505
    %3547 = vmatprep.subr.mxu0 0.0
    %3548 = vmatpush1.xpose.msra.mxu0 %v3508
    %3549 = vmatprep.subr.mxu0 0.0
    %3550 = vmatpush1.xpose.msra.mxu0 %v3511
    %3551 = vmatprep.subr.mxu0 0.0
    %3552 = vmatpush1.xpose.msra.mxu0 %v3514
    %3553 = vmatprep.subr.mxu0 0.0
    %3554 = vmatpush1.xpose.msra.mxu0 %v3517
    %3555 = vmatprep.subr.mxu0 0.0
    %3556 = vmatpush1.xpose.msra.mxu0 %v3520
    %3557 = vmatprep.subr.mxu0 0.0
    %3558 = vmatpush1.xpose.msra.mxu0 %v3523
    %3559 = vmatprep.subr.mxu0 0.0
    %3560 = vmatpush1.xpose.msra.mxu0 %v3526
    %3561 = vmatprep.subr.mxu0 0.0
    %3562 = vmatpush1.xpose.msra.mxu0 %v3529
    %3563 = vmatprep.subr.mxu0 0.0
    %3564 = vmatpush1.xpose.msra.mxu0 0.0
    %3565 = vmatprep.subr.mxu0 0.0
    %3566 = vmatpush1.xpose.msra.mxu0 0.0
    %3567 = vmatprep.subr.mxu0 0.0
    %3568 = vmatpush1.xpose.msra.mxu0 0.0
    %3569 = vmatprep.subr.mxu0 0.0
    %3570 = vmatpush1.xpose.msra.mxu0 0.0
    %3571 = vmatprep.subr.mxu0 0.0
    %3572 = vmatpush1.xpose.msra.mxu0 0.0
    %3573 = vmatprep.subr.mxu0 0.0
    %3574 = vmatpush1.xpose.msra.mxu0 0.0
    %3575 = vmatprep.subr.mxu0 0.0
    %3576 = vmatpush1.xpose.msra.mxu0 0.0
    %3577 = vmatprep.subr.mxu0 0.0
    %3578 = vmatpush1.xpose.msra.mxu0 0.0
    %3579 = vmatprep.subr.mxu0 0.0
    %3580 = vmatpush1.xpose.msra.mxu0 0.0
    %3581 = vmatprep.subr.mxu0 0.0
    %3582 = vmatpush1.xpose.msra.mxu0 0.0
    %3583 = vmatprep.subr.mxu0 0.0
    %3584 = vmatpush1.xpose.msra.mxu0 0.0
    %3585 = vmatprep.subr.mxu0 0.0
    %3586 = vmatpush1.xpose.msra.mxu0 0.0
    %3587 = vmatprep.subr.mxu0 0.0
    %3588 = vmatpush1.xpose.msra.mxu0 0.0
    %3589 = vmatprep.subr.mxu0 0.0
    %3590 = vmatpush1.xpose.msra.mxu0 0.0
    %3591 = vmatprep.subr.mxu0 0.0
    %3592 = vmatpush1.xpose.msra.mxu0 0.0
    %3593 = vmatprep.subr.mxu0 0.0
    %3594 = vmatpush1.xpose.msra.mxu0 0.0
    %3595 = vmatprep.mubr.f32.mxu0 0.0
    %3596 = vmatmul.mubr.f32.gmra.mrb[0].mxu0 %v453
    %v3597 = vpop.f32.mrb[0].mxu0
    %v3598 = vadd.f32 %v3405, %v3597
    %v3599 = vpop.f32.mrb[0].mxu0
    %3600 = vmatprep.mubr.f32.mxu0 0.0
    %3601 = vmatmul.mubr.f32.gmra.mrb[0].mxu0 %v456
    %v3602 = vpop.f32.mrb[0].mxu0
    %v3603 = vadd.f32 %v3410, %v3602
    %v3604 = vpop.f32.mrb[0].mxu0
    %3605 = vmatprep.mubr.f32.mxu0 0.0
    %3606 = vmatmul.mubr.f32.gmra.mrb[0].mxu0 %v459
    %v3607 = vpop.f32.mrb[0].mxu0
    %v3608 = vadd.f32 %v3415, %v3607
    %v3609 = vpop.f32.mrb[0].mxu0
    %3610 = vmatprep.mubr.f32.mxu0 0.0
    %3611 = vmatmul.mubr.f32.gmra.mrb[0].mxu0 %v462
    %v3612 = vpop.f32.mrb[0].mxu0
    %v3613 = vadd.f32 %v3420, %v3612
    %v3614 = vpop.f32.mrb[0].mxu0
    %3615 = vmatprep.mubr.f32.mxu0 0.0
    %3616 = vmatmul.mubr.f32.gmra.mrb[0].mxu0 %v465
    %v3617 = vpop.f32.mrb[0].mxu0
    %v3618 = vadd.f32 %v3425, %v3617
    %v3619 = vpop.f32.mrb[0].mxu0
    %3620 = vmatprep.mubr.f32.mxu0 0.0
    %3621 = vmatmul.mubr.f32.gmra.mrb[0].mxu0 %v468
    %v3622 = vpop.f32.mrb[0].mxu0
    %v3623 = vadd.f32 %v3430, %v3622
    %v3624 = vpop.f32.mrb[0].mxu0
    %3625 = vmatprep.mubr.f32.mxu0 0.0
    %3626 = vmatmul.mubr.f32.gmra.mrb[0].mxu0 %v471
    %v3627 = vpop.f32.mrb[0].mxu0
    %v3628 = vadd.f32 %v3435, %v3627
    %v3629 = vpop.f32.mrb[0].mxu0
    %3630 = vmatprep.mubr.f32.mxu0 0.0
    %3631 = vmatmul.mubr.f32.gmra.mrb[0].mxu0 %v474
    %v3632 = vpop.f32.mrb[0].mxu0
    %v3633 = vadd.f32 %v3440, %v3632
    %v3634 = vpop.f32.mrb[0].mxu0
    %3635 = vmatprep.mubr.f32.mxu0 0.0
    %3636 = vmatmul.mubr.f32.gmra.mrb[0].mxu0 %v477
    %v3637 = vpop.f32.mrb[0].mxu0
    %v3638 = vadd.f32 %v3445, %v3637
    %v3639 = vpop.f32.mrb[0].mxu0
    %3640 = vmatprep.mubr.f32.mxu0 0.0
    %3641 = vmatmul.mubr.f32.gmra.mrb[0].mxu0 %v480
    %v3642 = vpop.f32.mrb[0].mxu0
    %v3643 = vadd.f32 %v3450, %v3642
    %v3644 = vpop.f32.mrb[0].mxu0
    %3645 = vmatprep.mubr.f32.mxu0 0.0
    %3646 = vmatmul.mubr.f32.gmra.mrb[0].mxu0 %v483
    %v3647 = vpop.f32.mrb[0].mxu0
    %v3648 = vadd.f32 %v3455, %v3647
    %v3649 = vpop.f32.mrb[0].mxu0
    %3650 = vmatprep.mubr.f32.mxu0 0.0
    %3651 = vmatmul.mubr.f32.gmra.mrb[0].mxu0 %v486
    %v3652 = vpop.f32.mrb[0].mxu0
    %v3653 = vadd.f32 %v3460, %v3652
    %v3654 = vpop.f32.mrb[0].mxu0
    %3655 = vmatprep.mubr.f32.mxu0 0.0
    %3656 = vmatmul.mubr.f32.gmra.mrb[0].mxu0 %v489
    %v3657 = vpop.f32.mrb[0].mxu0
    %v3658 = vadd.f32 %v3465, %v3657
    %v3659 = vpop.f32.mrb[0].mxu0
    %3660 = vmatprep.mubr.f32.mxu0 0.0
    %3661 = vmatmul.mubr.f32.gmra.mrb[0].mxu0 %v492
    %v3662 = vpop.f32.mrb[0].mxu0
    %v3663 = vadd.f32 %v3470, %v3662
    %v3664 = vpop.f32.mrb[0].mxu0
    %3665 = vmatprep.mubr.f32.mxu0 0.0
    %3666 = vmatmul.mubr.f32.gmra.mrb[0].mxu0 %v495
    %v3667 = vpop.f32.mrb[0].mxu0
    %v3668 = vadd.f32 %v3475, %v3667
    %v3669 = vpop.f32.mrb[0].mxu0
    %3670 = vmatprep.mubr.f32.mxu0 0.0
    %3671 = vmatmul.mubr.f32.gmra.mrb[0].mxu0 %v498
    %v3672 = vpop.f32.mrb[0].mxu0
    %v3673 = vadd.f32 %v3480, %v3672
    %v3674 = vpop.f32.mrb[0].mxu0
    %3675 = vdwg.mxu0
    %3676 = vmatprep.subr.mxu0 0.0
    %3677 = vmatpush1.msra.mxu0 %v3238
    %3678 = vmatprep.subr.mxu0 0.0
    %3679 = vmatpush1.msra.mxu0 %v3239
    %3680 = vmatprep.subr.mxu0 0.0
    %3681 = vmatpush1.msra.mxu0 %v3240
    %3682 = vmatprep.subr.mxu0 0.0
    %3683 = vmatpush1.msra.mxu0 %v3241
    %3684 = vmatprep.subr.mxu0 0.0
    %3685 = vmatpush1.msra.mxu0 0.0
    %3686 = vmatprep.subr.mxu0 0.0
    %3687 = vmatpush1.msra.mxu0 0.0
    %3688 = vmatprep.subr.mxu0 0.0
    %3689 = vmatpush1.msra.mxu0 0.0
    %3690 = vmatprep.subr.mxu0 0.0
    %3691 = vmatpush1.msra.mxu0 0.0
    %3692 = vmatprep.subr.mxu0 0.0
    %3693 = vmatpush1.msra.mxu0 0.0
    %3694 = vmatprep.subr.mxu0 0.0
    %3695 = vmatpush1.msra.mxu0 0.0
    %3696 = vmatprep.subr.mxu0 0.0
    %3697 = vmatpush1.msra.mxu0 0.0
    %3698 = vmatprep.subr.mxu0 0.0
    %3699 = vmatpush1.msra.mxu0 0.0
    %3700 = vmatprep.subr.mxu0 0.0
    %3701 = vmatpush1.msra.mxu0 0.0
    %3702 = vmatprep.subr.mxu0 0.0
    %3703 = vmatpush1.msra.mxu0 0.0
    %3704 = vmatprep.subr.mxu0 0.0
    %3705 = vmatpush1.msra.mxu0 0.0
    %3706 = vmatprep.subr.mxu0 0.0
    %3707 = vmatpush1.msra.mxu0 0.0
    %3708 = vmatprep.subr.mxu0 0.0
    %3709 = vmatpush1.msra.mxu0 0.0
    %3710 = vmatprep.subr.mxu0 0.0
    %3711 = vmatpush1.msra.mxu0 0.0
    %3712 = vmatprep.subr.mxu0 0.0
    %3713 = vmatpush1.msra.mxu0 0.0
    %3714 = vmatprep.subr.mxu0 0.0
    %3715 = vmatpush1.msra.mxu0 0.0
    %3716 = vmatprep.subr.mxu0 0.0
    %3717 = vmatpush1.msra.mxu0 0.0
    %3718 = vmatprep.subr.mxu0 0.0
    %3719 = vmatpush1.msra.mxu0 0.0
    %3720 = vmatprep.subr.mxu0 0.0
    %3721 = vmatpush1.msra.mxu0 0.0
    %3722 = vmatprep.subr.mxu0 0.0
    %3723 = vmatpush1.msra.mxu0 0.0
    %3724 = vmatprep.subr.mxu0 0.0
    %3725 = vmatpush1.msra.mxu0 0.0
    %3726 = vmatprep.subr.mxu0 0.0
    %3727 = vmatpush1.msra.mxu0 0.0
    %3728 = vmatprep.subr.mxu0 0.0
    %3729 = vmatpush1.msra.mxu0 0.0
    %3730 = vmatprep.subr.mxu0 0.0
    %3731 = vmatpush1.msra.mxu0 0.0
    %3732 = vmatprep.subr.mxu0 0.0
    %3733 = vmatpush1.msra.mxu0 0.0
    %3734 = vmatprep.subr.mxu0 0.0
    %3735 = vmatpush1.msra.mxu0 0.0
    %3736 = vmatprep.subr.mxu0 0.0
    %3737 = vmatpush1.msra.mxu0 0.0
    %3738 = vmatprep.subr.mxu0 0.0
    %3739 = vmatpush1.msra.mxu0 0.0
    %3740 = vmatprep.mubr.f32.mxu0 0.0
    %3741 = vmatmul.mubr.f32.gmra.mrb[0].mxu0 %v695
    %v3742 = vpop.f32.mrb[0].mxu0
    %v3743 = vadd.f32 0.0, %v3742
    %v3744 = vpop.f32.mrb[0].mxu0
    %3745 = vmatprep.mubr.f32.mxu0 0.0
    %3746 = vmatmul.mubr.f32.gmra.mrb[0].mxu0 %v698
    %v3747 = vpop.f32.mrb[0].mxu0
    %v3748 = vadd.f32 0.0, %v3747
    %v3749 = vpop.f32.mrb[0].mxu0
    %3750 = vmatprep.mubr.f32.mxu0 0.0
    %3751 = vmatmul.mubr.f32.gmra.mrb[0].mxu0 %v701
    %v3752 = vpop.f32.mrb[0].mxu0
    %v3753 = vadd.f32 0.0, %v3752
    %v3754 = vpop.f32.mrb[0].mxu0
    %3755 = vmatprep.mubr.f32.mxu0 0.0
    %3756 = vmatmul.mubr.f32.gmra.mrb[0].mxu0 %v704
    %v3757 = vpop.f32.mrb[0].mxu0
    %v3758 = vadd.f32 0.0, %v3757
    %v3759 = vpop.f32.mrb[0].mxu0
    %3760 = vmatprep.mubr.f32.mxu0 0.0
    %3761 = vmatmul.mubr.f32.gmra.mrb[0].mxu0 %v707
    %v3762 = vpop.f32.mrb[0].mxu0
    %v3763 = vadd.f32 0.0, %v3762
    %v3764 = vpop.f32.mrb[0].mxu0
    %3765 = vmatprep.mubr.f32.mxu0 0.0
    %3766 = vmatmul.mubr.f32.gmra.mrb[0].mxu0 %v710
    %v3767 = vpop.f32.mrb[0].mxu0
    %v3768 = vadd.f32 0.0, %v3767
    %v3769 = vpop.f32.mrb[0].mxu0
    %3770 = vmatprep.mubr.f32.mxu0 0.0
    %3771 = vmatmul.mubr.f32.gmra.mrb[0].mxu0 %v713
    %v3772 = vpop.f32.mrb[0].mxu0
    %v3773 = vadd.f32 0.0, %v3772
    %v3774 = vpop.f32.mrb[0].mxu0
    %3775 = vmatprep.mubr.f32.mxu0 0.0
    %3776 = vmatmul.mubr.f32.gmra.mrb[0].mxu0 %v716
    %v3777 = vpop.f32.mrb[0].mxu0
    %v3778 = vadd.f32 0.0, %v3777
    %v3779 = vpop.f32.mrb[0].mxu0
    %3780 = vmatprep.mubr.f32.mxu0 0.0
    %3781 = vmatmul.mubr.f32.gmra.mrb[0].mxu0 %v719
    %v3782 = vpop.f32.mrb[0].mxu0
    %v3783 = vadd.f32 0.0, %v3782
    %v3784 = vpop.f32.mrb[0].mxu0
    %3785 = vmatprep.mubr.f32.mxu0 0.0
    %3786 = vmatmul.mubr.f32.gmra.mrb[0].mxu0 %v722
    %v3787 = vpop.f32.mrb[0].mxu0
    %v3788 = vadd.f32 0.0, %v3787
    %v3789 = vpop.f32.mrb[0].mxu0
    %3790 = vmatprep.mubr.f32.mxu0 0.0
    %3791 = vmatmul.mubr.f32.gmra.mrb[0].mxu0 %v725
    %v3792 = vpop.f32.mrb[0].mxu0
    %v3793 = vadd.f32 0.0, %v3792
    %v3794 = vpop.f32.mrb[0].mxu0
    %3795 = vmatprep.mubr.f32.mxu0 0.0
    %3796 = vmatmul.mubr.f32.gmra.mrb[0].mxu0 %v728
    %v3797 = vpop.f32.mrb[0].mxu0
    %v3798 = vadd.f32 0.0, %v3797
    %v3799 = vpop.f32.mrb[0].mxu0
    %3800 = vmatprep.mubr.f32.mxu0 0.0
    %3801 = vmatmul.mubr.f32.gmra.mrb[0].mxu0 %v731
    %v3802 = vpop.f32.mrb[0].mxu0
    %v3803 = vadd.f32 0.0, %v3802
    %v3804 = vpop.f32.mrb[0].mxu0
    %3805 = vmatprep.mubr.f32.mxu0 0.0
    %3806 = vmatmul.mubr.f32.gmra.mrb[0].mxu0 %v734
    %v3807 = vpop.f32.mrb[0].mxu0
    %v3808 = vadd.f32 0.0, %v3807
    %v3809 = vpop.f32.mrb[0].mxu0
    %3810 = vmatprep.mubr.f32.mxu0 0.0
    %3811 = vmatmul.mubr.f32.gmra.mrb[0].mxu0 %v737
    %v3812 = vpop.f32.mrb[0].mxu0
    %v3813 = vadd.f32 0.0, %v3812
    %v3814 = vpop.f32.mrb[0].mxu0
    %3815 = vmatprep.mubr.f32.mxu0 0.0
    %3816 = vmatmul.mubr.f32.gmra.mrb[0].mxu0 %v740
    %v3817 = vpop.f32.mrb[0].mxu0
    %v3818 = vadd.f32 0.0, %v3817
    %v3819 = vpop.f32.mrb[0].mxu0
    %3820 = vdwg.mxu0
    %v3821 = vadd.f32 %v3598, %v3743
    %v3822 = vadd.f32 %v3603, %v3748
    %v3823 = vadd.f32 %v3608, %v3753
    %v3824 = vadd.f32 %v3613, %v3758
    %v3825 = vadd.f32 %v3618, %v3763
    %v3826 = vadd.f32 %v3623, %v3768
    %v3827 = vadd.f32 %v3628, %v3773
    %v3828 = vadd.f32 %v3633, %v3778
    %v3829 = vadd.f32 %v3638, %v3783
    %v3830 = vadd.f32 %v3643, %v3788
    %v3831 = vadd.f32 %v3648, %v3793
    %v3832 = vadd.f32 %v3653, %v3798
    %v3833 = vadd.f32 %v3658, %v3803
    %v3834 = vadd.f32 %v3663, %v3808
    %v3835 = vadd.f32 %v3668, %v3813
    %v3836 = vadd.f32 %v3673, %v3818
    %v3837 = vadd.f32 %v3821, %v91
    %v3838 = vadd.f32 %v3822, %v96
    %v3839 = vadd.f32 %v3823, %v101
    %v3840 = vadd.f32 %v3824, %v106
    %v3841 = vadd.f32 %v3825, %v111
    %v3842 = vadd.f32 %v3826, %v116
    %v3843 = vadd.f32 %v3827, %v121
    %v3844 = vadd.f32 %v3828, %v126
    %v3845 = vadd.f32 %v3829, %v131
    %v3846 = vadd.f32 %v3830, %v136
    %v3847 = vadd.f32 %v3831, %v141
    %v3848 = vadd.f32 %v3832, %v146
    %v3849 = vadd.f32 %v3833, %v151
    %v3850 = vadd.f32 %v3834, %v156
    %v3851 = vadd.f32 %v3835, %v161
    %v3852 = vadd.f32 %v3836, %v166
    %v3853 = vxor.u32 %v3837, 2147483648
    %v3854 = vxor.u32 %v3838, 2147483648
    %v3855 = vxor.u32 %v3839, 2147483648
    %v3856 = vxor.u32 %v3840, 2147483648
    %v3857 = vmul.f32 %v3853, 1.442695
    %v3858 = vpow.pop %v3857
    %v3859 = vmul.f32 %v3854, 1.442695
    %v3860 = vpow.pop %v3859
    %v3861 = vmul.f32 %v3855, 1.442695
    %v3862 = vpow.pop %v3861
    %v3863 = vmul.f32 %v3856, 1.442695
    %v3864 = vpow.pop %v3863
    %v3865 = vadd.f32 %v3858, 1.0
    %v3866 = vadd.f32 %v3860, 1.0
    %v3867 = vadd.f32 %v3862, 1.0
    %v3868 = vadd.f32 %v3864, 1.0
    %v3869 = vrcp.pop %v3865
    %v3870 = vmul.f32 1.0, %v3869
    %v3871 = vrcp.pop %v3866
    %v3872 = vmul.f32 1.0, %v3871
    %v3873 = vrcp.pop %v3867
    %v3874 = vmul.f32 1.0, %v3873
    %v3875 = vrcp.pop %v3868
    %v3876 = vmul.f32 1.0, %v3875
    %v3877 = vxor.u32 %v3841, 2147483648
    %v3878 = vxor.u32 %v3842, 2147483648
    %v3879 = vxor.u32 %v3843, 2147483648
    %v3880 = vxor.u32 %v3844, 2147483648
    %v3881 = vmul.f32 %v3877, 1.442695
    %v3882 = vpow.pop %v3881
    %v3883 = vmul.f32 %v3878, 1.442695
    %v3884 = vpow.pop %v3883
    %v3885 = vmul.f32 %v3879, 1.442695
    %v3886 = vpow.pop %v3885
    %v3887 = vmul.f32 %v3880, 1.442695
    %v3888 = vpow.pop %v3887
    %v3889 = vadd.f32 %v3882, 1.0
    %v3890 = vadd.f32 %v3884, 1.0
    %v3891 = vadd.f32 %v3886, 1.0
    %v3892 = vadd.f32 %v3888, 1.0
    %v3893 = vrcp.pop %v3889
    %v3894 = vmul.f32 1.0, %v3893
    %v3895 = vrcp.pop %v3890
    %v3896 = vmul.f32 1.0, %v3895
    %v3897 = vrcp.pop %v3891
    %v3898 = vmul.f32 1.0, %v3897
    %v3899 = vrcp.pop %v3892
    %v3900 = vmul.f32 1.0, %v3899
    %v3901 = vtanh.pop %v3845
    %v3902 = vtanh.pop %v3846
    %v3903 = vtanh.pop %v3847
    %v3904 = vtanh.pop %v3848
    %v3905 = vxor.u32 %v3849, 2147483648
    %v3906 = vxor.u32 %v3850, 2147483648
    %v3907 = vxor.u32 %v3851, 2147483648
    %v3908 = vxor.u32 %v3852, 2147483648
    %v3909 = vmul.f32 %v3905, 1.442695
    %v3910 = vpow.pop %v3909
    %v3911 = vmul.f32 %v3906, 1.442695
    %v3912 = vpow.pop %v3911
    %v3913 = vmul.f32 %v3907, 1.442695
    %v3914 = vpow.pop %v3913
    %v3915 = vmul.f32 %v3908, 1.442695
    %v3916 = vpow.pop %v3915
    %v3917 = vadd.f32 %v3910, 1.0
    %v3918 = vadd.f32 %v3912, 1.0
    %v3919 = vadd.f32 %v3914, 1.0
    %v3920 = vadd.f32 %v3916, 1.0
    %v3921 = vrcp.pop %v3917
    %v3922 = vmul.f32 1.0, %v3921
    %v3923 = vrcp.pop %v3918
    %v3924 = vmul.f32 1.0, %v3923
    %v3925 = vrcp.pop %v3919
    %v3926 = vmul.f32 1.0, %v3925
    %v3927 = vrcp.pop %v3920
    %v3928 = vmul.f32 1.0, %v3927
    %v3929 = vmul.f32 %v3894, %v3242
    %v3930 = vmul.f32 %v3896, %v3243
    %v3931 = vmul.f32 %v3898, %v3244
    %v3932 = vmul.f32 %v3900, %v3245
    %v3933 = vmul.f32 %v3870, %v3901
    %v3934 = vmul.f32 %v3872, %v3902
    %v3935 = vmul.f32 %v3874, %v3903
    %v3936 = vmul.f32 %v3876, %v3904
    %v3937 = vadd.f32 %v3929, %v3933
    %v3938 = vadd.f32 %v3930, %v3934
    %v3939 = vadd.f32 %v3931, %v3935
    %v3940 = vadd.f32 %v3932, %v3936
    %v3941 = vtanh.pop %v3937
    %v3942 = vtanh.pop %v3938
    %v3943 = vtanh.pop %v3939
    %v3944 = vtanh.pop %v3940
    %v3945 = vmul.f32 %v3922, %v3941
    %v3946 = vmul.f32 %v3924, %v3942
    %v3947 = vmul.f32 %v3926, %v3943
    %v3948 = vmul.f32 %v3928, %v3944
    %s3949 = scalar_lea.vmem %s1, 4
    %v3950 = vld [vmem:[%s3949] sm:$0x1]
    %s3951 = scalar_lea.vmem %s1, 5
    %v3952 = vld [vmem:[%s3951] sm:$0x1]
    %v3954 = vlaneseq
    %v3955 = vshrl.u32 %v3954, 7
    %v3956 = vsub.s32 0, %v3955
    %v3957 = vrot.slane %v3950, %v3956
    %v3960 = vlaneseq
    %v3961 = vshrl.u32 %v3960, 7
    %v3962 = vsub.s32 0, %v3961
    %v3963 = vrot.slane %v3952, %v3962
    %v3965 = vsel %vm173, %v3957, %v3963
    %v3966 = vsel %vm174, %v3957, %v3963
    %v3967 = vsel %vm175, %v3957, %v3963
    %v3968 = vsel %vm176, %v3957, %v3963
    %vm3969 = vcmp.gt.f32.partialorder %v3965, 0.5
    %vm3970 = vcmp.gt.f32.partialorder %v3966, 0.5
    %vm3971 = vcmp.gt.f32.partialorder %v3967, 0.5
    %vm3972 = vcmp.gt.f32.partialorder %v3968, 0.5
    %v3973 = vsel %vm3969, %v3945, %v3238
    %v3974 = vsel %vm3970, %v3946, %v3239
    %v3975 = vsel %vm3971, %v3947, %v3240
    %v3976 = vsel %vm3972, %v3948, %v3241
    %v3977 = vsel %vm3969, %v3937, %v3242
    %v3978 = vsel %vm3970, %v3938, %v3243
    %v3979 = vsel %vm3971, %v3939, %v3244
    %v3980 = vsel %vm3972, %v3940, %v3245
    %v3981 = vsel %vm3969, %v3945, 0.0
    %v3982 = vsel %vm3970, %v3946, 0.0
    %v3983 = vsel %vm3971, %v3947, 0.0
    %v3984 = vsel %vm3972, %v3948, 0.0
    %s3985 = scalar_lea.vmem [#allocation2], 128
    %3986 = vst [vmem:[%s3985] sm:$0xff] %v3981
    %3987 = vst [vmem:[%s3985 + $0x8] sm:$0xff] %v3982
    %s3988 = scalar_lea.vmem [#allocation2], 160
    %3989 = vst [vmem:[%s3988 + $0x10] sm:$0xff] %v3983
    %3990 = vst [vmem:[%s3988 + $0x18] sm:$0xff] %v3984
    %v3991 = vld [vmem:[%s3273] sm:$0xff]
    %v3992 = vld [vmem:[%s3273 + $0x8] sm:$0xff]
    %v3993 = vld [vmem:[%s3273 + $0x10] sm:$0xff]
    %v3994 = vld [vmem:[%s3273 + $0x18] sm:$0xff]
    %v3995 = vld [vmem:[%s3273 + $0x20] sm:$0xff]
    %v3996 = vld [vmem:[%s3273 + $0x28] sm:$0xff]
    %v3997 = vld [vmem:[%s3273 + $0x30] sm:$0xff]
    %v3998 = vld [vmem:[%s3273 + $0x38] sm:$0xff]
    %v3999 = vld [vmem:[%s3273 + $0x40] sm:$0xff]
    %v4000 = vld [vmem:[%s3273 + $0x48] sm:$0xff]
    %v4001 = vld [vmem:[%s3273 + $0x50] sm:$0xff]
    %v4002 = vld [vmem:[%s3273 + $0x58] sm:$0xff]
    %v4003 = vld [vmem:[%s3273 + $0x60] sm:$0xff]
    %v4004 = vld [vmem:[%s3273 + $0x68] sm:$0xff]
    %v4005 = vld [vmem:[%s3273 + $0x70] sm:$0xff]
    %v4006 = vld [vmem:[%s3273 + $0x78] sm:$0xff]
    %v4007 = vld [vmem:[%s3256] sm:$0xff]
    %v4008 = vld [vmem:[%s3256 + $0x8] sm:$0xff]
    %v4009 = vld [vmem:[%s3256 + $0x10] sm:$0xff]
    %v4010 = vld [vmem:[%s3256 + $0x18] sm:$0xff]
    %v4011 = vld [vmem:[%s3256 + $0x20] sm:$0xff]
    %v4012 = vld [vmem:[%s3256 + $0x28] sm:$0xff]
    %v4013 = vld [vmem:[%s3256 + $0x30] sm:$0xff]
    %v4014 = vld [vmem:[%s3256 + $0x38] sm:$0xff]
    %v4015 = vld [vmem:[%s3256 + $0x40] sm:$0xff]
    %v4016 = vld [vmem:[%s3256 + $0x48] sm:$0xff]
    %v4017 = vld [vmem:[%s3256 + $0x50] sm:$0xff]
    %v4018 = vld [vmem:[%s3256 + $0x58] sm:$0xff]
    %v4019 = vld [vmem:[%s3256 + $0x60] sm:$0xff]
    %v4020 = vld [vmem:[%s3256 + $0x68] sm:$0xff]
    %v4021 = vld [vmem:[%s3256 + $0x70] sm:$0xff]
    %v4022 = vld [vmem:[%s3256 + $0x78] sm:$0xff]
    %v4024 = vsel %vm210, %v4007, 0
    %v4027 = vsel %vm210, %v4008, 0
    %v4030 = vsel %vm210, %v4009, 0
    %v4033 = vsel %vm210, %v4010, 0
    %v4036 = vsel %vm210, %v4011, 0
    %v4039 = vsel %vm210, %v4012, 0
    %v4042 = vsel %vm210, %v4013, 0
    %v4045 = vsel %vm210, %v4014, 0
    %v4048 = vsel %vm210, %v4015, 0
    %v4051 = vsel %vm210, %v4016, 0
    %v4054 = vsel %vm210, %v4017, 0
    %v4057 = vsel %vm210, %v4018, 0
    %v4060 = vsel %vm210, %v4019, 0
    %v4063 = vsel %vm210, %v4020, 0
    %v4066 = vsel %vm210, %v4021, 0
    %v4069 = vsel %vm210, %v4022, 0
    %4071 = vmatprep.subr.mxu0 0.0
    %4072 = vmatpush1.xpose.msra.mxu0 %v4024
    %4073 = vmatprep.subr.mxu0 0.0
    %4074 = vmatpush1.xpose.msra.mxu0 %v4027
    %4075 = vmatprep.subr.mxu0 0.0
    %4076 = vmatpush1.xpose.msra.mxu0 %v4030
    %4077 = vmatprep.subr.mxu0 0.0
    %4078 = vmatpush1.xpose.msra.mxu0 %v4033
    %4079 = vmatprep.subr.mxu0 0.0
    %4080 = vmatpush1.xpose.msra.mxu0 %v4036
    %4081 = vmatprep.subr.mxu0 0.0
    %4082 = vmatpush1.xpose.msra.mxu0 %v4039
    %4083 = vmatprep.subr.mxu0 0.0
    %4084 = vmatpush1.xpose.msra.mxu0 %v4042
    %4085 = vmatprep.subr.mxu0 0.0
    %4086 = vmatpush1.xpose.msra.mxu0 %v4045
    %4087 = vmatprep.subr.mxu0 0.0
    %4088 = vmatpush1.xpose.msra.mxu0 %v4048
    %4089 = vmatprep.subr.mxu0 0.0
    %4090 = vmatpush1.xpose.msra.mxu0 %v4051
    %4091 = vmatprep.subr.mxu0 0.0
    %4092 = vmatpush1.xpose.msra.mxu0 %v4054
    %4093 = vmatprep.subr.mxu0 0.0
    %4094 = vmatpush1.xpose.msra.mxu0 %v4057
    %4095 = vmatprep.subr.mxu0 0.0
    %4096 = vmatpush1.xpose.msra.mxu0 %v4060
    %4097 = vmatprep.subr.mxu0 0.0
    %4098 = vmatpush1.xpose.msra.mxu0 %v4063
    %4099 = vmatprep.subr.mxu0 0.0
    %4100 = vmatpush1.xpose.msra.mxu0 %v4066
    %4101 = vmatprep.subr.mxu0 0.0
    %4102 = vmatpush1.xpose.msra.mxu0 %v4069
    %4103 = vmatprep.subr.mxu0 0.0
    %4104 = vmatpush1.xpose.msra.mxu0 0.0
    %4105 = vmatprep.subr.mxu0 0.0
    %4106 = vmatpush1.xpose.msra.mxu0 0.0
    %4107 = vmatprep.subr.mxu0 0.0
    %4108 = vmatpush1.xpose.msra.mxu0 0.0
    %4109 = vmatprep.subr.mxu0 0.0
    %4110 = vmatpush1.xpose.msra.mxu0 0.0
    %4111 = vmatprep.subr.mxu0 0.0
    %4112 = vmatpush1.xpose.msra.mxu0 0.0
    %4113 = vmatprep.subr.mxu0 0.0
    %4114 = vmatpush1.xpose.msra.mxu0 0.0
    %4115 = vmatprep.subr.mxu0 0.0
    %4116 = vmatpush1.xpose.msra.mxu0 0.0
    %4117 = vmatprep.subr.mxu0 0.0
    %4118 = vmatpush1.xpose.msra.mxu0 0.0
    %4119 = vmatprep.subr.mxu0 0.0
    %4120 = vmatpush1.xpose.msra.mxu0 0.0
    %4121 = vmatprep.subr.mxu0 0.0
    %4122 = vmatpush1.xpose.msra.mxu0 0.0
    %4123 = vmatprep.subr.mxu0 0.0
    %4124 = vmatpush1.xpose.msra.mxu0 0.0
    %4125 = vmatprep.subr.mxu0 0.0
    %4126 = vmatpush1.xpose.msra.mxu0 0.0
    %4127 = vmatprep.subr.mxu0 0.0
    %4128 = vmatpush1.xpose.msra.mxu0 0.0
    %4129 = vmatprep.subr.mxu0 0.0
    %4130 = vmatpush1.xpose.msra.mxu0 0.0
    %4131 = vmatprep.subr.mxu0 0.0
    %4132 = vmatpush1.xpose.msra.mxu0 0.0
    %4133 = vmatprep.subr.mxu0 0.0
    %4134 = vmatpush1.xpose.msra.mxu0 0.0
    %4135 = vmatprep.mubr.f32.mxu0 0.0
    %4136 = vmatmul.mubr.f32.gmra.mrb[0].mxu0 %v212
    %v4137 = vpop.f32.mrb[0].mxu0
    %v4138 = vadd.f32 0.0, %v4137
    %v4139 = vpop.f32.mrb[0].mxu0
    %4140 = vmatprep.mubr.f32.mxu0 0.0
    %4141 = vmatmul.mubr.f32.gmra.mrb[0].mxu0 %v215
    %v4142 = vpop.f32.mrb[0].mxu0
    %v4143 = vadd.f32 0.0, %v4142
    %v4144 = vpop.f32.mrb[0].mxu0
    %4145 = vmatprep.mubr.f32.mxu0 0.0
    %4146 = vmatmul.mubr.f32.gmra.mrb[0].mxu0 %v218
    %v4147 = vpop.f32.mrb[0].mxu0
    %v4148 = vadd.f32 0.0, %v4147
    %v4149 = vpop.f32.mrb[0].mxu0
    %4150 = vmatprep.mubr.f32.mxu0 0.0
    %4151 = vmatmul.mubr.f32.gmra.mrb[0].mxu0 %v221
    %v4152 = vpop.f32.mrb[0].mxu0
    %v4153 = vadd.f32 0.0, %v4152
    %v4154 = vpop.f32.mrb[0].mxu0
    %4155 = vmatprep.mubr.f32.mxu0 0.0
    %4156 = vmatmul.mubr.f32.gmra.mrb[0].mxu0 %v224
    %v4157 = vpop.f32.mrb[0].mxu0
    %v4158 = vadd.f32 0.0, %v4157
    %v4159 = vpop.f32.mrb[0].mxu0
    %4160 = vmatprep.mubr.f32.mxu0 0.0
    %4161 = vmatmul.mubr.f32.gmra.mrb[0].mxu0 %v227
    %v4162 = vpop.f32.mrb[0].mxu0
    %v4163 = vadd.f32 0.0, %v4162
    %v4164 = vpop.f32.mrb[0].mxu0
    %4165 = vmatprep.mubr.f32.mxu0 0.0
    %4166 = vmatmul.mubr.f32.gmra.mrb[0].mxu0 %v230
    %v4167 = vpop.f32.mrb[0].mxu0
    %v4168 = vadd.f32 0.0, %v4167
    %v4169 = vpop.f32.mrb[0].mxu0
    %4170 = vmatprep.mubr.f32.mxu0 0.0
    %4171 = vmatmul.mubr.f32.gmra.mrb[0].mxu0 %v233
    %v4172 = vpop.f32.mrb[0].mxu0
    %v4173 = vadd.f32 0.0, %v4172
    %v4174 = vpop.f32.mrb[0].mxu0
    %4175 = vmatprep.mubr.f32.mxu0 0.0
    %4176 = vmatmul.mubr.f32.gmra.mrb[0].mxu0 %v236
    %v4177 = vpop.f32.mrb[0].mxu0
    %v4178 = vadd.f32 0.0, %v4177
    %v4179 = vpop.f32.mrb[0].mxu0
    %4180 = vmatprep.mubr.f32.mxu0 0.0
    %4181 = vmatmul.mubr.f32.gmra.mrb[0].mxu0 %v239
    %v4182 = vpop.f32.mrb[0].mxu0
    %v4183 = vadd.f32 0.0, %v4182
    %v4184 = vpop.f32.mrb[0].mxu0
    %4185 = vmatprep.mubr.f32.mxu0 0.0
    %4186 = vmatmul.mubr.f32.gmra.mrb[0].mxu0 %v242
    %v4187 = vpop.f32.mrb[0].mxu0
    %v4188 = vadd.f32 0.0, %v4187
    %v4189 = vpop.f32.mrb[0].mxu0
    %4190 = vmatprep.mubr.f32.mxu0 0.0
    %4191 = vmatmul.mubr.f32.gmra.mrb[0].mxu0 %v245
    %v4192 = vpop.f32.mrb[0].mxu0
    %v4193 = vadd.f32 0.0, %v4192
    %v4194 = vpop.f32.mrb[0].mxu0
    %4195 = vmatprep.mubr.f32.mxu0 0.0
    %4196 = vmatmul.mubr.f32.gmra.mrb[0].mxu0 %v248
    %v4197 = vpop.f32.mrb[0].mxu0
    %v4198 = vadd.f32 0.0, %v4197
    %v4199 = vpop.f32.mrb[0].mxu0
    %4200 = vmatprep.mubr.f32.mxu0 0.0
    %4201 = vmatmul.mubr.f32.gmra.mrb[0].mxu0 %v251
    %v4202 = vpop.f32.mrb[0].mxu0
    %v4203 = vadd.f32 0.0, %v4202
    %v4204 = vpop.f32.mrb[0].mxu0
    %4205 = vmatprep.mubr.f32.mxu0 0.0
    %4206 = vmatmul.mubr.f32.gmra.mrb[0].mxu0 %v254
    %v4207 = vpop.f32.mrb[0].mxu0
    %v4208 = vadd.f32 0.0, %v4207
    %v4209 = vpop.f32.mrb[0].mxu0
    %4210 = vmatprep.mubr.f32.mxu0 0.0
    %4211 = vmatmul.mubr.f32.gmra.mrb[0].mxu0 %v257
    %v4212 = vpop.f32.mrb[0].mxu0
    %v4213 = vadd.f32 0.0, %v4212
    %v4214 = vpop.f32.mrb[0].mxu0
    %4215 = vdwg.mxu0
    %v4217 = vsel %vm210, %v3991, 0
    %v4220 = vsel %vm210, %v3992, 0
    %v4223 = vsel %vm210, %v3993, 0
    %v4226 = vsel %vm210, %v3994, 0
    %v4229 = vsel %vm210, %v3995, 0
    %v4232 = vsel %vm210, %v3996, 0
    %v4235 = vsel %vm210, %v3997, 0
    %v4238 = vsel %vm210, %v3998, 0
    %v4241 = vsel %vm210, %v3999, 0
    %v4244 = vsel %vm210, %v4000, 0
    %v4247 = vsel %vm210, %v4001, 0
    %v4250 = vsel %vm210, %v4002, 0
    %v4253 = vsel %vm210, %v4003, 0
    %v4256 = vsel %vm210, %v4004, 0
    %v4259 = vsel %vm210, %v4005, 0
    %v4262 = vsel %vm210, %v4006, 0
    %4264 = vmatprep.subr.mxu0 0.0
    %4265 = vmatpush1.xpose.msra.mxu0 %v4217
    %4266 = vmatprep.subr.mxu0 0.0
    %4267 = vmatpush1.xpose.msra.mxu0 %v4220
    %4268 = vmatprep.subr.mxu0 0.0
    %4269 = vmatpush1.xpose.msra.mxu0 %v4223
    %4270 = vmatprep.subr.mxu0 0.0
    %4271 = vmatpush1.xpose.msra.mxu0 %v4226
    %4272 = vmatprep.subr.mxu0 0.0
    %4273 = vmatpush1.xpose.msra.mxu0 %v4229
    %4274 = vmatprep.subr.mxu0 0.0
    %4275 = vmatpush1.xpose.msra.mxu0 %v4232
    %4276 = vmatprep.subr.mxu0 0.0
    %4277 = vmatpush1.xpose.msra.mxu0 %v4235
    %4278 = vmatprep.subr.mxu0 0.0
    %4279 = vmatpush1.xpose.msra.mxu0 %v4238
    %4280 = vmatprep.subr.mxu0 0.0
    %4281 = vmatpush1.xpose.msra.mxu0 %v4241
    %4282 = vmatprep.subr.mxu0 0.0
    %4283 = vmatpush1.xpose.msra.mxu0 %v4244
    %4284 = vmatprep.subr.mxu0 0.0
    %4285 = vmatpush1.xpose.msra.mxu0 %v4247
    %4286 = vmatprep.subr.mxu0 0.0
    %4287 = vmatpush1.xpose.msra.mxu0 %v4250
    %4288 = vmatprep.subr.mxu0 0.0
    %4289 = vmatpush1.xpose.msra.mxu0 %v4253
    %4290 = vmatprep.subr.mxu0 0.0
    %4291 = vmatpush1.xpose.msra.mxu0 %v4256
    %4292 = vmatprep.subr.mxu0 0.0
    %4293 = vmatpush1.xpose.msra.mxu0 %v4259
    %4294 = vmatprep.subr.mxu0 0.0
    %4295 = vmatpush1.xpose.msra.mxu0 %v4262
    %4296 = vmatprep.subr.mxu0 0.0
    %4297 = vmatpush1.xpose.msra.mxu0 0.0
    %4298 = vmatprep.subr.mxu0 0.0
    %4299 = vmatpush1.xpose.msra.mxu0 0.0
    %4300 = vmatprep.subr.mxu0 0.0
    %4301 = vmatpush1.xpose.msra.mxu0 0.0
    %4302 = vmatprep.subr.mxu0 0.0
    %4303 = vmatpush1.xpose.msra.mxu0 0.0
    %4304 = vmatprep.subr.mxu0 0.0
    %4305 = vmatpush1.xpose.msra.mxu0 0.0
    %4306 = vmatprep.subr.mxu0 0.0
    %4307 = vmatpush1.xpose.msra.mxu0 0.0
    %4308 = vmatprep.subr.mxu0 0.0
    %4309 = vmatpush1.xpose.msra.mxu0 0.0
    %4310 = vmatprep.subr.mxu0 0.0
    %4311 = vmatpush1.xpose.msra.mxu0 0.0
    %4312 = vmatprep.subr.mxu0 0.0
    %4313 = vmatpush1.xpose.msra.mxu0 0.0
    %4314 = vmatprep.subr.mxu0 0.0
    %4315 = vmatpush1.xpose.msra.mxu0 0.0
    %4316 = vmatprep.subr.mxu0 0.0
    %4317 = vmatpush1.xpose.msra.mxu0 0.0
    %4318 = vmatprep.subr.mxu0 0.0
    %4319 = vmatpush1.xpose.msra.mxu0 0.0
    %4320 = vmatprep.subr.mxu0 0.0
    %4321 = vmatpush1.xpose.msra.mxu0 0.0
    %4322 = vmatprep.subr.mxu0 0.0
    %4323 = vmatpush1.xpose.msra.mxu0 0.0
    %4324 = vmatprep.subr.mxu0 0.0
    %4325 = vmatpush1.xpose.msra.mxu0 0.0
    %4326 = vmatprep.subr.mxu0 0.0
    %4327 = vmatpush1.xpose.msra.mxu0 0.0
    %4328 = vmatprep.mubr.f32.mxu0 0.0
    %4329 = vmatmul.mubr.f32.gmra.mrb[0].mxu0 %v453
    %v4330 = vpop.f32.mrb[0].mxu0
    %v4331 = vadd.f32 %v4138, %v4330
    %v4332 = vpop.f32.mrb[0].mxu0
    %4333 = vmatprep.mubr.f32.mxu0 0.0
    %4334 = vmatmul.mubr.f32.gmra.mrb[0].mxu0 %v456
    %v4335 = vpop.f32.mrb[0].mxu0
    %v4336 = vadd.f32 %v4143, %v4335
    %v4337 = vpop.f32.mrb[0].mxu0
    %4338 = vmatprep.mubr.f32.mxu0 0.0
    %4339 = vmatmul.mubr.f32.gmra.mrb[0].mxu0 %v459
    %v4340 = vpop.f32.mrb[0].mxu0
    %v4341 = vadd.f32 %v4148, %v4340
    %v4342 = vpop.f32.mrb[0].mxu0
    %4343 = vmatprep.mubr.f32.mxu0 0.0
    %4344 = vmatmul.mubr.f32.gmra.mrb[0].mxu0 %v462
    %v4345 = vpop.f32.mrb[0].mxu0
    %v4346 = vadd.f32 %v4153, %v4345
    %v4347 = vpop.f32.mrb[0].mxu0
    %4348 = vmatprep.mubr.f32.mxu0 0.0
    %4349 = vmatmul.mubr.f32.gmra.mrb[0].mxu0 %v465
    %v4350 = vpop.f32.mrb[0].mxu0
    %v4351 = vadd.f32 %v4158, %v4350
    %v4352 = vpop.f32.mrb[0].mxu0
    %4353 = vmatprep.mubr.f32.mxu0 0.0
    %4354 = vmatmul.mubr.f32.gmra.mrb[0].mxu0 %v468
    %v4355 = vpop.f32.mrb[0].mxu0
    %v4356 = vadd.f32 %v4163, %v4355
    %v4357 = vpop.f32.mrb[0].mxu0
    %4358 = vmatprep.mubr.f32.mxu0 0.0
    %4359 = vmatmul.mubr.f32.gmra.mrb[0].mxu0 %v471
    %v4360 = vpop.f32.mrb[0].mxu0
    %v4361 = vadd.f32 %v4168, %v4360
    %v4362 = vpop.f32.mrb[0].mxu0
    %4363 = vmatprep.mubr.f32.mxu0 0.0
    %4364 = vmatmul.mubr.f32.gmra.mrb[0].mxu0 %v474
    %v4365 = vpop.f32.mrb[0].mxu0
    %v4366 = vadd.f32 %v4173, %v4365
    %v4367 = vpop.f32.mrb[0].mxu0
    %4368 = vmatprep.mubr.f32.mxu0 0.0
    %4369 = vmatmul.mubr.f32.gmra.mrb[0].mxu0 %v477
    %v4370 = vpop.f32.mrb[0].mxu0
    %v4371 = vadd.f32 %v4178, %v4370
    %v4372 = vpop.f32.mrb[0].mxu0
    %4373 = vmatprep.mubr.f32.mxu0 0.0
    %4374 = vmatmul.mubr.f32.gmra.mrb[0].mxu0 %v480
    %v4375 = vpop.f32.mrb[0].mxu0
    %v4376 = vadd.f32 %v4183, %v4375
    %v4377 = vpop.f32.mrb[0].mxu0
    %4378 = vmatprep.mubr.f32.mxu0 0.0
    %4379 = vmatmul.mubr.f32.gmra.mrb[0].mxu0 %v483
    %v4380 = vpop.f32.mrb[0].mxu0
    %v4381 = vadd.f32 %v4188, %v4380
    %v4382 = vpop.f32.mrb[0].mxu0
    %4383 = vmatprep.mubr.f32.mxu0 0.0
    %4384 = vmatmul.mubr.f32.gmra.mrb[0].mxu0 %v486
    %v4385 = vpop.f32.mrb[0].mxu0
    %v4386 = vadd.f32 %v4193, %v4385
    %v4387 = vpop.f32.mrb[0].mxu0
    %4388 = vmatprep.mubr.f32.mxu0 0.0
    %4389 = vmatmul.mubr.f32.gmra.mrb[0].mxu0 %v489
    %v4390 = vpop.f32.mrb[0].mxu0
    %v4391 = vadd.f32 %v4198, %v4390
    %v4392 = vpop.f32.mrb[0].mxu0
    %4393 = vmatprep.mubr.f32.mxu0 0.0
    %4394 = vmatmul.mubr.f32.gmra.mrb[0].mxu0 %v492
    %v4395 = vpop.f32.mrb[0].mxu0
    %v4396 = vadd.f32 %v4203, %v4395
    %v4397 = vpop.f32.mrb[0].mxu0
    %4398 = vmatprep.mubr.f32.mxu0 0.0
    %4399 = vmatmul.mubr.f32.gmra.mrb[0].mxu0 %v495
    %v4400 = vpop.f32.mrb[0].mxu0
    %v4401 = vadd.f32 %v4208, %v4400
    %v4402 = vpop.f32.mrb[0].mxu0
    %4403 = vmatprep.mubr.f32.mxu0 0.0
    %4404 = vmatmul.mubr.f32.gmra.mrb[0].mxu0 %v498
    %v4405 = vpop.f32.mrb[0].mxu0
    %v4406 = vadd.f32 %v4213, %v4405
    %v4407 = vpop.f32.mrb[0].mxu0
    %4408 = vdwg.mxu0
    %4409 = vmatprep.subr.mxu0 0.0
    %4410 = vmatpush1.msra.mxu0 %v3973
    %4411 = vmatprep.subr.mxu0 0.0
    %4412 = vmatpush1.msra.mxu0 %v3974
    %4413 = vmatprep.subr.mxu0 0.0
    %4414 = vmatpush1.msra.mxu0 %v3975
    %4415 = vmatprep.subr.mxu0 0.0
    %4416 = vmatpush1.msra.mxu0 %v3976
    %4417 = vmatprep.subr.mxu0 0.0
    %4418 = vmatpush1.msra.mxu0 0.0
    %4419 = vmatprep.subr.mxu0 0.0
    %4420 = vmatpush1.msra.mxu0 0.0
    %4421 = vmatprep.subr.mxu0 0.0
    %4422 = vmatpush1.msra.mxu0 0.0
    %4423 = vmatprep.subr.mxu0 0.0
    %4424 = vmatpush1.msra.mxu0 0.0
    %4425 = vmatprep.subr.mxu0 0.0
    %4426 = vmatpush1.msra.mxu0 0.0
    %4427 = vmatprep.subr.mxu0 0.0
    %4428 = vmatpush1.msra.mxu0 0.0
    %4429 = vmatprep.subr.mxu0 0.0
    %4430 = vmatpush1.msra.mxu0 0.0
    %4431 = vmatprep.subr.mxu0 0.0
    %4432 = vmatpush1.msra.mxu0 0.0
    %4433 = vmatprep.subr.mxu0 0.0
    %4434 = vmatpush1.msra.mxu0 0.0
    %4435 = vmatprep.subr.mxu0 0.0
    %4436 = vmatpush1.msra.mxu0 0.0
    %4437 = vmatprep.subr.mxu0 0.0
    %4438 = vmatpush1.msra.mxu0 0.0
    %4439 = vmatprep.subr.mxu0 0.0
    %4440 = vmatpush1.msra.mxu0 0.0
    %4441 = vmatprep.subr.mxu0 0.0
    %4442 = vmatpush1.msra.mxu0 0.0
    %4443 = vmatprep.subr.mxu0 0.0
    %4444 = vmatpush1.msra.mxu0 0.0
    %4445 = vmatprep.subr.mxu0 0.0
    %4446 = vmatpush1.msra.mxu0 0.0
    %4447 = vmatprep.subr.mxu0 0.0
    %4448 = vmatpush1.msra.mxu0 0.0
    %4449 = vmatprep.subr.mxu0 0.0
    %4450 = vmatpush1.msra.mxu0 0.0
    %4451 = vmatprep.subr.mxu0 0.0
    %4452 = vmatpush1.msra.mxu0 0.0
    %4453 = vmatprep.subr.mxu0 0.0
    %4454 = vmatpush1.msra.mxu0 0.0
    %4455 = vmatprep.subr.mxu0 0.0
    %4456 = vmatpush1.msra.mxu0 0.0
    %4457 = vmatprep.subr.mxu0 0.0
    %4458 = vmatpush1.msra.mxu0 0.0
    %4459 = vmatprep.subr.mxu0 0.0
    %4460 = vmatpush1.msra.mxu0 0.0
    %4461 = vmatprep.subr.mxu0 0.0
    %4462 = vmatpush1.msra.mxu0 0.0
    %4463 = vmatprep.subr.mxu0 0.0
    %4464 = vmatpush1.msra.mxu0 0.0
    %4465 = vmatprep.subr.mxu0 0.0
    %4466 = vmatpush1.msra.mxu0 0.0
    %4467 = vmatprep.subr.mxu0 0.0
    %4468 = vmatpush1.msra.mxu0 0.0
    %4469 = vmatprep.subr.mxu0 0.0
    %4470 = vmatpush1.msra.mxu0 0.0
    %4471 = vmatprep.subr.mxu0 0.0
    %4472 = vmatpush1.msra.mxu0 0.0
    %4473 = vmatprep.mubr.f32.mxu0 0.0
    %4474 = vmatmul.mubr.f32.gmra.mrb[0].mxu0 %v695
    %v4475 = vpop.f32.mrb[0].mxu0
    %v4476 = vadd.f32 0.0, %v4475
    %v4477 = vpop.f32.mrb[0].mxu0
    %4478 = vmatprep.mubr.f32.mxu0 0.0
    %4479 = vmatmul.mubr.f32.gmra.mrb[0].mxu0 %v698
    %v4480 = vpop.f32.mrb[0].mxu0
    %v4481 = vadd.f32 0.0, %v4480
    %v4482 = vpop.f32.mrb[0].mxu0
    %4483 = vmatprep.mubr.f32.mxu0 0.0
    %4484 = vmatmul.mubr.f32.gmra.mrb[0].mxu0 %v701
    %v4485 = vpop.f32.mrb[0].mxu0
    %v4486 = vadd.f32 0.0, %v4485
    %v4487 = vpop.f32.mrb[0].mxu0
    %4488 = vmatprep.mubr.f32.mxu0 0.0
    %4489 = vmatmul.mubr.f32.gmra.mrb[0].mxu0 %v704
    %v4490 = vpop.f32.mrb[0].mxu0
    %v4491 = vadd.f32 0.0, %v4490
    %v4492 = vpop.f32.mrb[0].mxu0
    %4493 = vmatprep.mubr.f32.mxu0 0.0
    %4494 = vmatmul.mubr.f32.gmra.mrb[0].mxu0 %v707
    %v4495 = vpop.f32.mrb[0].mxu0
    %v4496 = vadd.f32 0.0, %v4495
    %v4497 = vpop.f32.mrb[0].mxu0
    %4498 = vmatprep.mubr.f32.mxu0 0.0
    %4499 = vmatmul.mubr.f32.gmra.mrb[0].mxu0 %v710
    %v4500 = vpop.f32.mrb[0].mxu0
    %v4501 = vadd.f32 0.0, %v4500
    %v4502 = vpop.f32.mrb[0].mxu0
    %4503 = vmatprep.mubr.f32.mxu0 0.0
    %4504 = vmatmul.mubr.f32.gmra.mrb[0].mxu0 %v713
    %v4505 = vpop.f32.mrb[0].mxu0
    %v4506 = vadd.f32 0.0, %v4505
    %v4507 = vpop.f32.mrb[0].mxu0
    %4508 = vmatprep.mubr.f32.mxu0 0.0
    %4509 = vmatmul.mubr.f32.gmra.mrb[0].mxu0 %v716
    %v4510 = vpop.f32.mrb[0].mxu0
    %v4511 = vadd.f32 0.0, %v4510
    %v4512 = vpop.f32.mrb[0].mxu0
    %4513 = vmatprep.mubr.f32.mxu0 0.0
    %4514 = vmatmul.mubr.f32.gmra.mrb[0].mxu0 %v719
    %v4515 = vpop.f32.mrb[0].mxu0
    %v4516 = vadd.f32 0.0, %v4515
    %v4517 = vpop.f32.mrb[0].mxu0
    %4518 = vmatprep.mubr.f32.mxu0 0.0
    %4519 = vmatmul.mubr.f32.gmra.mrb[0].mxu0 %v722
    %v4520 = vpop.f32.mrb[0].mxu0
    %v4521 = vadd.f32 0.0, %v4520
    %v4522 = vpop.f32.mrb[0].mxu0
    %4523 = vmatprep.mubr.f32.mxu0 0.0
    %4524 = vmatmul.mubr.f32.gmra.mrb[0].mxu0 %v725
    %v4525 = vpop.f32.mrb[0].mxu0
    %v4526 = vadd.f32 0.0, %v4525
    %v4527 = vpop.f32.mrb[0].mxu0
    %4528 = vmatprep.mubr.f32.mxu0 0.0
    %4529 = vmatmul.mubr.f32.gmra.mrb[0].mxu0 %v728
    %v4530 = vpop.f32.mrb[0].mxu0
    %v4531 = vadd.f32 0.0, %v4530
    %v4532 = vpop.f32.mrb[0].mxu0
    %4533 = vmatprep.mubr.f32.mxu0 0.0
    %4534 = vmatmul.mubr.f32.gmra.mrb[0].mxu0 %v731
    %v4535 = vpop.f32.mrb[0].mxu0
    %v4536 = vadd.f32 0.0, %v4535
    %v4537 = vpop.f32.mrb[0].mxu0
    %4538 = vmatprep.mubr.f32.mxu0 0.0
    %4539 = vmatmul.mubr.f32.gmra.mrb[0].mxu0 %v734
    %v4540 = vpop.f32.mrb[0].mxu0
    %v4541 = vadd.f32 0.0, %v4540
    %v4542 = vpop.f32.mrb[0].mxu0
    %4543 = vmatprep.mubr.f32.mxu0 0.0
    %4544 = vmatmul.mubr.f32.gmra.mrb[0].mxu0 %v737
    %v4545 = vpop.f32.mrb[0].mxu0
    %v4546 = vadd.f32 0.0, %v4545
    %v4547 = vpop.f32.mrb[0].mxu0
    %4548 = vmatprep.mubr.f32.mxu0 0.0
    %4549 = vmatmul.mubr.f32.gmra.mrb[0].mxu0 %v740
    %v4550 = vpop.f32.mrb[0].mxu0
    %v4551 = vadd.f32 0.0, %v4550
    %v4552 = vpop.f32.mrb[0].mxu0
    %4553 = vdwg.mxu0
    %v4554 = vadd.f32 %v4331, %v4476
    %v4555 = vadd.f32 %v4336, %v4481
    %v4556 = vadd.f32 %v4341, %v4486
    %v4557 = vadd.f32 %v4346, %v4491
    %v4558 = vadd.f32 %v4351, %v4496
    %v4559 = vadd.f32 %v4356, %v4501
    %v4560 = vadd.f32 %v4361, %v4506
    %v4561 = vadd.f32 %v4366, %v4511
    %v4562 = vadd.f32 %v4371, %v4516
    %v4563 = vadd.f32 %v4376, %v4521
    %v4564 = vadd.f32 %v4381, %v4526
    %v4565 = vadd.f32 %v4386, %v4531
    %v4566 = vadd.f32 %v4391, %v4536
    %v4567 = vadd.f32 %v4396, %v4541
    %v4568 = vadd.f32 %v4401, %v4546
    %v4569 = vadd.f32 %v4406, %v4551
    %v4570 = vadd.f32 %v4554, %v91
    %v4571 = vadd.f32 %v4555, %v96
    %v4572 = vadd.f32 %v4556, %v101
    %v4573 = vadd.f32 %v4557, %v106
    %v4574 = vadd.f32 %v4558, %v111
    %v4575 = vadd.f32 %v4559, %v116
    %v4576 = vadd.f32 %v4560, %v121
    %v4577 = vadd.f32 %v4561, %v126
    %v4578 = vadd.f32 %v4562, %v131
    %v4579 = vadd.f32 %v4563, %v136
    %v4580 = vadd.f32 %v4564, %v141
    %v4581 = vadd.f32 %v4565, %v146
    %v4582 = vadd.f32 %v4566, %v151
    %v4583 = vadd.f32 %v4567, %v156
    %v4584 = vadd.f32 %v4568, %v161
    %v4585 = vadd.f32 %v4569, %v166
    %v4586 = vxor.u32 %v4570, 2147483648
    %v4587 = vxor.u32 %v4571, 2147483648
    %v4588 = vxor.u32 %v4572, 2147483648
    %v4589 = vxor.u32 %v4573, 2147483648
    %v4590 = vmul.f32 %v4586, 1.442695
    %v4591 = vpow.pop %v4590
    %v4592 = vmul.f32 %v4587, 1.442695
    %v4593 = vpow.pop %v4592
    %v4594 = vmul.f32 %v4588, 1.442695
    %v4595 = vpow.pop %v4594
    %v4596 = vmul.f32 %v4589, 1.442695
    %v4597 = vpow.pop %v4596
    %v4598 = vadd.f32 %v4591, 1.0
    %v4599 = vadd.f32 %v4593, 1.0
    %v4600 = vadd.f32 %v4595, 1.0
    %v4601 = vadd.f32 %v4597, 1.0
    %v4602 = vrcp.pop %v4598
    %v4603 = vmul.f32 1.0, %v4602
    %v4604 = vrcp.pop %v4599
    %v4605 = vmul.f32 1.0, %v4604
    %v4606 = vrcp.pop %v4600
    %v4607 = vmul.f32 1.0, %v4606
    %v4608 = vrcp.pop %v4601
    %v4609 = vmul.f32 1.0, %v4608
    %v4610 = vxor.u32 %v4574, 2147483648
    %v4611 = vxor.u32 %v4575, 2147483648
    %v4612 = vxor.u32 %v4576, 2147483648
    %v4613 = vxor.u32 %v4577, 2147483648
    %v4614 = vmul.f32 %v4610, 1.442695
    %v4615 = vpow.pop %v4614
    %v4616 = vmul.f32 %v4611, 1.442695
    %v4617 = vpow.pop %v4616
    %v4618 = vmul.f32 %v4612, 1.442695
    %v4619 = vpow.pop %v4618
    %v4620 = vmul.f32 %v4613, 1.442695
    %v4621 = vpow.pop %v4620
    %v4622 = vadd.f32 %v4615, 1.0
    %v4623 = vadd.f32 %v4617, 1.0
    %v4624 = vadd.f32 %v4619, 1.0
    %v4625 = vadd.f32 %v4621, 1.0
    %v4626 = vrcp.pop %v4622
    %v4627 = vmul.f32 1.0, %v4626
    %v4628 = vrcp.pop %v4623
    %v4629 = vmul.f32 1.0, %v4628
    %v4630 = vrcp.pop %v4624
    %v4631 = vmul.f32 1.0, %v4630
    %v4632 = vrcp.pop %v4625
    %v4633 = vmul.f32 1.0, %v4632
    %v4634 = vtanh.pop %v4578
    %v4635 = vtanh.pop %v4579
    %v4636 = vtanh.pop %v4580
    %v4637 = vtanh.pop %v4581
    %v4638 = vxor.u32 %v4582, 2147483648
    %v4639 = vxor.u32 %v4583, 2147483648
    %v4640 = vxor.u32 %v4584, 2147483648
    %v4641 = vxor.u32 %v4585, 2147483648
    %v4642 = vmul.f32 %v4638, 1.442695
    %v4643 = vpow.pop %v4642
    %v4644 = vmul.f32 %v4639, 1.442695
    %v4645 = vpow.pop %v4644
    %v4646 = vmul.f32 %v4640, 1.442695
    %v4647 = vpow.pop %v4646
    %v4648 = vmul.f32 %v4641, 1.442695
    %v4649 = vpow.pop %v4648
    %v4650 = vadd.f32 %v4643, 1.0
    %v4651 = vadd.f32 %v4645, 1.0
    %v4652 = vadd.f32 %v4647, 1.0
    %v4653 = vadd.f32 %v4649, 1.0
    %v4654 = vrcp.pop %v4650
    %v4655 = vmul.f32 1.0, %v4654
    %v4656 = vrcp.pop %v4651
    %v4657 = vmul.f32 1.0, %v4656
    %v4658 = vrcp.pop %v4652
    %v4659 = vmul.f32 1.0, %v4658
    %v4660 = vrcp.pop %v4653
    %v4661 = vmul.f32 1.0, %v4660
    %v4662 = vmul.f32 %v4627, %v3977
    %v4663 = vmul.f32 %v4629, %v3978
    %v4664 = vmul.f32 %v4631, %v3979
    %v4665 = vmul.f32 %v4633, %v3980
    %v4666 = vmul.f32 %v4603, %v4634
    %v4667 = vmul.f32 %v4605, %v4635
    %v4668 = vmul.f32 %v4607, %v4636
    %v4669 = vmul.f32 %v4609, %v4637
    %v4670 = vadd.f32 %v4662, %v4666
    %v4671 = vadd.f32 %v4663, %v4667
    %v4672 = vadd.f32 %v4664, %v4668
    %v4673 = vadd.f32 %v4665, %v4669
    %v4674 = vtanh.pop %v4670
    %v4675 = vtanh.pop %v4671
    %v4676 = vtanh.pop %v4672
    %v4677 = vtanh.pop %v4673
    %v4678 = vmul.f32 %v4655, %v4674
    %v4679 = vmul.f32 %v4657, %v4675
    %v4680 = vmul.f32 %v4659, %v4676
    %v4681 = vmul.f32 %v4661, %v4677
    %v4682 = vld [vmem:[%s3951] sm:$0x1]
    %v4683 = vld [vmem:[%s3949] sm:$0x1]
    %v4685 = vlaneseq
    %v4686 = vshrl.u32 %v4685, 7
    %v4687 = vsub.s32 0, %v4686
    %v4688 = vrot.slane %v4682, %v4687
    %v4691 = vlaneseq
    %v4692 = vshrl.u32 %v4691, 7
    %v4693 = vsub.s32 0, %v4692
    %v4694 = vrot.slane %v4683, %v4693
    %v4696 = vsel %vm173, %v4688, %v4694
    %v4697 = vsel %vm174, %v4688, %v4694
    %v4698 = vsel %vm175, %v4688, %v4694
    %v4699 = vsel %vm176, %v4688, %v4694
    %vm4700 = vcmp.gt.f32.partialorder %v4696, 0.5
    %vm4701 = vcmp.gt.f32.partialorder %v4697, 0.5
    %vm4702 = vcmp.gt.f32.partialorder %v4698, 0.5
    %vm4703 = vcmp.gt.f32.partialorder %v4699, 0.5
    %v4704 = vsel %vm4700, %v4678, %v3973
    %v4705 = vsel %vm4701, %v4679, %v3974
    %v4706 = vsel %vm4702, %v4680, %v3975
    %v4707 = vsel %vm4703, %v4681, %v3976
    %v4708 = vsel %vm4700, %v4670, %v3977
    %v4709 = vsel %vm4701, %v4671, %v3978
    %v4710 = vsel %vm4702, %v4672, %v3979
    %v4711 = vsel %vm4703, %v4673, %v3980
    %v4712 = vsel %vm4700, %v4678, 0.0
    %v4713 = vsel %vm4701, %v4679, 0.0
    %v4714 = vsel %vm4702, %v4680, 0.0
    %v4715 = vsel %vm4703, %v4681, 0.0
    %4716 = vst [vmem:[%s3988] sm:$0xff] %v4712
    %4717 = vst [vmem:[%s3988 + $0x8] sm:$0xff] %v4713
    %4718 = vst [vmem:[%s3985 + $0x10] sm:$0xff] %v4714
    %4719 = vst [vmem:[%s3985 + $0x18] sm:$0xff] %v4715
    %v4720 = vld [vmem:[%s2538] sm:$0xff]
    %v4721 = vld [vmem:[%s2538 + $0x8] sm:$0xff]
    %v4722 = vld [vmem:[%s2538 + $0x10] sm:$0xff]
    %v4723 = vld [vmem:[%s2538 + $0x18] sm:$0xff]
    %v4724 = vld [vmem:[%s2538 + $0x20] sm:$0xff]
    %v4725 = vld [vmem:[%s2538 + $0x28] sm:$0xff]
    %v4726 = vld [vmem:[%s2538 + $0x30] sm:$0xff]
    %v4727 = vld [vmem:[%s2538 + $0x38] sm:$0xff]
    %v4728 = vld [vmem:[%s2538 + $0x40] sm:$0xff]
    %v4729 = vld [vmem:[%s2538 + $0x48] sm:$0xff]
    %v4730 = vld [vmem:[%s2538 + $0x50] sm:$0xff]
    %v4731 = vld [vmem:[%s2538 + $0x58] sm:$0xff]
    %v4732 = vld [vmem:[%s2538 + $0x60] sm:$0xff]
    %v4733 = vld [vmem:[%s2538 + $0x68] sm:$0xff]
    %v4734 = vld [vmem:[%s2538 + $0x70] sm:$0xff]
    %v4735 = vld [vmem:[%s2538 + $0x78] sm:$0xff]
    %v4736 = vld [vmem:[%s2521] sm:$0xff]
    %v4737 = vld [vmem:[%s2521 + $0x8] sm:$0xff]
    %v4738 = vld [vmem:[%s2521 + $0x10] sm:$0xff]
    %v4739 = vld [vmem:[%s2521 + $0x18] sm:$0xff]
    %v4740 = vld [vmem:[%s2521 + $0x20] sm:$0xff]
    %v4741 = vld [vmem:[%s2521 + $0x28] sm:$0xff]
    %v4742 = vld [vmem:[%s2521 + $0x30] sm:$0xff]
    %v4743 = vld [vmem:[%s2521 + $0x38] sm:$0xff]
    %v4744 = vld [vmem:[%s2521 + $0x40] sm:$0xff]
    %v4745 = vld [vmem:[%s2521 + $0x48] sm:$0xff]
    %v4746 = vld [vmem:[%s2521 + $0x50] sm:$0xff]
    %v4747 = vld [vmem:[%s2521 + $0x58] sm:$0xff]
    %v4748 = vld [vmem:[%s2521 + $0x60] sm:$0xff]
    %v4749 = vld [vmem:[%s2521 + $0x68] sm:$0xff]
    %v4750 = vld [vmem:[%s2521 + $0x70] sm:$0xff]
    %v4751 = vld [vmem:[%s2521 + $0x78] sm:$0xff]
    %v4753 = vsel %vm210, %v4736, 0
    %v4756 = vsel %vm210, %v4737, 0
    %v4759 = vsel %vm210, %v4738, 0
    %v4762 = vsel %vm210, %v4739, 0
    %v4765 = vsel %vm210, %v4740, 0
    %v4768 = vsel %vm210, %v4741, 0
    %v4771 = vsel %vm210, %v4742, 0
    %v4774 = vsel %vm210, %v4743, 0
    %v4777 = vsel %vm210, %v4744, 0
    %v4780 = vsel %vm210, %v4745, 0
    %v4783 = vsel %vm210, %v4746, 0
    %v4786 = vsel %vm210, %v4747, 0
    %v4789 = vsel %vm210, %v4748, 0
    %v4792 = vsel %vm210, %v4749, 0
    %v4795 = vsel %vm210, %v4750, 0
    %v4798 = vsel %vm210, %v4751, 0
    %4800 = vmatprep.subr.mxu0 0.0
    %4801 = vmatpush1.xpose.msra.mxu0 %v4753
    %4802 = vmatprep.subr.mxu0 0.0
    %4803 = vmatpush1.xpose.msra.mxu0 %v4756
    %4804 = vmatprep.subr.mxu0 0.0
    %4805 = vmatpush1.xpose.msra.mxu0 %v4759
    %4806 = vmatprep.subr.mxu0 0.0
    %4807 = vmatpush1.xpose.msra.mxu0 %v4762
    %4808 = vmatprep.subr.mxu0 0.0
    %4809 = vmatpush1.xpose.msra.mxu0 %v4765
    %4810 = vmatprep.subr.mxu0 0.0
    %4811 = vmatpush1.xpose.msra.mxu0 %v4768
    %4812 = vmatprep.subr.mxu0 0.0
    %4813 = vmatpush1.xpose.msra.mxu0 %v4771
    %4814 = vmatprep.subr.mxu0 0.0
    %4815 = vmatpush1.xpose.msra.mxu0 %v4774
    %4816 = vmatprep.subr.mxu0 0.0
    %4817 = vmatpush1.xpose.msra.mxu0 %v4777
    %4818 = vmatprep.subr.mxu0 0.0
    %4819 = vmatpush1.xpose.msra.mxu0 %v4780
    %4820 = vmatprep.subr.mxu0 0.0
    %4821 = vmatpush1.xpose.msra.mxu0 %v4783
    %4822 = vmatprep.subr.mxu0 0.0
    %4823 = vmatpush1.xpose.msra.mxu0 %v4786
    %4824 = vmatprep.subr.mxu0 0.0
    %4825 = vmatpush1.xpose.msra.mxu0 %v4789
    %4826 = vmatprep.subr.mxu0 0.0
    %4827 = vmatpush1.xpose.msra.mxu0 %v4792
    %4828 = vmatprep.subr.mxu0 0.0
    %4829 = vmatpush1.xpose.msra.mxu0 %v4795
    %4830 = vmatprep.subr.mxu0 0.0
    %4831 = vmatpush1.xpose.msra.mxu0 %v4798
    %4832 = vmatprep.subr.mxu0 0.0
    %4833 = vmatpush1.xpose.msra.mxu0 0.0
    %4834 = vmatprep.subr.mxu0 0.0
    %4835 = vmatpush1.xpose.msra.mxu0 0.0
    %4836 = vmatprep.subr.mxu0 0.0
    %4837 = vmatpush1.xpose.msra.mxu0 0.0
    %4838 = vmatprep.subr.mxu0 0.0
    %4839 = vmatpush1.xpose.msra.mxu0 0.0
    %4840 = vmatprep.subr.mxu0 0.0
    %4841 = vmatpush1.xpose.msra.mxu0 0.0
    %4842 = vmatprep.subr.mxu0 0.0
    %4843 = vmatpush1.xpose.msra.mxu0 0.0
    %4844 = vmatprep.subr.mxu0 0.0
    %4845 = vmatpush1.xpose.msra.mxu0 0.0
    %4846 = vmatprep.subr.mxu0 0.0
    %4847 = vmatpush1.xpose.msra.mxu0 0.0
    %4848 = vmatprep.subr.mxu0 0.0
    %4849 = vmatpush1.xpose.msra.mxu0 0.0
    %4850 = vmatprep.subr.mxu0 0.0
    %4851 = vmatpush1.xpose.msra.mxu0 0.0
    %4852 = vmatprep.subr.mxu0 0.0
    %4853 = vmatpush1.xpose.msra.mxu0 0.0
    %4854 = vmatprep.subr.mxu0 0.0
    %4855 = vmatpush1.xpose.msra.mxu0 0.0
    %4856 = vmatprep.subr.mxu0 0.0
    %4857 = vmatpush1.xpose.msra.mxu0 0.0
    %4858 = vmatprep.subr.mxu0 0.0
    %4859 = vmatpush1.xpose.msra.mxu0 0.0
    %4860 = vmatprep.subr.mxu0 0.0
    %4861 = vmatpush1.xpose.msra.mxu0 0.0
    %4862 = vmatprep.subr.mxu0 0.0
    %4863 = vmatpush1.xpose.msra.mxu0 0.0
    %4864 = vmatprep.mubr.f32.mxu0 0.0
    %4865 = vmatmul.mubr.f32.gmra.mrb[0].mxu0 %v212
    %v4866 = vpop.f32.mrb[0].mxu0
    %v4867 = vadd.f32 0.0, %v4866
    %v4868 = vpop.f32.mrb[0].mxu0
    %4869 = vmatprep.mubr.f32.mxu0 0.0
    %4870 = vmatmul.mubr.f32.gmra.mrb[0].mxu0 %v215
    %v4871 = vpop.f32.mrb[0].mxu0
    %v4872 = vadd.f32 0.0, %v4871
    %v4873 = vpop.f32.mrb[0].mxu0
    %4874 = vmatprep.mubr.f32.mxu0 0.0
    %4875 = vmatmul.mubr.f32.gmra.mrb[0].mxu0 %v218
    %v4876 = vpop.f32.mrb[0].mxu0
    %v4877 = vadd.f32 0.0, %v4876
    %v4878 = vpop.f32.mrb[0].mxu0
    %4879 = vmatprep.mubr.f32.mxu0 0.0
    %4880 = vmatmul.mubr.f32.gmra.mrb[0].mxu0 %v221
    %v4881 = vpop.f32.mrb[0].mxu0
    %v4882 = vadd.f32 0.0, %v4881
    %v4883 = vpop.f32.mrb[0].mxu0
    %4884 = vmatprep.mubr.f32.mxu0 0.0
    %4885 = vmatmul.mubr.f32.gmra.mrb[0].mxu0 %v224
    %v4886 = vpop.f32.mrb[0].mxu0
    %v4887 = vadd.f32 0.0, %v4886
    %v4888 = vpop.f32.mrb[0].mxu0
    %4889 = vmatprep.mubr.f32.mxu0 0.0
    %4890 = vmatmul.mubr.f32.gmra.mrb[0].mxu0 %v227
    %v4891 = vpop.f32.mrb[0].mxu0
    %v4892 = vadd.f32 0.0, %v4891
    %v4893 = vpop.f32.mrb[0].mxu0
    %4894 = vmatprep.mubr.f32.mxu0 0.0
    %4895 = vmatmul.mubr.f32.gmra.mrb[0].mxu0 %v230
    %v4896 = vpop.f32.mrb[0].mxu0
    %v4897 = vadd.f32 0.0, %v4896
    %v4898 = vpop.f32.mrb[0].mxu0
    %4899 = vmatprep.mubr.f32.mxu0 0.0
    %4900 = vmatmul.mubr.f32.gmra.mrb[0].mxu0 %v233
    %v4901 = vpop.f32.mrb[0].mxu0
    %v4902 = vadd.f32 0.0, %v4901
    %v4903 = vpop.f32.mrb[0].mxu0
    %4904 = vmatprep.mubr.f32.mxu0 0.0
    %4905 = vmatmul.mubr.f32.gmra.mrb[0].mxu0 %v236
    %v4906 = vpop.f32.mrb[0].mxu0
    %v4907 = vadd.f32 0.0, %v4906
    %v4908 = vpop.f32.mrb[0].mxu0
    %4909 = vmatprep.mubr.f32.mxu0 0.0
    %4910 = vmatmul.mubr.f32.gmra.mrb[0].mxu0 %v239
    %v4911 = vpop.f32.mrb[0].mxu0
    %v4912 = vadd.f32 0.0, %v4911
    %v4913 = vpop.f32.mrb[0].mxu0
    %4914 = vmatprep.mubr.f32.mxu0 0.0
    %4915 = vmatmul.mubr.f32.gmra.mrb[0].mxu0 %v242
    %v4916 = vpop.f32.mrb[0].mxu0
    %v4917 = vadd.f32 0.0, %v4916
    %v4918 = vpop.f32.mrb[0].mxu0
    %4919 = vmatprep.mubr.f32.mxu0 0.0
    %4920 = vmatmul.mubr.f32.gmra.mrb[0].mxu0 %v245
    %v4921 = vpop.f32.mrb[0].mxu0
    %v4922 = vadd.f32 0.0, %v4921
    %v4923 = vpop.f32.mrb[0].mxu0
    %4924 = vmatprep.mubr.f32.mxu0 0.0
    %4925 = vmatmul.mubr.f32.gmra.mrb[0].mxu0 %v248
    %v4926 = vpop.f32.mrb[0].mxu0
    %v4927 = vadd.f32 0.0, %v4926
    %v4928 = vpop.f32.mrb[0].mxu0
    %4929 = vmatprep.mubr.f32.mxu0 0.0
    %4930 = vmatmul.mubr.f32.gmra.mrb[0].mxu0 %v251
    %v4931 = vpop.f32.mrb[0].mxu0
    %v4932 = vadd.f32 0.0, %v4931
    %v4933 = vpop.f32.mrb[0].mxu0
    %4934 = vmatprep.mubr.f32.mxu0 0.0
    %4935 = vmatmul.mubr.f32.gmra.mrb[0].mxu0 %v254
    %v4936 = vpop.f32.mrb[0].mxu0
    %v4937 = vadd.f32 0.0, %v4936
    %v4938 = vpop.f32.mrb[0].mxu0
    %4939 = vmatprep.mubr.f32.mxu0 0.0
    %4940 = vmatmul.mubr.f32.gmra.mrb[0].mxu0 %v257
    %v4941 = vpop.f32.mrb[0].mxu0
    %v4942 = vadd.f32 0.0, %v4941
    %v4943 = vpop.f32.mrb[0].mxu0
    %4944 = vdwg.mxu0
    %v4946 = vsel %vm210, %v4720, 0
    %v4949 = vsel %vm210, %v4721, 0
    %v4952 = vsel %vm210, %v4722, 0
    %v4955 = vsel %vm210, %v4723, 0
    %v4958 = vsel %vm210, %v4724, 0
    %v4961 = vsel %vm210, %v4725, 0
    %v4964 = vsel %vm210, %v4726, 0
    %v4967 = vsel %vm210, %v4727, 0
    %v4970 = vsel %vm210, %v4728, 0
    %v4973 = vsel %vm210, %v4729, 0
    %v4976 = vsel %vm210, %v4730, 0
    %v4979 = vsel %vm210, %v4731, 0
    %v4982 = vsel %vm210, %v4732, 0
    %v4985 = vsel %vm210, %v4733, 0
    %v4988 = vsel %vm210, %v4734, 0
    %v4991 = vsel %vm210, %v4735, 0
    %4993 = vmatprep.subr.mxu0 0.0
    %4994 = vmatpush1.xpose.msra.mxu0 %v4946
    %4995 = vmatprep.subr.mxu0 0.0
    %4996 = vmatpush1.xpose.msra.mxu0 %v4949
    %4997 = vmatprep.subr.mxu0 0.0
    %4998 = vmatpush1.xpose.msra.mxu0 %v4952
    %4999 = vmatprep.subr.mxu0 0.0
    %5000 = vmatpush1.xpose.msra.mxu0 %v4955
    %5001 = vmatprep.subr.mxu0 0.0
    %5002 = vmatpush1.xpose.msra.mxu0 %v4958
    %5003 = vmatprep.subr.mxu0 0.0
    %5004 = vmatpush1.xpose.msra.mxu0 %v4961
    %5005 = vmatprep.subr.mxu0 0.0
    %5006 = vmatpush1.xpose.msra.mxu0 %v4964
    %5007 = vmatprep.subr.mxu0 0.0
    %5008 = vmatpush1.xpose.msra.mxu0 %v4967
    %5009 = vmatprep.subr.mxu0 0.0
    %5010 = vmatpush1.xpose.msra.mxu0 %v4970
    %5011 = vmatprep.subr.mxu0 0.0
    %5012 = vmatpush1.xpose.msra.mxu0 %v4973
    %5013 = vmatprep.subr.mxu0 0.0
    %5014 = vmatpush1.xpose.msra.mxu0 %v4976
    %5015 = vmatprep.subr.mxu0 0.0
    %5016 = vmatpush1.xpose.msra.mxu0 %v4979
    %5017 = vmatprep.subr.mxu0 0.0
    %5018 = vmatpush1.xpose.msra.mxu0 %v4982
    %5019 = vmatprep.subr.mxu0 0.0
    %5020 = vmatpush1.xpose.msra.mxu0 %v4985
    %5021 = vmatprep.subr.mxu0 0.0
    %5022 = vmatpush1.xpose.msra.mxu0 %v4988
    %5023 = vmatprep.subr.mxu0 0.0
    %5024 = vmatpush1.xpose.msra.mxu0 %v4991
    %5025 = vmatprep.subr.mxu0 0.0
    %5026 = vmatpush1.xpose.msra.mxu0 0.0
    %5027 = vmatprep.subr.mxu0 0.0
    %5028 = vmatpush1.xpose.msra.mxu0 0.0
    %5029 = vmatprep.subr.mxu0 0.0
    %5030 = vmatpush1.xpose.msra.mxu0 0.0
    %5031 = vmatprep.subr.mxu0 0.0
    %5032 = vmatpush1.xpose.msra.mxu0 0.0
    %5033 = vmatprep.subr.mxu0 0.0
    %5034 = vmatpush1.xpose.msra.mxu0 0.0
    %5035 = vmatprep.subr.mxu0 0.0
    %5036 = vmatpush1.xpose.msra.mxu0 0.0
    %5037 = vmatprep.subr.mxu0 0.0
    %5038 = vmatpush1.xpose.msra.mxu0 0.0
    %5039 = vmatprep.subr.mxu0 0.0
    %5040 = vmatpush1.xpose.msra.mxu0 0.0
    %5041 = vmatprep.subr.mxu0 0.0
    %5042 = vmatpush1.xpose.msra.mxu0 0.0
    %5043 = vmatprep.subr.mxu0 0.0
    %5044 = vmatpush1.xpose.msra.mxu0 0.0
    %5045 = vmatprep.subr.mxu0 0.0
    %5046 = vmatpush1.xpose.msra.mxu0 0.0
    %5047 = vmatprep.subr.mxu0 0.0
    %5048 = vmatpush1.xpose.msra.mxu0 0.0
    %5049 = vmatprep.subr.mxu0 0.0
    %5050 = vmatpush1.xpose.msra.mxu0 0.0
    %5051 = vmatprep.subr.mxu0 0.0
    %5052 = vmatpush1.xpose.msra.mxu0 0.0
    %5053 = vmatprep.subr.mxu0 0.0
    %5054 = vmatpush1.xpose.msra.mxu0 0.0
    %5055 = vmatprep.subr.mxu0 0.0
    %5056 = vmatpush1.xpose.msra.mxu0 0.0
    %5057 = vmatprep.mubr.f32.mxu0 0.0
    %5058 = vmatmul.mubr.f32.gmra.mrb[0].mxu0 %v453
    %v5059 = vpop.f32.mrb[0].mxu0
    %v5060 = vadd.f32 %v4867, %v5059
    %v5061 = vpop.f32.mrb[0].mxu0
    %5062 = vmatprep.mubr.f32.mxu0 0.0
    %5063 = vmatmul.mubr.f32.gmra.mrb[0].mxu0 %v456
    %v5064 = vpop.f32.mrb[0].mxu0
    %v5065 = vadd.f32 %v4872, %v5064
    %v5066 = vpop.f32.mrb[0].mxu0
    %5067 = vmatprep.mubr.f32.mxu0 0.0
    %5068 = vmatmul.mubr.f32.gmra.mrb[0].mxu0 %v459
    %v5069 = vpop.f32.mrb[0].mxu0
    %v5070 = vadd.f32 %v4877, %v5069
    %v5071 = vpop.f32.mrb[0].mxu0
    %5072 = vmatprep.mubr.f32.mxu0 0.0
    %5073 = vmatmul.mubr.f32.gmra.mrb[0].mxu0 %v462
    %v5074 = vpop.f32.mrb[0].mxu0
    %v5075 = vadd.f32 %v4882, %v5074
    %v5076 = vpop.f32.mrb[0].mxu0
    %5077 = vmatprep.mubr.f32.mxu0 0.0
    %5078 = vmatmul.mubr.f32.gmra.mrb[0].mxu0 %v465
    %v5079 = vpop.f32.mrb[0].mxu0
    %v5080 = vadd.f32 %v4887, %v5079
    %v5081 = vpop.f32.mrb[0].mxu0
    %5082 = vmatprep.mubr.f32.mxu0 0.0
    %5083 = vmatmul.mubr.f32.gmra.mrb[0].mxu0 %v468
    %v5084 = vpop.f32.mrb[0].mxu0
    %v5085 = vadd.f32 %v4892, %v5084
    %v5086 = vpop.f32.mrb[0].mxu0
    %5087 = vmatprep.mubr.f32.mxu0 0.0
    %5088 = vmatmul.mubr.f32.gmra.mrb[0].mxu0 %v471
    %v5089 = vpop.f32.mrb[0].mxu0
    %v5090 = vadd.f32 %v4897, %v5089
    %v5091 = vpop.f32.mrb[0].mxu0
    %5092 = vmatprep.mubr.f32.mxu0 0.0
    %5093 = vmatmul.mubr.f32.gmra.mrb[0].mxu0 %v474
    %v5094 = vpop.f32.mrb[0].mxu0
    %v5095 = vadd.f32 %v4902, %v5094
    %v5096 = vpop.f32.mrb[0].mxu0
    %5097 = vmatprep.mubr.f32.mxu0 0.0
    %5098 = vmatmul.mubr.f32.gmra.mrb[0].mxu0 %v477
    %v5099 = vpop.f32.mrb[0].mxu0
    %v5100 = vadd.f32 %v4907, %v5099
    %v5101 = vpop.f32.mrb[0].mxu0
    %5102 = vmatprep.mubr.f32.mxu0 0.0
    %5103 = vmatmul.mubr.f32.gmra.mrb[0].mxu0 %v480
    %v5104 = vpop.f32.mrb[0].mxu0
    %v5105 = vadd.f32 %v4912, %v5104
    %v5106 = vpop.f32.mrb[0].mxu0
    %5107 = vmatprep.mubr.f32.mxu0 0.0
    %5108 = vmatmul.mubr.f32.gmra.mrb[0].mxu0 %v483
    %v5109 = vpop.f32.mrb[0].mxu0
    %v5110 = vadd.f32 %v4917, %v5109
    %v5111 = vpop.f32.mrb[0].mxu0
    %5112 = vmatprep.mubr.f32.mxu0 0.0
    %5113 = vmatmul.mubr.f32.gmra.mrb[0].mxu0 %v486
    %v5114 = vpop.f32.mrb[0].mxu0
    %v5115 = vadd.f32 %v4922, %v5114
    %v5116 = vpop.f32.mrb[0].mxu0
    %5117 = vmatprep.mubr.f32.mxu0 0.0
    %5118 = vmatmul.mubr.f32.gmra.mrb[0].mxu0 %v489
    %v5119 = vpop.f32.mrb[0].mxu0
    %v5120 = vadd.f32 %v4927, %v5119
    %v5121 = vpop.f32.mrb[0].mxu0
    %5122 = vmatprep.mubr.f32.mxu0 0.0
    %5123 = vmatmul.mubr.f32.gmra.mrb[0].mxu0 %v492
    %v5124 = vpop.f32.mrb[0].mxu0
    %v5125 = vadd.f32 %v4932, %v5124
    %v5126 = vpop.f32.mrb[0].mxu0
    %5127 = vmatprep.mubr.f32.mxu0 0.0
    %5128 = vmatmul.mubr.f32.gmra.mrb[0].mxu0 %v495
    %v5129 = vpop.f32.mrb[0].mxu0
    %v5130 = vadd.f32 %v4937, %v5129
    %v5131 = vpop.f32.mrb[0].mxu0
    %5132 = vmatprep.mubr.f32.mxu0 0.0
    %5133 = vmatmul.mubr.f32.gmra.mrb[0].mxu0 %v498
    %v5134 = vpop.f32.mrb[0].mxu0
    %v5135 = vadd.f32 %v4942, %v5134
    %v5136 = vpop.f32.mrb[0].mxu0
    %5137 = vdwg.mxu0
    %5138 = vmatprep.subr.mxu0 0.0
    %5139 = vmatpush1.msra.mxu0 %v4704
    %5140 = vmatprep.subr.mxu0 0.0
    %5141 = vmatpush1.msra.mxu0 %v4705
    %5142 = vmatprep.subr.mxu0 0.0
    %5143 = vmatpush1.msra.mxu0 %v4706
    %5144 = vmatprep.subr.mxu0 0.0
    %5145 = vmatpush1.msra.mxu0 %v4707
    %5146 = vmatprep.subr.mxu0 0.0
    %5147 = vmatpush1.msra.mxu0 0.0
    %5148 = vmatprep.subr.mxu0 0.0
    %5149 = vmatpush1.msra.mxu0 0.0
    %5150 = vmatprep.subr.mxu0 0.0
    %5151 = vmatpush1.msra.mxu0 0.0
    %5152 = vmatprep.subr.mxu0 0.0
    %5153 = vmatpush1.msra.mxu0 0.0
    %5154 = vmatprep.subr.mxu0 0.0
    %5155 = vmatpush1.msra.mxu0 0.0
    %5156 = vmatprep.subr.mxu0 0.0
    %5157 = vmatpush1.msra.mxu0 0.0
    %5158 = vmatprep.subr.mxu0 0.0
    %5159 = vmatpush1.msra.mxu0 0.0
    %5160 = vmatprep.subr.mxu0 0.0
    %5161 = vmatpush1.msra.mxu0 0.0
    %5162 = vmatprep.subr.mxu0 0.0
    %5163 = vmatpush1.msra.mxu0 0.0
    %5164 = vmatprep.subr.mxu0 0.0
    %5165 = vmatpush1.msra.mxu0 0.0
    %5166 = vmatprep.subr.mxu0 0.0
    %5167 = vmatpush1.msra.mxu0 0.0
    %5168 = vmatprep.subr.mxu0 0.0
    %5169 = vmatpush1.msra.mxu0 0.0
    %5170 = vmatprep.subr.mxu0 0.0
    %5171 = vmatpush1.msra.mxu0 0.0
    %5172 = vmatprep.subr.mxu0 0.0
    %5173 = vmatpush1.msra.mxu0 0.0
    %5174 = vmatprep.subr.mxu0 0.0
    %5175 = vmatpush1.msra.mxu0 0.0
    %5176 = vmatprep.subr.mxu0 0.0
    %5177 = vmatpush1.msra.mxu0 0.0
    %5178 = vmatprep.subr.mxu0 0.0
    %5179 = vmatpush1.msra.mxu0 0.0
    %5180 = vmatprep.subr.mxu0 0.0
    %5181 = vmatpush1.msra.mxu0 0.0
    %5182 = vmatprep.subr.mxu0 0.0
    %5183 = vmatpush1.msra.mxu0 0.0
    %5184 = vmatprep.subr.mxu0 0.0
    %5185 = vmatpush1.msra.mxu0 0.0
    %5186 = vmatprep.subr.mxu0 0.0
    %5187 = vmatpush1.msra.mxu0 0.0
    %5188 = vmatprep.subr.mxu0 0.0
    %5189 = vmatpush1.msra.mxu0 0.0
    %5190 = vmatprep.subr.mxu0 0.0
    %5191 = vmatpush1.msra.mxu0 0.0
    %5192 = vmatprep.subr.mxu0 0.0
    %5193 = vmatpush1.msra.mxu0 0.0
    %5194 = vmatprep.subr.mxu0 0.0
    %5195 = vmatpush1.msra.mxu0 0.0
    %5196 = vmatprep.subr.mxu0 0.0
    %5197 = vmatpush1.msra.mxu0 0.0
    %5198 = vmatprep.subr.mxu0 0.0
    %5199 = vmatpush1.msra.mxu0 0.0
    %5200 = vmatprep.subr.mxu0 0.0
    %5201 = vmatpush1.msra.mxu0 0.0
    %5202 = vmatprep.mubr.f32.mxu0 0.0
    %5203 = vmatmul.mubr.f32.gmra.mrb[0].mxu0 %v695
    %v5204 = vpop.f32.mrb[0].mxu0
    %v5205 = vadd.f32 0.0, %v5204
    %v5206 = vpop.f32.mrb[0].mxu0
    %5207 = vmatprep.mubr.f32.mxu0 0.0
    %5208 = vmatmul.mubr.f32.gmra.mrb[0].mxu0 %v698
    %v5209 = vpop.f32.mrb[0].mxu0
    %v5210 = vadd.f32 0.0, %v5209
    %v5211 = vpop.f32.mrb[0].mxu0
    %5212 = vmatprep.mubr.f32.mxu0 0.0
    %5213 = vmatmul.mubr.f32.gmra.mrb[0].mxu0 %v701
    %v5214 = vpop.f32.mrb[0].mxu0
    %v5215 = vadd.f32 0.0, %v5214
    %v5216 = vpop.f32.mrb[0].mxu0
    %5217 = vmatprep.mubr.f32.mxu0 0.0
    %5218 = vmatmul.mubr.f32.gmra.mrb[0].mxu0 %v704
    %v5219 = vpop.f32.mrb[0].mxu0
    %v5220 = vadd.f32 0.0, %v5219
    %v5221 = vpop.f32.mrb[0].mxu0
    %5222 = vmatprep.mubr.f32.mxu0 0.0
    %5223 = vmatmul.mubr.f32.gmra.mrb[0].mxu0 %v707
    %v5224 = vpop.f32.mrb[0].mxu0
    %v5225 = vadd.f32 0.0, %v5224
    %v5226 = vpop.f32.mrb[0].mxu0
    %5227 = vmatprep.mubr.f32.mxu0 0.0
    %5228 = vmatmul.mubr.f32.gmra.mrb[0].mxu0 %v710
    %v5229 = vpop.f32.mrb[0].mxu0
    %v5230 = vadd.f32 0.0, %v5229
    %v5231 = vpop.f32.mrb[0].mxu0
    %5232 = vmatprep.mubr.f32.mxu0 0.0
    %5233 = vmatmul.mubr.f32.gmra.mrb[0].mxu0 %v713
    %v5234 = vpop.f32.mrb[0].mxu0
    %v5235 = vadd.f32 0.0, %v5234
    %v5236 = vpop.f32.mrb[0].mxu0
    %5237 = vmatprep.mubr.f32.mxu0 0.0
    %5238 = vmatmul.mubr.f32.gmra.mrb[0].mxu0 %v716
    %v5239 = vpop.f32.mrb[0].mxu0
    %v5240 = vadd.f32 0.0, %v5239
    %v5241 = vpop.f32.mrb[0].mxu0
    %5242 = vmatprep.mubr.f32.mxu0 0.0
    %5243 = vmatmul.mubr.f32.gmra.mrb[0].mxu0 %v719
    %v5244 = vpop.f32.mrb[0].mxu0
    %v5245 = vadd.f32 0.0, %v5244
    %v5246 = vpop.f32.mrb[0].mxu0
    %5247 = vmatprep.mubr.f32.mxu0 0.0
    %5248 = vmatmul.mubr.f32.gmra.mrb[0].mxu0 %v722
    %v5249 = vpop.f32.mrb[0].mxu0
    %v5250 = vadd.f32 0.0, %v5249
    %v5251 = vpop.f32.mrb[0].mxu0
    %5252 = vmatprep.mubr.f32.mxu0 0.0
    %5253 = vmatmul.mubr.f32.gmra.mrb[0].mxu0 %v725
    %v5254 = vpop.f32.mrb[0].mxu0
    %v5255 = vadd.f32 0.0, %v5254
    %v5256 = vpop.f32.mrb[0].mxu0
    %5257 = vmatprep.mubr.f32.mxu0 0.0
    %5258 = vmatmul.mubr.f32.gmra.mrb[0].mxu0 %v728
    %v5259 = vpop.f32.mrb[0].mxu0
    %v5260 = vadd.f32 0.0, %v5259
    %v5261 = vpop.f32.mrb[0].mxu0
    %5262 = vmatprep.mubr.f32.mxu0 0.0
    %5263 = vmatmul.mubr.f32.gmra.mrb[0].mxu0 %v731
    %v5264 = vpop.f32.mrb[0].mxu0
    %v5265 = vadd.f32 0.0, %v5264
    %v5266 = vpop.f32.mrb[0].mxu0
    %5267 = vmatprep.mubr.f32.mxu0 0.0
    %5268 = vmatmul.mubr.f32.gmra.mrb[0].mxu0 %v734
    %v5269 = vpop.f32.mrb[0].mxu0
    %v5270 = vadd.f32 0.0, %v5269
    %v5271 = vpop.f32.mrb[0].mxu0
    %5272 = vmatprep.mubr.f32.mxu0 0.0
    %5273 = vmatmul.mubr.f32.gmra.mrb[0].mxu0 %v737
    %v5274 = vpop.f32.mrb[0].mxu0
    %v5275 = vadd.f32 0.0, %v5274
    %v5276 = vpop.f32.mrb[0].mxu0
    %5277 = vmatprep.mubr.f32.mxu0 0.0
    %5278 = vmatmul.mubr.f32.gmra.mrb[0].mxu0 %v740
    %v5279 = vpop.f32.mrb[0].mxu0
    %v5280 = vadd.f32 0.0, %v5279
    %v5281 = vpop.f32.mrb[0].mxu0
    %5282 = vdwg.mxu0
    %v5283 = vadd.f32 %v5060, %v5205
    %v5284 = vadd.f32 %v5065, %v5210
    %v5285 = vadd.f32 %v5070, %v5215
    %v5286 = vadd.f32 %v5075, %v5220
    %v5287 = vadd.f32 %v5080, %v5225
    %v5288 = vadd.f32 %v5085, %v5230
    %v5289 = vadd.f32 %v5090, %v5235
    %v5290 = vadd.f32 %v5095, %v5240
    %v5291 = vadd.f32 %v5100, %v5245
    %v5292 = vadd.f32 %v5105, %v5250
    %v5293 = vadd.f32 %v5110, %v5255
    %v5294 = vadd.f32 %v5115, %v5260
    %v5295 = vadd.f32 %v5120, %v5265
    %v5296 = vadd.f32 %v5125, %v5270
    %v5297 = vadd.f32 %v5130, %v5275
    %v5298 = vadd.f32 %v5135, %v5280
    %v5299 = vadd.f32 %v5283, %v91
    %v5300 = vadd.f32 %v5284, %v96
    %v5301 = vadd.f32 %v5285, %v101
    %v5302 = vadd.f32 %v5286, %v106
    %v5303 = vadd.f32 %v5287, %v111
    %v5304 = vadd.f32 %v5288, %v116
    %v5305 = vadd.f32 %v5289, %v121
    %v5306 = vadd.f32 %v5290, %v126
    %v5307 = vadd.f32 %v5291, %v131
    %v5308 = vadd.f32 %v5292, %v136
    %v5309 = vadd.f32 %v5293, %v141
    %v5310 = vadd.f32 %v5294, %v146
    %v5311 = vadd.f32 %v5295, %v151
    %v5312 = vadd.f32 %v5296, %v156
    %v5313 = vadd.f32 %v5297, %v161
    %v5314 = vadd.f32 %v5298, %v166
    %v5315 = vxor.u32 %v5299, 2147483648
    %v5316 = vxor.u32 %v5300, 2147483648
    %v5317 = vxor.u32 %v5301, 2147483648
    %v5318 = vxor.u32 %v5302, 2147483648
    %v5319 = vmul.f32 %v5315, 1.442695
    %v5320 = vpow.pop %v5319
    %v5321 = vmul.f32 %v5316, 1.442695
    %v5322 = vpow.pop %v5321
    %v5323 = vmul.f32 %v5317, 1.442695
    %v5324 = vpow.pop %v5323
    %v5325 = vmul.f32 %v5318, 1.442695
    %v5326 = vpow.pop %v5325
    %v5327 = vadd.f32 %v5320, 1.0
    %v5328 = vadd.f32 %v5322, 1.0
    %v5329 = vadd.f32 %v5324, 1.0
    %v5330 = vadd.f32 %v5326, 1.0
    %v5331 = vrcp.pop %v5327
    %v5332 = vmul.f32 1.0, %v5331
    %v5333 = vrcp.pop %v5328
    %v5334 = vmul.f32 1.0, %v5333
    %v5335 = vrcp.pop %v5329
    %v5336 = vmul.f32 1.0, %v5335
    %v5337 = vrcp.pop %v5330
    %v5338 = vmul.f32 1.0, %v5337
    %v5339 = vxor.u32 %v5303, 2147483648
    %v5340 = vxor.u32 %v5304, 2147483648
    %v5341 = vxor.u32 %v5305, 2147483648
    %v5342 = vxor.u32 %v5306, 2147483648
    %v5343 = vmul.f32 %v5339, 1.442695
    %v5344 = vpow.pop %v5343
    %v5345 = vmul.f32 %v5340, 1.442695
    %v5346 = vpow.pop %v5345
    %v5347 = vmul.f32 %v5341, 1.442695
    %v5348 = vpow.pop %v5347
    %v5349 = vmul.f32 %v5342, 1.442695
    %v5350 = vpow.pop %v5349
    %v5351 = vadd.f32 %v5344, 1.0
    %v5352 = vadd.f32 %v5346, 1.0
    %v5353 = vadd.f32 %v5348, 1.0
    %v5354 = vadd.f32 %v5350, 1.0
    %v5355 = vrcp.pop %v5351
    %v5356 = vmul.f32 1.0, %v5355
    %v5357 = vrcp.pop %v5352
    %v5358 = vmul.f32 1.0, %v5357
    %v5359 = vrcp.pop %v5353
    %v5360 = vmul.f32 1.0, %v5359
    %v5361 = vrcp.pop %v5354
    %v5362 = vmul.f32 1.0, %v5361
    %v5363 = vtanh.pop %v5307
    %v5364 = vtanh.pop %v5308
    %v5365 = vtanh.pop %v5309
    %v5366 = vtanh.pop %v5310
    %v5367 = vxor.u32 %v5311, 2147483648
    %v5368 = vxor.u32 %v5312, 2147483648
    %v5369 = vxor.u32 %v5313, 2147483648
    %v5370 = vxor.u32 %v5314, 2147483648
    %v5371 = vmul.f32 %v5367, 1.442695
    %v5372 = vpow.pop %v5371
    %v5373 = vmul.f32 %v5368, 1.442695
    %v5374 = vpow.pop %v5373
    %v5375 = vmul.f32 %v5369, 1.442695
    %v5376 = vpow.pop %v5375
    %v5377 = vmul.f32 %v5370, 1.442695
    %v5378 = vpow.pop %v5377
    %v5379 = vadd.f32 %v5372, 1.0
    %v5380 = vadd.f32 %v5374, 1.0
    %v5381 = vadd.f32 %v5376, 1.0
    %v5382 = vadd.f32 %v5378, 1.0
    %v5383 = vrcp.pop %v5379
    %v5384 = vmul.f32 1.0, %v5383
    %v5385 = vrcp.pop %v5380
    %v5386 = vmul.f32 1.0, %v5385
    %v5387 = vrcp.pop %v5381
    %v5388 = vmul.f32 1.0, %v5387
    %v5389 = vrcp.pop %v5382
    %v5390 = vmul.f32 1.0, %v5389
    %v5391 = vmul.f32 %v5356, %v4708
    %v5392 = vmul.f32 %v5358, %v4709
    %v5393 = vmul.f32 %v5360, %v4710
    %v5394 = vmul.f32 %v5362, %v4711
    %v5395 = vmul.f32 %v5332, %v5363
    %v5396 = vmul.f32 %v5334, %v5364
    %v5397 = vmul.f32 %v5336, %v5365
    %v5398 = vmul.f32 %v5338, %v5366
    %v5399 = vadd.f32 %v5391, %v5395
    %v5400 = vadd.f32 %v5392, %v5396
    %v5401 = vadd.f32 %v5393, %v5397
    %v5402 = vadd.f32 %v5394, %v5398
    %v5403 = vtanh.pop %v5399
    %v5404 = vtanh.pop %v5400
    %v5405 = vtanh.pop %v5401
    %v5406 = vtanh.pop %v5402
    %v5407 = vmul.f32 %v5384, %v5403
    %v5408 = vmul.f32 %v5386, %v5404
    %v5409 = vmul.f32 %v5388, %v5405
    %v5410 = vmul.f32 %v5390, %v5406
    %v5411 = vld [vmem:[%s3216] sm:$0x1]
    %v5412 = vld [vmem:[%s3214] sm:$0x1]
    %v5414 = vlaneseq
    %v5415 = vshrl.u32 %v5414, 7
    %v5416 = vsub.s32 0, %v5415
    %v5417 = vrot.slane %v5411, %v5416
    %v5420 = vlaneseq
    %v5421 = vshrl.u32 %v5420, 7
    %v5422 = vsub.s32 0, %v5421
    %v5423 = vrot.slane %v5412, %v5422
    %v5425 = vsel %vm173, %v5417, %v5423
    %v5426 = vsel %vm174, %v5417, %v5423
    %v5427 = vsel %vm175, %v5417, %v5423
    %v5428 = vsel %vm176, %v5417, %v5423
    %vm5429 = vcmp.gt.f32.partialorder %v5425, 0.5
    %vm5430 = vcmp.gt.f32.partialorder %v5426, 0.5
    %vm5431 = vcmp.gt.f32.partialorder %v5427, 0.5
    %vm5432 = vcmp.gt.f32.partialorder %v5428, 0.5
    %v5433 = vsel %vm5429, %v5407, %v4704
    %v5434 = vsel %vm5430, %v5408, %v4705
    %v5435 = vsel %vm5431, %v5409, %v4706
    %v5436 = vsel %vm5432, %v5410, %v4707
    %v5437 = vsel %vm5429, %v5399, %v4708
    %v5438 = vsel %vm5430, %v5400, %v4709
    %v5439 = vsel %vm5431, %v5401, %v4710
    %v5440 = vsel %vm5432, %v5402, %v4711
    %v5441 = vsel %vm5429, %v5407, 0.0
    %v5442 = vsel %vm5430, %v5408, 0.0
    %v5443 = vsel %vm5431, %v5409, 0.0
    %v5444 = vsel %vm5432, %v5410, 0.0
    %5445 = vst [vmem:[%s3253] sm:$0xff] %v5441
    %5446 = vst [vmem:[%s3253 + $0x8] sm:$0xff] %v5442
    %5447 = vst [vmem:[%s3250 + $0x10] sm:$0xff] %v5443
    %5448 = vst [vmem:[%s3250 + $0x18] sm:$0xff] %v5444
    %v5449 = vld [vmem:[%s1803] sm:$0xff]
    %v5450 = vld [vmem:[%s1803 + $0x8] sm:$0xff]
    %v5451 = vld [vmem:[%s1803 + $0x10] sm:$0xff]
    %v5452 = vld [vmem:[%s1803 + $0x18] sm:$0xff]
    %v5453 = vld [vmem:[%s1803 + $0x20] sm:$0xff]
    %v5454 = vld [vmem:[%s1803 + $0x28] sm:$0xff]
    %v5455 = vld [vmem:[%s1803 + $0x30] sm:$0xff]
    %v5456 = vld [vmem:[%s1803 + $0x38] sm:$0xff]
    %v5457 = vld [vmem:[%s1803 + $0x40] sm:$0xff]
    %v5458 = vld [vmem:[%s1803 + $0x48] sm:$0xff]
    %v5459 = vld [vmem:[%s1803 + $0x50] sm:$0xff]
    %v5460 = vld [vmem:[%s1803 + $0x58] sm:$0xff]
    %v5461 = vld [vmem:[%s1803 + $0x60] sm:$0xff]
    %v5462 = vld [vmem:[%s1803 + $0x68] sm:$0xff]
    %v5463 = vld [vmem:[%s1803 + $0x70] sm:$0xff]
    %v5464 = vld [vmem:[%s1803 + $0x78] sm:$0xff]
    %v5465 = vld [vmem:[%s1786] sm:$0xff]
    %v5466 = vld [vmem:[%s1786 + $0x8] sm:$0xff]
    %v5467 = vld [vmem:[%s1786 + $0x10] sm:$0xff]
    %v5468 = vld [vmem:[%s1786 + $0x18] sm:$0xff]
    %v5469 = vld [vmem:[%s1786 + $0x20] sm:$0xff]
    %v5470 = vld [vmem:[%s1786 + $0x28] sm:$0xff]
    %v5471 = vld [vmem:[%s1786 + $0x30] sm:$0xff]
    %v5472 = vld [vmem:[%s1786 + $0x38] sm:$0xff]
    %v5473 = vld [vmem:[%s1786 + $0x40] sm:$0xff]
    %v5474 = vld [vmem:[%s1786 + $0x48] sm:$0xff]
    %v5475 = vld [vmem:[%s1786 + $0x50] sm:$0xff]
    %v5476 = vld [vmem:[%s1786 + $0x58] sm:$0xff]
    %v5477 = vld [vmem:[%s1786 + $0x60] sm:$0xff]
    %v5478 = vld [vmem:[%s1786 + $0x68] sm:$0xff]
    %v5479 = vld [vmem:[%s1786 + $0x70] sm:$0xff]
    %v5480 = vld [vmem:[%s1786 + $0x78] sm:$0xff]
    %v5482 = vsel %vm210, %v5465, 0
    %v5485 = vsel %vm210, %v5466, 0
    %v5488 = vsel %vm210, %v5467, 0
    %v5491 = vsel %vm210, %v5468, 0
    %v5494 = vsel %vm210, %v5469, 0
    %v5497 = vsel %vm210, %v5470, 0
    %v5500 = vsel %vm210, %v5471, 0
    %v5503 = vsel %vm210, %v5472, 0
    %v5506 = vsel %vm210, %v5473, 0
    %v5509 = vsel %vm210, %v5474, 0
    %v5512 = vsel %vm210, %v5475, 0
    %v5515 = vsel %vm210, %v5476, 0
    %v5518 = vsel %vm210, %v5477, 0
    %v5521 = vsel %vm210, %v5478, 0
    %v5524 = vsel %vm210, %v5479, 0
    %v5527 = vsel %vm210, %v5480, 0
    %5529 = vmatprep.subr.mxu0 0.0
    %5530 = vmatpush1.xpose.msra.mxu0 %v5482
    %5531 = vmatprep.subr.mxu0 0.0
    %5532 = vmatpush1.xpose.msra.mxu0 %v5485
    %5533 = vmatprep.subr.mxu0 0.0
    %5534 = vmatpush1.xpose.msra.mxu0 %v5488
    %5535 = vmatprep.subr.mxu0 0.0
    %5536 = vmatpush1.xpose.msra.mxu0 %v5491
    %5537 = vmatprep.subr.mxu0 0.0
    %5538 = vmatpush1.xpose.msra.mxu0 %v5494
    %5539 = vmatprep.subr.mxu0 0.0
    %5540 = vmatpush1.xpose.msra.mxu0 %v5497
    %5541 = vmatprep.subr.mxu0 0.0
    %5542 = vmatpush1.xpose.msra.mxu0 %v5500
    %5543 = vmatprep.subr.mxu0 0.0
    %5544 = vmatpush1.xpose.msra.mxu0 %v5503
    %5545 = vmatprep.subr.mxu0 0.0
    %5546 = vmatpush1.xpose.msra.mxu0 %v5506
    %5547 = vmatprep.subr.mxu0 0.0
    %5548 = vmatpush1.xpose.msra.mxu0 %v5509
    %5549 = vmatprep.subr.mxu0 0.0
    %5550 = vmatpush1.xpose.msra.mxu0 %v5512
    %5551 = vmatprep.subr.mxu0 0.0
    %5552 = vmatpush1.xpose.msra.mxu0 %v5515
    %5553 = vmatprep.subr.mxu0 0.0
    %5554 = vmatpush1.xpose.msra.mxu0 %v5518
    %5555 = vmatprep.subr.mxu0 0.0
    %5556 = vmatpush1.xpose.msra.mxu0 %v5521
    %5557 = vmatprep.subr.mxu0 0.0
    %5558 = vmatpush1.xpose.msra.mxu0 %v5524
    %5559 = vmatprep.subr.mxu0 0.0
    %5560 = vmatpush1.xpose.msra.mxu0 %v5527
    %5561 = vmatprep.subr.mxu0 0.0
    %5562 = vmatpush1.xpose.msra.mxu0 0.0
    %5563 = vmatprep.subr.mxu0 0.0
    %5564 = vmatpush1.xpose.msra.mxu0 0.0
    %5565 = vmatprep.subr.mxu0 0.0
    %5566 = vmatpush1.xpose.msra.mxu0 0.0
    %5567 = vmatprep.subr.mxu0 0.0
    %5568 = vmatpush1.xpose.msra.mxu0 0.0
    %5569 = vmatprep.subr.mxu0 0.0
    %5570 = vmatpush1.xpose.msra.mxu0 0.0
    %5571 = vmatprep.subr.mxu0 0.0
    %5572 = vmatpush1.xpose.msra.mxu0 0.0
    %5573 = vmatprep.subr.mxu0 0.0
    %5574 = vmatpush1.xpose.msra.mxu0 0.0
    %5575 = vmatprep.subr.mxu0 0.0
    %5576 = vmatpush1.xpose.msra.mxu0 0.0
    %5577 = vmatprep.subr.mxu0 0.0
    %5578 = vmatpush1.xpose.msra.mxu0 0.0
    %5579 = vmatprep.subr.mxu0 0.0
    %5580 = vmatpush1.xpose.msra.mxu0 0.0
    %5581 = vmatprep.subr.mxu0 0.0
    %5582 = vmatpush1.xpose.msra.mxu0 0.0
    %5583 = vmatprep.subr.mxu0 0.0
    %5584 = vmatpush1.xpose.msra.mxu0 0.0
    %5585 = vmatprep.subr.mxu0 0.0
    %5586 = vmatpush1.xpose.msra.mxu0 0.0
    %5587 = vmatprep.subr.mxu0 0.0
    %5588 = vmatpush1.xpose.msra.mxu0 0.0
    %5589 = vmatprep.subr.mxu0 0.0
    %5590 = vmatpush1.xpose.msra.mxu0 0.0
    %5591 = vmatprep.subr.mxu0 0.0
    %5592 = vmatpush1.xpose.msra.mxu0 0.0
    %5593 = vmatprep.mubr.f32.mxu0 0.0
    %5594 = vmatmul.mubr.f32.gmra.mrb[0].mxu0 %v212
    %v5595 = vpop.f32.mrb[0].mxu0
    %v5596 = vadd.f32 0.0, %v5595
    %v5597 = vpop.f32.mrb[0].mxu0
    %5598 = vmatprep.mubr.f32.mxu0 0.0
    %5599 = vmatmul.mubr.f32.gmra.mrb[0].mxu0 %v215
    %v5600 = vpop.f32.mrb[0].mxu0
    %v5601 = vadd.f32 0.0, %v5600
    %v5602 = vpop.f32.mrb[0].mxu0
    %5603 = vmatprep.mubr.f32.mxu0 0.0
    %5604 = vmatmul.mubr.f32.gmra.mrb[0].mxu0 %v218
    %v5605 = vpop.f32.mrb[0].mxu0
    %v5606 = vadd.f32 0.0, %v5605
    %v5607 = vpop.f32.mrb[0].mxu0
    %5608 = vmatprep.mubr.f32.mxu0 0.0
    %5609 = vmatmul.mubr.f32.gmra.mrb[0].mxu0 %v221
    %v5610 = vpop.f32.mrb[0].mxu0
    %v5611 = vadd.f32 0.0, %v5610
    %v5612 = vpop.f32.mrb[0].mxu0
    %5613 = vmatprep.mubr.f32.mxu0 0.0
    %5614 = vmatmul.mubr.f32.gmra.mrb[0].mxu0 %v224
    %v5615 = vpop.f32.mrb[0].mxu0
    %v5616 = vadd.f32 0.0, %v5615
    %v5617 = vpop.f32.mrb[0].mxu0
    %5618 = vmatprep.mubr.f32.mxu0 0.0
    %5619 = vmatmul.mubr.f32.gmra.mrb[0].mxu0 %v227
    %v5620 = vpop.f32.mrb[0].mxu0
    %v5621 = vadd.f32 0.0, %v5620
    %v5622 = vpop.f32.mrb[0].mxu0
    %5623 = vmatprep.mubr.f32.mxu0 0.0
    %5624 = vmatmul.mubr.f32.gmra.mrb[0].mxu0 %v230
    %v5625 = vpop.f32.mrb[0].mxu0
    %v5626 = vadd.f32 0.0, %v5625
    %v5627 = vpop.f32.mrb[0].mxu0
    %5628 = vmatprep.mubr.f32.mxu0 0.0
    %5629 = vmatmul.mubr.f32.gmra.mrb[0].mxu0 %v233
    %v5630 = vpop.f32.mrb[0].mxu0
    %v5631 = vadd.f32 0.0, %v5630
    %v5632 = vpop.f32.mrb[0].mxu0
    %5633 = vmatprep.mubr.f32.mxu0 0.0
    %5634 = vmatmul.mubr.f32.gmra.mrb[0].mxu0 %v236
    %v5635 = vpop.f32.mrb[0].mxu0
    %v5636 = vadd.f32 0.0, %v5635
    %v5637 = vpop.f32.mrb[0].mxu0
    %5638 = vmatprep.mubr.f32.mxu0 0.0
    %5639 = vmatmul.mubr.f32.gmra.mrb[0].mxu0 %v239
    %v5640 = vpop.f32.mrb[0].mxu0
    %v5641 = vadd.f32 0.0, %v5640
    %v5642 = vpop.f32.mrb[0].mxu0
    %5643 = vmatprep.mubr.f32.mxu0 0.0
    %5644 = vmatmul.mubr.f32.gmra.mrb[0].mxu0 %v242
    %v5645 = vpop.f32.mrb[0].mxu0
    %v5646 = vadd.f32 0.0, %v5645
    %v5647 = vpop.f32.mrb[0].mxu0
    %5648 = vmatprep.mubr.f32.mxu0 0.0
    %5649 = vmatmul.mubr.f32.gmra.mrb[0].mxu0 %v245
    %v5650 = vpop.f32.mrb[0].mxu0
    %v5651 = vadd.f32 0.0, %v5650
    %v5652 = vpop.f32.mrb[0].mxu0
    %5653 = vmatprep.mubr.f32.mxu0 0.0
    %5654 = vmatmul.mubr.f32.gmra.mrb[0].mxu0 %v248
    %v5655 = vpop.f32.mrb[0].mxu0
    %v5656 = vadd.f32 0.0, %v5655
    %v5657 = vpop.f32.mrb[0].mxu0
    %5658 = vmatprep.mubr.f32.mxu0 0.0
    %5659 = vmatmul.mubr.f32.gmra.mrb[0].mxu0 %v251
    %v5660 = vpop.f32.mrb[0].mxu0
    %v5661 = vadd.f32 0.0, %v5660
    %v5662 = vpop.f32.mrb[0].mxu0
    %5663 = vmatprep.mubr.f32.mxu0 0.0
    %5664 = vmatmul.mubr.f32.gmra.mrb[0].mxu0 %v254
    %v5665 = vpop.f32.mrb[0].mxu0
    %v5666 = vadd.f32 0.0, %v5665
    %v5667 = vpop.f32.mrb[0].mxu0
    %5668 = vmatprep.mubr.f32.mxu0 0.0
    %5669 = vmatmul.mubr.f32.gmra.mrb[0].mxu0 %v257
    %v5670 = vpop.f32.mrb[0].mxu0
    %v5671 = vadd.f32 0.0, %v5670
    %v5672 = vpop.f32.mrb[0].mxu0
    %5673 = vdwg.mxu0
    %v5675 = vsel %vm210, %v5449, 0
    %v5678 = vsel %vm210, %v5450, 0
    %v5681 = vsel %vm210, %v5451, 0
    %v5684 = vsel %vm210, %v5452, 0
    %v5687 = vsel %vm210, %v5453, 0
    %v5690 = vsel %vm210, %v5454, 0
    %v5693 = vsel %vm210, %v5455, 0
    %v5696 = vsel %vm210, %v5456, 0
    %v5699 = vsel %vm210, %v5457, 0
    %v5702 = vsel %vm210, %v5458, 0
    %v5705 = vsel %vm210, %v5459, 0
    %v5708 = vsel %vm210, %v5460, 0
    %v5711 = vsel %vm210, %v5461, 0
    %v5714 = vsel %vm210, %v5462, 0
    %v5717 = vsel %vm210, %v5463, 0
    %v5720 = vsel %vm210, %v5464, 0
    %5722 = vmatprep.subr.mxu0 0.0
    %5723 = vmatpush1.xpose.msra.mxu0 %v5675
    %5724 = vmatprep.subr.mxu0 0.0
    %5725 = vmatpush1.xpose.msra.mxu0 %v5678
    %5726 = vmatprep.subr.mxu0 0.0
    %5727 = vmatpush1.xpose.msra.mxu0 %v5681
    %5728 = vmatprep.subr.mxu0 0.0
    %5729 = vmatpush1.xpose.msra.mxu0 %v5684
    %5730 = vmatprep.subr.mxu0 0.0
    %5731 = vmatpush1.xpose.msra.mxu0 %v5687
    %5732 = vmatprep.subr.mxu0 0.0
    %5733 = vmatpush1.xpose.msra.mxu0 %v5690
    %5734 = vmatprep.subr.mxu0 0.0
    %5735 = vmatpush1.xpose.msra.mxu0 %v5693
    %5736 = vmatprep.subr.mxu0 0.0
    %5737 = vmatpush1.xpose.msra.mxu0 %v5696
    %5738 = vmatprep.subr.mxu0 0.0
    %5739 = vmatpush1.xpose.msra.mxu0 %v5699
    %5740 = vmatprep.subr.mxu0 0.0
    %5741 = vmatpush1.xpose.msra.mxu0 %v5702
    %5742 = vmatprep.subr.mxu0 0.0
    %5743 = vmatpush1.xpose.msra.mxu0 %v5705
    %5744 = vmatprep.subr.mxu0 0.0
    %5745 = vmatpush1.xpose.msra.mxu0 %v5708
    %5746 = vmatprep.subr.mxu0 0.0
    %5747 = vmatpush1.xpose.msra.mxu0 %v5711
    %5748 = vmatprep.subr.mxu0 0.0
    %5749 = vmatpush1.xpose.msra.mxu0 %v5714
    %5750 = vmatprep.subr.mxu0 0.0
    %5751 = vmatpush1.xpose.msra.mxu0 %v5717
    %5752 = vmatprep.subr.mxu0 0.0
    %5753 = vmatpush1.xpose.msra.mxu0 %v5720
    %5754 = vmatprep.subr.mxu0 0.0
    %5755 = vmatpush1.xpose.msra.mxu0 0.0
    %5756 = vmatprep.subr.mxu0 0.0
    %5757 = vmatpush1.xpose.msra.mxu0 0.0
    %5758 = vmatprep.subr.mxu0 0.0
    %5759 = vmatpush1.xpose.msra.mxu0 0.0
    %5760 = vmatprep.subr.mxu0 0.0
    %5761 = vmatpush1.xpose.msra.mxu0 0.0
    %5762 = vmatprep.subr.mxu0 0.0
    %5763 = vmatpush1.xpose.msra.mxu0 0.0
    %5764 = vmatprep.subr.mxu0 0.0
    %5765 = vmatpush1.xpose.msra.mxu0 0.0
    %5766 = vmatprep.subr.mxu0 0.0
    %5767 = vmatpush1.xpose.msra.mxu0 0.0
    %5768 = vmatprep.subr.mxu0 0.0
    %5769 = vmatpush1.xpose.msra.mxu0 0.0
    %5770 = vmatprep.subr.mxu0 0.0
    %5771 = vmatpush1.xpose.msra.mxu0 0.0
    %5772 = vmatprep.subr.mxu0 0.0
    %5773 = vmatpush1.xpose.msra.mxu0 0.0
    %5774 = vmatprep.subr.mxu0 0.0
    %5775 = vmatpush1.xpose.msra.mxu0 0.0
    %5776 = vmatprep.subr.mxu0 0.0
    %5777 = vmatpush1.xpose.msra.mxu0 0.0
    %5778 = vmatprep.subr.mxu0 0.0
    %5779 = vmatpush1.xpose.msra.mxu0 0.0
    %5780 = vmatprep.subr.mxu0 0.0
    %5781 = vmatpush1.xpose.msra.mxu0 0.0
    %5782 = vmatprep.subr.mxu0 0.0
    %5783 = vmatpush1.xpose.msra.mxu0 0.0
    %5784 = vmatprep.subr.mxu0 0.0
    %5785 = vmatpush1.xpose.msra.mxu0 0.0
    %5786 = vmatprep.mubr.f32.mxu0 0.0
    %5787 = vmatmul.mubr.f32.gmra.mrb[0].mxu0 %v453
    %v5788 = vpop.f32.mrb[0].mxu0
    %v5789 = vadd.f32 %v5596, %v5788
    %v5790 = vpop.f32.mrb[0].mxu0
    %5791 = vmatprep.mubr.f32.mxu0 0.0
    %5792 = vmatmul.mubr.f32.gmra.mrb[0].mxu0 %v456
    %v5793 = vpop.f32.mrb[0].mxu0
    %v5794 = vadd.f32 %v5601, %v5793
    %v5795 = vpop.f32.mrb[0].mxu0
    %5796 = vmatprep.mubr.f32.mxu0 0.0
    %5797 = vmatmul.mubr.f32.gmra.mrb[0].mxu0 %v459
    %v5798 = vpop.f32.mrb[0].mxu0
    %v5799 = vadd.f32 %v5606, %v5798
    %v5800 = vpop.f32.mrb[0].mxu0
    %5801 = vmatprep.mubr.f32.mxu0 0.0
    %5802 = vmatmul.mubr.f32.gmra.mrb[0].mxu0 %v462
    %v5803 = vpop.f32.mrb[0].mxu0
    %v5804 = vadd.f32 %v5611, %v5803
    %v5805 = vpop.f32.mrb[0].mxu0
    %5806 = vmatprep.mubr.f32.mxu0 0.0
    %5807 = vmatmul.mubr.f32.gmra.mrb[0].mxu0 %v465
    %v5808 = vpop.f32.mrb[0].mxu0
    %v5809 = vadd.f32 %v5616, %v5808
    %v5810 = vpop.f32.mrb[0].mxu0
    %5811 = vmatprep.mubr.f32.mxu0 0.0
    %5812 = vmatmul.mubr.f32.gmra.mrb[0].mxu0 %v468
    %v5813 = vpop.f32.mrb[0].mxu0
    %v5814 = vadd.f32 %v5621, %v5813
    %v5815 = vpop.f32.mrb[0].mxu0
    %5816 = vmatprep.mubr.f32.mxu0 0.0
    %5817 = vmatmul.mubr.f32.gmra.mrb[0].mxu0 %v471
    %v5818 = vpop.f32.mrb[0].mxu0
    %v5819 = vadd.f32 %v5626, %v5818
    %v5820 = vpop.f32.mrb[0].mxu0
    %5821 = vmatprep.mubr.f32.mxu0 0.0
    %5822 = vmatmul.mubr.f32.gmra.mrb[0].mxu0 %v474
    %v5823 = vpop.f32.mrb[0].mxu0
    %v5824 = vadd.f32 %v5631, %v5823
    %v5825 = vpop.f32.mrb[0].mxu0
    %5826 = vmatprep.mubr.f32.mxu0 0.0
    %5827 = vmatmul.mubr.f32.gmra.mrb[0].mxu0 %v477
    %v5828 = vpop.f32.mrb[0].mxu0
    %v5829 = vadd.f32 %v5636, %v5828
    %v5830 = vpop.f32.mrb[0].mxu0
    %5831 = vmatprep.mubr.f32.mxu0 0.0
    %5832 = vmatmul.mubr.f32.gmra.mrb[0].mxu0 %v480
    %v5833 = vpop.f32.mrb[0].mxu0
    %v5834 = vadd.f32 %v5641, %v5833
    %v5835 = vpop.f32.mrb[0].mxu0
    %5836 = vmatprep.mubr.f32.mxu0 0.0
    %5837 = vmatmul.mubr.f32.gmra.mrb[0].mxu0 %v483
    %v5838 = vpop.f32.mrb[0].mxu0
    %v5839 = vadd.f32 %v5646, %v5838
    %v5840 = vpop.f32.mrb[0].mxu0
    %5841 = vmatprep.mubr.f32.mxu0 0.0
    %5842 = vmatmul.mubr.f32.gmra.mrb[0].mxu0 %v486
    %v5843 = vpop.f32.mrb[0].mxu0
    %v5844 = vadd.f32 %v5651, %v5843
    %v5845 = vpop.f32.mrb[0].mxu0
    %5846 = vmatprep.mubr.f32.mxu0 0.0
    %5847 = vmatmul.mubr.f32.gmra.mrb[0].mxu0 %v489
    %v5848 = vpop.f32.mrb[0].mxu0
    %v5849 = vadd.f32 %v5656, %v5848
    %v5850 = vpop.f32.mrb[0].mxu0
    %5851 = vmatprep.mubr.f32.mxu0 0.0
    %5852 = vmatmul.mubr.f32.gmra.mrb[0].mxu0 %v492
    %v5853 = vpop.f32.mrb[0].mxu0
    %v5854 = vadd.f32 %v5661, %v5853
    %v5855 = vpop.f32.mrb[0].mxu0
    %5856 = vmatprep.mubr.f32.mxu0 0.0
    %5857 = vmatmul.mubr.f32.gmra.mrb[0].mxu0 %v495
    %v5858 = vpop.f32.mrb[0].mxu0
    %v5859 = vadd.f32 %v5666, %v5858
    %v5860 = vpop.f32.mrb[0].mxu0
    %5861 = vmatprep.mubr.f32.mxu0 0.0
    %5862 = vmatmul.mubr.f32.gmra.mrb[0].mxu0 %v498
    %v5863 = vpop.f32.mrb[0].mxu0
    %v5864 = vadd.f32 %v5671, %v5863
    %v5865 = vpop.f32.mrb[0].mxu0
    %5866 = vdwg.mxu0
    %5867 = vmatprep.subr.mxu0 0.0
    %5868 = vmatpush1.msra.mxu0 %v5433
    %5869 = vmatprep.subr.mxu0 0.0
    %5870 = vmatpush1.msra.mxu0 %v5434
    %5871 = vmatprep.subr.mxu0 0.0
    %5872 = vmatpush1.msra.mxu0 %v5435
    %5873 = vmatprep.subr.mxu0 0.0
    %5874 = vmatpush1.msra.mxu0 %v5436
    %5875 = vmatprep.subr.mxu0 0.0
    %5876 = vmatpush1.msra.mxu0 0.0
    %5877 = vmatprep.subr.mxu0 0.0
    %5878 = vmatpush1.msra.mxu0 0.0
    %5879 = vmatprep.subr.mxu0 0.0
    %5880 = vmatpush1.msra.mxu0 0.0
    %5881 = vmatprep.subr.mxu0 0.0
    %5882 = vmatpush1.msra.mxu0 0.0
    %5883 = vmatprep.subr.mxu0 0.0
    %5884 = vmatpush1.msra.mxu0 0.0
    %5885 = vmatprep.subr.mxu0 0.0
    %5886 = vmatpush1.msra.mxu0 0.0
    %5887 = vmatprep.subr.mxu0 0.0
    %5888 = vmatpush1.msra.mxu0 0.0
    %5889 = vmatprep.subr.mxu0 0.0
    %5890 = vmatpush1.msra.mxu0 0.0
    %5891 = vmatprep.subr.mxu0 0.0
    %5892 = vmatpush1.msra.mxu0 0.0
    %5893 = vmatprep.subr.mxu0 0.0
    %5894 = vmatpush1.msra.mxu0 0.0
    %5895 = vmatprep.subr.mxu0 0.0
    %5896 = vmatpush1.msra.mxu0 0.0
    %5897 = vmatprep.subr.mxu0 0.0
    %5898 = vmatpush1.msra.mxu0 0.0
    %5899 = vmatprep.subr.mxu0 0.0
    %5900 = vmatpush1.msra.mxu0 0.0
    %5901 = vmatprep.subr.mxu0 0.0
    %5902 = vmatpush1.msra.mxu0 0.0
    %5903 = vmatprep.subr.mxu0 0.0
    %5904 = vmatpush1.msra.mxu0 0.0
    %5905 = vmatprep.subr.mxu0 0.0
    %5906 = vmatpush1.msra.mxu0 0.0
    %5907 = vmatprep.subr.mxu0 0.0
    %5908 = vmatpush1.msra.mxu0 0.0
    %5909 = vmatprep.subr.mxu0 0.0
    %5910 = vmatpush1.msra.mxu0 0.0
    %5911 = vmatprep.subr.mxu0 0.0
    %5912 = vmatpush1.msra.mxu0 0.0
    %5913 = vmatprep.subr.mxu0 0.0
    %5914 = vmatpush1.msra.mxu0 0.0
    %5915 = vmatprep.subr.mxu0 0.0
    %5916 = vmatpush1.msra.mxu0 0.0
    %5917 = vmatprep.subr.mxu0 0.0
    %5918 = vmatpush1.msra.mxu0 0.0
    %5919 = vmatprep.subr.mxu0 0.0
    %5920 = vmatpush1.msra.mxu0 0.0
    %5921 = vmatprep.subr.mxu0 0.0
    %5922 = vmatpush1.msra.mxu0 0.0
    %5923 = vmatprep.subr.mxu0 0.0
    %5924 = vmatpush1.msra.mxu0 0.0
    %5925 = vmatprep.subr.mxu0 0.0
    %5926 = vmatpush1.msra.mxu0 0.0
    %5927 = vmatprep.subr.mxu0 0.0
    %5928 = vmatpush1.msra.mxu0 0.0
    %5929 = vmatprep.subr.mxu0 0.0
    %5930 = vmatpush1.msra.mxu0 0.0
    %5931 = vmatprep.mubr.f32.mxu0 0.0
    %5932 = vmatmul.mubr.f32.gmra.mrb[0].mxu0 %v695
    %v5933 = vpop.f32.mrb[0].mxu0
    %v5934 = vadd.f32 0.0, %v5933
    %v5935 = vpop.f32.mrb[0].mxu0
    %5936 = vmatprep.mubr.f32.mxu0 0.0
    %5937 = vmatmul.mubr.f32.gmra.mrb[0].mxu0 %v698
    %v5938 = vpop.f32.mrb[0].mxu0
    %v5939 = vadd.f32 0.0, %v5938
    %v5940 = vpop.f32.mrb[0].mxu0
    %5941 = vmatprep.mubr.f32.mxu0 0.0
    %5942 = vmatmul.mubr.f32.gmra.mrb[0].mxu0 %v701
    %v5943 = vpop.f32.mrb[0].mxu0
    %v5944 = vadd.f32 0.0, %v5943
    %v5945 = vpop.f32.mrb[0].mxu0
    %5946 = vmatprep.mubr.f32.mxu0 0.0
    %5947 = vmatmul.mubr.f32.gmra.mrb[0].mxu0 %v704
    %v5948 = vpop.f32.mrb[0].mxu0
    %v5949 = vadd.f32 0.0, %v5948
    %v5950 = vpop.f32.mrb[0].mxu0
    %5951 = vmatprep.mubr.f32.mxu0 0.0
    %5952 = vmatmul.mubr.f32.gmra.mrb[0].mxu0 %v707
    %v5953 = vpop.f32.mrb[0].mxu0
    %v5954 = vadd.f32 0.0, %v5953
    %v5955 = vpop.f32.mrb[0].mxu0
    %5956 = vmatprep.mubr.f32.mxu0 0.0
    %5957 = vmatmul.mubr.f32.gmra.mrb[0].mxu0 %v710
    %v5958 = vpop.f32.mrb[0].mxu0
    %v5959 = vadd.f32 0.0, %v5958
    %v5960 = vpop.f32.mrb[0].mxu0
    %5961 = vmatprep.mubr.f32.mxu0 0.0
    %5962 = vmatmul.mubr.f32.gmra.mrb[0].mxu0 %v713
    %v5963 = vpop.f32.mrb[0].mxu0
    %v5964 = vadd.f32 0.0, %v5963
    %v5965 = vpop.f32.mrb[0].mxu0
    %5966 = vmatprep.mubr.f32.mxu0 0.0
    %5967 = vmatmul.mubr.f32.gmra.mrb[0].mxu0 %v716
    %v5968 = vpop.f32.mrb[0].mxu0
    %v5969 = vadd.f32 0.0, %v5968
    %v5970 = vpop.f32.mrb[0].mxu0
    %5971 = vmatprep.mubr.f32.mxu0 0.0
    %5972 = vmatmul.mubr.f32.gmra.mrb[0].mxu0 %v719
    %v5973 = vpop.f32.mrb[0].mxu0
    %v5974 = vadd.f32 0.0, %v5973
    %v5975 = vpop.f32.mrb[0].mxu0
    %5976 = vmatprep.mubr.f32.mxu0 0.0
    %5977 = vmatmul.mubr.f32.gmra.mrb[0].mxu0 %v722
    %v5978 = vpop.f32.mrb[0].mxu0
    %v5979 = vadd.f32 0.0, %v5978
    %v5980 = vpop.f32.mrb[0].mxu0
    %5981 = vmatprep.mubr.f32.mxu0 0.0
    %5982 = vmatmul.mubr.f32.gmra.mrb[0].mxu0 %v725
    %v5983 = vpop.f32.mrb[0].mxu0
    %v5984 = vadd.f32 0.0, %v5983
    %v5985 = vpop.f32.mrb[0].mxu0
    %5986 = vmatprep.mubr.f32.mxu0 0.0
    %5987 = vmatmul.mubr.f32.gmra.mrb[0].mxu0 %v728
    %v5988 = vpop.f32.mrb[0].mxu0
    %v5989 = vadd.f32 0.0, %v5988
    %v5990 = vpop.f32.mrb[0].mxu0
    %5991 = vmatprep.mubr.f32.mxu0 0.0
    %5992 = vmatmul.mubr.f32.gmra.mrb[0].mxu0 %v731
    %v5993 = vpop.f32.mrb[0].mxu0
    %v5994 = vadd.f32 0.0, %v5993
    %v5995 = vpop.f32.mrb[0].mxu0
    %5996 = vmatprep.mubr.f32.mxu0 0.0
    %5997 = vmatmul.mubr.f32.gmra.mrb[0].mxu0 %v734
    %v5998 = vpop.f32.mrb[0].mxu0
    %v5999 = vadd.f32 0.0, %v5998
    %v6000 = vpop.f32.mrb[0].mxu0
    %6001 = vmatprep.mubr.f32.mxu0 0.0
    %6002 = vmatmul.mubr.f32.gmra.mrb[0].mxu0 %v737
    %v6003 = vpop.f32.mrb[0].mxu0
    %v6004 = vadd.f32 0.0, %v6003
    %v6005 = vpop.f32.mrb[0].mxu0
    %6006 = vmatprep.mubr.f32.mxu0 0.0
    %6007 = vmatmul.mubr.f32.gmra.mrb[0].mxu0 %v740
    %v6008 = vpop.f32.mrb[0].mxu0
    %v6009 = vadd.f32 0.0, %v6008
    %v6010 = vpop.f32.mrb[0].mxu0
    %6011 = vdwg.mxu0
    %v6012 = vadd.f32 %v5789, %v5934
    %v6013 = vadd.f32 %v5794, %v5939
    %v6014 = vadd.f32 %v5799, %v5944
    %v6015 = vadd.f32 %v5804, %v5949
    %v6016 = vadd.f32 %v5809, %v5954
    %v6017 = vadd.f32 %v5814, %v5959
    %v6018 = vadd.f32 %v5819, %v5964
    %v6019 = vadd.f32 %v5824, %v5969
    %v6020 = vadd.f32 %v5829, %v5974
    %v6021 = vadd.f32 %v5834, %v5979
    %v6022 = vadd.f32 %v5839, %v5984
    %v6023 = vadd.f32 %v5844, %v5989
    %v6024 = vadd.f32 %v5849, %v5994
    %v6025 = vadd.f32 %v5854, %v5999
    %v6026 = vadd.f32 %v5859, %v6004
    %v6027 = vadd.f32 %v5864, %v6009
    %v6028 = vadd.f32 %v6012, %v91
    %v6029 = vadd.f32 %v6013, %v96
    %v6030 = vadd.f32 %v6014, %v101
    %v6031 = vadd.f32 %v6015, %v106
    %v6032 = vadd.f32 %v6016, %v111
    %v6033 = vadd.f32 %v6017, %v116
    %v6034 = vadd.f32 %v6018, %v121
    %v6035 = vadd.f32 %v6019, %v126
    %v6036 = vadd.f32 %v6020, %v131
    %v6037 = vadd.f32 %v6021, %v136
    %v6038 = vadd.f32 %v6022, %v141
    %v6039 = vadd.f32 %v6023, %v146
    %v6040 = vadd.f32 %v6024, %v151
    %v6041 = vadd.f32 %v6025, %v156
    %v6042 = vadd.f32 %v6026, %v161
    %v6043 = vadd.f32 %v6027, %v166
    %v6044 = vxor.u32 %v6028, 2147483648
    %v6045 = vxor.u32 %v6029, 2147483648
    %v6046 = vxor.u32 %v6030, 2147483648
    %v6047 = vxor.u32 %v6031, 2147483648
    %v6048 = vmul.f32 %v6044, 1.442695
    %v6049 = vpow.pop %v6048
    %v6050 = vmul.f32 %v6045, 1.442695
    %v6051 = vpow.pop %v6050
    %v6052 = vmul.f32 %v6046, 1.442695
    %v6053 = vpow.pop %v6052
    %v6054 = vmul.f32 %v6047, 1.442695
    %v6055 = vpow.pop %v6054
    %v6056 = vadd.f32 %v6049, 1.0
    %v6057 = vadd.f32 %v6051, 1.0
    %v6058 = vadd.f32 %v6053, 1.0
    %v6059 = vadd.f32 %v6055, 1.0
    %v6060 = vrcp.pop %v6056
    %v6061 = vmul.f32 1.0, %v6060
    %v6062 = vrcp.pop %v6057
    %v6063 = vmul.f32 1.0, %v6062
    %v6064 = vrcp.pop %v6058
    %v6065 = vmul.f32 1.0, %v6064
    %v6066 = vrcp.pop %v6059
    %v6067 = vmul.f32 1.0, %v6066
    %v6068 = vxor.u32 %v6032, 2147483648
    %v6069 = vxor.u32 %v6033, 2147483648
    %v6070 = vxor.u32 %v6034, 2147483648
    %v6071 = vxor.u32 %v6035, 2147483648
    %v6072 = vmul.f32 %v6068, 1.442695
    %v6073 = vpow.pop %v6072
    %v6074 = vmul.f32 %v6069, 1.442695
    %v6075 = vpow.pop %v6074
    %v6076 = vmul.f32 %v6070, 1.442695
    %v6077 = vpow.pop %v6076
    %v6078 = vmul.f32 %v6071, 1.442695
    %v6079 = vpow.pop %v6078
    %v6080 = vadd.f32 %v6073, 1.0
    %v6081 = vadd.f32 %v6075, 1.0
    %v6082 = vadd.f32 %v6077, 1.0
    %v6083 = vadd.f32 %v6079, 1.0
    %v6084 = vrcp.pop %v6080
    %v6085 = vmul.f32 1.0, %v6084
    %v6086 = vrcp.pop %v6081
    %v6087 = vmul.f32 1.0, %v6086
    %v6088 = vrcp.pop %v6082
    %v6089 = vmul.f32 1.0, %v6088
    %v6090 = vrcp.pop %v6083
    %v6091 = vmul.f32 1.0, %v6090
    %v6092 = vtanh.pop %v6036
    %v6093 = vtanh.pop %v6037
    %v6094 = vtanh.pop %v6038
    %v6095 = vtanh.pop %v6039
    %v6096 = vxor.u32 %v6040, 2147483648
    %v6097 = vxor.u32 %v6041, 2147483648
    %v6098 = vxor.u32 %v6042, 2147483648
    %v6099 = vxor.u32 %v6043, 2147483648
    %v6100 = vmul.f32 %v6096, 1.442695
    %v6101 = vpow.pop %v6100
    %v6102 = vmul.f32 %v6097, 1.442695
    %v6103 = vpow.pop %v6102
    %v6104 = vmul.f32 %v6098, 1.442695
    %v6105 = vpow.pop %v6104
    %v6106 = vmul.f32 %v6099, 1.442695
    %v6107 = vpow.pop %v6106
    %v6108 = vadd.f32 %v6101, 1.0
    %v6109 = vadd.f32 %v6103, 1.0
    %v6110 = vadd.f32 %v6105, 1.0
    %v6111 = vadd.f32 %v6107, 1.0
    %v6112 = vrcp.pop %v6108
    %v6113 = vmul.f32 1.0, %v6112
    %v6114 = vrcp.pop %v6109
    %v6115 = vmul.f32 1.0, %v6114
    %v6116 = vrcp.pop %v6110
    %v6117 = vmul.f32 1.0, %v6116
    %v6118 = vrcp.pop %v6111
    %v6119 = vmul.f32 1.0, %v6118
    %v6120 = vmul.f32 %v6085, %v5437
    %v6121 = vmul.f32 %v6087, %v5438
    %v6122 = vmul.f32 %v6089, %v5439
    %v6123 = vmul.f32 %v6091, %v5440
    %v6124 = vmul.f32 %v6061, %v6092
    %v6125 = vmul.f32 %v6063, %v6093
    %v6126 = vmul.f32 %v6065, %v6094
    %v6127 = vmul.f32 %v6067, %v6095
    %v6128 = vadd.f32 %v6120, %v6124
    %v6129 = vadd.f32 %v6121, %v6125
    %v6130 = vadd.f32 %v6122, %v6126
    %v6131 = vadd.f32 %v6123, %v6127
    %v6132 = vtanh.pop %v6128
    %v6133 = vtanh.pop %v6129
    %v6134 = vtanh.pop %v6130
    %v6135 = vtanh.pop %v6131
    %v6136 = vmul.f32 %v6113, %v6132
    %v6137 = vmul.f32 %v6115, %v6133
    %v6138 = vmul.f32 %v6117, %v6134
    %v6139 = vmul.f32 %v6119, %v6135
    %v6140 = vld [vmem:[%s2481] sm:$0x1]
    %v6141 = vld [vmem:[%s2479] sm:$0x1]
    %v6143 = vlaneseq
    %v6144 = vshrl.u32 %v6143, 7
    %v6145 = vsub.s32 0, %v6144
    %v6146 = vrot.slane %v6140, %v6145
    %v6149 = vlaneseq
    %v6150 = vshrl.u32 %v6149, 7
    %v6151 = vsub.s32 0, %v6150
    %v6152 = vrot.slane %v6141, %v6151
    %v6154 = vsel %vm173, %v6146, %v6152
    %v6155 = vsel %vm174, %v6146, %v6152
    %v6156 = vsel %vm175, %v6146, %v6152
    %v6157 = vsel %vm176, %v6146, %v6152
    %vm6158 = vcmp.gt.f32.partialorder %v6154, 0.5
    %vm6159 = vcmp.gt.f32.partialorder %v6155, 0.5
    %vm6160 = vcmp.gt.f32.partialorder %v6156, 0.5
    %vm6161 = vcmp.gt.f32.partialorder %v6157, 0.5
    %v6162 = vsel %vm6158, %v6136, %v5433
    %v6163 = vsel %vm6159, %v6137, %v5434
    %v6164 = vsel %vm6160, %v6138, %v5435
    %v6165 = vsel %vm6161, %v6139, %v5436
    %v6166 = vsel %vm6158, %v6128, %v5437
    %v6167 = vsel %vm6159, %v6129, %v5438
    %v6168 = vsel %vm6160, %v6130, %v5439
    %v6169 = vsel %vm6161, %v6131, %v5440
    %v6170 = vsel %vm6158, %v6136, 0.0
    %v6171 = vsel %vm6159, %v6137, 0.0
    %v6172 = vsel %vm6160, %v6138, 0.0
    %v6173 = vsel %vm6161, %v6139, 0.0
    %6174 = vst [vmem:[%s2518] sm:$0xff] %v6170
    %6175 = vst [vmem:[%s2518 + $0x8] sm:$0xff] %v6171
    %6176 = vst [vmem:[%s2515 + $0x10] sm:$0xff] %v6172
    %6177 = vst [vmem:[%s2515 + $0x18] sm:$0xff] %v6173
    %v6178 = vld [vmem:[%s1068] sm:$0xff]
    %v6179 = vld [vmem:[%s1068 + $0x8] sm:$0xff]
    %v6180 = vld [vmem:[%s1068 + $0x10] sm:$0xff]
    %v6181 = vld [vmem:[%s1068 + $0x18] sm:$0xff]
    %v6182 = vld [vmem:[%s1068 + $0x20] sm:$0xff]
    %v6183 = vld [vmem:[%s1068 + $0x28] sm:$0xff]
    %v6184 = vld [vmem:[%s1068 + $0x30] sm:$0xff]
    %v6185 = vld [vmem:[%s1068 + $0x38] sm:$0xff]
    %v6186 = vld [vmem:[%s1068 + $0x40] sm:$0xff]
    %v6187 = vld [vmem:[%s1068 + $0x48] sm:$0xff]
    %v6188 = vld [vmem:[%s1068 + $0x50] sm:$0xff]
    %v6189 = vld [vmem:[%s1068 + $0x58] sm:$0xff]
    %v6190 = vld [vmem:[%s1068 + $0x60] sm:$0xff]
    %v6191 = vld [vmem:[%s1068 + $0x68] sm:$0xff]
    %v6192 = vld [vmem:[%s1068 + $0x70] sm:$0xff]
    %v6193 = vld [vmem:[%s1068 + $0x78] sm:$0xff]
    %v6194 = vld [vmem:[%s1051] sm:$0xff]
    %v6195 = vld [vmem:[%s1051 + $0x8] sm:$0xff]
    %v6196 = vld [vmem:[%s1051 + $0x10] sm:$0xff]
    %v6197 = vld [vmem:[%s1051 + $0x18] sm:$0xff]
    %v6198 = vld [vmem:[%s1051 + $0x20] sm:$0xff]
    %v6199 = vld [vmem:[%s1051 + $0x28] sm:$0xff]
    %v6200 = vld [vmem:[%s1051 + $0x30] sm:$0xff]
    %v6201 = vld [vmem:[%s1051 + $0x38] sm:$0xff]
    %v6202 = vld [vmem:[%s1051 + $0x40] sm:$0xff]
    %v6203 = vld [vmem:[%s1051 + $0x48] sm:$0xff]
    %v6204 = vld [vmem:[%s1051 + $0x50] sm:$0xff]
    %v6205 = vld [vmem:[%s1051 + $0x58] sm:$0xff]
    %v6206 = vld [vmem:[%s1051 + $0x60] sm:$0xff]
    %v6207 = vld [vmem:[%s1051 + $0x68] sm:$0xff]
    %v6208 = vld [vmem:[%s1051 + $0x70] sm:$0xff]
    %v6209 = vld [vmem:[%s1051 + $0x78] sm:$0xff]
    %v6211 = vsel %vm210, %v6194, 0
    %v6214 = vsel %vm210, %v6195, 0
    %v6217 = vsel %vm210, %v6196, 0
    %v6220 = vsel %vm210, %v6197, 0
    %v6223 = vsel %vm210, %v6198, 0
    %v6226 = vsel %vm210, %v6199, 0
    %v6229 = vsel %vm210, %v6200, 0
    %v6232 = vsel %vm210, %v6201, 0
    %v6235 = vsel %vm210, %v6202, 0
    %v6238 = vsel %vm210, %v6203, 0
    %v6241 = vsel %vm210, %v6204, 0
    %v6244 = vsel %vm210, %v6205, 0
    %v6247 = vsel %vm210, %v6206, 0
    %v6250 = vsel %vm210, %v6207, 0
    %v6253 = vsel %vm210, %v6208, 0
    %v6256 = vsel %vm210, %v6209, 0
    %6258 = vmatprep.subr.mxu0 0.0
    %6259 = vmatpush1.xpose.msra.mxu0 %v6211
    %6260 = vmatprep.subr.mxu0 0.0
    %6261 = vmatpush1.xpose.msra.mxu0 %v6214
    %6262 = vmatprep.subr.mxu0 0.0
    %6263 = vmatpush1.xpose.msra.mxu0 %v6217
    %6264 = vmatprep.subr.mxu0 0.0
    %6265 = vmatpush1.xpose.msra.mxu0 %v6220
    %6266 = vmatprep.subr.mxu0 0.0
    %6267 = vmatpush1.xpose.msra.mxu0 %v6223
    %6268 = vmatprep.subr.mxu0 0.0
    %6269 = vmatpush1.xpose.msra.mxu0 %v6226
    %6270 = vmatprep.subr.mxu0 0.0
    %6271 = vmatpush1.xpose.msra.mxu0 %v6229
    %6272 = vmatprep.subr.mxu0 0.0
    %6273 = vmatpush1.xpose.msra.mxu0 %v6232
    %6274 = vmatprep.subr.mxu0 0.0
    %6275 = vmatpush1.xpose.msra.mxu0 %v6235
    %6276 = vmatprep.subr.mxu0 0.0
    %6277 = vmatpush1.xpose.msra.mxu0 %v6238
    %6278 = vmatprep.subr.mxu0 0.0
    %6279 = vmatpush1.xpose.msra.mxu0 %v6241
    %6280 = vmatprep.subr.mxu0 0.0
    %6281 = vmatpush1.xpose.msra.mxu0 %v6244
    %6282 = vmatprep.subr.mxu0 0.0
    %6283 = vmatpush1.xpose.msra.mxu0 %v6247
    %6284 = vmatprep.subr.mxu0 0.0
    %6285 = vmatpush1.xpose.msra.mxu0 %v6250
    %6286 = vmatprep.subr.mxu0 0.0
    %6287 = vmatpush1.xpose.msra.mxu0 %v6253
    %6288 = vmatprep.subr.mxu0 0.0
    %6289 = vmatpush1.xpose.msra.mxu0 %v6256
    %6290 = vmatprep.subr.mxu0 0.0
    %6291 = vmatpush1.xpose.msra.mxu0 0.0
    %6292 = vmatprep.subr.mxu0 0.0
    %6293 = vmatpush1.xpose.msra.mxu0 0.0
    %6294 = vmatprep.subr.mxu0 0.0
    %6295 = vmatpush1.xpose.msra.mxu0 0.0
    %6296 = vmatprep.subr.mxu0 0.0
    %6297 = vmatpush1.xpose.msra.mxu0 0.0
    %6298 = vmatprep.subr.mxu0 0.0
    %6299 = vmatpush1.xpose.msra.mxu0 0.0
    %6300 = vmatprep.subr.mxu0 0.0
    %6301 = vmatpush1.xpose.msra.mxu0 0.0
    %6302 = vmatprep.subr.mxu0 0.0
    %6303 = vmatpush1.xpose.msra.mxu0 0.0
    %6304 = vmatprep.subr.mxu0 0.0
    %6305 = vmatpush1.xpose.msra.mxu0 0.0
    %6306 = vmatprep.subr.mxu0 0.0
    %6307 = vmatpush1.xpose.msra.mxu0 0.0
    %6308 = vmatprep.subr.mxu0 0.0
    %6309 = vmatpush1.xpose.msra.mxu0 0.0
    %6310 = vmatprep.subr.mxu0 0.0
    %6311 = vmatpush1.xpose.msra.mxu0 0.0
    %6312 = vmatprep.subr.mxu0 0.0
    %6313 = vmatpush1.xpose.msra.mxu0 0.0
    %6314 = vmatprep.subr.mxu0 0.0
    %6315 = vmatpush1.xpose.msra.mxu0 0.0
    %6316 = vmatprep.subr.mxu0 0.0
    %6317 = vmatpush1.xpose.msra.mxu0 0.0
    %6318 = vmatprep.subr.mxu0 0.0
    %6319 = vmatpush1.xpose.msra.mxu0 0.0
    %6320 = vmatprep.subr.mxu0 0.0
    %6321 = vmatpush1.xpose.msra.mxu0 0.0
    %6322 = vmatprep.mubr.f32.mxu0 0.0
    %6323 = vmatmul.mubr.f32.gmra.mrb[0].mxu0 %v212
    %v6324 = vpop.f32.mrb[0].mxu0
    %v6325 = vadd.f32 0.0, %v6324
    %v6326 = vpop.f32.mrb[0].mxu0
    %6327 = vmatprep.mubr.f32.mxu0 0.0
    %6328 = vmatmul.mubr.f32.gmra.mrb[0].mxu0 %v215
    %v6329 = vpop.f32.mrb[0].mxu0
    %v6330 = vadd.f32 0.0, %v6329
    %v6331 = vpop.f32.mrb[0].mxu0
    %6332 = vmatprep.mubr.f32.mxu0 0.0
    %6333 = vmatmul.mubr.f32.gmra.mrb[0].mxu0 %v218
    %v6334 = vpop.f32.mrb[0].mxu0
    %v6335 = vadd.f32 0.0, %v6334
    %v6336 = vpop.f32.mrb[0].mxu0
    %6337 = vmatprep.mubr.f32.mxu0 0.0
    %6338 = vmatmul.mubr.f32.gmra.mrb[0].mxu0 %v221
    %v6339 = vpop.f32.mrb[0].mxu0
    %v6340 = vadd.f32 0.0, %v6339
    %v6341 = vpop.f32.mrb[0].mxu0
    %6342 = vmatprep.mubr.f32.mxu0 0.0
    %6343 = vmatmul.mubr.f32.gmra.mrb[0].mxu0 %v224
    %v6344 = vpop.f32.mrb[0].mxu0
    %v6345 = vadd.f32 0.0, %v6344
    %v6346 = vpop.f32.mrb[0].mxu0
    %6347 = vmatprep.mubr.f32.mxu0 0.0
    %6348 = vmatmul.mubr.f32.gmra.mrb[0].mxu0 %v227
    %v6349 = vpop.f32.mrb[0].mxu0
    %v6350 = vadd.f32 0.0, %v6349
    %v6351 = vpop.f32.mrb[0].mxu0
    %6352 = vmatprep.mubr.f32.mxu0 0.0
    %6353 = vmatmul.mubr.f32.gmra.mrb[0].mxu0 %v230
    %v6354 = vpop.f32.mrb[0].mxu0
    %v6355 = vadd.f32 0.0, %v6354
    %v6356 = vpop.f32.mrb[0].mxu0
    %6357 = vmatprep.mubr.f32.mxu0 0.0
    %6358 = vmatmul.mubr.f32.gmra.mrb[0].mxu0 %v233
    %v6359 = vpop.f32.mrb[0].mxu0
    %v6360 = vadd.f32 0.0, %v6359
    %v6361 = vpop.f32.mrb[0].mxu0
    %6362 = vmatprep.mubr.f32.mxu0 0.0
    %6363 = vmatmul.mubr.f32.gmra.mrb[0].mxu0 %v236
    %v6364 = vpop.f32.mrb[0].mxu0
    %v6365 = vadd.f32 0.0, %v6364
    %v6366 = vpop.f32.mrb[0].mxu0
    %6367 = vmatprep.mubr.f32.mxu0 0.0
    %6368 = vmatmul.mubr.f32.gmra.mrb[0].mxu0 %v239
    %v6369 = vpop.f32.mrb[0].mxu0
    %v6370 = vadd.f32 0.0, %v6369
    %v6371 = vpop.f32.mrb[0].mxu0
    %6372 = vmatprep.mubr.f32.mxu0 0.0
    %6373 = vmatmul.mubr.f32.gmra.mrb[0].mxu0 %v242
    %v6374 = vpop.f32.mrb[0].mxu0
    %v6375 = vadd.f32 0.0, %v6374
    %v6376 = vpop.f32.mrb[0].mxu0
    %6377 = vmatprep.mubr.f32.mxu0 0.0
    %6378 = vmatmul.mubr.f32.gmra.mrb[0].mxu0 %v245
    %v6379 = vpop.f32.mrb[0].mxu0
    %v6380 = vadd.f32 0.0, %v6379
    %v6381 = vpop.f32.mrb[0].mxu0
    %6382 = vmatprep.mubr.f32.mxu0 0.0
    %6383 = vmatmul.mubr.f32.gmra.mrb[0].mxu0 %v248
    %v6384 = vpop.f32.mrb[0].mxu0
    %v6385 = vadd.f32 0.0, %v6384
    %v6386 = vpop.f32.mrb[0].mxu0
    %6387 = vmatprep.mubr.f32.mxu0 0.0
    %6388 = vmatmul.mubr.f32.gmra.mrb[0].mxu0 %v251
    %v6389 = vpop.f32.mrb[0].mxu0
    %v6390 = vadd.f32 0.0, %v6389
    %v6391 = vpop.f32.mrb[0].mxu0
    %6392 = vmatprep.mubr.f32.mxu0 0.0
    %6393 = vmatmul.mubr.f32.gmra.mrb[0].mxu0 %v254
    %v6394 = vpop.f32.mrb[0].mxu0
    %v6395 = vadd.f32 0.0, %v6394
    %v6396 = vpop.f32.mrb[0].mxu0
    %6397 = vmatprep.mubr.f32.mxu0 0.0
    %6398 = vmatmul.mubr.f32.gmra.mrb[0].mxu0 %v257
    %v6399 = vpop.f32.mrb[0].mxu0
    %v6400 = vadd.f32 0.0, %v6399
    %v6401 = vpop.f32.mrb[0].mxu0
    %6402 = vdwg.mxu0
    %v6404 = vsel %vm210, %v6178, 0
    %v6407 = vsel %vm210, %v6179, 0
    %v6410 = vsel %vm210, %v6180, 0
    %v6413 = vsel %vm210, %v6181, 0
    %v6416 = vsel %vm210, %v6182, 0
    %v6419 = vsel %vm210, %v6183, 0
    %v6422 = vsel %vm210, %v6184, 0
    %v6425 = vsel %vm210, %v6185, 0
    %v6428 = vsel %vm210, %v6186, 0
    %v6431 = vsel %vm210, %v6187, 0
    %v6434 = vsel %vm210, %v6188, 0
    %v6437 = vsel %vm210, %v6189, 0
    %v6440 = vsel %vm210, %v6190, 0
    %v6443 = vsel %vm210, %v6191, 0
    %v6446 = vsel %vm210, %v6192, 0
    %v6449 = vsel %vm210, %v6193, 0
    %6451 = vmatprep.subr.mxu0 0.0
    %6452 = vmatpush1.xpose.msra.mxu0 %v6404
    %6453 = vmatprep.subr.mxu0 0.0
    %6454 = vmatpush1.xpose.msra.mxu0 %v6407
    %6455 = vmatprep.subr.mxu0 0.0
    %6456 = vmatpush1.xpose.msra.mxu0 %v6410
    %6457 = vmatprep.subr.mxu0 0.0
    %6458 = vmatpush1.xpose.msra.mxu0 %v6413
    %6459 = vmatprep.subr.mxu0 0.0
    %6460 = vmatpush1.xpose.msra.mxu0 %v6416
    %6461 = vmatprep.subr.mxu0 0.0
    %6462 = vmatpush1.xpose.msra.mxu0 %v6419
    %6463 = vmatprep.subr.mxu0 0.0
    %6464 = vmatpush1.xpose.msra.mxu0 %v6422
    %6465 = vmatprep.subr.mxu0 0.0
    %6466 = vmatpush1.xpose.msra.mxu0 %v6425
    %6467 = vmatprep.subr.mxu0 0.0
    %6468 = vmatpush1.xpose.msra.mxu0 %v6428
    %6469 = vmatprep.subr.mxu0 0.0
    %6470 = vmatpush1.xpose.msra.mxu0 %v6431
    %6471 = vmatprep.subr.mxu0 0.0
    %6472 = vmatpush1.xpose.msra.mxu0 %v6434
    %6473 = vmatprep.subr.mxu0 0.0
    %6474 = vmatpush1.xpose.msra.mxu0 %v6437
    %6475 = vmatprep.subr.mxu0 0.0
    %6476 = vmatpush1.xpose.msra.mxu0 %v6440
    %6477 = vmatprep.subr.mxu0 0.0
    %6478 = vmatpush1.xpose.msra.mxu0 %v6443
    %6479 = vmatprep.subr.mxu0 0.0
    %6480 = vmatpush1.xpose.msra.mxu0 %v6446
    %6481 = vmatprep.subr.mxu0 0.0
    %6482 = vmatpush1.xpose.msra.mxu0 %v6449
    %6483 = vmatprep.subr.mxu0 0.0
    %6484 = vmatpush1.xpose.msra.mxu0 0.0
    %6485 = vmatprep.subr.mxu0 0.0
    %6486 = vmatpush1.xpose.msra.mxu0 0.0
    %6487 = vmatprep.subr.mxu0 0.0
    %6488 = vmatpush1.xpose.msra.mxu0 0.0
    %6489 = vmatprep.subr.mxu0 0.0
    %6490 = vmatpush1.xpose.msra.mxu0 0.0
    %6491 = vmatprep.subr.mxu0 0.0
    %6492 = vmatpush1.xpose.msra.mxu0 0.0
    %6493 = vmatprep.subr.mxu0 0.0
    %6494 = vmatpush1.xpose.msra.mxu0 0.0
    %6495 = vmatprep.subr.mxu0 0.0
    %6496 = vmatpush1.xpose.msra.mxu0 0.0
    %6497 = vmatprep.subr.mxu0 0.0
    %6498 = vmatpush1.xpose.msra.mxu0 0.0
    %6499 = vmatprep.subr.mxu0 0.0
    %6500 = vmatpush1.xpose.msra.mxu0 0.0
    %6501 = vmatprep.subr.mxu0 0.0
    %6502 = vmatpush1.xpose.msra.mxu0 0.0
    %6503 = vmatprep.subr.mxu0 0.0
    %6504 = vmatpush1.xpose.msra.mxu0 0.0
    %6505 = vmatprep.subr.mxu0 0.0
    %6506 = vmatpush1.xpose.msra.mxu0 0.0
    %6507 = vmatprep.subr.mxu0 0.0
    %6508 = vmatpush1.xpose.msra.mxu0 0.0
    %6509 = vmatprep.subr.mxu0 0.0
    %6510 = vmatpush1.xpose.msra.mxu0 0.0
    %6511 = vmatprep.subr.mxu0 0.0
    %6512 = vmatpush1.xpose.msra.mxu0 0.0
    %6513 = vmatprep.subr.mxu0 0.0
    %6514 = vmatpush1.xpose.msra.mxu0 0.0
    %6515 = vmatprep.mubr.f32.mxu0 0.0
    %6516 = vmatmul.mubr.f32.gmra.mrb[0].mxu0 %v453
    %v6517 = vpop.f32.mrb[0].mxu0
    %v6518 = vadd.f32 %v6325, %v6517
    %v6519 = vpop.f32.mrb[0].mxu0
    %6520 = vmatprep.mubr.f32.mxu0 0.0
    %6521 = vmatmul.mubr.f32.gmra.mrb[0].mxu0 %v456
    %v6522 = vpop.f32.mrb[0].mxu0
    %v6523 = vadd.f32 %v6330, %v6522
    %v6524 = vpop.f32.mrb[0].mxu0
    %6525 = vmatprep.mubr.f32.mxu0 0.0
    %6526 = vmatmul.mubr.f32.gmra.mrb[0].mxu0 %v459
    %v6527 = vpop.f32.mrb[0].mxu0
    %v6528 = vadd.f32 %v6335, %v6527
    %v6529 = vpop.f32.mrb[0].mxu0
    %6530 = vmatprep.mubr.f32.mxu0 0.0
    %6531 = vmatmul.mubr.f32.gmra.mrb[0].mxu0 %v462
    %v6532 = vpop.f32.mrb[0].mxu0
    %v6533 = vadd.f32 %v6340, %v6532
    %v6534 = vpop.f32.mrb[0].mxu0
    %6535 = vmatprep.mubr.f32.mxu0 0.0
    %6536 = vmatmul.mubr.f32.gmra.mrb[0].mxu0 %v465
    %v6537 = vpop.f32.mrb[0].mxu0
    %v6538 = vadd.f32 %v6345, %v6537
    %v6539 = vpop.f32.mrb[0].mxu0
    %6540 = vmatprep.mubr.f32.mxu0 0.0
    %6541 = vmatmul.mubr.f32.gmra.mrb[0].mxu0 %v468
    %v6542 = vpop.f32.mrb[0].mxu0
    %v6543 = vadd.f32 %v6350, %v6542
    %v6544 = vpop.f32.mrb[0].mxu0
    %6545 = vmatprep.mubr.f32.mxu0 0.0
    %6546 = vmatmul.mubr.f32.gmra.mrb[0].mxu0 %v471
    %v6547 = vpop.f32.mrb[0].mxu0
    %v6548 = vadd.f32 %v6355, %v6547
    %v6549 = vpop.f32.mrb[0].mxu0
    %6550 = vmatprep.mubr.f32.mxu0 0.0
    %6551 = vmatmul.mubr.f32.gmra.mrb[0].mxu0 %v474
    %v6552 = vpop.f32.mrb[0].mxu0
    %v6553 = vadd.f32 %v6360, %v6552
    %v6554 = vpop.f32.mrb[0].mxu0
    %6555 = vmatprep.mubr.f32.mxu0 0.0
    %6556 = vmatmul.mubr.f32.gmra.mrb[0].mxu0 %v477
    %v6557 = vpop.f32.mrb[0].mxu0
    %v6558 = vadd.f32 %v6365, %v6557
    %v6559 = vpop.f32.mrb[0].mxu0
    %6560 = vmatprep.mubr.f32.mxu0 0.0
    %6561 = vmatmul.mubr.f32.gmra.mrb[0].mxu0 %v480
    %v6562 = vpop.f32.mrb[0].mxu0
    %v6563 = vadd.f32 %v6370, %v6562
    %v6564 = vpop.f32.mrb[0].mxu0
    %6565 = vmatprep.mubr.f32.mxu0 0.0
    %6566 = vmatmul.mubr.f32.gmra.mrb[0].mxu0 %v483
    %v6567 = vpop.f32.mrb[0].mxu0
    %v6568 = vadd.f32 %v6375, %v6567
    %v6569 = vpop.f32.mrb[0].mxu0
    %6570 = vmatprep.mubr.f32.mxu0 0.0
    %6571 = vmatmul.mubr.f32.gmra.mrb[0].mxu0 %v486
    %v6572 = vpop.f32.mrb[0].mxu0
    %v6573 = vadd.f32 %v6380, %v6572
    %v6574 = vpop.f32.mrb[0].mxu0
    %6575 = vmatprep.mubr.f32.mxu0 0.0
    %6576 = vmatmul.mubr.f32.gmra.mrb[0].mxu0 %v489
    %v6577 = vpop.f32.mrb[0].mxu0
    %v6578 = vadd.f32 %v6385, %v6577
    %v6579 = vpop.f32.mrb[0].mxu0
    %6580 = vmatprep.mubr.f32.mxu0 0.0
    %6581 = vmatmul.mubr.f32.gmra.mrb[0].mxu0 %v492
    %v6582 = vpop.f32.mrb[0].mxu0
    %v6583 = vadd.f32 %v6390, %v6582
    %v6584 = vpop.f32.mrb[0].mxu0
    %6585 = vmatprep.mubr.f32.mxu0 0.0
    %6586 = vmatmul.mubr.f32.gmra.mrb[0].mxu0 %v495
    %v6587 = vpop.f32.mrb[0].mxu0
    %v6588 = vadd.f32 %v6395, %v6587
    %v6589 = vpop.f32.mrb[0].mxu0
    %6590 = vmatprep.mubr.f32.mxu0 0.0
    %6591 = vmatmul.mubr.f32.gmra.mrb[0].mxu0 %v498
    %v6592 = vpop.f32.mrb[0].mxu0
    %v6593 = vadd.f32 %v6400, %v6592
    %v6594 = vpop.f32.mrb[0].mxu0
    %6595 = vdwg.mxu0
    %6596 = vmatprep.subr.mxu0 0.0
    %6597 = vmatpush1.msra.mxu0 %v6162
    %6598 = vmatprep.subr.mxu0 0.0
    %6599 = vmatpush1.msra.mxu0 %v6163
    %6600 = vmatprep.subr.mxu0 0.0
    %6601 = vmatpush1.msra.mxu0 %v6164
    %6602 = vmatprep.subr.mxu0 0.0
    %6603 = vmatpush1.msra.mxu0 %v6165
    %6604 = vmatprep.subr.mxu0 0.0
    %6605 = vmatpush1.msra.mxu0 0.0
    %6606 = vmatprep.subr.mxu0 0.0
    %6607 = vmatpush1.msra.mxu0 0.0
    %6608 = vmatprep.subr.mxu0 0.0
    %6609 = vmatpush1.msra.mxu0 0.0
    %6610 = vmatprep.subr.mxu0 0.0
    %6611 = vmatpush1.msra.mxu0 0.0
    %6612 = vmatprep.subr.mxu0 0.0
    %6613 = vmatpush1.msra.mxu0 0.0
    %6614 = vmatprep.subr.mxu0 0.0
    %6615 = vmatpush1.msra.mxu0 0.0
    %6616 = vmatprep.subr.mxu0 0.0
    %6617 = vmatpush1.msra.mxu0 0.0
    %6618 = vmatprep.subr.mxu0 0.0
    %6619 = vmatpush1.msra.mxu0 0.0
    %6620 = vmatprep.subr.mxu0 0.0
    %6621 = vmatpush1.msra.mxu0 0.0
    %6622 = vmatprep.subr.mxu0 0.0
    %6623 = vmatpush1.msra.mxu0 0.0
    %6624 = vmatprep.subr.mxu0 0.0
    %6625 = vmatpush1.msra.mxu0 0.0
    %6626 = vmatprep.subr.mxu0 0.0
    %6627 = vmatpush1.msra.mxu0 0.0
    %6628 = vmatprep.subr.mxu0 0.0
    %6629 = vmatpush1.msra.mxu0 0.0
    %6630 = vmatprep.subr.mxu0 0.0
    %6631 = vmatpush1.msra.mxu0 0.0
    %6632 = vmatprep.subr.mxu0 0.0
    %6633 = vmatpush1.msra.mxu0 0.0
    %6634 = vmatprep.subr.mxu0 0.0
    %6635 = vmatpush1.msra.mxu0 0.0
    %6636 = vmatprep.subr.mxu0 0.0
    %6637 = vmatpush1.msra.mxu0 0.0
    %6638 = vmatprep.subr.mxu0 0.0
    %6639 = vmatpush1.msra.mxu0 0.0
    %6640 = vmatprep.subr.mxu0 0.0
    %6641 = vmatpush1.msra.mxu0 0.0
    %6642 = vmatprep.subr.mxu0 0.0
    %6643 = vmatpush1.msra.mxu0 0.0
    %6644 = vmatprep.subr.mxu0 0.0
    %6645 = vmatpush1.msra.mxu0 0.0
    %6646 = vmatprep.subr.mxu0 0.0
    %6647 = vmatpush1.msra.mxu0 0.0
    %6648 = vmatprep.subr.mxu0 0.0
    %6649 = vmatpush1.msra.mxu0 0.0
    %6650 = vmatprep.subr.mxu0 0.0
    %6651 = vmatpush1.msra.mxu0 0.0
    %6652 = vmatprep.subr.mxu0 0.0
    %6653 = vmatpush1.msra.mxu0 0.0
    %6654 = vmatprep.subr.mxu0 0.0
    %6655 = vmatpush1.msra.mxu0 0.0
    %6656 = vmatprep.subr.mxu0 0.0
    %6657 = vmatpush1.msra.mxu0 0.0
    %6658 = vmatprep.subr.mxu0 0.0
    %6659 = vmatpush1.msra.mxu0 0.0
    %6660 = vmatprep.mubr.f32.mxu0 0.0
    %6661 = vmatmul.mubr.f32.gmra.mrb[0].mxu0 %v695
    %v6662 = vpop.f32.mrb[0].mxu0
    %v6663 = vadd.f32 0.0, %v6662
    %v6664 = vpop.f32.mrb[0].mxu0
    %6665 = vmatprep.mubr.f32.mxu0 0.0
    %6666 = vmatmul.mubr.f32.gmra.mrb[0].mxu0 %v698
    %v6667 = vpop.f32.mrb[0].mxu0
    %v6668 = vadd.f32 0.0, %v6667
    %v6669 = vpop.f32.mrb[0].mxu0
    %6670 = vmatprep.mubr.f32.mxu0 0.0
    %6671 = vmatmul.mubr.f32.gmra.mrb[0].mxu0 %v701
    %v6672 = vpop.f32.mrb[0].mxu0
    %v6673 = vadd.f32 0.0, %v6672
    %v6674 = vpop.f32.mrb[0].mxu0
    %6675 = vmatprep.mubr.f32.mxu0 0.0
    %6676 = vmatmul.mubr.f32.gmra.mrb[0].mxu0 %v704
    %v6677 = vpop.f32.mrb[0].mxu0
    %v6678 = vadd.f32 0.0, %v6677
    %v6679 = vpop.f32.mrb[0].mxu0
    %6680 = vmatprep.mubr.f32.mxu0 0.0
    %6681 = vmatmul.mubr.f32.gmra.mrb[0].mxu0 %v707
    %v6682 = vpop.f32.mrb[0].mxu0
    %v6683 = vadd.f32 0.0, %v6682
    %v6684 = vpop.f32.mrb[0].mxu0
    %6685 = vmatprep.mubr.f32.mxu0 0.0
    %6686 = vmatmul.mubr.f32.gmra.mrb[0].mxu0 %v710
    %v6687 = vpop.f32.mrb[0].mxu0
    %v6688 = vadd.f32 0.0, %v6687
    %v6689 = vpop.f32.mrb[0].mxu0
    %6690 = vmatprep.mubr.f32.mxu0 0.0
    %6691 = vmatmul.mubr.f32.gmra.mrb[0].mxu0 %v713
    %v6692 = vpop.f32.mrb[0].mxu0
    %v6693 = vadd.f32 0.0, %v6692
    %v6694 = vpop.f32.mrb[0].mxu0
    %6695 = vmatprep.mubr.f32.mxu0 0.0
    %6696 = vmatmul.mubr.f32.gmra.mrb[0].mxu0 %v716
    %v6697 = vpop.f32.mrb[0].mxu0
    %v6698 = vadd.f32 0.0, %v6697
    %v6699 = vpop.f32.mrb[0].mxu0
    %6700 = vmatprep.mubr.f32.mxu0 0.0
    %6701 = vmatmul.mubr.f32.gmra.mrb[0].mxu0 %v719
    %v6702 = vpop.f32.mrb[0].mxu0
    %v6703 = vadd.f32 0.0, %v6702
    %v6704 = vpop.f32.mrb[0].mxu0
    %6705 = vmatprep.mubr.f32.mxu0 0.0
    %6706 = vmatmul.mubr.f32.gmra.mrb[0].mxu0 %v722
    %v6707 = vpop.f32.mrb[0].mxu0
    %v6708 = vadd.f32 0.0, %v6707
    %v6709 = vpop.f32.mrb[0].mxu0
    %6710 = vmatprep.mubr.f32.mxu0 0.0
    %6711 = vmatmul.mubr.f32.gmra.mrb[0].mxu0 %v725
    %v6712 = vpop.f32.mrb[0].mxu0
    %v6713 = vadd.f32 0.0, %v6712
    %v6714 = vpop.f32.mrb[0].mxu0
    %6715 = vmatprep.mubr.f32.mxu0 0.0
    %6716 = vmatmul.mubr.f32.gmra.mrb[0].mxu0 %v728
    %v6717 = vpop.f32.mrb[0].mxu0
    %v6718 = vadd.f32 0.0, %v6717
    %v6719 = vpop.f32.mrb[0].mxu0
    %6720 = vmatprep.mubr.f32.mxu0 0.0
    %6721 = vmatmul.mubr.f32.gmra.mrb[0].mxu0 %v731
    %v6722 = vpop.f32.mrb[0].mxu0
    %v6723 = vadd.f32 0.0, %v6722
    %v6724 = vpop.f32.mrb[0].mxu0
    %6725 = vmatprep.mubr.f32.mxu0 0.0
    %6726 = vmatmul.mubr.f32.gmra.mrb[0].mxu0 %v734
    %v6727 = vpop.f32.mrb[0].mxu0
    %v6728 = vadd.f32 0.0, %v6727
    %v6729 = vpop.f32.mrb[0].mxu0
    %6730 = vmatprep.mubr.f32.mxu0 0.0
    %6731 = vmatmul.mubr.f32.gmra.mrb[0].mxu0 %v737
    %v6732 = vpop.f32.mrb[0].mxu0
    %v6733 = vadd.f32 0.0, %v6732
    %v6734 = vpop.f32.mrb[0].mxu0
    %6735 = vmatprep.mubr.f32.mxu0 0.0
    %6736 = vmatmul.mubr.f32.gmra.mrb[0].mxu0 %v740
    %v6737 = vpop.f32.mrb[0].mxu0
    %v6738 = vadd.f32 0.0, %v6737
    %v6739 = vpop.f32.mrb[0].mxu0
    %6740 = vdwg.mxu0
    %v6741 = vadd.f32 %v6518, %v6663
    %v6742 = vadd.f32 %v6523, %v6668
    %v6743 = vadd.f32 %v6528, %v6673
    %v6744 = vadd.f32 %v6533, %v6678
    %v6745 = vadd.f32 %v6538, %v6683
    %v6746 = vadd.f32 %v6543, %v6688
    %v6747 = vadd.f32 %v6548, %v6693
    %v6748 = vadd.f32 %v6553, %v6698
    %v6749 = vadd.f32 %v6558, %v6703
    %v6750 = vadd.f32 %v6563, %v6708
    %v6751 = vadd.f32 %v6568, %v6713
    %v6752 = vadd.f32 %v6573, %v6718
    %v6753 = vadd.f32 %v6578, %v6723
    %v6754 = vadd.f32 %v6583, %v6728
    %v6755 = vadd.f32 %v6588, %v6733
    %v6756 = vadd.f32 %v6593, %v6738
    %v6757 = vadd.f32 %v6741, %v91
    %v6758 = vadd.f32 %v6742, %v96
    %v6759 = vadd.f32 %v6743, %v101
    %v6760 = vadd.f32 %v6744, %v106
    %v6761 = vadd.f32 %v6745, %v111
    %v6762 = vadd.f32 %v6746, %v116
    %v6763 = vadd.f32 %v6747, %v121
    %v6764 = vadd.f32 %v6748, %v126
    %v6765 = vadd.f32 %v6749, %v131
    %v6766 = vadd.f32 %v6750, %v136
    %v6767 = vadd.f32 %v6751, %v141
    %v6768 = vadd.f32 %v6752, %v146
    %v6769 = vadd.f32 %v6753, %v151
    %v6770 = vadd.f32 %v6754, %v156
    %v6771 = vadd.f32 %v6755, %v161
    %v6772 = vadd.f32 %v6756, %v166
    %v6773 = vxor.u32 %v6757, 2147483648
    %v6774 = vxor.u32 %v6758, 2147483648
    %v6775 = vxor.u32 %v6759, 2147483648
    %v6776 = vxor.u32 %v6760, 2147483648
    %v6777 = vmul.f32 %v6773, 1.442695
    %v6778 = vpow.pop %v6777
    %v6779 = vmul.f32 %v6774, 1.442695
    %v6780 = vpow.pop %v6779
    %v6781 = vmul.f32 %v6775, 1.442695
    %v6782 = vpow.pop %v6781
    %v6783 = vmul.f32 %v6776, 1.442695
    %v6784 = vpow.pop %v6783
    %v6785 = vadd.f32 %v6778, 1.0
    %v6786 = vadd.f32 %v6780, 1.0
    %v6787 = vadd.f32 %v6782, 1.0
    %v6788 = vadd.f32 %v6784, 1.0
    %v6789 = vrcp.pop %v6785
    %v6790 = vmul.f32 1.0, %v6789
    %v6791 = vrcp.pop %v6786
    %v6792 = vmul.f32 1.0, %v6791
    %v6793 = vrcp.pop %v6787
    %v6794 = vmul.f32 1.0, %v6793
    %v6795 = vrcp.pop %v6788
    %v6796 = vmul.f32 1.0, %v6795
    %v6797 = vxor.u32 %v6761, 2147483648
    %v6798 = vxor.u32 %v6762, 2147483648
    %v6799 = vxor.u32 %v6763, 2147483648
    %v6800 = vxor.u32 %v6764, 2147483648
    %v6801 = vmul.f32 %v6797, 1.442695
    %v6802 = vpow.pop %v6801
    %v6803 = vmul.f32 %v6798, 1.442695
    %v6804 = vpow.pop %v6803
    %v6805 = vmul.f32 %v6799, 1.442695
    %v6806 = vpow.pop %v6805
    %v6807 = vmul.f32 %v6800, 1.442695
    %v6808 = vpow.pop %v6807
    %v6809 = vadd.f32 %v6802, 1.0
    %v6810 = vadd.f32 %v6804, 1.0
    %v6811 = vadd.f32 %v6806, 1.0
    %v6812 = vadd.f32 %v6808, 1.0
    %v6813 = vrcp.pop %v6809
    %v6814 = vmul.f32 1.0, %v6813
    %v6815 = vrcp.pop %v6810
    %v6816 = vmul.f32 1.0, %v6815
    %v6817 = vrcp.pop %v6811
    %v6818 = vmul.f32 1.0, %v6817
    %v6819 = vrcp.pop %v6812
    %v6820 = vmul.f32 1.0, %v6819
    %v6821 = vtanh.pop %v6765
    %v6822 = vtanh.pop %v6766
    %v6823 = vtanh.pop %v6767
    %v6824 = vtanh.pop %v6768
    %v6825 = vxor.u32 %v6769, 2147483648
    %v6826 = vxor.u32 %v6770, 2147483648
    %v6827 = vxor.u32 %v6771, 2147483648
    %v6828 = vxor.u32 %v6772, 2147483648
    %v6829 = vmul.f32 %v6825, 1.442695
    %v6830 = vpow.pop %v6829
    %v6831 = vmul.f32 %v6826, 1.442695
    %v6832 = vpow.pop %v6831
    %v6833 = vmul.f32 %v6827, 1.442695
    %v6834 = vpow.pop %v6833
    %v6835 = vmul.f32 %v6828, 1.442695
    %v6836 = vpow.pop %v6835
    %v6837 = vadd.f32 %v6830, 1.0
    %v6838 = vadd.f32 %v6832, 1.0
    %v6839 = vadd.f32 %v6834, 1.0
    %v6840 = vadd.f32 %v6836, 1.0
    %v6841 = vrcp.pop %v6837
    %v6842 = vmul.f32 1.0, %v6841
    %v6843 = vrcp.pop %v6838
    %v6844 = vmul.f32 1.0, %v6843
    %v6845 = vrcp.pop %v6839
    %v6846 = vmul.f32 1.0, %v6845
    %v6847 = vrcp.pop %v6840
    %v6848 = vmul.f32 1.0, %v6847
    %v6849 = vmul.f32 %v6814, %v6166
    %v6850 = vmul.f32 %v6816, %v6167
    %v6851 = vmul.f32 %v6818, %v6168
    %v6852 = vmul.f32 %v6820, %v6169
    %v6853 = vmul.f32 %v6790, %v6821
    %v6854 = vmul.f32 %v6792, %v6822
    %v6855 = vmul.f32 %v6794, %v6823
    %v6856 = vmul.f32 %v6796, %v6824
    %v6857 = vadd.f32 %v6849, %v6853
    %v6858 = vadd.f32 %v6850, %v6854
    %v6859 = vadd.f32 %v6851, %v6855
    %v6860 = vadd.f32 %v6852, %v6856
    %v6861 = vtanh.pop %v6857
    %v6862 = vtanh.pop %v6858
    %v6863 = vtanh.pop %v6859
    %v6864 = vtanh.pop %v6860
    %v6865 = vmul.f32 %v6842, %v6861
    %v6866 = vmul.f32 %v6844, %v6862
    %v6867 = vmul.f32 %v6846, %v6863
    %v6868 = vmul.f32 %v6848, %v6864
    %v6869 = vld [vmem:[%s1746] sm:$0x1]
    %v6870 = vld [vmem:[%s1744] sm:$0x1]
    %v6872 = vlaneseq
    %v6873 = vshrl.u32 %v6872, 7
    %v6874 = vsub.s32 0, %v6873
    %v6875 = vrot.slane %v6869, %v6874
    %v6878 = vlaneseq
    %v6879 = vshrl.u32 %v6878, 7
    %v6880 = vsub.s32 0, %v6879
    %v6881 = vrot.slane %v6870, %v6880
    %v6883 = vsel %vm173, %v6875, %v6881
    %v6884 = vsel %vm174, %v6875, %v6881
    %v6885 = vsel %vm175, %v6875, %v6881
    %v6886 = vsel %vm176, %v6875, %v6881
    %vm6887 = vcmp.gt.f32.partialorder %v6883, 0.5
    %vm6888 = vcmp.gt.f32.partialorder %v6884, 0.5
    %vm6889 = vcmp.gt.f32.partialorder %v6885, 0.5
    %vm6890 = vcmp.gt.f32.partialorder %v6886, 0.5
    %v6891 = vsel %vm6887, %v6865, %v6162
    %v6892 = vsel %vm6888, %v6866, %v6163
    %v6893 = vsel %vm6889, %v6867, %v6164
    %v6894 = vsel %vm6890, %v6868, %v6165
    %v6895 = vsel %vm6887, %v6857, %v6166
    %v6896 = vsel %vm6888, %v6858, %v6167
    %v6897 = vsel %vm6889, %v6859, %v6168
    %v6898 = vsel %vm6890, %v6860, %v6169
    %v6899 = vsel %vm6887, %v6865, 0.0
    %v6900 = vsel %vm6888, %v6866, 0.0
    %v6901 = vsel %vm6889, %v6867, 0.0
    %v6902 = vsel %vm6890, %v6868, 0.0
    %6903 = vst [vmem:[%s1783] sm:$0xff] %v6899
    %6904 = vst [vmem:[%s1783 + $0x8] sm:$0xff] %v6900
    %6905 = vst [vmem:[%s1780 + $0x10] sm:$0xff] %v6901
    %6906 = vst [vmem:[%s1780 + $0x18] sm:$0xff] %v6902
    %v6907 = vld [vmem:[%s193] sm:$0xff]
    %v6908 = vld [vmem:[%s193 + $0x8] sm:$0xff]
    %v6909 = vld [vmem:[%s193 + $0x10] sm:$0xff]
    %v6910 = vld [vmem:[%s193 + $0x18] sm:$0xff]
    %v6911 = vld [vmem:[%s193 + $0x20] sm:$0xff]
    %v6912 = vld [vmem:[%s193 + $0x28] sm:$0xff]
    %v6913 = vld [vmem:[%s193 + $0x30] sm:$0xff]
    %v6914 = vld [vmem:[%s193 + $0x38] sm:$0xff]
    %v6915 = vld [vmem:[%s193 + $0x40] sm:$0xff]
    %v6916 = vld [vmem:[%s193 + $0x48] sm:$0xff]
    %v6917 = vld [vmem:[%s193 + $0x50] sm:$0xff]
    %v6918 = vld [vmem:[%s193 + $0x58] sm:$0xff]
    %v6919 = vld [vmem:[%s193 + $0x60] sm:$0xff]
    %v6920 = vld [vmem:[%s193 + $0x68] sm:$0xff]
    %v6921 = vld [vmem:[%s193 + $0x70] sm:$0xff]
    %v6922 = vld [vmem:[%s193 + $0x78] sm:$0xff]
    %v6923 = vld [vmem:[%s0] sm:$0xff]
    %v6924 = vld [vmem:[%s0 + $0x8] sm:$0xff]
    %v6925 = vld [vmem:[%s0 + $0x10] sm:$0xff]
    %v6926 = vld [vmem:[%s0 + $0x18] sm:$0xff]
    %v6927 = vld [vmem:[%s0 + $0x20] sm:$0xff]
    %v6928 = vld [vmem:[%s0 + $0x28] sm:$0xff]
    %v6929 = vld [vmem:[%s0 + $0x30] sm:$0xff]
    %v6930 = vld [vmem:[%s0 + $0x38] sm:$0xff]
    %v6931 = vld [vmem:[%s0 + $0x40] sm:$0xff]
    %v6932 = vld [vmem:[%s0 + $0x48] sm:$0xff]
    %v6933 = vld [vmem:[%s0 + $0x50] sm:$0xff]
    %v6934 = vld [vmem:[%s0 + $0x58] sm:$0xff]
    %v6935 = vld [vmem:[%s0 + $0x60] sm:$0xff]
    %v6936 = vld [vmem:[%s0 + $0x68] sm:$0xff]
    %v6937 = vld [vmem:[%s0 + $0x70] sm:$0xff]
    %v6938 = vld [vmem:[%s0 + $0x78] sm:$0xff]
    %v6940 = vsel %vm210, %v6923, 0
    %v6943 = vsel %vm210, %v6924, 0
    %v6946 = vsel %vm210, %v6925, 0
    %v6949 = vsel %vm210, %v6926, 0
    %v6952 = vsel %vm210, %v6927, 0
    %v6955 = vsel %vm210, %v6928, 0
    %v6958 = vsel %vm210, %v6929, 0
    %v6961 = vsel %vm210, %v6930, 0
    %v6964 = vsel %vm210, %v6931, 0
    %v6967 = vsel %vm210, %v6932, 0
    %v6970 = vsel %vm210, %v6933, 0
    %v6973 = vsel %vm210, %v6934, 0
    %v6976 = vsel %vm210, %v6935, 0
    %v6979 = vsel %vm210, %v6936, 0
    %v6982 = vsel %vm210, %v6937, 0
    %v6985 = vsel %vm210, %v6938, 0
    %6987 = vmatprep.subr.mxu0 0.0
    %6988 = vmatpush1.xpose.msra.mxu0 %v6940
    %6989 = vmatprep.subr.mxu0 0.0
    %6990 = vmatpush1.xpose.msra.mxu0 %v6943
    %6991 = vmatprep.subr.mxu0 0.0
    %6992 = vmatpush1.xpose.msra.mxu0 %v6946
    %6993 = vmatprep.subr.mxu0 0.0
    %6994 = vmatpush1.xpose.msra.mxu0 %v6949
    %6995 = vmatprep.subr.mxu0 0.0
    %6996 = vmatpush1.xpose.msra.mxu0 %v6952
    %6997 = vmatprep.subr.mxu0 0.0
    %6998 = vmatpush1.xpose.msra.mxu0 %v6955
    %6999 = vmatprep.subr.mxu0 0.0
    %7000 = vmatpush1.xpose.msra.mxu0 %v6958
    %7001 = vmatprep.subr.mxu0 0.0
    %7002 = vmatpush1.xpose.msra.mxu0 %v6961
    %7003 = vmatprep.subr.mxu0 0.0
    %7004 = vmatpush1.xpose.msra.mxu0 %v6964
    %7005 = vmatprep.subr.mxu0 0.0
    %7006 = vmatpush1.xpose.msra.mxu0 %v6967
    %7007 = vmatprep.subr.mxu0 0.0
    %7008 = vmatpush1.xpose.msra.mxu0 %v6970
    %7009 = vmatprep.subr.mxu0 0.0
    %7010 = vmatpush1.xpose.msra.mxu0 %v6973
    %7011 = vmatprep.subr.mxu0 0.0
    %7012 = vmatpush1.xpose.msra.mxu0 %v6976
    %7013 = vmatprep.subr.mxu0 0.0
    %7014 = vmatpush1.xpose.msra.mxu0 %v6979
    %7015 = vmatprep.subr.mxu0 0.0
    %7016 = vmatpush1.xpose.msra.mxu0 %v6982
    %7017 = vmatprep.subr.mxu0 0.0
    %7018 = vmatpush1.xpose.msra.mxu0 %v6985
    %7019 = vmatprep.subr.mxu0 0.0
    %7020 = vmatpush1.xpose.msra.mxu0 0.0
    %7021 = vmatprep.subr.mxu0 0.0
    %7022 = vmatpush1.xpose.msra.mxu0 0.0
    %7023 = vmatprep.subr.mxu0 0.0
    %7024 = vmatpush1.xpose.msra.mxu0 0.0
    %7025 = vmatprep.subr.mxu0 0.0
    %7026 = vmatpush1.xpose.msra.mxu0 0.0
    %7027 = vmatprep.subr.mxu0 0.0
    %7028 = vmatpush1.xpose.msra.mxu0 0.0
    %7029 = vmatprep.subr.mxu0 0.0
    %7030 = vmatpush1.xpose.msra.mxu0 0.0
    %7031 = vmatprep.subr.mxu0 0.0
    %7032 = vmatpush1.xpose.msra.mxu0 0.0
    %7033 = vmatprep.subr.mxu0 0.0
    %7034 = vmatpush1.xpose.msra.mxu0 0.0
    %7035 = vmatprep.subr.mxu0 0.0
    %7036 = vmatpush1.xpose.msra.mxu0 0.0
    %7037 = vmatprep.subr.mxu0 0.0
    %7038 = vmatpush1.xpose.msra.mxu0 0.0
    %7039 = vmatprep.subr.mxu0 0.0
    %7040 = vmatpush1.xpose.msra.mxu0 0.0
    %7041 = vmatprep.subr.mxu0 0.0
    %7042 = vmatpush1.xpose.msra.mxu0 0.0
    %7043 = vmatprep.subr.mxu0 0.0
    %7044 = vmatpush1.xpose.msra.mxu0 0.0
    %7045 = vmatprep.subr.mxu0 0.0
    %7046 = vmatpush1.xpose.msra.mxu0 0.0
    %7047 = vmatprep.subr.mxu0 0.0
    %7048 = vmatpush1.xpose.msra.mxu0 0.0
    %7049 = vmatprep.subr.mxu0 0.0
    %7050 = vmatpush1.xpose.msra.mxu0 0.0
    %7051 = vmatprep.mubr.f32.mxu0 0.0
    %7052 = vmatmul.mubr.f32.gmra.mrb[0].mxu0 %v212
    %v7053 = vpop.f32.mrb[0].mxu0
    %v7054 = vadd.f32 0.0, %v7053
    %v7055 = vpop.f32.mrb[0].mxu0
    %7056 = vmatprep.mubr.f32.mxu0 0.0
    %7057 = vmatmul.mubr.f32.gmra.mrb[0].mxu0 %v215
    %v7058 = vpop.f32.mrb[0].mxu0
    %v7059 = vadd.f32 0.0, %v7058
    %v7060 = vpop.f32.mrb[0].mxu0
    %7061 = vmatprep.mubr.f32.mxu0 0.0
    %7062 = vmatmul.mubr.f32.gmra.mrb[0].mxu0 %v218
    %v7063 = vpop.f32.mrb[0].mxu0
    %v7064 = vadd.f32 0.0, %v7063
    %v7065 = vpop.f32.mrb[0].mxu0
    %7066 = vmatprep.mubr.f32.mxu0 0.0
    %7067 = vmatmul.mubr.f32.gmra.mrb[0].mxu0 %v221
    %v7068 = vpop.f32.mrb[0].mxu0
    %v7069 = vadd.f32 0.0, %v7068
    %v7070 = vpop.f32.mrb[0].mxu0
    %7071 = vmatprep.mubr.f32.mxu0 0.0
    %7072 = vmatmul.mubr.f32.gmra.mrb[0].mxu0 %v224
    %v7073 = vpop.f32.mrb[0].mxu0
    %v7074 = vadd.f32 0.0, %v7073
    %v7075 = vpop.f32.mrb[0].mxu0
    %7076 = vmatprep.mubr.f32.mxu0 0.0
    %7077 = vmatmul.mubr.f32.gmra.mrb[0].mxu0 %v227
    %v7078 = vpop.f32.mrb[0].mxu0
    %v7079 = vadd.f32 0.0, %v7078
    %v7080 = vpop.f32.mrb[0].mxu0
    %7081 = vmatprep.mubr.f32.mxu0 0.0
    %7082 = vmatmul.mubr.f32.gmra.mrb[0].mxu0 %v230
    %v7083 = vpop.f32.mrb[0].mxu0
    %v7084 = vadd.f32 0.0, %v7083
    %v7085 = vpop.f32.mrb[0].mxu0
    %7086 = vmatprep.mubr.f32.mxu0 0.0
    %7087 = vmatmul.mubr.f32.gmra.mrb[0].mxu0 %v233
    %v7088 = vpop.f32.mrb[0].mxu0
    %v7089 = vadd.f32 0.0, %v7088
    %v7090 = vpop.f32.mrb[0].mxu0
    %7091 = vmatprep.mubr.f32.mxu0 0.0
    %7092 = vmatmul.mubr.f32.gmra.mrb[0].mxu0 %v236
    %v7093 = vpop.f32.mrb[0].mxu0
    %v7094 = vadd.f32 0.0, %v7093
    %v7095 = vpop.f32.mrb[0].mxu0
    %7096 = vmatprep.mubr.f32.mxu0 0.0
    %7097 = vmatmul.mubr.f32.gmra.mrb[0].mxu0 %v239
    %v7098 = vpop.f32.mrb[0].mxu0
    %v7099 = vadd.f32 0.0, %v7098
    %v7100 = vpop.f32.mrb[0].mxu0
    %7101 = vmatprep.mubr.f32.mxu0 0.0
    %7102 = vmatmul.mubr.f32.gmra.mrb[0].mxu0 %v242
    %v7103 = vpop.f32.mrb[0].mxu0
    %v7104 = vadd.f32 0.0, %v7103
    %v7105 = vpop.f32.mrb[0].mxu0
    %7106 = vmatprep.mubr.f32.mxu0 0.0
    %7107 = vmatmul.mubr.f32.gmra.mrb[0].mxu0 %v245
    %v7108 = vpop.f32.mrb[0].mxu0
    %v7109 = vadd.f32 0.0, %v7108
    %v7110 = vpop.f32.mrb[0].mxu0
    %7111 = vmatprep.mubr.f32.mxu0 0.0
    %7112 = vmatmul.mubr.f32.gmra.mrb[0].mxu0 %v248
    %v7113 = vpop.f32.mrb[0].mxu0
    %v7114 = vadd.f32 0.0, %v7113
    %v7115 = vpop.f32.mrb[0].mxu0
    %7116 = vmatprep.mubr.f32.mxu0 0.0
    %7117 = vmatmul.mubr.f32.gmra.mrb[0].mxu0 %v251
    %v7118 = vpop.f32.mrb[0].mxu0
    %v7119 = vadd.f32 0.0, %v7118
    %v7120 = vpop.f32.mrb[0].mxu0
    %7121 = vmatprep.mubr.f32.mxu0 0.0
    %7122 = vmatmul.mubr.f32.gmra.mrb[0].mxu0 %v254
    %v7123 = vpop.f32.mrb[0].mxu0
    %v7124 = vadd.f32 0.0, %v7123
    %v7125 = vpop.f32.mrb[0].mxu0
    %7126 = vmatprep.mubr.f32.mxu0 0.0
    %7127 = vmatmul.mubr.f32.gmra.mrb[0].mxu0 %v257
    %v7128 = vpop.f32.mrb[0].mxu0
    %v7129 = vadd.f32 0.0, %v7128
    %v7130 = vpop.f32.mrb[0].mxu0
    %7131 = vdwg.mxu0
    %v7133 = vsel %vm210, %v6907, 0
    %v7136 = vsel %vm210, %v6908, 0
    %v7139 = vsel %vm210, %v6909, 0
    %v7142 = vsel %vm210, %v6910, 0
    %v7145 = vsel %vm210, %v6911, 0
    %v7148 = vsel %vm210, %v6912, 0
    %v7151 = vsel %vm210, %v6913, 0
    %v7154 = vsel %vm210, %v6914, 0
    %v7157 = vsel %vm210, %v6915, 0
    %v7160 = vsel %vm210, %v6916, 0
    %v7163 = vsel %vm210, %v6917, 0
    %v7166 = vsel %vm210, %v6918, 0
    %v7169 = vsel %vm210, %v6919, 0
    %v7172 = vsel %vm210, %v6920, 0
    %v7175 = vsel %vm210, %v6921, 0
    %v7178 = vsel %vm210, %v6922, 0
    %7180 = vmatprep.subr.mxu0 0.0
    %7181 = vmatpush1.xpose.msra.mxu0 %v7133
    %7182 = vmatprep.subr.mxu0 0.0
    %7183 = vmatpush1.xpose.msra.mxu0 %v7136
    %7184 = vmatprep.subr.mxu0 0.0
    %7185 = vmatpush1.xpose.msra.mxu0 %v7139
    %7186 = vmatprep.subr.mxu0 0.0
    %7187 = vmatpush1.xpose.msra.mxu0 %v7142
    %7188 = vmatprep.subr.mxu0 0.0
    %7189 = vmatpush1.xpose.msra.mxu0 %v7145
    %7190 = vmatprep.subr.mxu0 0.0
    %7191 = vmatpush1.xpose.msra.mxu0 %v7148
    %7192 = vmatprep.subr.mxu0 0.0
    %7193 = vmatpush1.xpose.msra.mxu0 %v7151
    %7194 = vmatprep.subr.mxu0 0.0
    %7195 = vmatpush1.xpose.msra.mxu0 %v7154
    %7196 = vmatprep.subr.mxu0 0.0
    %7197 = vmatpush1.xpose.msra.mxu0 %v7157
    %7198 = vmatprep.subr.mxu0 0.0
    %7199 = vmatpush1.xpose.msra.mxu0 %v7160
    %7200 = vmatprep.subr.mxu0 0.0
    %7201 = vmatpush1.xpose.msra.mxu0 %v7163
    %7202 = vmatprep.subr.mxu0 0.0
    %7203 = vmatpush1.xpose.msra.mxu0 %v7166
    %7204 = vmatprep.subr.mxu0 0.0
    %7205 = vmatpush1.xpose.msra.mxu0 %v7169
    %7206 = vmatprep.subr.mxu0 0.0
    %7207 = vmatpush1.xpose.msra.mxu0 %v7172
    %7208 = vmatprep.subr.mxu0 0.0
    %7209 = vmatpush1.xpose.msra.mxu0 %v7175
    %7210 = vmatprep.subr.mxu0 0.0
    %7211 = vmatpush1.xpose.msra.mxu0 %v7178
    %7212 = vmatprep.subr.mxu0 0.0
    %7213 = vmatpush1.xpose.msra.mxu0 0.0
    %7214 = vmatprep.subr.mxu0 0.0
    %7215 = vmatpush1.xpose.msra.mxu0 0.0
    %7216 = vmatprep.subr.mxu0 0.0
    %7217 = vmatpush1.xpose.msra.mxu0 0.0
    %7218 = vmatprep.subr.mxu0 0.0
    %7219 = vmatpush1.xpose.msra.mxu0 0.0
    %7220 = vmatprep.subr.mxu0 0.0
    %7221 = vmatpush1.xpose.msra.mxu0 0.0
    %7222 = vmatprep.subr.mxu0 0.0
    %7223 = vmatpush1.xpose.msra.mxu0 0.0
    %7224 = vmatprep.subr.mxu0 0.0
    %7225 = vmatpush1.xpose.msra.mxu0 0.0
    %7226 = vmatprep.subr.mxu0 0.0
    %7227 = vmatpush1.xpose.msra.mxu0 0.0
    %7228 = vmatprep.subr.mxu0 0.0
    %7229 = vmatpush1.xpose.msra.mxu0 0.0
    %7230 = vmatprep.subr.mxu0 0.0
    %7231 = vmatpush1.xpose.msra.mxu0 0.0
    %7232 = vmatprep.subr.mxu0 0.0
    %7233 = vmatpush1.xpose.msra.mxu0 0.0
    %7234 = vmatprep.subr.mxu0 0.0
    %7235 = vmatpush1.xpose.msra.mxu0 0.0
    %7236 = vmatprep.subr.mxu0 0.0
    %7237 = vmatpush1.xpose.msra.mxu0 0.0
    %7238 = vmatprep.subr.mxu0 0.0
    %7239 = vmatpush1.xpose.msra.mxu0 0.0
    %7240 = vmatprep.subr.mxu0 0.0
    %7241 = vmatpush1.xpose.msra.mxu0 0.0
    %7242 = vmatprep.subr.mxu0 0.0
    %7243 = vmatpush1.xpose.msra.mxu0 0.0
    %7244 = vmatprep.mubr.f32.mxu0 0.0
    %7245 = vmatmul.mubr.f32.gmra.mrb[0].mxu0 %v453
    %v7246 = vpop.f32.mrb[0].mxu0
    %v7247 = vadd.f32 %v7054, %v7246
    %v7248 = vpop.f32.mrb[0].mxu0
    %7249 = vmatprep.mubr.f32.mxu0 0.0
    %7250 = vmatmul.mubr.f32.gmra.mrb[0].mxu0 %v456
    %v7251 = vpop.f32.mrb[0].mxu0
    %v7252 = vadd.f32 %v7059, %v7251
    %v7253 = vpop.f32.mrb[0].mxu0
    %7254 = vmatprep.mubr.f32.mxu0 0.0
    %7255 = vmatmul.mubr.f32.gmra.mrb[0].mxu0 %v459
    %v7256 = vpop.f32.mrb[0].mxu0
    %v7257 = vadd.f32 %v7064, %v7256
    %v7258 = vpop.f32.mrb[0].mxu0
    %7259 = vmatprep.mubr.f32.mxu0 0.0
    %7260 = vmatmul.mubr.f32.gmra.mrb[0].mxu0 %v462
    %v7261 = vpop.f32.mrb[0].mxu0
    %v7262 = vadd.f32 %v7069, %v7261
    %v7263 = vpop.f32.mrb[0].mxu0
    %7264 = vmatprep.mubr.f32.mxu0 0.0
    %7265 = vmatmul.mubr.f32.gmra.mrb[0].mxu0 %v465
    %v7266 = vpop.f32.mrb[0].mxu0
    %v7267 = vadd.f32 %v7074, %v7266
    %v7268 = vpop.f32.mrb[0].mxu0
    %7269 = vmatprep.mubr.f32.mxu0 0.0
    %7270 = vmatmul.mubr.f32.gmra.mrb[0].mxu0 %v468
    %v7271 = vpop.f32.mrb[0].mxu0
    %v7272 = vadd.f32 %v7079, %v7271
    %v7273 = vpop.f32.mrb[0].mxu0
    %7274 = vmatprep.mubr.f32.mxu0 0.0
    %7275 = vmatmul.mubr.f32.gmra.mrb[0].mxu0 %v471
    %v7276 = vpop.f32.mrb[0].mxu0
    %v7277 = vadd.f32 %v7084, %v7276
    %v7278 = vpop.f32.mrb[0].mxu0
    %7279 = vmatprep.mubr.f32.mxu0 0.0
    %7280 = vmatmul.mubr.f32.gmra.mrb[0].mxu0 %v474
    %v7281 = vpop.f32.mrb[0].mxu0
    %v7282 = vadd.f32 %v7089, %v7281
    %v7283 = vpop.f32.mrb[0].mxu0
    %7284 = vmatprep.mubr.f32.mxu0 0.0
    %7285 = vmatmul.mubr.f32.gmra.mrb[0].mxu0 %v477
    %v7286 = vpop.f32.mrb[0].mxu0
    %v7287 = vadd.f32 %v7094, %v7286
    %v7288 = vpop.f32.mrb[0].mxu0
    %7289 = vmatprep.mubr.f32.mxu0 0.0
    %7290 = vmatmul.mubr.f32.gmra.mrb[0].mxu0 %v480
    %v7291 = vpop.f32.mrb[0].mxu0
    %v7292 = vadd.f32 %v7099, %v7291
    %v7293 = vpop.f32.mrb[0].mxu0
    %7294 = vmatprep.mubr.f32.mxu0 0.0
    %7295 = vmatmul.mubr.f32.gmra.mrb[0].mxu0 %v483
    %v7296 = vpop.f32.mrb[0].mxu0
    %v7297 = vadd.f32 %v7104, %v7296
    %v7298 = vpop.f32.mrb[0].mxu0
    %7299 = vmatprep.mubr.f32.mxu0 0.0
    %7300 = vmatmul.mubr.f32.gmra.mrb[0].mxu0 %v486
    %v7301 = vpop.f32.mrb[0].mxu0
    %v7302 = vadd.f32 %v7109, %v7301
    %v7303 = vpop.f32.mrb[0].mxu0
    %7304 = vmatprep.mubr.f32.mxu0 0.0
    %7305 = vmatmul.mubr.f32.gmra.mrb[0].mxu0 %v489
    %v7306 = vpop.f32.mrb[0].mxu0
    %v7307 = vadd.f32 %v7114, %v7306
    %v7308 = vpop.f32.mrb[0].mxu0
    %7309 = vmatprep.mubr.f32.mxu0 0.0
    %7310 = vmatmul.mubr.f32.gmra.mrb[0].mxu0 %v492
    %v7311 = vpop.f32.mrb[0].mxu0
    %v7312 = vadd.f32 %v7119, %v7311
    %v7313 = vpop.f32.mrb[0].mxu0
    %7314 = vmatprep.mubr.f32.mxu0 0.0
    %7315 = vmatmul.mubr.f32.gmra.mrb[0].mxu0 %v495
    %v7316 = vpop.f32.mrb[0].mxu0
    %v7317 = vadd.f32 %v7124, %v7316
    %v7318 = vpop.f32.mrb[0].mxu0
    %7319 = vmatprep.mubr.f32.mxu0 0.0
    %7320 = vmatmul.mubr.f32.gmra.mrb[0].mxu0 %v498
    %v7321 = vpop.f32.mrb[0].mxu0
    %v7322 = vadd.f32 %v7129, %v7321
    %v7323 = vpop.f32.mrb[0].mxu0
    %7324 = vdwg.mxu0
    %7325 = vmatprep.subr.mxu0 0.0
    %7326 = vmatpush1.msra.mxu0 %v6891
    %7327 = vmatprep.subr.mxu0 0.0
    %7328 = vmatpush1.msra.mxu0 %v6892
    %7329 = vmatprep.subr.mxu0 0.0
    %7330 = vmatpush1.msra.mxu0 %v6893
    %7331 = vmatprep.subr.mxu0 0.0
    %7332 = vmatpush1.msra.mxu0 %v6894
    %7333 = vmatprep.subr.mxu0 0.0
    %7334 = vmatpush1.msra.mxu0 0.0
    %7335 = vmatprep.subr.mxu0 0.0
    %7336 = vmatpush1.msra.mxu0 0.0
    %7337 = vmatprep.subr.mxu0 0.0
    %7338 = vmatpush1.msra.mxu0 0.0
    %7339 = vmatprep.subr.mxu0 0.0
    %7340 = vmatpush1.msra.mxu0 0.0
    %7341 = vmatprep.subr.mxu0 0.0
    %7342 = vmatpush1.msra.mxu0 0.0
    %7343 = vmatprep.subr.mxu0 0.0
    %7344 = vmatpush1.msra.mxu0 0.0
    %7345 = vmatprep.subr.mxu0 0.0
    %7346 = vmatpush1.msra.mxu0 0.0
    %7347 = vmatprep.subr.mxu0 0.0
    %7348 = vmatpush1.msra.mxu0 0.0
    %7349 = vmatprep.subr.mxu0 0.0
    %7350 = vmatpush1.msra.mxu0 0.0
    %7351 = vmatprep.subr.mxu0 0.0
    %7352 = vmatpush1.msra.mxu0 0.0
    %7353 = vmatprep.subr.mxu0 0.0
    %7354 = vmatpush1.msra.mxu0 0.0
    %7355 = vmatprep.subr.mxu0 0.0
    %7356 = vmatpush1.msra.mxu0 0.0
    %7357 = vmatprep.subr.mxu0 0.0
    %7358 = vmatpush1.msra.mxu0 0.0
    %7359 = vmatprep.subr.mxu0 0.0
    %7360 = vmatpush1.msra.mxu0 0.0
    %7361 = vmatprep.subr.mxu0 0.0
    %7362 = vmatpush1.msra.mxu0 0.0
    %7363 = vmatprep.subr.mxu0 0.0
    %7364 = vmatpush1.msra.mxu0 0.0
    %7365 = vmatprep.subr.mxu0 0.0
    %7366 = vmatpush1.msra.mxu0 0.0
    %7367 = vmatprep.subr.mxu0 0.0
    %7368 = vmatpush1.msra.mxu0 0.0
    %7369 = vmatprep.subr.mxu0 0.0
    %7370 = vmatpush1.msra.mxu0 0.0
    %7371 = vmatprep.subr.mxu0 0.0
    %7372 = vmatpush1.msra.mxu0 0.0
    %7373 = vmatprep.subr.mxu0 0.0
    %7374 = vmatpush1.msra.mxu0 0.0
    %7375 = vmatprep.subr.mxu0 0.0
    %7376 = vmatpush1.msra.mxu0 0.0
    %7377 = vmatprep.subr.mxu0 0.0
    %7378 = vmatpush1.msra.mxu0 0.0
    %7379 = vmatprep.subr.mxu0 0.0
    %7380 = vmatpush1.msra.mxu0 0.0
    %7381 = vmatprep.subr.mxu0 0.0
    %7382 = vmatpush1.msra.mxu0 0.0
    %7383 = vmatprep.subr.mxu0 0.0
    %7384 = vmatpush1.msra.mxu0 0.0
    %7385 = vmatprep.subr.mxu0 0.0
    %7386 = vmatpush1.msra.mxu0 0.0
    %7387 = vmatprep.subr.mxu0 0.0
    %7388 = vmatpush1.msra.mxu0 0.0
    %7389 = vmatprep.mubr.f32.mxu0 0.0
    %7390 = vmatmul.mubr.f32.gmra.mrb[0].mxu0 %v695
    %v7391 = vpop.f32.mrb[0].mxu0
    %v7392 = vadd.f32 0.0, %v7391
    %v7393 = vpop.f32.mrb[0].mxu0
    %7394 = vmatprep.mubr.f32.mxu0 0.0
    %7395 = vmatmul.mubr.f32.gmra.mrb[0].mxu0 %v698
    %v7396 = vpop.f32.mrb[0].mxu0
    %v7397 = vadd.f32 0.0, %v7396
    %v7398 = vpop.f32.mrb[0].mxu0
    %7399 = vmatprep.mubr.f32.mxu0 0.0
    %7400 = vmatmul.mubr.f32.gmra.mrb[0].mxu0 %v701
    %v7401 = vpop.f32.mrb[0].mxu0
    %v7402 = vadd.f32 0.0, %v7401
    %v7403 = vpop.f32.mrb[0].mxu0
    %7404 = vmatprep.mubr.f32.mxu0 0.0
    %7405 = vmatmul.mubr.f32.gmra.mrb[0].mxu0 %v704
    %v7406 = vpop.f32.mrb[0].mxu0
    %v7407 = vadd.f32 0.0, %v7406
    %v7408 = vpop.f32.mrb[0].mxu0
    %7409 = vmatprep.mubr.f32.mxu0 0.0
    %7410 = vmatmul.mubr.f32.gmra.mrb[0].mxu0 %v707
    %v7411 = vpop.f32.mrb[0].mxu0
    %v7412 = vadd.f32 0.0, %v7411
    %v7413 = vpop.f32.mrb[0].mxu0
    %7414 = vmatprep.mubr.f32.mxu0 0.0
    %7415 = vmatmul.mubr.f32.gmra.mrb[0].mxu0 %v710
    %v7416 = vpop.f32.mrb[0].mxu0
    %v7417 = vadd.f32 0.0, %v7416
    %v7418 = vpop.f32.mrb[0].mxu0
    %7419 = vmatprep.mubr.f32.mxu0 0.0
    %7420 = vmatmul.mubr.f32.gmra.mrb[0].mxu0 %v713
    %v7421 = vpop.f32.mrb[0].mxu0
    %v7422 = vadd.f32 0.0, %v7421
    %v7423 = vpop.f32.mrb[0].mxu0
    %7424 = vmatprep.mubr.f32.mxu0 0.0
    %7425 = vmatmul.mubr.f32.gmra.mrb[0].mxu0 %v716
    %v7426 = vpop.f32.mrb[0].mxu0
    %v7427 = vadd.f32 0.0, %v7426
    %v7428 = vpop.f32.mrb[0].mxu0
    %7429 = vmatprep.mubr.f32.mxu0 0.0
    %7430 = vmatmul.mubr.f32.gmra.mrb[0].mxu0 %v719
    %v7431 = vpop.f32.mrb[0].mxu0
    %v7432 = vadd.f32 0.0, %v7431
    %v7433 = vpop.f32.mrb[0].mxu0
    %7434 = vmatprep.mubr.f32.mxu0 0.0
    %7435 = vmatmul.mubr.f32.gmra.mrb[0].mxu0 %v722
    %v7436 = vpop.f32.mrb[0].mxu0
    %v7437 = vadd.f32 0.0, %v7436
    %v7438 = vpop.f32.mrb[0].mxu0
    %7439 = vmatprep.mubr.f32.mxu0 0.0
    %7440 = vmatmul.mubr.f32.gmra.mrb[0].mxu0 %v725
    %v7441 = vpop.f32.mrb[0].mxu0
    %v7442 = vadd.f32 0.0, %v7441
    %v7443 = vpop.f32.mrb[0].mxu0
    %7444 = vmatprep.mubr.f32.mxu0 0.0
    %7445 = vmatmul.mubr.f32.gmra.mrb[0].mxu0 %v728
    %v7446 = vpop.f32.mrb[0].mxu0
    %v7447 = vadd.f32 0.0, %v7446
    %v7448 = vpop.f32.mrb[0].mxu0
    %7449 = vmatprep.mubr.f32.mxu0 0.0
    %7450 = vmatmul.mubr.f32.gmra.mrb[0].mxu0 %v731
    %v7451 = vpop.f32.mrb[0].mxu0
    %v7452 = vadd.f32 0.0, %v7451
    %v7453 = vpop.f32.mrb[0].mxu0
    %7454 = vmatprep.mubr.f32.mxu0 0.0
    %7455 = vmatmul.mubr.f32.gmra.mrb[0].mxu0 %v734
    %v7456 = vpop.f32.mrb[0].mxu0
    %v7457 = vadd.f32 0.0, %v7456
    %v7458 = vpop.f32.mrb[0].mxu0
    %7459 = vmatprep.mubr.f32.mxu0 0.0
    %7460 = vmatmul.mubr.f32.gmra.mrb[0].mxu0 %v737
    %v7461 = vpop.f32.mrb[0].mxu0
    %v7462 = vadd.f32 0.0, %v7461
    %v7463 = vpop.f32.mrb[0].mxu0
    %7464 = vmatprep.mubr.f32.mxu0 0.0
    %7465 = vmatmul.mubr.f32.gmra.mrb[0].mxu0 %v740
    %v7466 = vpop.f32.mrb[0].mxu0
    %v7467 = vadd.f32 0.0, %v7466
    %v7468 = vpop.f32.mrb[0].mxu0
    %7469 = vdwg.mxu0
    %v7470 = vadd.f32 %v7247, %v7392
    %v7471 = vadd.f32 %v7252, %v7397
    %v7472 = vadd.f32 %v7257, %v7402
    %v7473 = vadd.f32 %v7262, %v7407
    %v7474 = vadd.f32 %v7267, %v7412
    %v7475 = vadd.f32 %v7272, %v7417
    %v7476 = vadd.f32 %v7277, %v7422
    %v7477 = vadd.f32 %v7282, %v7427
    %v7478 = vadd.f32 %v7287, %v7432
    %v7479 = vadd.f32 %v7292, %v7437
    %v7480 = vadd.f32 %v7297, %v7442
    %v7481 = vadd.f32 %v7302, %v7447
    %v7482 = vadd.f32 %v7307, %v7452
    %v7483 = vadd.f32 %v7312, %v7457
    %v7484 = vadd.f32 %v7317, %v7462
    %v7485 = vadd.f32 %v7322, %v7467
    %v7486 = vadd.f32 %v7470, %v91
    %v7487 = vadd.f32 %v7471, %v96
    %v7488 = vadd.f32 %v7472, %v101
    %v7489 = vadd.f32 %v7473, %v106
    %v7490 = vadd.f32 %v7474, %v111
    %v7491 = vadd.f32 %v7475, %v116
    %v7492 = vadd.f32 %v7476, %v121
    %v7493 = vadd.f32 %v7477, %v126
    %v7494 = vadd.f32 %v7478, %v131
    %v7495 = vadd.f32 %v7479, %v136
    %v7496 = vadd.f32 %v7480, %v141
    %v7497 = vadd.f32 %v7481, %v146
    %v7498 = vadd.f32 %v7482, %v151
    %v7499 = vadd.f32 %v7483, %v156
    %v7500 = vadd.f32 %v7484, %v161
    %v7501 = vadd.f32 %v7485, %v166
    %v7502 = vxor.u32 %v7486, 2147483648
    %v7503 = vxor.u32 %v7487, 2147483648
    %v7504 = vxor.u32 %v7488, 2147483648
    %v7505 = vxor.u32 %v7489, 2147483648
    %v7506 = vmul.f32 %v7502, 1.442695
    %v7507 = vpow.pop %v7506
    %v7508 = vmul.f32 %v7503, 1.442695
    %v7509 = vpow.pop %v7508
    %v7510 = vmul.f32 %v7504, 1.442695
    %v7511 = vpow.pop %v7510
    %v7512 = vmul.f32 %v7505, 1.442695
    %v7513 = vpow.pop %v7512
    %v7514 = vadd.f32 %v7507, 1.0
    %v7515 = vadd.f32 %v7509, 1.0
    %v7516 = vadd.f32 %v7511, 1.0
    %v7517 = vadd.f32 %v7513, 1.0
    %v7518 = vrcp.pop %v7514
    %v7519 = vmul.f32 1.0, %v7518
    %v7520 = vrcp.pop %v7515
    %v7521 = vmul.f32 1.0, %v7520
    %v7522 = vrcp.pop %v7516
    %v7523 = vmul.f32 1.0, %v7522
    %v7524 = vrcp.pop %v7517
    %v7525 = vmul.f32 1.0, %v7524
    %v7526 = vxor.u32 %v7490, 2147483648
    %v7527 = vxor.u32 %v7491, 2147483648
    %v7528 = vxor.u32 %v7492, 2147483648
    %v7529 = vxor.u32 %v7493, 2147483648
    %v7530 = vmul.f32 %v7526, 1.442695
    %v7531 = vpow.pop %v7530
    %v7532 = vmul.f32 %v7527, 1.442695
    %v7533 = vpow.pop %v7532
    %v7534 = vmul.f32 %v7528, 1.442695
    %v7535 = vpow.pop %v7534
    %v7536 = vmul.f32 %v7529, 1.442695
    %v7537 = vpow.pop %v7536
    %v7538 = vadd.f32 %v7531, 1.0
    %v7539 = vadd.f32 %v7533, 1.0
    %v7540 = vadd.f32 %v7535, 1.0
    %v7541 = vadd.f32 %v7537, 1.0
    %v7542 = vrcp.pop %v7538
    %v7543 = vmul.f32 1.0, %v7542
    %v7544 = vrcp.pop %v7539
    %v7545 = vmul.f32 1.0, %v7544
    %v7546 = vrcp.pop %v7540
    %v7547 = vmul.f32 1.0, %v7546
    %v7548 = vrcp.pop %v7541
    %v7549 = vmul.f32 1.0, %v7548
    %v7550 = vtanh.pop %v7494
    %v7551 = vtanh.pop %v7495
    %v7552 = vtanh.pop %v7496
    %v7553 = vtanh.pop %v7497
    %v7554 = vxor.u32 %v7498, 2147483648
    %v7555 = vxor.u32 %v7499, 2147483648
    %v7556 = vxor.u32 %v7500, 2147483648
    %v7557 = vxor.u32 %v7501, 2147483648
    %v7558 = vmul.f32 %v7554, 1.442695
    %v7559 = vpow.pop %v7558
    %v7560 = vmul.f32 %v7555, 1.442695
    %v7561 = vpow.pop %v7560
    %v7562 = vmul.f32 %v7556, 1.442695
    %v7563 = vpow.pop %v7562
    %v7564 = vmul.f32 %v7557, 1.442695
    %v7565 = vpow.pop %v7564
    %v7566 = vadd.f32 %v7559, 1.0
    %v7567 = vadd.f32 %v7561, 1.0
    %v7568 = vadd.f32 %v7563, 1.0
    %v7569 = vadd.f32 %v7565, 1.0
    %v7570 = vrcp.pop %v7566
    %v7571 = vmul.f32 1.0, %v7570
    %v7572 = vrcp.pop %v7567
    %v7573 = vmul.f32 1.0, %v7572
    %v7574 = vrcp.pop %v7568
    %v7575 = vmul.f32 1.0, %v7574
    %v7576 = vrcp.pop %v7569
    %v7577 = vmul.f32 1.0, %v7576
    %v7578 = vmul.f32 %v7543, %v6895
    %v7579 = vmul.f32 %v7545, %v6896
    %v7580 = vmul.f32 %v7547, %v6897
    %v7581 = vmul.f32 %v7549, %v6898
    %v7582 = vmul.f32 %v7519, %v7550
    %v7583 = vmul.f32 %v7521, %v7551
    %v7584 = vmul.f32 %v7523, %v7552
    %v7585 = vmul.f32 %v7525, %v7553
    %v7586 = vadd.f32 %v7578, %v7582
    %v7587 = vadd.f32 %v7579, %v7583
    %v7588 = vadd.f32 %v7580, %v7584
    %v7589 = vadd.f32 %v7581, %v7585
    %v7590 = vtanh.pop %v7586
    %v7591 = vtanh.pop %v7587
    %v7592 = vtanh.pop %v7588
    %v7593 = vtanh.pop %v7589
    %v7594 = vmul.f32 %v7571, %v7590
    %v7595 = vmul.f32 %v7573, %v7591
    %v7596 = vmul.f32 %v7575, %v7592
    %v7597 = vmul.f32 %v7577, %v7593
    %v7598 = vld [vmem:[%s1016] sm:$0x1]
    %v7599 = vld [vmem:[%s1] sm:$0x1]
    %v7601 = vlaneseq
    %v7602 = vshrl.u32 %v7601, 7
    %v7603 = vsub.s32 0, %v7602
    %v7604 = vrot.slane %v7598, %v7603
    %v7607 = vlaneseq
    %v7608 = vshrl.u32 %v7607, 7
    %v7609 = vsub.s32 0, %v7608
    %v7610 = vrot.slane %v7599, %v7609
    %v7612 = vsel %vm173, %v7604, %v7610
    %v7613 = vsel %vm174, %v7604, %v7610
    %v7614 = vsel %vm175, %v7604, %v7610
    %v7615 = vsel %vm176, %v7604, %v7610
    %vm7616 = vcmp.gt.f32.partialorder %v7612, 0.5
    %vm7617 = vcmp.gt.f32.partialorder %v7613, 0.5
    %vm7618 = vcmp.gt.f32.partialorder %v7614, 0.5
    %vm7619 = vcmp.gt.f32.partialorder %v7615, 0.5
    %v7620 = vsel %vm7616, %v7594, 0.0
    %v7621 = vsel %vm7617, %v7595, 0.0
    %v7622 = vsel %vm7618, %v7596, 0.0
    %v7623 = vsel %vm7619, %v7597, 0.0
    %7624 = vst [vmem:[%s1048] sm:$0xff] %v7620
    %7625 = vst [vmem:[%s1048 + $0x8] sm:$0xff] %v7621
    %7626 = vst [vmem:[#allocation2 + $0x10] sm:$0xff] %v7622
    %7627 = vst [vmem:[#allocation2 + $0x18] sm:$0xff] %v7623
    // Predicated region
    $region26: #{tpu_custom_call.1} parent=1 // pred_check
      _
    $region27: #{tpu_custom_call.1} parent=1 // pred_check_branch
      %7629 = sbr.rel (0) target = $region29
    $region28: #{tpu_custom_call.1} parent=1 // pred_region
      %s7631 = ssub.s32 5120, 5120
      %7632 = vsyncadd [#allocation3], %s7631
      %s7633 = sshll.u32 [#allocation2], 4
      %s7634 = int_to_ptr.vmem [resolvable:$true] %s7633
      %7639 = dma.vmem_to_hbm [thread:$0]  %s7634, 5120, %s6, [#allocation3], 128, 128, 8
    $region29: #{tpu_custom_call.1} parent=1 // pred_fallthru
      _
    // Predicated region
    $region30: #{tpu_custom_call.1} parent=1 // pred_check
      _
    $region31: #{tpu_custom_call.1} parent=1 // pred_check_branch
      %7641 = sbr.rel (0) target = $region33
    $region32: #{tpu_custom_call.1} parent=1 // pred_region
      %7642 = dma.done [#allocation3], 5120
    $region33: #{tpu_custom_call.1} parent=1 // pred_fallthru
      _
    %7643 = vsyncpa [#allocation3], 1

</llo_original>
